<compile_context>
chip_gen: v7x
topology: tpu7x:2x2x1
jax: 0.10.0
libtpu: 0.0.40
codegen_flags: <defaults>
</compile_context>

<pallas_src>
import functools
import math

import jax
import jax.numpy as jnp
from jax.experimental import pallas as pl
from jax.experimental.pallas import tpu as pltpu

NEG_INF = float("-inf")
LANE = 128
SUBLANE = 8


def _round_up(n, m):
    return ((n + m - 1) // m) * m


# ----------------------------- parameter packing -----------------------------

class _Packer:
    """Packs 2-D weights into one (rows, width) slab and 1-D vectors into one
    (n, width) slab; matrix row offsets are 8-aligned for sublane-aligned slices."""

    def __init__(self):
        self._mats = []     # (array, row_offset)
        self._vecs = []     # (array, row_index)
        self._wrows = 0
        self._vrows = 0
        self._width = 1

    def mat(self, a, cols=None):
        a = jnp.asarray(a, jnp.float32)
        ncols = int(a.shape[1] if cols is None else cols)
        self._width = max(self._width, ncols)
        off = self._wrows
        self._mats.append((a, off))
        self._wrows += _round_up(int(a.shape[0]), SUBLANE)
        return ("W", off, int(a.shape[0]), ncols)

    def vec(self, a, cols=None):
        a = jnp.asarray(a, jnp.float32)
        ncols = int(a.shape[0] if cols is None else cols)
        self._width = max(self._width, ncols)
        idx = self._vrows
        self._vecs.append((a, idx))
        self._vrows += 1
        return ("V", idx, ncols)

    def build(self):
        width = _round_up(self._width, LANE)
        wr = max(_round_up(self._wrows, SUBLANE), SUBLANE)
        vr = max(_round_up(self._vrows, SUBLANE), SUBLANE)
        wslab = jnp.zeros((wr, width), jnp.float32)
        for a, off in self._mats:
            wslab = wslab.at[off:off + a.shape[0], :a.shape[1]].set(a)
        vslab = jnp.zeros((vr, width), jnp.float32)
        for a, idx in self._vecs:
            vslab = vslab.at[idx, :a.shape[0]].set(a)
        return wslab, vslab


def _pack_params(params, pos, out_pad):
    p = _Packer()

    def mha(mp):
        return {"Wq": p.mat(mp["Wq"]), "bq": p.vec(mp["bq"]),
                "Wo": p.mat(mp["Wo"]), "bo": p.vec(mp["bo"])}

    def ffn_ln(lp, n_ln):
        d = {"W1": p.mat(lp["ffn"]["W1"]), "b1": p.vec(lp["ffn"]["b1"]),
             "W2": p.mat(lp["ffn"]["W2"]), "b2": p.vec(lp["ffn"]["b2"])}
        for i in range(1, n_ln + 1):
            d[f"ln{i}_g"] = p.vec(lp[f"ln{i}_g"])
            d[f"ln{i}_b"] = p.vec(lp[f"ln{i}_b"])
        return d

    layout = {
        "embed_w": p.mat(params["embed"][0]),
        "embed_b": p.vec(params["embed"][1]),
        "pos": p.mat(pos),
        "encoder": [], "decoder": [],
        "out_w": p.mat(params["out"][0], cols=out_pad),   # zero-padded -> lane-dense out
        "out_b": p.vec(params["out"][1], cols=out_pad),
    }
    for lp in params["encoder"]:
        e = {"mha": mha(lp["mha"])}
        e.update(ffn_ln(lp, 2))
        layout["encoder"].append(e)
    for lp in params["decoder"]:
        d = {"mha1": mha(lp["mha1"]), "mha2": mha(lp["mha2"])}
        d.update(ffn_ln(lp, 3))
        layout["decoder"].append(d)

    wslab, vslab = p.build()
    return wslab, vslab, layout


# ----------------------------- fused Pallas kernel -----------------------------

def _generator_kernel(x_ref, mask_ref, w_ref, v_ref, out_ref, *, layout, heads, d_k):
    x = x_ref[0]              # (L, d_in)  — this batch element
    keymask = mask_ref[0]     # (1, L)     — 1 = observed, 0 = missing (key axis)
    L = x.shape[0]
    scale = 1.0 / math.sqrt(L)     # reference quirk: 1/sqrt(seq_len), not 1/sqrt(d_k)

    def W(e):                 # 2-D weight slice out of the packed slab
        _, off, rows, cols = e
        return w_ref[off:off + rows, :cols]

    def V(e):                 # (1, cols) bias / LN row out of the packed slab
        _, idx, cols = e
        return v_ref[idx:idx + 1, :cols]

    # ---- attention mask biases, hoisted: built once per grid step ----
    key_bias = jnp.where(keymask == 0.0, NEG_INF, 0.0)            # (1, L) -> bcast (H,L,L)
    row = jax.lax.broadcasted_iota(jnp.int32, (L, L), 0)
    col = jax.lax.broadcasted_iota(jnp.int32, (L, L), 1)
    causal_bias = jnp.where(col > row, NEG_INF, 0.0)              # (L, L)

    def dense(v, w_e, b_e, relu=False):
        y = jnp.dot(v, W(w_e), preferred_element_type=jnp.float32) + V(b_e)
        return jnp.maximum(y, 0.0) if relu else y

    def layer_norm(v, g_e, b_e):    # torch LayerNorm: biased variance, eps=1e-5
        mean = jnp.mean(v, axis=-1, keepdims=True)
        var = jnp.mean(jnp.square(v - mean), axis=-1, keepdims=True)
        return (v - mean) * jax.lax.rsqrt(var + 1e-5) * V(g_e) + V(b_e)

    def split_heads(z):             # (L, H*dk) -> (H, L, dk) via lane slices + stack
        return jnp.stack([z[:, h * d_k:(h + 1) * d_k] for h in range(heads)], axis=0)

    def mha(q_in, kv_in, mp, causal):
        """kv_in=None -> self-attention.  Reference quirk: W_q projects q, k AND v,
        so each distinct projection is computed exactly once."""
        q_all = jnp.dot(q_in, W(mp["Wq"]), preferred_element_type=jnp.float32) + V(mp["bq"])
        qh = split_heads(q_all)                               # (H, L, dk)
        if kv_in is None:
            kvh = qh                                          # q == k == v projection
        else:
            kv_all = jnp.dot(kv_in, W(mp["Wq"]),
                             preferred_element_type=jnp.float32) + V(mp["bq"])
            kvh = split_heads(kv_all)
        # head-batched score / weighted-value matmuls (2 MXU calls instead of 2*heads)
        s = jnp.einsum("hqd,hkd->hqk", qh, kvh,
                       preferred_element_type=jnp.float32) * scale
        s = s + key_bias
        if causal:
            s = s + causal_bias
        m = jnp.max(s, axis=-1, keepdims=True)
        e = jnp.exp(s - m)
        prob = e * pl.reciprocal(jnp.sum(e, axis=-1, keepdims=True), approx=True)
        o = jnp.einsum("hqk,hkd->hqd", prob, kvh,
                       preferred_element_type=jnp.float32)    # (H, L, dv)
        # head-concat + W_o folded into per-head row blocks of W_o (dv == dk here).
        Wo = W(mp["Wo"])                                      # (H*dv, d_model)
        total = None
        for h in range(heads):
            c = jnp.dot(o[h], Wo[h * d_k:(h + 1) * d_k, :],
                        preferred_element_type=jnp.float32)
            total = c if total is None else total + c
        return total + V(mp["bo"])

    # embedding + positional encoding
    hid = dense(x, layout["embed_w"], layout["embed_b"]) + W(layout["pos"])

    enc = hid
    for lp in layout["encoder"]:
        a = mha(enc, None, lp["mha"], causal=False)
        enc = layer_norm(a + enc, lp["ln1_g"], lp["ln1_b"])
        f = dense(dense(enc, lp["W1"], lp["b1"], relu=True), lp["W2"], lp["b2"])
        enc = layer_norm(f + enc, lp["ln2_g"], lp["ln2_b"])

    dec = enc
    for lp in layout["decoder"]:
        a = mha(dec, None, lp["mha1"], causal=True)
        dec = layer_norm(a + dec, lp["ln1_g"], lp["ln1_b"])
        a = mha(dec, enc, lp["mha2"], causal=False)
        dec = layer_norm(a + dec, lp["ln2_g"], lp["ln2_b"])
        f = dense(dense(dec, lp["W1"], lp["b1"], relu=True), lp["W2"], lp["b2"])
        dec = layer_norm(f + dec, lp["ln3_g"], lp["ln3_b"])

    # lane-dense (L, out_pad) store; wrapper slices back to d_out.
    out_ref[0] = dense(dec, layout["out_w"], layout["out_b"], relu=True)


# ----------------------------- wrapper -----------------------------

def position_encoding(length, d_model):
    pos = jnp.arange(length, dtype=jnp.float32)[:, None]
    even = jnp.arange(0, d_model, 2, dtype=jnp.float32)
    odd = jnp.arange(1, d_model, 2, dtype=jnp.float32)
    enc = jnp.zeros((length, d_model), dtype=jnp.float32)
    enc = enc.at[:, 0::2].set(jnp.sin(pos / jnp.power(10000.0, even / d_model)))
    enc = enc.at[:, 1::2].set(jnp.cos(pos / jnp.power(10000.0, odd / d_model)))
    return enc


def _cost_estimate(B, L, d_in, d_model, d_hidden, d_k, heads, n_enc, n_dec,
                   out_pad, wslab, vslab, x, mask):
    hk = heads * d_k
    proj = 2 * L * d_model * hk
    attn = 2 * (2 * heads * L * L * d_k)          # scores + weighted values
    wo = 2 * L * hk * d_model
    mha_self = proj + attn + wo                   # shared q/k/v projection -> one matmul
    mha_cross = 2 * proj + attn + wo
    ffn = 2 * 2 * L * d_model * d_hidden
    flops_b = (2 * L * d_in * d_model
               + n_enc * (mha_self + ffn)
               + n_dec * (mha_self + mha_cross + ffn)
               + 2 * L * d_model * out_pad)
    transc_b = heads * L * L * (n_enc + 2 * n_dec) + L * (2 * n_enc + 3 * n_dec)
    bytes_accessed = 4 * (x.size + mask.size + wslab.size + vslab.size + B * L * out_pad)
    return pl.CostEstimate(flops=int(B * flops_b),
                           transcendentals=int(B * transc_b),
                           bytes_accessed=int(bytes_accessed))


def generator_forward(params, x, missing_mask, heads):
    B, L, d_in = x.shape
    d_model = params["embed"][0].shape[1]
    d_hidden = params["encoder"][0]["ffn"]["W1"].shape[1]
    d_out = params["out"][0].shape[1]
    d_k = params["encoder"][0]["mha"]["Wq"].shape[1] // heads
    # Reference reuses W_q for values, so W_o must consume heads*d_k features.
    assert params["encoder"][0]["mha"]["Wo"].shape[0] == heads * d_k

    out_pad = _round_up(d_out, LANE)                           # lane-dense output width
    pos = position_encoding(L, d_model)                        # (L, d_model)
    mask = missing_mask.reshape(B, 1, L).astype(jnp.float32)   # key-axis mask

    wslab, vslab, layout = _pack_params(params, pos, out_pad)

    kernel = functools.partial(_generator_kernel, layout=layout, heads=heads, d_k=d_k)
    cost = _cost_estimate(B, L, d_in, d_model, d_hidden, d_k, heads,
                          len(params["encoder"]), len(params["decoder"]),
                          out_pad, wslab, vslab, x, mask)

    out = pl.pallas_call(
        kernel,
        out_shape=jax.ShapeDtypeStruct((B, L, out_pad), jnp.float32),
        grid=(B,),
        in_specs=[
            pl.BlockSpec((1, L, d_in), lambda b: (b, 0, 0)),
            pl.BlockSpec((1, 1, L), lambda b: (b, 0, 0)),
            pl.BlockSpec(wslab.shape, lambda b: (0, 0)),   # resident across all grid steps
            pl.BlockSpec(vslab.shape, lambda b: (0, 0)),   # (fetched once; tiny footprint)
        ],
        out_specs=pl.BlockSpec((1, L, out_pad), lambda b: (b, 0, 0)),
        compiler_params=pltpu.CompilerParams(
            dimension_semantics=("parallel",),
            vmem_limit_bytes=64 * 1024 * 1024,
        ),
        cost_estimate=cost,
    )(x, mask, wslab, vslab)
    return out[:, :, :d_out]


# ----------------------------- deterministic init -----------------------------

def _init_linear(key, d_in_, d_out_):
    k1, k2 = jax.random.split(key)
    bound = 1.0 / math.sqrt(d_in_)
    w = jax.random.uniform(k1, (d_in_, d_out_), jnp.float32, -bound, bound)
    b = jax.random.uniform(k2, (d_out_,), jnp.float32, -bound, bound)
    return w, b


def init_params(key, num_layer, d_in, d_model, d_hidden, d_out, d_k, d_v, heads):
    keys = iter(jax.random.split(key, 64))
    lin = lambda di, do: _init_linear(next(keys), di, do)

    def mha():  # only W_q / W_o are ever used by the reference forward
        wq, bq = lin(d_model, heads * d_k)
        wo, bo = lin(heads * d_v, d_model)
        return {"Wq": wq, "bq": bq, "Wo": wo, "bo": bo}

    def ffn():
        w1, b1 = lin(d_model, d_hidden)
        w2, b2 = lin(d_hidden, d_model)
        return {"W1": w1, "b1": b1, "W2": w2, "b2": b2}

    def ln():
        return jnp.ones((d_model,), jnp.float32), jnp.zeros((d_model,), jnp.float32)

    params = {"embed": lin(d_in, d_model), "encoder": [], "decoder": []}
    for _ in range(num_layer):
        g1, b1 = ln(); g2, b2 = ln()
        params["encoder"].append({"mha": mha(), "ffn": ffn(),
                                  "ln1_g": g1, "ln1_b": b1,
                                  "ln2_g": g2, "ln2_b": b2})
    for _ in range(num_layer):
        g1, b1 = ln(); g2, b2 = ln(); g3, b3 = ln()
        params["decoder"].append({"mha1": mha(), "mha2": mha(), "ffn": ffn(),
                                  "ln1_g": g1, "ln1_b": b1,
                                  "ln2_g": g2, "ln2_b": b2,
                                  "ln3_g": g3, "ln3_b": b3})
    params["out"] = lin(d_model, d_out)
    return params


# ----------------------------- main -----------------------------

if __name__ == "__main__":
    num_layer, d_in, d_model, d_hidden, d_out = 2, 4, 32, 64, 4
    d_k = d_v = 8
    heads = 4
    B, L = 2, 8

    root = jax.random.PRNGKey(0)
    kp, kx = jax.random.split(root)
    params = init_params(kp, num_layer, d_in, d_model, d_hidden, d_out, d_k, d_v, heads)

    x = jax.random.normal(kx, (B, L, d_in), jnp.float32)
    # missing_mask: (B, L, 1), 1 = observed, 0 = missing; last two timesteps missing.
    # (Every query row still sees at least one visible key, so no 0/0 NaN rows here.)
    missing_mask = jnp.ones((B, L, 1), jnp.float32).at[:, -2:, :].set(0.0)

    out = generator_forward(params, x, missing_mask, heads)
    jax.block_until_ready(out)
    assert out.shape == (B, L, d_out)
    assert bool(jnp.all(jnp.isfinite(out)))
    print("KERNEL_OK")
</pallas_src>

<mosaic_0001>
module attributes {stable_mosaic.version = 11 : i64} {
  func.func @_generator_kernel(%arg0: i32, %arg1: memref<1x8x4xf32, #tpu.memory_space<vmem>>, %arg2: memref<1x1x8xf32, #tpu.memory_space<vmem>>, %arg3: memref<816x128xf32, #tpu.memory_space<vmem>>, %arg4: memref<48x128xf32, #tpu.memory_space<vmem>>, %arg5: memref<1x8x128xf32, #tpu.memory_space<vmem>>) attributes {dimension_semantics = [#tpu.dimension_semantics<parallel>], iteration_bounds = array<i64: 2>, scalar_prefetch = 0 : i64, scratch_operands = 0 : i64, tpu.core_type = #tpu.core_type<tc>, window_params = [{transform_indices = @transform_0, window_bounds = array<i64: 1, 8, 4>}, {transform_indices = @transform_1, window_bounds = array<i64: 1, 1, 8>}, {pipeline_mode = #tpu.pipeline_mode<synchronous>, transform_indices = @transform_2, window_bounds = array<i64: 816, 128>}, {pipeline_mode = #tpu.pipeline_mode<synchronous>, transform_indices = @transform_3, window_bounds = array<i64: 48, 128>}, {transform_indices = @transform_4, window_bounds = array<i64: 1, 8, 128>}]} {
    %c0 = arith.constant 0 : index
    %c0_0 = arith.constant 0 : index
    %c0_1 = arith.constant 0 : index
    %0 = vector.load %arg1[%c0, %c0_0, %c0_1] : memref<1x8x4xf32, #tpu.memory_space<vmem>>, vector<1x8x4xf32>
    %1 = vector.shape_cast %0 : vector<1x8x4xf32> to vector<8x4xf32>
    %c0_2 = arith.constant 0 : index
    %c0_3 = arith.constant 0 : index
    %c0_4 = arith.constant 0 : index
    %2 = vector.load %arg2[%c0_2, %c0_3, %c0_4] : memref<1x1x8xf32, #tpu.memory_space<vmem>>, vector<1x1x8xf32>
    %3 = vector.shape_cast %2 : vector<1x1x8xf32> to vector<1x8xf32>
    %cst = arith.constant 0.000000e+00 : f32
    %4 = vector.broadcast %cst : f32 to vector<1x8xf32>
    %5 = arith.cmpf oeq, %3, %4 : vector<1x8xf32>
    %cst_5 = arith.constant 0xFF800000 : f32
    %cst_6 = arith.constant 0.000000e+00 : f32
    %6 = vector.broadcast %cst_5 : f32 to vector<1x8xf32>
    %7 = vector.broadcast %cst_6 : f32 to vector<1x8xf32>
    %8 = arith.select %5, %6, %7 : vector<1x8xi1>, vector<1x8xf32>
    %9 = tpu.iota {dimensions = array<i32: 0>} : vector<8x8xi32>
    %10 = tpu.iota {dimensions = array<i32: 1>} : vector<8x8xi32>
    %11 = arith.cmpi sgt, %10, %9 : vector<8x8xi32>
    %cst_7 = arith.constant 0xFF800000 : f32
    %cst_8 = arith.constant 0.000000e+00 : f32
    %12 = vector.broadcast %cst_7 : f32 to vector<8x8xf32>
    %13 = vector.broadcast %cst_8 : f32 to vector<8x8xf32>
    %14 = arith.select %11, %12, %13 : vector<8x8xi1>, vector<8x8xf32>
    %c0_9 = arith.constant 0 : index
    %c0_10 = arith.constant 0 : index
    %15 = vector.load %arg3[%c0_9, %c0_10] : memref<816x128xf32, #tpu.memory_space<vmem>>, vector<4x32xf32>
    %cst_11 = arith.constant dense<0.000000e+00> : vector<8x32xf32>
    %16 = tpu.matmul %1, %15, %cst_11 {dimension_numbers = #tpu.dot_dimension_numbers<[1], [0], [0], [1], [0, 0, 1, 1], [], []>} : vector<8x4xf32>, vector<4x32xf32>, vector<8x32xf32> -> vector<8x32xf32>
    %c0_12 = arith.constant 0 : index
    %c0_13 = arith.constant 0 : index
    %17 = vector.load %arg4[%c0_12, %c0_13] : memref<48x128xf32, #tpu.memory_space<vmem>>, vector<1x32xf32>
    %18 = vector.broadcast %17 : vector<1x32xf32> to vector<8x32xf32>
    %19 = arith.addf %16, %18 : vector<8x32xf32>
    %c8 = arith.constant 8 : index
    %c0_14 = arith.constant 0 : index
    %20 = vector.load %arg3[%c8, %c0_14] : memref<816x128xf32, #tpu.memory_space<vmem>>, vector<8x32xf32>
    %21 = arith.addf %19, %20 : vector<8x32xf32>
    %c48 = arith.constant 48 : index
    %c0_15 = arith.constant 0 : index
    %22 = vector.load %arg3[%c48, %c0_15] : memref<816x128xf32, #tpu.memory_space<vmem>>, vector<32x32xf32>
    %cst_16 = arith.constant dense<0.000000e+00> : vector<8x32xf32>
    %23 = tpu.matmul %21, %22, %cst_16 {dimension_numbers = #tpu.dot_dimension_numbers<[1], [0], [0], [1], [0, 0, 1, 1], [], []>} : vector<8x32xf32>, vector<32x32xf32>, vector<8x32xf32> -> vector<8x32xf32>
    %c2 = arith.constant 2 : index
    %c0_17 = arith.constant 0 : index
    %24 = vector.load %arg4[%c2, %c0_17] : memref<48x128xf32, #tpu.memory_space<vmem>>, vector<1x32xf32>
    %25 = vector.broadcast %24 : vector<1x32xf32> to vector<8x32xf32>
    %26 = arith.addf %23, %25 : vector<8x32xf32>
    %27 = vector.extract_strided_slice %26 {offsets = [0, 0], sizes = [8, 8], strides = [1, 1]} : vector<8x32xf32> to vector<8x8xf32>
    %28 = vector.extract_strided_slice %26 {offsets = [0, 8], sizes = [8, 8], strides = [1, 1]} : vector<8x32xf32> to vector<8x8xf32>
    %29 = vector.extract_strided_slice %26 {offsets = [0, 16], sizes = [8, 8], strides = [1, 1]} : vector<8x32xf32> to vector<8x8xf32>
    %30 = vector.extract_strided_slice %26 {offsets = [0, 24], sizes = [8, 8], strides = [1, 1]} : vector<8x32xf32> to vector<8x8xf32>
    %31 = vector.shape_cast %27 : vector<8x8xf32> to vector<1x8x8xf32>
    %32 = vector.shape_cast %28 : vector<8x8xf32> to vector<1x8x8xf32>
    %33 = vector.shape_cast %29 : vector<8x8xf32> to vector<1x8x8xf32>
    %34 = vector.shape_cast %30 : vector<8x8xf32> to vector<1x8x8xf32>
    %35 = tpu.concatenate %31, %32, %33, %34 in 0 : vector<1x8x8xf32>, vector<1x8x8xf32>, vector<1x8x8xf32>, vector<1x8x8xf32> -> vector<4x8x8xf32>
    "tpu.trace_start"() <{level = 10 : i32, message = "hqd,hkd->hqk"}> : () -> ()
    %cst_18 = arith.constant dense<0.000000e+00> : vector<4x8x8xf32>
    %36 = tpu.matmul %35, %35, %cst_18 {dimension_numbers = #tpu.dot_dimension_numbers<[2], [2], [1], [1], [0, 0, 0, 1, 1, 1], [0], [0]>} : vector<4x8x8xf32>, vector<4x8x8xf32>, vector<4x8x8xf32> -> vector<4x8x8xf32>
    "tpu.trace_stop"() : () -> ()
    %cst_19 = arith.constant 0.353553385 : f32
    %37 = vector.broadcast %cst_19 : f32 to vector<4x8x8xf32>
    %38 = arith.mulf %36, %37 : vector<4x8x8xf32>
    %39 = vector.shape_cast %8 : vector<1x8xf32> to vector<1x1x8xf32>
    %40 = vector.broadcast %39 : vector<1x1x8xf32> to vector<4x8x8xf32>
    %41 = arith.addf %38, %40 : vector<4x8x8xf32>
    %cst_20 = arith.constant dense<0xFF800000> : vector<4x8xf32>
    %42 = vector.multi_reduction <maximumf>, %41, %cst_20 [2] : vector<4x8x8xf32> to vector<4x8xf32>
    %43 = vector.shape_cast %42 : vector<4x8xf32> to vector<4x8x1xf32>
    %44 = vector.broadcast %43 : vector<4x8x1xf32> to vector<4x8x8xf32>
    %45 = arith.subf %41, %44 : vector<4x8x8xf32>
    %46 = math.exp %45 : vector<4x8x8xf32>
    %cst_21 = arith.constant dense<0.000000e+00> : vector<4x8xf32>
    %47 = vector.multi_reduction <add>, %46, %cst_21 [2] : vector<4x8x8xf32> to vector<4x8xf32>
    %48 = vector.shape_cast %47 : vector<4x8xf32> to vector<4x8x1xf32>
    %49 = tpu.reciprocal %48 {approx = true} : vector<4x8x1xf32> -> vector<4x8x1xf32>
    %50 = vector.broadcast %49 : vector<4x8x1xf32> to vector<4x8x8xf32>
    %51 = arith.mulf %46, %50 : vector<4x8x8xf32>
    "tpu.trace_start"() <{level = 10 : i32, message = "hqk,hkd->hqd"}> : () -> ()
    %cst_22 = arith.constant dense<0.000000e+00> : vector<4x8x8xf32>
    %52 = tpu.matmul %51, %35, %cst_22 {dimension_numbers = #tpu.dot_dimension_numbers<[2], [1], [1], [2], [0, 0, 0, 1, 1, 2], [0], [0]>} : vector<4x8x8xf32>, vector<4x8x8xf32>, vector<4x8x8xf32> -> vector<4x8x8xf32>
    "tpu.trace_stop"() : () -> ()
    %c80 = arith.constant 80 : index
    %c0_23 = arith.constant 0 : index
    %53 = vector.load %arg3[%c80, %c0_23] : memref<816x128xf32, #tpu.memory_space<vmem>>, vector<32x32xf32>
    %54 = vector.extract_strided_slice %52 {offsets = [0, 0, 0], sizes = [1, 8, 8], strides = [1, 1, 1]} : vector<4x8x8xf32> to vector<1x8x8xf32>
    %55 = vector.shape_cast %54 : vector<1x8x8xf32> to vector<8x8xf32>
    %56 = vector.extract_strided_slice %53 {offsets = [0, 0], sizes = [8, 32], strides = [1, 1]} : vector<32x32xf32> to vector<8x32xf32>
    %cst_24 = arith.constant dense<0.000000e+00> : vector<8x32xf32>
    %57 = tpu.matmul %55, %56, %cst_24 {dimension_numbers = #tpu.dot_dimension_numbers<[1], [0], [0], [1], [0, 0, 1, 1], [], []>} : vector<8x8xf32>, vector<8x32xf32>, vector<8x32xf32> -> vector<8x32xf32>
    %58 = vector.extract_strided_slice %52 {offsets = [1, 0, 0], sizes = [1, 8, 8], strides = [1, 1, 1]} : vector<4x8x8xf32> to vector<1x8x8xf32>
    %59 = vector.shape_cast %58 : vector<1x8x8xf32> to vector<8x8xf32>
    %60 = vector.extract_strided_slice %53 {offsets = [8, 0], sizes = [8, 32], strides = [1, 1]} : vector<32x32xf32> to vector<8x32xf32>
    %cst_25 = arith.constant dense<0.000000e+00> : vector<8x32xf32>
    %61 = tpu.matmul %59, %60, %cst_25 {dimension_numbers = #tpu.dot_dimension_numbers<[1], [0], [0], [1], [0, 0, 1, 1], [], []>} : vector<8x8xf32>, vector<8x32xf32>, vector<8x32xf32> -> vector<8x32xf32>
    %62 = arith.addf %57, %61 : vector<8x32xf32>
    %63 = vector.extract_strided_slice %52 {offsets = [2, 0, 0], sizes = [1, 8, 8], strides = [1, 1, 1]} : vector<4x8x8xf32> to vector<1x8x8xf32>
    %64 = vector.shape_cast %63 : vector<1x8x8xf32> to vector<8x8xf32>
    %65 = vector.extract_strided_slice %53 {offsets = [16, 0], sizes = [8, 32], strides = [1, 1]} : vector<32x32xf32> to vector<8x32xf32>
    %cst_26 = arith.constant dense<0.000000e+00> : vector<8x32xf32>
    %66 = tpu.matmul %64, %65, %cst_26 {dimension_numbers = #tpu.dot_dimension_numbers<[1], [0], [0], [1], [0, 0, 1, 1], [], []>} : vector<8x8xf32>, vector<8x32xf32>, vector<8x32xf32> -> vector<8x32xf32>
    %67 = arith.addf %62, %66 : vector<8x32xf32>
    %68 = vector.extract_strided_slice %52 {offsets = [3, 0, 0], sizes = [1, 8, 8], strides = [1, 1, 1]} : vector<4x8x8xf32> to vector<1x8x8xf32>
    %69 = vector.shape_cast %68 : vector<1x8x8xf32> to vector<8x8xf32>
    %70 = vector.extract_strided_slice %53 {offsets = [24, 0], sizes = [8, 32], strides = [1, 1]} : vector<32x32xf32> to vector<8x32xf32>
    %cst_27 = arith.constant dense<0.000000e+00> : vector<8x32xf32>
    %71 = tpu.matmul %69, %70, %cst_27 {dimension_numbers = #tpu.dot_dimension_numbers<[1], [0], [0], [1], [0, 0, 1, 1], [], []>} : vector<8x8xf32>, vector<8x32xf32>, vector<8x32xf32> -> vector<8x32xf32>
    %72 = arith.addf %67, %71 : vector<8x32xf32>
    %c3 = arith.constant 3 : index
    %c0_28 = arith.constant 0 : index
    %73 = vector.load %arg4[%c3, %c0_28] : memref<48x128xf32, #tpu.memory_space<vmem>>, vector<1x32xf32>
    %74 = vector.broadcast %73 : vector<1x32xf32> to vector<8x32xf32>
    %75 = arith.addf %72, %74 : vector<8x32xf32>
    %76 = arith.addf %75, %21 : vector<8x32xf32>
    %cst_29 = arith.constant dense<0.000000e+00> : vector<8xf32>
    %77 = vector.multi_reduction <add>, %76, %cst_29 [1] : vector<8x32xf32> to vector<8xf32>
    %78 = vector.shape_cast %77 : vector<8xf32> to vector<8x1xf32>
    %cst_30 = arith.constant 3.200000e+01 : f32
    %79 = vector.broadcast %cst_30 : f32 to vector<8x1xf32>
    %80 = arith.divf %78, %79 : vector<8x1xf32>
    %81 = vector.broadcast %80 : vector<8x1xf32> to vector<8x32xf32>
    %82 = arith.subf %76, %81 : vector<8x32xf32>
    %83 = arith.mulf %82, %82 : vector<8x32xf32>
    %cst_31 = arith.constant dense<0.000000e+00> : vector<8xf32>
    %84 = vector.multi_reduction <add>, %83, %cst_31 [1] : vector<8x32xf32> to vector<8xf32>
    %85 = vector.shape_cast %84 : vector<8xf32> to vector<8x1xf32>
    %cst_32 = arith.constant 3.200000e+01 : f32
    %86 = vector.broadcast %cst_32 : f32 to vector<8x1xf32>
    %87 = arith.divf %85, %86 : vector<8x1xf32>
    %88 = vector.broadcast %80 : vector<8x1xf32> to vector<8x32xf32>
    %89 = arith.subf %76, %88 : vector<8x32xf32>
    %cst_33 = arith.constant 9.99999974E-6 : f32
    %90 = vector.broadcast %cst_33 : f32 to vector<8x1xf32>
    %91 = arith.addf %87, %90 : vector<8x1xf32>
    %92 = math.rsqrt %91 : vector<8x1xf32>
    %93 = vector.broadcast %92 : vector<8x1xf32> to vector<8x32xf32>
    %94 = arith.mulf %89, %93 : vector<8x32xf32>
    %c6 = arith.constant 6 : index
    %c0_34 = arith.constant 0 : index
    %95 = vector.load %arg4[%c6, %c0_34] : memref<48x128xf32, #tpu.memory_space<vmem>>, vector<1x32xf32>
    %96 = vector.broadcast %95 : vector<1x32xf32> to vector<8x32xf32>
    %97 = arith.mulf %94, %96 : vector<8x32xf32>
    %c7 = arith.constant 7 : index
    %c0_35 = arith.constant 0 : index
    %98 = vector.load %arg4[%c7, %c0_35] : memref<48x128xf32, #tpu.memory_space<vmem>>, vector<1x32xf32>
    %99 = vector.broadcast %98 : vector<1x32xf32> to vector<8x32xf32>
    %100 = arith.addf %97, %99 : vector<8x32xf32>
    %c112 = arith.constant 112 : index
    %c0_36 = arith.constant 0 : index
    %101 = vector.load %arg3[%c112, %c0_36] : memref<816x128xf32, #tpu.memory_space<vmem>>, vector<32x64xf32>
    %cst_37 = arith.constant dense<0.000000e+00> : vector<8x64xf32>
    %102 = tpu.matmul %100, %101, %cst_37 {dimension_numbers = #tpu.dot_dimension_numbers<[1], [0], [0], [1], [0, 0, 1, 1], [], []>} : vector<8x32xf32>, vector<32x64xf32>, vector<8x64xf32> -> vector<8x64xf32>
    %c4 = arith.constant 4 : index
    %c0_38 = arith.constant 0 : index
    %103 = vector.load %arg4[%c4, %c0_38] : memref<48x128xf32, #tpu.memory_space<vmem>>, vector<1x64xf32>
    %104 = vector.broadcast %103 : vector<1x64xf32> to vector<8x64xf32>
    %105 = arith.addf %102, %104 : vector<8x64xf32>
    %cst_39 = arith.constant 0.000000e+00 : f32
    %106 = vector.broadcast %cst_39 : f32 to vector<8x64xf32>
    %107 = arith.maximumf %105, %106 : vector<8x64xf32>
    %c144 = arith.constant 144 : index
    %c0_40 = arith.constant 0 : index
    %108 = vector.load %arg3[%c144, %c0_40] : memref<816x128xf32, #tpu.memory_space<vmem>>, vector<64x32xf32>
    %cst_41 = arith.constant dense<0.000000e+00> : vector<8x32xf32>
    %109 = tpu.matmul %107, %108, %cst_41 {dimension_numbers = #tpu.dot_dimension_numbers<[1], [0], [0], [1], [0, 0, 1, 1], [], []>} : vector<8x64xf32>, vector<64x32xf32>, vector<8x32xf32> -> vector<8x32xf32>
    %c5 = arith.constant 5 : index
    %c0_42 = arith.constant 0 : index
    %110 = vector.load %arg4[%c5, %c0_42] : memref<48x128xf32, #tpu.memory_space<vmem>>, vector<1x32xf32>
    %111 = vector.broadcast %110 : vector<1x32xf32> to vector<8x32xf32>
    %112 = arith.addf %109, %111 : vector<8x32xf32>
    %113 = arith.addf %112, %100 : vector<8x32xf32>
    %cst_43 = arith.constant dense<0.000000e+00> : vector<8xf32>
    %114 = vector.multi_reduction <add>, %113, %cst_43 [1] : vector<8x32xf32> to vector<8xf32>
    %115 = vector.shape_cast %114 : vector<8xf32> to vector<8x1xf32>
    %cst_44 = arith.constant 3.200000e+01 : f32
    %116 = vector.broadcast %cst_44 : f32 to vector<8x1xf32>
    %117 = arith.divf %115, %116 : vector<8x1xf32>
    %118 = vector.broadcast %117 : vector<8x1xf32> to vector<8x32xf32>
    %119 = arith.subf %113, %118 : vector<8x32xf32>
    %120 = arith.mulf %119, %119 : vector<8x32xf32>
    %cst_45 = arith.constant dense<0.000000e+00> : vector<8xf32>
    %121 = vector.multi_reduction <add>, %120, %cst_45 [1] : vector<8x32xf32> to vector<8xf32>
    %122 = vector.shape_cast %121 : vector<8xf32> to vector<8x1xf32>
    %cst_46 = arith.constant 3.200000e+01 : f32
    %123 = vector.broadcast %cst_46 : f32 to vector<8x1xf32>
    %124 = arith.divf %122, %123 : vector<8x1xf32>
    %125 = vector.broadcast %117 : vector<8x1xf32> to vector<8x32xf32>
    %126 = arith.subf %113, %125 : vector<8x32xf32>
    %cst_47 = arith.constant 9.99999974E-6 : f32
    %127 = vector.broadcast %cst_47 : f32 to vector<8x1xf32>
    %128 = arith.addf %124, %127 : vector<8x1xf32>
    %129 = math.rsqrt %128 : vector<8x1xf32>
    %130 = vector.broadcast %129 : vector<8x1xf32> to vector<8x32xf32>
    %131 = arith.mulf %126, %130 : vector<8x32xf32>
    %c8_48 = arith.constant 8 : index
    %c0_49 = arith.constant 0 : index
    %132 = vector.load %arg4[%c8_48, %c0_49] : memref<48x128xf32, #tpu.memory_space<vmem>>, vector<1x32xf32>
    %133 = vector.broadcast %132 : vector<1x32xf32> to vector<8x32xf32>
    %134 = arith.mulf %131, %133 : vector<8x32xf32>
    %c9 = arith.constant 9 : index
    %c0_50 = arith.constant 0 : index
    %135 = vector.load %arg4[%c9, %c0_50] : memref<48x128xf32, #tpu.memory_space<vmem>>, vector<1x32xf32>
    %136 = vector.broadcast %135 : vector<1x32xf32> to vector<8x32xf32>
    %137 = arith.addf %134, %136 : vector<8x32xf32>
    %c208 = arith.constant 208 : index
    %c0_51 = arith.constant 0 : index
    %138 = vector.load %arg3[%c208, %c0_51] : memref<816x128xf32, #tpu.memory_space<vmem>>, vector<32x32xf32>
    %cst_52 = arith.constant dense<0.000000e+00> : vector<8x32xf32>
    %139 = tpu.matmul %137, %138, %cst_52 {dimension_numbers = #tpu.dot_dimension_numbers<[1], [0], [0], [1], [0, 0, 1, 1], [], []>} : vector<8x32xf32>, vector<32x32xf32>, vector<8x32xf32> -> vector<8x32xf32>
    %c10 = arith.constant 10 : index
    %c0_53 = arith.constant 0 : index
    %140 = vector.load %arg4[%c10, %c0_53] : memref<48x128xf32, #tpu.memory_space<vmem>>, vector<1x32xf32>
    %141 = vector.broadcast %140 : vector<1x32xf32> to vector<8x32xf32>
    %142 = arith.addf %139, %141 : vector<8x32xf32>
    %143 = vector.extract_strided_slice %142 {offsets = [0, 0], sizes = [8, 8], strides = [1, 1]} : vector<8x32xf32> to vector<8x8xf32>
    %144 = vector.extract_strided_slice %142 {offsets = [0, 8], sizes = [8, 8], strides = [1, 1]} : vector<8x32xf32> to vector<8x8xf32>
    %145 = vector.extract_strided_slice %142 {offsets = [0, 16], sizes = [8, 8], strides = [1, 1]} : vector<8x32xf32> to vector<8x8xf32>
    %146 = vector.extract_strided_slice %142 {offsets = [0, 24], sizes = [8, 8], strides = [1, 1]} : vector<8x32xf32> to vector<8x8xf32>
    %147 = vector.shape_cast %143 : vector<8x8xf32> to vector<1x8x8xf32>
    %148 = vector.shape_cast %144 : vector<8x8xf32> to vector<1x8x8xf32>
    %149 = vector.shape_cast %145 : vector<8x8xf32> to vector<1x8x8xf32>
    %150 = vector.shape_cast %146 : vector<8x8xf32> to vector<1x8x8xf32>
    %151 = tpu.concatenate %147, %148, %149, %150 in 0 : vector<1x8x8xf32>, vector<1x8x8xf32>, vector<1x8x8xf32>, vector<1x8x8xf32> -> vector<4x8x8xf32>
    "tpu.trace_start"() <{level = 10 : i32, message = "hqd,hkd->hqk"}> : () -> ()
    %cst_54 = arith.constant dense<0.000000e+00> : vector<4x8x8xf32>
    %152 = tpu.matmul %151, %151, %cst_54 {dimension_numbers = #tpu.dot_dimension_numbers<[2], [2], [1], [1], [0, 0, 0, 1, 1, 1], [0], [0]>} : vector<4x8x8xf32>, vector<4x8x8xf32>, vector<4x8x8xf32> -> vector<4x8x8xf32>
    "tpu.trace_stop"() : () -> ()
    %cst_55 = arith.constant 0.353553385 : f32
    %153 = vector.broadcast %cst_55 : f32 to vector<4x8x8xf32>
    %154 = arith.mulf %152, %153 : vector<4x8x8xf32>
    %155 = vector.shape_cast %8 : vector<1x8xf32> to vector<1x1x8xf32>
    %156 = vector.broadcast %155 : vector<1x1x8xf32> to vector<4x8x8xf32>
    %157 = arith.addf %154, %156 : vector<4x8x8xf32>
    %cst_56 = arith.constant dense<0xFF800000> : vector<4x8xf32>
    %158 = vector.multi_reduction <maximumf>, %157, %cst_56 [2] : vector<4x8x8xf32> to vector<4x8xf32>
    %159 = vector.shape_cast %158 : vector<4x8xf32> to vector<4x8x1xf32>
    %160 = vector.broadcast %159 : vector<4x8x1xf32> to vector<4x8x8xf32>
    %161 = arith.subf %157, %160 : vector<4x8x8xf32>
    %162 = math.exp %161 : vector<4x8x8xf32>
    %cst_57 = arith.constant dense<0.000000e+00> : vector<4x8xf32>
    %163 = vector.multi_reduction <add>, %162, %cst_57 [2] : vector<4x8x8xf32> to vector<4x8xf32>
    %164 = vector.shape_cast %163 : vector<4x8xf32> to vector<4x8x1xf32>
    %165 = tpu.reciprocal %164 {approx = true} : vector<4x8x1xf32> -> vector<4x8x1xf32>
    %166 = vector.broadcast %165 : vector<4x8x1xf32> to vector<4x8x8xf32>
    %167 = arith.mulf %162, %166 : vector<4x8x8xf32>
    "tpu.trace_start"() <{level = 10 : i32, message = "hqk,hkd->hqd"}> : () -> ()
    %cst_58 = arith.constant dense<0.000000e+00> : vector<4x8x8xf32>
    %168 = tpu.matmul %167, %151, %cst_58 {dimension_numbers = #tpu.dot_dimension_numbers<[2], [1], [1], [2], [0, 0, 0, 1, 1, 2], [0], [0]>} : vector<4x8x8xf32>, vector<4x8x8xf32>, vector<4x8x8xf32> -> vector<4x8x8xf32>
    "tpu.trace_stop"() : () -> ()
    %c240 = arith.constant 240 : index
    %c0_59 = arith.constant 0 : index
    %169 = vector.load %arg3[%c240, %c0_59] : memref<816x128xf32, #tpu.memory_space<vmem>>, vector<32x32xf32>
    %170 = vector.extract_strided_slice %168 {offsets = [0, 0, 0], sizes = [1, 8, 8], strides = [1, 1, 1]} : vector<4x8x8xf32> to vector<1x8x8xf32>
    %171 = vector.shape_cast %170 : vector<1x8x8xf32> to vector<8x8xf32>
    %172 = vector.extract_strided_slice %169 {offsets = [0, 0], sizes = [8, 32], strides = [1, 1]} : vector<32x32xf32> to vector<8x32xf32>
    %cst_60 = arith.constant dense<0.000000e+00> : vector<8x32xf32>
    %173 = tpu.matmul %171, %172, %cst_60 {dimension_numbers = #tpu.dot_dimension_numbers<[1], [0], [0], [1], [0, 0, 1, 1], [], []>} : vector<8x8xf32>, vector<8x32xf32>, vector<8x32xf32> -> vector<8x32xf32>
    %174 = vector.extract_strided_slice %168 {offsets = [1, 0, 0], sizes = [1, 8, 8], strides = [1, 1, 1]} : vector<4x8x8xf32> to vector<1x8x8xf32>
    %175 = vector.shape_cast %174 : vector<1x8x8xf32> to vector<8x8xf32>
    %176 = vector.extract_strided_slice %169 {offsets = [8, 0], sizes = [8, 32], strides = [1, 1]} : vector<32x32xf32> to vector<8x32xf32>
    %cst_61 = arith.constant dense<0.000000e+00> : vector<8x32xf32>
    %177 = tpu.matmul %175, %176, %cst_61 {dimension_numbers = #tpu.dot_dimension_numbers<[1], [0], [0], [1], [0, 0, 1, 1], [], []>} : vector<8x8xf32>, vector<8x32xf32>, vector<8x32xf32> -> vector<8x32xf32>
    %178 = arith.addf %173, %177 : vector<8x32xf32>
    %179 = vector.extract_strided_slice %168 {offsets = [2, 0, 0], sizes = [1, 8, 8], strides = [1, 1, 1]} : vector<4x8x8xf32> to vector<1x8x8xf32>
    %180 = vector.shape_cast %179 : vector<1x8x8xf32> to vector<8x8xf32>
    %181 = vector.extract_strided_slice %169 {offsets = [16, 0], sizes = [8, 32], strides = [1, 1]} : vector<32x32xf32> to vector<8x32xf32>
    %cst_62 = arith.constant dense<0.000000e+00> : vector<8x32xf32>
    %182 = tpu.matmul %180, %181, %cst_62 {dimension_numbers = #tpu.dot_dimension_numbers<[1], [0], [0], [1], [0, 0, 1, 1], [], []>} : vector<8x8xf32>, vector<8x32xf32>, vector<8x32xf32> -> vector<8x32xf32>
    %183 = arith.addf %178, %182 : vector<8x32xf32>
    %184 = vector.extract_strided_slice %168 {offsets = [3, 0, 0], sizes = [1, 8, 8], strides = [1, 1, 1]} : vector<4x8x8xf32> to vector<1x8x8xf32>
    %185 = vector.shape_cast %184 : vector<1x8x8xf32> to vector<8x8xf32>
    %186 = vector.extract_strided_slice %169 {offsets = [24, 0], sizes = [8, 32], strides = [1, 1]} : vector<32x32xf32> to vector<8x32xf32>
    %cst_63 = arith.constant dense<0.000000e+00> : vector<8x32xf32>
    %187 = tpu.matmul %185, %186, %cst_63 {dimension_numbers = #tpu.dot_dimension_numbers<[1], [0], [0], [1], [0, 0, 1, 1], [], []>} : vector<8x8xf32>, vector<8x32xf32>, vector<8x32xf32> -> vector<8x32xf32>
    %188 = arith.addf %183, %187 : vector<8x32xf32>
    %c11 = arith.constant 11 : index
    %c0_64 = arith.constant 0 : index
    %189 = vector.load %arg4[%c11, %c0_64] : memref<48x128xf32, #tpu.memory_space<vmem>>, vector<1x32xf32>
    %190 = vector.broadcast %189 : vector<1x32xf32> to vector<8x32xf32>
    %191 = arith.addf %188, %190 : vector<8x32xf32>
    %192 = arith.addf %191, %137 : vector<8x32xf32>
    %cst_65 = arith.constant dense<0.000000e+00> : vector<8xf32>
    %193 = vector.multi_reduction <add>, %192, %cst_65 [1] : vector<8x32xf32> to vector<8xf32>
    %194 = vector.shape_cast %193 : vector<8xf32> to vector<8x1xf32>
    %cst_66 = arith.constant 3.200000e+01 : f32
    %195 = vector.broadcast %cst_66 : f32 to vector<8x1xf32>
    %196 = arith.divf %194, %195 : vector<8x1xf32>
    %197 = vector.broadcast %196 : vector<8x1xf32> to vector<8x32xf32>
    %198 = arith.subf %192, %197 : vector<8x32xf32>
    %199 = arith.mulf %198, %198 : vector<8x32xf32>
    %cst_67 = arith.constant dense<0.000000e+00> : vector<8xf32>
    %200 = vector.multi_reduction <add>, %199, %cst_67 [1] : vector<8x32xf32> to vector<8xf32>
    %201 = vector.shape_cast %200 : vector<8xf32> to vector<8x1xf32>
    %cst_68 = arith.constant 3.200000e+01 : f32
    %202 = vector.broadcast %cst_68 : f32 to vector<8x1xf32>
    %203 = arith.divf %201, %202 : vector<8x1xf32>
    %204 = vector.broadcast %196 : vector<8x1xf32> to vector<8x32xf32>
    %205 = arith.subf %192, %204 : vector<8x32xf32>
    %cst_69 = arith.constant 9.99999974E-6 : f32
    %206 = vector.broadcast %cst_69 : f32 to vector<8x1xf32>
    %207 = arith.addf %203, %206 : vector<8x1xf32>
    %208 = math.rsqrt %207 : vector<8x1xf32>
    %209 = vector.broadcast %208 : vector<8x1xf32> to vector<8x32xf32>
    %210 = arith.mulf %205, %209 : vector<8x32xf32>
    %c14 = arith.constant 14 : index
    %c0_70 = arith.constant 0 : index
    %211 = vector.load %arg4[%c14, %c0_70] : memref<48x128xf32, #tpu.memory_space<vmem>>, vector<1x32xf32>
    %212 = vector.broadcast %211 : vector<1x32xf32> to vector<8x32xf32>
    %213 = arith.mulf %210, %212 : vector<8x32xf32>
    %c15 = arith.constant 15 : index
    %c0_71 = arith.constant 0 : index
    %214 = vector.load %arg4[%c15, %c0_71] : memref<48x128xf32, #tpu.memory_space<vmem>>, vector<1x32xf32>
    %215 = vector.broadcast %214 : vector<1x32xf32> to vector<8x32xf32>
    %216 = arith.addf %213, %215 : vector<8x32xf32>
    %c272 = arith.constant 272 : index
    %c0_72 = arith.constant 0 : index
    %217 = vector.load %arg3[%c272, %c0_72] : memref<816x128xf32, #tpu.memory_space<vmem>>, vector<32x64xf32>
    %cst_73 = arith.constant dense<0.000000e+00> : vector<8x64xf32>
    %218 = tpu.matmul %216, %217, %cst_73 {dimension_numbers = #tpu.dot_dimension_numbers<[1], [0], [0], [1], [0, 0, 1, 1], [], []>} : vector<8x32xf32>, vector<32x64xf32>, vector<8x64xf32> -> vector<8x64xf32>
    %c12 = arith.constant 12 : index
    %c0_74 = arith.constant 0 : index
    %219 = vector.load %arg4[%c12, %c0_74] : memref<48x128xf32, #tpu.memory_space<vmem>>, vector<1x64xf32>
    %220 = vector.broadcast %219 : vector<1x64xf32> to vector<8x64xf32>
    %221 = arith.addf %218, %220 : vector<8x64xf32>
    %cst_75 = arith.constant 0.000000e+00 : f32
    %222 = vector.broadcast %cst_75 : f32 to vector<8x64xf32>
    %223 = arith.maximumf %221, %222 : vector<8x64xf32>
    %c304 = arith.constant 304 : index
    %c0_76 = arith.constant 0 : index
    %224 = vector.load %arg3[%c304, %c0_76] : memref<816x128xf32, #tpu.memory_space<vmem>>, vector<64x32xf32>
    %cst_77 = arith.constant dense<0.000000e+00> : vector<8x32xf32>
    %225 = tpu.matmul %223, %224, %cst_77 {dimension_numbers = #tpu.dot_dimension_numbers<[1], [0], [0], [1], [0, 0, 1, 1], [], []>} : vector<8x64xf32>, vector<64x32xf32>, vector<8x32xf32> -> vector<8x32xf32>
    %c13 = arith.constant 13 : index
    %c0_78 = arith.constant 0 : index
    %226 = vector.load %arg4[%c13, %c0_78] : memref<48x128xf32, #tpu.memory_space<vmem>>, vector<1x32xf32>
    %227 = vector.broadcast %226 : vector<1x32xf32> to vector<8x32xf32>
    %228 = arith.addf %225, %227 : vector<8x32xf32>
    %229 = arith.addf %228, %216 : vector<8x32xf32>
    %cst_79 = arith.constant dense<0.000000e+00> : vector<8xf32>
    %230 = vector.multi_reduction <add>, %229, %cst_79 [1] : vector<8x32xf32> to vector<8xf32>
    %231 = vector.shape_cast %230 : vector<8xf32> to vector<8x1xf32>
    %cst_80 = arith.constant 3.200000e+01 : f32
    %232 = vector.broadcast %cst_80 : f32 to vector<8x1xf32>
    %233 = arith.divf %231, %232 : vector<8x1xf32>
    %234 = vector.broadcast %233 : vector<8x1xf32> to vector<8x32xf32>
    %235 = arith.subf %229, %234 : vector<8x32xf32>
    %236 = arith.mulf %235, %235 : vector<8x32xf32>
    %cst_81 = arith.constant dense<0.000000e+00> : vector<8xf32>
    %237 = vector.multi_reduction <add>, %236, %cst_81 [1] : vector<8x32xf32> to vector<8xf32>
    %238 = vector.shape_cast %237 : vector<8xf32> to vector<8x1xf32>
    %cst_82 = arith.constant 3.200000e+01 : f32
    %239 = vector.broadcast %cst_82 : f32 to vector<8x1xf32>
    %240 = arith.divf %238, %239 : vector<8x1xf32>
    %241 = vector.broadcast %233 : vector<8x1xf32> to vector<8x32xf32>
    %242 = arith.subf %229, %241 : vector<8x32xf32>
    %cst_83 = arith.constant 9.99999974E-6 : f32
    %243 = vector.broadcast %cst_83 : f32 to vector<8x1xf32>
    %244 = arith.addf %240, %243 : vector<8x1xf32>
    %245 = math.rsqrt %244 : vector<8x1xf32>
    %246 = vector.broadcast %245 : vector<8x1xf32> to vector<8x32xf32>
    %247 = arith.mulf %242, %246 : vector<8x32xf32>
    %c16 = arith.constant 16 : index
    %c0_84 = arith.constant 0 : index
    %248 = vector.load %arg4[%c16, %c0_84] : memref<48x128xf32, #tpu.memory_space<vmem>>, vector<1x32xf32>
    %249 = vector.broadcast %248 : vector<1x32xf32> to vector<8x32xf32>
    %250 = arith.mulf %247, %249 : vector<8x32xf32>
    %c17 = arith.constant 17 : index
    %c0_85 = arith.constant 0 : index
    %251 = vector.load %arg4[%c17, %c0_85] : memref<48x128xf32, #tpu.memory_space<vmem>>, vector<1x32xf32>
    %252 = vector.broadcast %251 : vector<1x32xf32> to vector<8x32xf32>
    %253 = arith.addf %250, %252 : vector<8x32xf32>
    %c368 = arith.constant 368 : index
    %c0_86 = arith.constant 0 : index
    %254 = vector.load %arg3[%c368, %c0_86] : memref<816x128xf32, #tpu.memory_space<vmem>>, vector<32x32xf32>
    %cst_87 = arith.constant dense<0.000000e+00> : vector<8x32xf32>
    %255 = tpu.matmul %253, %254, %cst_87 {dimension_numbers = #tpu.dot_dimension_numbers<[1], [0], [0], [1], [0, 0, 1, 1], [], []>} : vector<8x32xf32>, vector<32x32xf32>, vector<8x32xf32> -> vector<8x32xf32>
    %c18 = arith.constant 18 : index
    %c0_88 = arith.constant 0 : index
    %256 = vector.load %arg4[%c18, %c0_88] : memref<48x128xf32, #tpu.memory_space<vmem>>, vector<1x32xf32>
    %257 = vector.broadcast %256 : vector<1x32xf32> to vector<8x32xf32>
    %258 = arith.addf %255, %257 : vector<8x32xf32>
    %259 = vector.extract_strided_slice %258 {offsets = [0, 0], sizes = [8, 8], strides = [1, 1]} : vector<8x32xf32> to vector<8x8xf32>
    %260 = vector.extract_strided_slice %258 {offsets = [0, 8], sizes = [8, 8], strides = [1, 1]} : vector<8x32xf32> to vector<8x8xf32>
    %261 = vector.extract_strided_slice %258 {offsets = [0, 16], sizes = [8, 8], strides = [1, 1]} : vector<8x32xf32> to vector<8x8xf32>
    %262 = vector.extract_strided_slice %258 {offsets = [0, 24], sizes = [8, 8], strides = [1, 1]} : vector<8x32xf32> to vector<8x8xf32>
    %263 = vector.shape_cast %259 : vector<8x8xf32> to vector<1x8x8xf32>
    %264 = vector.shape_cast %260 : vector<8x8xf32> to vector<1x8x8xf32>
    %265 = vector.shape_cast %261 : vector<8x8xf32> to vector<1x8x8xf32>
    %266 = vector.shape_cast %262 : vector<8x8xf32> to vector<1x8x8xf32>
    %267 = tpu.concatenate %263, %264, %265, %266 in 0 : vector<1x8x8xf32>, vector<1x8x8xf32>, vector<1x8x8xf32>, vector<1x8x8xf32> -> vector<4x8x8xf32>
    "tpu.trace_start"() <{level = 10 : i32, message = "hqd,hkd->hqk"}> : () -> ()
    %cst_89 = arith.constant dense<0.000000e+00> : vector<4x8x8xf32>
    %268 = tpu.matmul %267, %267, %cst_89 {dimension_numbers = #tpu.dot_dimension_numbers<[2], [2], [1], [1], [0, 0, 0, 1, 1, 1], [0], [0]>} : vector<4x8x8xf32>, vector<4x8x8xf32>, vector<4x8x8xf32> -> vector<4x8x8xf32>
    "tpu.trace_stop"() : () -> ()
    %cst_90 = arith.constant 0.353553385 : f32
    %269 = vector.broadcast %cst_90 : f32 to vector<4x8x8xf32>
    %270 = arith.mulf %268, %269 : vector<4x8x8xf32>
    %271 = vector.shape_cast %8 : vector<1x8xf32> to vector<1x1x8xf32>
    %272 = vector.broadcast %271 : vector<1x1x8xf32> to vector<4x8x8xf32>
    %273 = arith.addf %270, %272 : vector<4x8x8xf32>
    %274 = vector.shape_cast %14 : vector<8x8xf32> to vector<1x8x8xf32>
    %275 = vector.broadcast %274 : vector<1x8x8xf32> to vector<4x8x8xf32>
    %276 = arith.addf %273, %275 : vector<4x8x8xf32>
    %cst_91 = arith.constant dense<0xFF800000> : vector<4x8xf32>
    %277 = vector.multi_reduction <maximumf>, %276, %cst_91 [2] : vector<4x8x8xf32> to vector<4x8xf32>
    %278 = vector.shape_cast %277 : vector<4x8xf32> to vector<4x8x1xf32>
    %279 = vector.broadcast %278 : vector<4x8x1xf32> to vector<4x8x8xf32>
    %280 = arith.subf %276, %279 : vector<4x8x8xf32>
    %281 = math.exp %280 : vector<4x8x8xf32>
    %cst_92 = arith.constant dense<0.000000e+00> : vector<4x8xf32>
    %282 = vector.multi_reduction <add>, %281, %cst_92 [2] : vector<4x8x8xf32> to vector<4x8xf32>
    %283 = vector.shape_cast %282 : vector<4x8xf32> to vector<4x8x1xf32>
    %284 = tpu.reciprocal %283 {approx = true} : vector<4x8x1xf32> -> vector<4x8x1xf32>
    %285 = vector.broadcast %284 : vector<4x8x1xf32> to vector<4x8x8xf32>
    %286 = arith.mulf %281, %285 : vector<4x8x8xf32>
    "tpu.trace_start"() <{level = 10 : i32, message = "hqk,hkd->hqd"}> : () -> ()
    %cst_93 = arith.constant dense<0.000000e+00> : vector<4x8x8xf32>
    %287 = tpu.matmul %286, %267, %cst_93 {dimension_numbers = #tpu.dot_dimension_numbers<[2], [1], [1], [2], [0, 0, 0, 1, 1, 2], [0], [0]>} : vector<4x8x8xf32>, vector<4x8x8xf32>, vector<4x8x8xf32> -> vector<4x8x8xf32>
    "tpu.trace_stop"() : () -> ()
    %c400 = arith.constant 400 : index
    %c0_94 = arith.constant 0 : index
    %288 = vector.load %arg3[%c400, %c0_94] : memref<816x128xf32, #tpu.memory_space<vmem>>, vector<32x32xf32>
    %289 = vector.extract_strided_slice %287 {offsets = [0, 0, 0], sizes = [1, 8, 8], strides = [1, 1, 1]} : vector<4x8x8xf32> to vector<1x8x8xf32>
    %290 = vector.shape_cast %289 : vector<1x8x8xf32> to vector<8x8xf32>
    %291 = vector.extract_strided_slice %288 {offsets = [0, 0], sizes = [8, 32], strides = [1, 1]} : vector<32x32xf32> to vector<8x32xf32>
    %cst_95 = arith.constant dense<0.000000e+00> : vector<8x32xf32>
    %292 = tpu.matmul %290, %291, %cst_95 {dimension_numbers = #tpu.dot_dimension_numbers<[1], [0], [0], [1], [0, 0, 1, 1], [], []>} : vector<8x8xf32>, vector<8x32xf32>, vector<8x32xf32> -> vector<8x32xf32>
    %293 = vector.extract_strided_slice %287 {offsets = [1, 0, 0], sizes = [1, 8, 8], strides = [1, 1, 1]} : vector<4x8x8xf32> to vector<1x8x8xf32>
    %294 = vector.shape_cast %293 : vector<1x8x8xf32> to vector<8x8xf32>
    %295 = vector.extract_strided_slice %288 {offsets = [8, 0], sizes = [8, 32], strides = [1, 1]} : vector<32x32xf32> to vector<8x32xf32>
    %cst_96 = arith.constant dense<0.000000e+00> : vector<8x32xf32>
    %296 = tpu.matmul %294, %295, %cst_96 {dimension_numbers = #tpu.dot_dimension_numbers<[1], [0], [0], [1], [0, 0, 1, 1], [], []>} : vector<8x8xf32>, vector<8x32xf32>, vector<8x32xf32> -> vector<8x32xf32>
    %297 = arith.addf %292, %296 : vector<8x32xf32>
    %298 = vector.extract_strided_slice %287 {offsets = [2, 0, 0], sizes = [1, 8, 8], strides = [1, 1, 1]} : vector<4x8x8xf32> to vector<1x8x8xf32>
    %299 = vector.shape_cast %298 : vector<1x8x8xf32> to vector<8x8xf32>
    %300 = vector.extract_strided_slice %288 {offsets = [16, 0], sizes = [8, 32], strides = [1, 1]} : vector<32x32xf32> to vector<8x32xf32>
    %cst_97 = arith.constant dense<0.000000e+00> : vector<8x32xf32>
    %301 = tpu.matmul %299, %300, %cst_97 {dimension_numbers = #tpu.dot_dimension_numbers<[1], [0], [0], [1], [0, 0, 1, 1], [], []>} : vector<8x8xf32>, vector<8x32xf32>, vector<8x32xf32> -> vector<8x32xf32>
    %302 = arith.addf %297, %301 : vector<8x32xf32>
    %303 = vector.extract_strided_slice %287 {offsets = [3, 0, 0], sizes = [1, 8, 8], strides = [1, 1, 1]} : vector<4x8x8xf32> to vector<1x8x8xf32>
    %304 = vector.shape_cast %303 : vector<1x8x8xf32> to vector<8x8xf32>
    %305 = vector.extract_strided_slice %288 {offsets = [24, 0], sizes = [8, 32], strides = [1, 1]} : vector<32x32xf32> to vector<8x32xf32>
    %cst_98 = arith.constant dense<0.000000e+00> : vector<8x32xf32>
    %306 = tpu.matmul %304, %305, %cst_98 {dimension_numbers = #tpu.dot_dimension_numbers<[1], [0], [0], [1], [0, 0, 1, 1], [], []>} : vector<8x8xf32>, vector<8x32xf32>, vector<8x32xf32> -> vector<8x32xf32>
    %307 = arith.addf %302, %306 : vector<8x32xf32>
    %c19 = arith.constant 19 : index
    %c0_99 = arith.constant 0 : index
    %308 = vector.load %arg4[%c19, %c0_99] : memref<48x128xf32, #tpu.memory_space<vmem>>, vector<1x32xf32>
    %309 = vector.broadcast %308 : vector<1x32xf32> to vector<8x32xf32>
    %310 = arith.addf %307, %309 : vector<8x32xf32>
    %311 = arith.addf %310, %253 : vector<8x32xf32>
    %cst_100 = arith.constant dense<0.000000e+00> : vector<8xf32>
    %312 = vector.multi_reduction <add>, %311, %cst_100 [1] : vector<8x32xf32> to vector<8xf32>
    %313 = vector.shape_cast %312 : vector<8xf32> to vector<8x1xf32>
    %cst_101 = arith.constant 3.200000e+01 : f32
    %314 = vector.broadcast %cst_101 : f32 to vector<8x1xf32>
    %315 = arith.divf %313, %314 : vector<8x1xf32>
    %316 = vector.broadcast %315 : vector<8x1xf32> to vector<8x32xf32>
    %317 = arith.subf %311, %316 : vector<8x32xf32>
    %318 = arith.mulf %317, %317 : vector<8x32xf32>
    %cst_102 = arith.constant dense<0.000000e+00> : vector<8xf32>
    %319 = vector.multi_reduction <add>, %318, %cst_102 [1] : vector<8x32xf32> to vector<8xf32>
    %320 = vector.shape_cast %319 : vector<8xf32> to vector<8x1xf32>
    %cst_103 = arith.constant 3.200000e+01 : f32
    %321 = vector.broadcast %cst_103 : f32 to vector<8x1xf32>
    %322 = arith.divf %320, %321 : vector<8x1xf32>
    %323 = vector.broadcast %315 : vector<8x1xf32> to vector<8x32xf32>
    %324 = arith.subf %311, %323 : vector<8x32xf32>
    %cst_104 = arith.constant 9.99999974E-6 : f32
    %325 = vector.broadcast %cst_104 : f32 to vector<8x1xf32>
    %326 = arith.addf %322, %325 : vector<8x1xf32>
    %327 = math.rsqrt %326 : vector<8x1xf32>
    %328 = vector.broadcast %327 : vector<8x1xf32> to vector<8x32xf32>
    %329 = arith.mulf %324, %328 : vector<8x32xf32>
    %c24 = arith.constant 24 : index
    %c0_105 = arith.constant 0 : index
    %330 = vector.load %arg4[%c24, %c0_105] : memref<48x128xf32, #tpu.memory_space<vmem>>, vector<1x32xf32>
    %331 = vector.broadcast %330 : vector<1x32xf32> to vector<8x32xf32>
    %332 = arith.mulf %329, %331 : vector<8x32xf32>
    %c25 = arith.constant 25 : index
    %c0_106 = arith.constant 0 : index
    %333 = vector.load %arg4[%c25, %c0_106] : memref<48x128xf32, #tpu.memory_space<vmem>>, vector<1x32xf32>
    %334 = vector.broadcast %333 : vector<1x32xf32> to vector<8x32xf32>
    %335 = arith.addf %332, %334 : vector<8x32xf32>
    %c432 = arith.constant 432 : index
    %c0_107 = arith.constant 0 : index
    %336 = vector.load %arg3[%c432, %c0_107] : memref<816x128xf32, #tpu.memory_space<vmem>>, vector<32x32xf32>
    %cst_108 = arith.constant dense<0.000000e+00> : vector<8x32xf32>
    %337 = tpu.matmul %335, %336, %cst_108 {dimension_numbers = #tpu.dot_dimension_numbers<[1], [0], [0], [1], [0, 0, 1, 1], [], []>} : vector<8x32xf32>, vector<32x32xf32>, vector<8x32xf32> -> vector<8x32xf32>
    %c20 = arith.constant 20 : index
    %c0_109 = arith.constant 0 : index
    %338 = vector.load %arg4[%c20, %c0_109] : memref<48x128xf32, #tpu.memory_space<vmem>>, vector<1x32xf32>
    %339 = vector.broadcast %338 : vector<1x32xf32> to vector<8x32xf32>
    %340 = arith.addf %337, %339 : vector<8x32xf32>
    %341 = vector.extract_strided_slice %340 {offsets = [0, 0], sizes = [8, 8], strides = [1, 1]} : vector<8x32xf32> to vector<8x8xf32>
    %342 = vector.extract_strided_slice %340 {offsets = [0, 8], sizes = [8, 8], strides = [1, 1]} : vector<8x32xf32> to vector<8x8xf32>
    %343 = vector.extract_strided_slice %340 {offsets = [0, 16], sizes = [8, 8], strides = [1, 1]} : vector<8x32xf32> to vector<8x8xf32>
    %344 = vector.extract_strided_slice %340 {offsets = [0, 24], sizes = [8, 8], strides = [1, 1]} : vector<8x32xf32> to vector<8x8xf32>
    %345 = vector.shape_cast %341 : vector<8x8xf32> to vector<1x8x8xf32>
    %346 = vector.shape_cast %342 : vector<8x8xf32> to vector<1x8x8xf32>
    %347 = vector.shape_cast %343 : vector<8x8xf32> to vector<1x8x8xf32>
    %348 = vector.shape_cast %344 : vector<8x8xf32> to vector<1x8x8xf32>
    %349 = tpu.concatenate %345, %346, %347, %348 in 0 : vector<1x8x8xf32>, vector<1x8x8xf32>, vector<1x8x8xf32>, vector<1x8x8xf32> -> vector<4x8x8xf32>
    %c432_110 = arith.constant 432 : index
    %c0_111 = arith.constant 0 : index
    %350 = vector.load %arg3[%c432_110, %c0_111] : memref<816x128xf32, #tpu.memory_space<vmem>>, vector<32x32xf32>
    %cst_112 = arith.constant dense<0.000000e+00> : vector<8x32xf32>
    %351 = tpu.matmul %253, %350, %cst_112 {dimension_numbers = #tpu.dot_dimension_numbers<[1], [0], [0], [1], [0, 0, 1, 1], [], []>} : vector<8x32xf32>, vector<32x32xf32>, vector<8x32xf32> -> vector<8x32xf32>
    %c20_113 = arith.constant 20 : index
    %c0_114 = arith.constant 0 : index
    %352 = vector.load %arg4[%c20_113, %c0_114] : memref<48x128xf32, #tpu.memory_space<vmem>>, vector<1x32xf32>
    %353 = vector.broadcast %352 : vector<1x32xf32> to vector<8x32xf32>
    %354 = arith.addf %351, %353 : vector<8x32xf32>
    %355 = vector.extract_strided_slice %354 {offsets = [0, 0], sizes = [8, 8], strides = [1, 1]} : vector<8x32xf32> to vector<8x8xf32>
    %356 = vector.extract_strided_slice %354 {offsets = [0, 8], sizes = [8, 8], strides = [1, 1]} : vector<8x32xf32> to vector<8x8xf32>
    %357 = vector.extract_strided_slice %354 {offsets = [0, 16], sizes = [8, 8], strides = [1, 1]} : vector<8x32xf32> to vector<8x8xf32>
    %358 = vector.extract_strided_slice %354 {offsets = [0, 24], sizes = [8, 8], strides = [1, 1]} : vector<8x32xf32> to vector<8x8xf32>
    %359 = vector.shape_cast %355 : vector<8x8xf32> to vector<1x8x8xf32>
    %360 = vector.shape_cast %356 : vector<8x8xf32> to vector<1x8x8xf32>
    %361 = vector.shape_cast %357 : vector<8x8xf32> to vector<1x8x8xf32>
    %362 = vector.shape_cast %358 : vector<8x8xf32> to vector<1x8x8xf32>
    %363 = tpu.concatenate %359, %360, %361, %362 in 0 : vector<1x8x8xf32>, vector<1x8x8xf32>, vector<1x8x8xf32>, vector<1x8x8xf32> -> vector<4x8x8xf32>
    "tpu.trace_start"() <{level = 10 : i32, message = "hqd,hkd->hqk"}> : () -> ()
    %cst_115 = arith.constant dense<0.000000e+00> : vector<4x8x8xf32>
    %364 = tpu.matmul %349, %363, %cst_115 {dimension_numbers = #tpu.dot_dimension_numbers<[2], [2], [1], [1], [0, 0, 0, 1, 1, 1], [0], [0]>} : vector<4x8x8xf32>, vector<4x8x8xf32>, vector<4x8x8xf32> -> vector<4x8x8xf32>
    "tpu.trace_stop"() : () -> ()
    %cst_116 = arith.constant 0.353553385 : f32
    %365 = vector.broadcast %cst_116 : f32 to vector<4x8x8xf32>
    %366 = arith.mulf %364, %365 : vector<4x8x8xf32>
    %367 = vector.shape_cast %8 : vector<1x8xf32> to vector<1x1x8xf32>
    %368 = vector.broadcast %367 : vector<1x1x8xf32> to vector<4x8x8xf32>
    %369 = arith.addf %366, %368 : vector<4x8x8xf32>
    %cst_117 = arith.constant dense<0xFF800000> : vector<4x8xf32>
    %370 = vector.multi_reduction <maximumf>, %369, %cst_117 [2] : vector<4x8x8xf32> to vector<4x8xf32>
    %371 = vector.shape_cast %370 : vector<4x8xf32> to vector<4x8x1xf32>
    %372 = vector.broadcast %371 : vector<4x8x1xf32> to vector<4x8x8xf32>
    %373 = arith.subf %369, %372 : vector<4x8x8xf32>
    %374 = math.exp %373 : vector<4x8x8xf32>
    %cst_118 = arith.constant dense<0.000000e+00> : vector<4x8xf32>
    %375 = vector.multi_reduction <add>, %374, %cst_118 [2] : vector<4x8x8xf32> to vector<4x8xf32>
    %376 = vector.shape_cast %375 : vector<4x8xf32> to vector<4x8x1xf32>
    %377 = tpu.reciprocal %376 {approx = true} : vector<4x8x1xf32> -> vector<4x8x1xf32>
    %378 = vector.broadcast %377 : vector<4x8x1xf32> to vector<4x8x8xf32>
    %379 = arith.mulf %374, %378 : vector<4x8x8xf32>
    "tpu.trace_start"() <{level = 10 : i32, message = "hqk,hkd->hqd"}> : () -> ()
    %cst_119 = arith.constant dense<0.000000e+00> : vector<4x8x8xf32>
    %380 = tpu.matmul %379, %363, %cst_119 {dimension_numbers = #tpu.dot_dimension_numbers<[2], [1], [1], [2], [0, 0, 0, 1, 1, 2], [0], [0]>} : vector<4x8x8xf32>, vector<4x8x8xf32>, vector<4x8x8xf32> -> vector<4x8x8xf32>
    "tpu.trace_stop"() : () -> ()
    %c464 = arith.constant 464 : index
    %c0_120 = arith.constant 0 : index
    %381 = vector.load %arg3[%c464, %c0_120] : memref<816x128xf32, #tpu.memory_space<vmem>>, vector<32x32xf32>
    %382 = vector.extract_strided_slice %380 {offsets = [0, 0, 0], sizes = [1, 8, 8], strides = [1, 1, 1]} : vector<4x8x8xf32> to vector<1x8x8xf32>
    %383 = vector.shape_cast %382 : vector<1x8x8xf32> to vector<8x8xf32>
    %384 = vector.extract_strided_slice %381 {offsets = [0, 0], sizes = [8, 32], strides = [1, 1]} : vector<32x32xf32> to vector<8x32xf32>
    %cst_121 = arith.constant dense<0.000000e+00> : vector<8x32xf32>
    %385 = tpu.matmul %383, %384, %cst_121 {dimension_numbers = #tpu.dot_dimension_numbers<[1], [0], [0], [1], [0, 0, 1, 1], [], []>} : vector<8x8xf32>, vector<8x32xf32>, vector<8x32xf32> -> vector<8x32xf32>
    %386 = vector.extract_strided_slice %380 {offsets = [1, 0, 0], sizes = [1, 8, 8], strides = [1, 1, 1]} : vector<4x8x8xf32> to vector<1x8x8xf32>
    %387 = vector.shape_cast %386 : vector<1x8x8xf32> to vector<8x8xf32>
    %388 = vector.extract_strided_slice %381 {offsets = [8, 0], sizes = [8, 32], strides = [1, 1]} : vector<32x32xf32> to vector<8x32xf32>
    %cst_122 = arith.constant dense<0.000000e+00> : vector<8x32xf32>
    %389 = tpu.matmul %387, %388, %cst_122 {dimension_numbers = #tpu.dot_dimension_numbers<[1], [0], [0], [1], [0, 0, 1, 1], [], []>} : vector<8x8xf32>, vector<8x32xf32>, vector<8x32xf32> -> vector<8x32xf32>
    %390 = arith.addf %385, %389 : vector<8x32xf32>
    %391 = vector.extract_strided_slice %380 {offsets = [2, 0, 0], sizes = [1, 8, 8], strides = [1, 1, 1]} : vector<4x8x8xf32> to vector<1x8x8xf32>
    %392 = vector.shape_cast %391 : vector<1x8x8xf32> to vector<8x8xf32>
    %393 = vector.extract_strided_slice %381 {offsets = [16, 0], sizes = [8, 32], strides = [1, 1]} : vector<32x32xf32> to vector<8x32xf32>
    %cst_123 = arith.constant dense<0.000000e+00> : vector<8x32xf32>
    %394 = tpu.matmul %392, %393, %cst_123 {dimension_numbers = #tpu.dot_dimension_numbers<[1], [0], [0], [1], [0, 0, 1, 1], [], []>} : vector<8x8xf32>, vector<8x32xf32>, vector<8x32xf32> -> vector<8x32xf32>
    %395 = arith.addf %390, %394 : vector<8x32xf32>
    %396 = vector.extract_strided_slice %380 {offsets = [3, 0, 0], sizes = [1, 8, 8], strides = [1, 1, 1]} : vector<4x8x8xf32> to vector<1x8x8xf32>
    %397 = vector.shape_cast %396 : vector<1x8x8xf32> to vector<8x8xf32>
    %398 = vector.extract_strided_slice %381 {offsets = [24, 0], sizes = [8, 32], strides = [1, 1]} : vector<32x32xf32> to vector<8x32xf32>
    %cst_124 = arith.constant dense<0.000000e+00> : vector<8x32xf32>
    %399 = tpu.matmul %397, %398, %cst_124 {dimension_numbers = #tpu.dot_dimension_numbers<[1], [0], [0], [1], [0, 0, 1, 1], [], []>} : vector<8x8xf32>, vector<8x32xf32>, vector<8x32xf32> -> vector<8x32xf32>
    %400 = arith.addf %395, %399 : vector<8x32xf32>
    %c21 = arith.constant 21 : index
    %c0_125 = arith.constant 0 : index
    %401 = vector.load %arg4[%c21, %c0_125] : memref<48x128xf32, #tpu.memory_space<vmem>>, vector<1x32xf32>
    %402 = vector.broadcast %401 : vector<1x32xf32> to vector<8x32xf32>
    %403 = arith.addf %400, %402 : vector<8x32xf32>
    %404 = arith.addf %403, %335 : vector<8x32xf32>
    %cst_126 = arith.constant dense<0.000000e+00> : vector<8xf32>
    %405 = vector.multi_reduction <add>, %404, %cst_126 [1] : vector<8x32xf32> to vector<8xf32>
    %406 = vector.shape_cast %405 : vector<8xf32> to vector<8x1xf32>
    %cst_127 = arith.constant 3.200000e+01 : f32
    %407 = vector.broadcast %cst_127 : f32 to vector<8x1xf32>
    %408 = arith.divf %406, %407 : vector<8x1xf32>
    %409 = vector.broadcast %408 : vector<8x1xf32> to vector<8x32xf32>
    %410 = arith.subf %404, %409 : vector<8x32xf32>
    %411 = arith.mulf %410, %410 : vector<8x32xf32>
    %cst_128 = arith.constant dense<0.000000e+00> : vector<8xf32>
    %412 = vector.multi_reduction <add>, %411, %cst_128 [1] : vector<8x32xf32> to vector<8xf32>
    %413 = vector.shape_cast %412 : vector<8xf32> to vector<8x1xf32>
    %cst_129 = arith.constant 3.200000e+01 : f32
    %414 = vector.broadcast %cst_129 : f32 to vector<8x1xf32>
    %415 = arith.divf %413, %414 : vector<8x1xf32>
    %416 = vector.broadcast %408 : vector<8x1xf32> to vector<8x32xf32>
    %417 = arith.subf %404, %416 : vector<8x32xf32>
    %cst_130 = arith.constant 9.99999974E-6 : f32
    %418 = vector.broadcast %cst_130 : f32 to vector<8x1xf32>
    %419 = arith.addf %415, %418 : vector<8x1xf32>
    %420 = math.rsqrt %419 : vector<8x1xf32>
    %421 = vector.broadcast %420 : vector<8x1xf32> to vector<8x32xf32>
    %422 = arith.mulf %417, %421 : vector<8x32xf32>
    %c26 = arith.constant 26 : index
    %c0_131 = arith.constant 0 : index
    %423 = vector.load %arg4[%c26, %c0_131] : memref<48x128xf32, #tpu.memory_space<vmem>>, vector<1x32xf32>
    %424 = vector.broadcast %423 : vector<1x32xf32> to vector<8x32xf32>
    %425 = arith.mulf %422, %424 : vector<8x32xf32>
    %c27 = arith.constant 27 : index
    %c0_132 = arith.constant 0 : index
    %426 = vector.load %arg4[%c27, %c0_132] : memref<48x128xf32, #tpu.memory_space<vmem>>, vector<1x32xf32>
    %427 = vector.broadcast %426 : vector<1x32xf32> to vector<8x32xf32>
    %428 = arith.addf %425, %427 : vector<8x32xf32>
    %c496 = arith.constant 496 : index
    %c0_133 = arith.constant 0 : index
    %429 = vector.load %arg3[%c496, %c0_133] : memref<816x128xf32, #tpu.memory_space<vmem>>, vector<32x64xf32>
    %cst_134 = arith.constant dense<0.000000e+00> : vector<8x64xf32>
    %430 = tpu.matmul %428, %429, %cst_134 {dimension_numbers = #tpu.dot_dimension_numbers<[1], [0], [0], [1], [0, 0, 1, 1], [], []>} : vector<8x32xf32>, vector<32x64xf32>, vector<8x64xf32> -> vector<8x64xf32>
    %c22 = arith.constant 22 : index
    %c0_135 = arith.constant 0 : index
    %431 = vector.load %arg4[%c22, %c0_135] : memref<48x128xf32, #tpu.memory_space<vmem>>, vector<1x64xf32>
    %432 = vector.broadcast %431 : vector<1x64xf32> to vector<8x64xf32>
    %433 = arith.addf %430, %432 : vector<8x64xf32>
    %cst_136 = arith.constant 0.000000e+00 : f32
    %434 = vector.broadcast %cst_136 : f32 to vector<8x64xf32>
    %435 = arith.maximumf %433, %434 : vector<8x64xf32>
    %c528 = arith.constant 528 : index
    %c0_137 = arith.constant 0 : index
    %436 = vector.load %arg3[%c528, %c0_137] : memref<816x128xf32, #tpu.memory_space<vmem>>, vector<64x32xf32>
    %cst_138 = arith.constant dense<0.000000e+00> : vector<8x32xf32>
    %437 = tpu.matmul %435, %436, %cst_138 {dimension_numbers = #tpu.dot_dimension_numbers<[1], [0], [0], [1], [0, 0, 1, 1], [], []>} : vector<8x64xf32>, vector<64x32xf32>, vector<8x32xf32> -> vector<8x32xf32>
    %c23 = arith.constant 23 : index
    %c0_139 = arith.constant 0 : index
    %438 = vector.load %arg4[%c23, %c0_139] : memref<48x128xf32, #tpu.memory_space<vmem>>, vector<1x32xf32>
    %439 = vector.broadcast %438 : vector<1x32xf32> to vector<8x32xf32>
    %440 = arith.addf %437, %439 : vector<8x32xf32>
    %441 = arith.addf %440, %428 : vector<8x32xf32>
    %cst_140 = arith.constant dense<0.000000e+00> : vector<8xf32>
    %442 = vector.multi_reduction <add>, %441, %cst_140 [1] : vector<8x32xf32> to vector<8xf32>
    %443 = vector.shape_cast %442 : vector<8xf32> to vector<8x1xf32>
    %cst_141 = arith.constant 3.200000e+01 : f32
    %444 = vector.broadcast %cst_141 : f32 to vector<8x1xf32>
    %445 = arith.divf %443, %444 : vector<8x1xf32>
    %446 = vector.broadcast %445 : vector<8x1xf32> to vector<8x32xf32>
    %447 = arith.subf %441, %446 : vector<8x32xf32>
    %448 = arith.mulf %447, %447 : vector<8x32xf32>
    %cst_142 = arith.constant dense<0.000000e+00> : vector<8xf32>
    %449 = vector.multi_reduction <add>, %448, %cst_142 [1] : vector<8x32xf32> to vector<8xf32>
    %450 = vector.shape_cast %449 : vector<8xf32> to vector<8x1xf32>
    %cst_143 = arith.constant 3.200000e+01 : f32
    %451 = vector.broadcast %cst_143 : f32 to vector<8x1xf32>
    %452 = arith.divf %450, %451 : vector<8x1xf32>
    %453 = vector.broadcast %445 : vector<8x1xf32> to vector<8x32xf32>
    %454 = arith.subf %441, %453 : vector<8x32xf32>
    %cst_144 = arith.constant 9.99999974E-6 : f32
    %455 = vector.broadcast %cst_144 : f32 to vector<8x1xf32>
    %456 = arith.addf %452, %455 : vector<8x1xf32>
    %457 = math.rsqrt %456 : vector<8x1xf32>
    %458 = vector.broadcast %457 : vector<8x1xf32> to vector<8x32xf32>
    %459 = arith.mulf %454, %458 : vector<8x32xf32>
    %c28 = arith.constant 28 : index
    %c0_145 = arith.constant 0 : index
    %460 = vector.load %arg4[%c28, %c0_145] : memref<48x128xf32, #tpu.memory_space<vmem>>, vector<1x32xf32>
    %461 = vector.broadcast %460 : vector<1x32xf32> to vector<8x32xf32>
    %462 = arith.mulf %459, %461 : vector<8x32xf32>
    %c29 = arith.constant 29 : index
    %c0_146 = arith.constant 0 : index
    %463 = vector.load %arg4[%c29, %c0_146] : memref<48x128xf32, #tpu.memory_space<vmem>>, vector<1x32xf32>
    %464 = vector.broadcast %463 : vector<1x32xf32> to vector<8x32xf32>
    %465 = arith.addf %462, %464 : vector<8x32xf32>
    %c592 = arith.constant 592 : index
    %c0_147 = arith.constant 0 : index
    %466 = vector.load %arg3[%c592, %c0_147] : memref<816x128xf32, #tpu.memory_space<vmem>>, vector<32x32xf32>
    %cst_148 = arith.constant dense<0.000000e+00> : vector<8x32xf32>
    %467 = tpu.matmul %465, %466, %cst_148 {dimension_numbers = #tpu.dot_dimension_numbers<[1], [0], [0], [1], [0, 0, 1, 1], [], []>} : vector<8x32xf32>, vector<32x32xf32>, vector<8x32xf32> -> vector<8x32xf32>
    %c30 = arith.constant 30 : index
    %c0_149 = arith.constant 0 : index
    %468 = vector.load %arg4[%c30, %c0_149] : memref<48x128xf32, #tpu.memory_space<vmem>>, vector<1x32xf32>
    %469 = vector.broadcast %468 : vector<1x32xf32> to vector<8x32xf32>
    %470 = arith.addf %467, %469 : vector<8x32xf32>
    %471 = vector.extract_strided_slice %470 {offsets = [0, 0], sizes = [8, 8], strides = [1, 1]} : vector<8x32xf32> to vector<8x8xf32>
    %472 = vector.extract_strided_slice %470 {offsets = [0, 8], sizes = [8, 8], strides = [1, 1]} : vector<8x32xf32> to vector<8x8xf32>
    %473 = vector.extract_strided_slice %470 {offsets = [0, 16], sizes = [8, 8], strides = [1, 1]} : vector<8x32xf32> to vector<8x8xf32>
    %474 = vector.extract_strided_slice %470 {offsets = [0, 24], sizes = [8, 8], strides = [1, 1]} : vector<8x32xf32> to vector<8x8xf32>
    %475 = vector.shape_cast %471 : vector<8x8xf32> to vector<1x8x8xf32>
    %476 = vector.shape_cast %472 : vector<8x8xf32> to vector<1x8x8xf32>
    %477 = vector.shape_cast %473 : vector<8x8xf32> to vector<1x8x8xf32>
    %478 = vector.shape_cast %474 : vector<8x8xf32> to vector<1x8x8xf32>
    %479 = tpu.concatenate %475, %476, %477, %478 in 0 : vector<1x8x8xf32>, vector<1x8x8xf32>, vector<1x8x8xf32>, vector<1x8x8xf32> -> vector<4x8x8xf32>
    "tpu.trace_start"() <{level = 10 : i32, message = "hqd,hkd->hqk"}> : () -> ()
    %cst_150 = arith.constant dense<0.000000e+00> : vector<4x8x8xf32>
    %480 = tpu.matmul %479, %479, %cst_150 {dimension_numbers = #tpu.dot_dimension_numbers<[2], [2], [1], [1], [0, 0, 0, 1, 1, 1], [0], [0]>} : vector<4x8x8xf32>, vector<4x8x8xf32>, vector<4x8x8xf32> -> vector<4x8x8xf32>
    "tpu.trace_stop"() : () -> ()
    %cst_151 = arith.constant 0.353553385 : f32
    %481 = vector.broadcast %cst_151 : f32 to vector<4x8x8xf32>
    %482 = arith.mulf %480, %481 : vector<4x8x8xf32>
    %483 = vector.shape_cast %8 : vector<1x8xf32> to vector<1x1x8xf32>
    %484 = vector.broadcast %483 : vector<1x1x8xf32> to vector<4x8x8xf32>
    %485 = arith.addf %482, %484 : vector<4x8x8xf32>
    %486 = vector.shape_cast %14 : vector<8x8xf32> to vector<1x8x8xf32>
    %487 = vector.broadcast %486 : vector<1x8x8xf32> to vector<4x8x8xf32>
    %488 = arith.addf %485, %487 : vector<4x8x8xf32>
    %cst_152 = arith.constant dense<0xFF800000> : vector<4x8xf32>
    %489 = vector.multi_reduction <maximumf>, %488, %cst_152 [2] : vector<4x8x8xf32> to vector<4x8xf32>
    %490 = vector.shape_cast %489 : vector<4x8xf32> to vector<4x8x1xf32>
    %491 = vector.broadcast %490 : vector<4x8x1xf32> to vector<4x8x8xf32>
    %492 = arith.subf %488, %491 : vector<4x8x8xf32>
    %493 = math.exp %492 : vector<4x8x8xf32>
    %cst_153 = arith.constant dense<0.000000e+00> : vector<4x8xf32>
    %494 = vector.multi_reduction <add>, %493, %cst_153 [2] : vector<4x8x8xf32> to vector<4x8xf32>
    %495 = vector.shape_cast %494 : vector<4x8xf32> to vector<4x8x1xf32>
    %496 = tpu.reciprocal %495 {approx = true} : vector<4x8x1xf32> -> vector<4x8x1xf32>
    %497 = vector.broadcast %496 : vector<4x8x1xf32> to vector<4x8x8xf32>
    %498 = arith.mulf %493, %497 : vector<4x8x8xf32>
    "tpu.trace_start"() <{level = 10 : i32, message = "hqk,hkd->hqd"}> : () -> ()
    %cst_154 = arith.constant dense<0.000000e+00> : vector<4x8x8xf32>
    %499 = tpu.matmul %498, %479, %cst_154 {dimension_numbers = #tpu.dot_dimension_numbers<[2], [1], [1], [2], [0, 0, 0, 1, 1, 2], [0], [0]>} : vector<4x8x8xf32>, vector<4x8x8xf32>, vector<4x8x8xf32> -> vector<4x8x8xf32>
    "tpu.trace_stop"() : () -> ()
    %c624 = arith.constant 624 : index
    %c0_155 = arith.constant 0 : index
    %500 = vector.load %arg3[%c624, %c0_155] : memref<816x128xf32, #tpu.memory_space<vmem>>, vector<32x32xf32>
    %501 = vector.extract_strided_slice %499 {offsets = [0, 0, 0], sizes = [1, 8, 8], strides = [1, 1, 1]} : vector<4x8x8xf32> to vector<1x8x8xf32>
    %502 = vector.shape_cast %501 : vector<1x8x8xf32> to vector<8x8xf32>
    %503 = vector.extract_strided_slice %500 {offsets = [0, 0], sizes = [8, 32], strides = [1, 1]} : vector<32x32xf32> to vector<8x32xf32>
    %cst_156 = arith.constant dense<0.000000e+00> : vector<8x32xf32>
    %504 = tpu.matmul %502, %503, %cst_156 {dimension_numbers = #tpu.dot_dimension_numbers<[1], [0], [0], [1], [0, 0, 1, 1], [], []>} : vector<8x8xf32>, vector<8x32xf32>, vector<8x32xf32> -> vector<8x32xf32>
    %505 = vector.extract_strided_slice %499 {offsets = [1, 0, 0], sizes = [1, 8, 8], strides = [1, 1, 1]} : vector<4x8x8xf32> to vector<1x8x8xf32>
    %506 = vector.shape_cast %505 : vector<1x8x8xf32> to vector<8x8xf32>
    %507 = vector.extract_strided_slice %500 {offsets = [8, 0], sizes = [8, 32], strides = [1, 1]} : vector<32x32xf32> to vector<8x32xf32>
    %cst_157 = arith.constant dense<0.000000e+00> : vector<8x32xf32>
    %508 = tpu.matmul %506, %507, %cst_157 {dimension_numbers = #tpu.dot_dimension_numbers<[1], [0], [0], [1], [0, 0, 1, 1], [], []>} : vector<8x8xf32>, vector<8x32xf32>, vector<8x32xf32> -> vector<8x32xf32>
    %509 = arith.addf %504, %508 : vector<8x32xf32>
    %510 = vector.extract_strided_slice %499 {offsets = [2, 0, 0], sizes = [1, 8, 8], strides = [1, 1, 1]} : vector<4x8x8xf32> to vector<1x8x8xf32>
    %511 = vector.shape_cast %510 : vector<1x8x8xf32> to vector<8x8xf32>
    %512 = vector.extract_strided_slice %500 {offsets = [16, 0], sizes = [8, 32], strides = [1, 1]} : vector<32x32xf32> to vector<8x32xf32>
    %cst_158 = arith.constant dense<0.000000e+00> : vector<8x32xf32>
    %513 = tpu.matmul %511, %512, %cst_158 {dimension_numbers = #tpu.dot_dimension_numbers<[1], [0], [0], [1], [0, 0, 1, 1], [], []>} : vector<8x8xf32>, vector<8x32xf32>, vector<8x32xf32> -> vector<8x32xf32>
    %514 = arith.addf %509, %513 : vector<8x32xf32>
    %515 = vector.extract_strided_slice %499 {offsets = [3, 0, 0], sizes = [1, 8, 8], strides = [1, 1, 1]} : vector<4x8x8xf32> to vector<1x8x8xf32>
    %516 = vector.shape_cast %515 : vector<1x8x8xf32> to vector<8x8xf32>
    %517 = vector.extract_strided_slice %500 {offsets = [24, 0], sizes = [8, 32], strides = [1, 1]} : vector<32x32xf32> to vector<8x32xf32>
    %cst_159 = arith.constant dense<0.000000e+00> : vector<8x32xf32>
    %518 = tpu.matmul %516, %517, %cst_159 {dimension_numbers = #tpu.dot_dimension_numbers<[1], [0], [0], [1], [0, 0, 1, 1], [], []>} : vector<8x8xf32>, vector<8x32xf32>, vector<8x32xf32> -> vector<8x32xf32>
    %519 = arith.addf %514, %518 : vector<8x32xf32>
    %c31 = arith.constant 31 : index
    %c0_160 = arith.constant 0 : index
    %520 = vector.load %arg4[%c31, %c0_160] : memref<48x128xf32, #tpu.memory_space<vmem>>, vector<1x32xf32>
    %521 = vector.broadcast %520 : vector<1x32xf32> to vector<8x32xf32>
    %522 = arith.addf %519, %521 : vector<8x32xf32>
    %523 = arith.addf %522, %465 : vector<8x32xf32>
    %cst_161 = arith.constant dense<0.000000e+00> : vector<8xf32>
    %524 = vector.multi_reduction <add>, %523, %cst_161 [1] : vector<8x32xf32> to vector<8xf32>
    %525 = vector.shape_cast %524 : vector<8xf32> to vector<8x1xf32>
    %cst_162 = arith.constant 3.200000e+01 : f32
    %526 = vector.broadcast %cst_162 : f32 to vector<8x1xf32>
    %527 = arith.divf %525, %526 : vector<8x1xf32>
    %528 = vector.broadcast %527 : vector<8x1xf32> to vector<8x32xf32>
    %529 = arith.subf %523, %528 : vector<8x32xf32>
    %530 = arith.mulf %529, %529 : vector<8x32xf32>
    %cst_163 = arith.constant dense<0.000000e+00> : vector<8xf32>
    %531 = vector.multi_reduction <add>, %530, %cst_163 [1] : vector<8x32xf32> to vector<8xf32>
    %532 = vector.shape_cast %531 : vector<8xf32> to vector<8x1xf32>
    %cst_164 = arith.constant 3.200000e+01 : f32
    %533 = vector.broadcast %cst_164 : f32 to vector<8x1xf32>
    %534 = arith.divf %532, %533 : vector<8x1xf32>
    %535 = vector.broadcast %527 : vector<8x1xf32> to vector<8x32xf32>
    %536 = arith.subf %523, %535 : vector<8x32xf32>
    %cst_165 = arith.constant 9.99999974E-6 : f32
    %537 = vector.broadcast %cst_165 : f32 to vector<8x1xf32>
    %538 = arith.addf %534, %537 : vector<8x1xf32>
    %539 = math.rsqrt %538 : vector<8x1xf32>
    %540 = vector.broadcast %539 : vector<8x1xf32> to vector<8x32xf32>
    %541 = arith.mulf %536, %540 : vector<8x32xf32>
    %c36 = arith.constant 36 : index
    %c0_166 = arith.constant 0 : index
    %542 = vector.load %arg4[%c36, %c0_166] : memref<48x128xf32, #tpu.memory_space<vmem>>, vector<1x32xf32>
    %543 = vector.broadcast %542 : vector<1x32xf32> to vector<8x32xf32>
    %544 = arith.mulf %541, %543 : vector<8x32xf32>
    %c37 = arith.constant 37 : index
    %c0_167 = arith.constant 0 : index
    %545 = vector.load %arg4[%c37, %c0_167] : memref<48x128xf32, #tpu.memory_space<vmem>>, vector<1x32xf32>
    %546 = vector.broadcast %545 : vector<1x32xf32> to vector<8x32xf32>
    %547 = arith.addf %544, %546 : vector<8x32xf32>
    %c656 = arith.constant 656 : index
    %c0_168 = arith.constant 0 : index
    %548 = vector.load %arg3[%c656, %c0_168] : memref<816x128xf32, #tpu.memory_space<vmem>>, vector<32x32xf32>
    %cst_169 = arith.constant dense<0.000000e+00> : vector<8x32xf32>
    %549 = tpu.matmul %547, %548, %cst_169 {dimension_numbers = #tpu.dot_dimension_numbers<[1], [0], [0], [1], [0, 0, 1, 1], [], []>} : vector<8x32xf32>, vector<32x32xf32>, vector<8x32xf32> -> vector<8x32xf32>
    %c32 = arith.constant 32 : index
    %c0_170 = arith.constant 0 : index
    %550 = vector.load %arg4[%c32, %c0_170] : memref<48x128xf32, #tpu.memory_space<vmem>>, vector<1x32xf32>
    %551 = vector.broadcast %550 : vector<1x32xf32> to vector<8x32xf32>
    %552 = arith.addf %549, %551 : vector<8x32xf32>
    %553 = vector.extract_strided_slice %552 {offsets = [0, 0], sizes = [8, 8], strides = [1, 1]} : vector<8x32xf32> to vector<8x8xf32>
    %554 = vector.extract_strided_slice %552 {offsets = [0, 8], sizes = [8, 8], strides = [1, 1]} : vector<8x32xf32> to vector<8x8xf32>
    %555 = vector.extract_strided_slice %552 {offsets = [0, 16], sizes = [8, 8], strides = [1, 1]} : vector<8x32xf32> to vector<8x8xf32>
    %556 = vector.extract_strided_slice %552 {offsets = [0, 24], sizes = [8, 8], strides = [1, 1]} : vector<8x32xf32> to vector<8x8xf32>
    %557 = vector.shape_cast %553 : vector<8x8xf32> to vector<1x8x8xf32>
    %558 = vector.shape_cast %554 : vector<8x8xf32> to vector<1x8x8xf32>
    %559 = vector.shape_cast %555 : vector<8x8xf32> to vector<1x8x8xf32>
    %560 = vector.shape_cast %556 : vector<8x8xf32> to vector<1x8x8xf32>
    %561 = tpu.concatenate %557, %558, %559, %560 in 0 : vector<1x8x8xf32>, vector<1x8x8xf32>, vector<1x8x8xf32>, vector<1x8x8xf32> -> vector<4x8x8xf32>
    %c656_171 = arith.constant 656 : index
    %c0_172 = arith.constant 0 : index
    %562 = vector.load %arg3[%c656_171, %c0_172] : memref<816x128xf32, #tpu.memory_space<vmem>>, vector<32x32xf32>
    %cst_173 = arith.constant dense<0.000000e+00> : vector<8x32xf32>
    %563 = tpu.matmul %253, %562, %cst_173 {dimension_numbers = #tpu.dot_dimension_numbers<[1], [0], [0], [1], [0, 0, 1, 1], [], []>} : vector<8x32xf32>, vector<32x32xf32>, vector<8x32xf32> -> vector<8x32xf32>
    %c32_174 = arith.constant 32 : index
    %c0_175 = arith.constant 0 : index
    %564 = vector.load %arg4[%c32_174, %c0_175] : memref<48x128xf32, #tpu.memory_space<vmem>>, vector<1x32xf32>
    %565 = vector.broadcast %564 : vector<1x32xf32> to vector<8x32xf32>
    %566 = arith.addf %563, %565 : vector<8x32xf32>
    %567 = vector.extract_strided_slice %566 {offsets = [0, 0], sizes = [8, 8], strides = [1, 1]} : vector<8x32xf32> to vector<8x8xf32>
    %568 = vector.extract_strided_slice %566 {offsets = [0, 8], sizes = [8, 8], strides = [1, 1]} : vector<8x32xf32> to vector<8x8xf32>
    %569 = vector.extract_strided_slice %566 {offsets = [0, 16], sizes = [8, 8], strides = [1, 1]} : vector<8x32xf32> to vector<8x8xf32>
    %570 = vector.extract_strided_slice %566 {offsets = [0, 24], sizes = [8, 8], strides = [1, 1]} : vector<8x32xf32> to vector<8x8xf32>
    %571 = vector.shape_cast %567 : vector<8x8xf32> to vector<1x8x8xf32>
    %572 = vector.shape_cast %568 : vector<8x8xf32> to vector<1x8x8xf32>
    %573 = vector.shape_cast %569 : vector<8x8xf32> to vector<1x8x8xf32>
    %574 = vector.shape_cast %570 : vector<8x8xf32> to vector<1x8x8xf32>
    %575 = tpu.concatenate %571, %572, %573, %574 in 0 : vector<1x8x8xf32>, vector<1x8x8xf32>, vector<1x8x8xf32>, vector<1x8x8xf32> -> vector<4x8x8xf32>
    "tpu.trace_start"() <{level = 10 : i32, message = "hqd,hkd->hqk"}> : () -> ()
    %cst_176 = arith.constant dense<0.000000e+00> : vector<4x8x8xf32>
    %576 = tpu.matmul %561, %575, %cst_176 {dimension_numbers = #tpu.dot_dimension_numbers<[2], [2], [1], [1], [0, 0, 0, 1, 1, 1], [0], [0]>} : vector<4x8x8xf32>, vector<4x8x8xf32>, vector<4x8x8xf32> -> vector<4x8x8xf32>
    "tpu.trace_stop"() : () -> ()
    %cst_177 = arith.constant 0.353553385 : f32
    %577 = vector.broadcast %cst_177 : f32 to vector<4x8x8xf32>
    %578 = arith.mulf %576, %577 : vector<4x8x8xf32>
    %579 = vector.shape_cast %8 : vector<1x8xf32> to vector<1x1x8xf32>
    %580 = vector.broadcast %579 : vector<1x1x8xf32> to vector<4x8x8xf32>
    %581 = arith.addf %578, %580 : vector<4x8x8xf32>
    %cst_178 = arith.constant dense<0xFF800000> : vector<4x8xf32>
    %582 = vector.multi_reduction <maximumf>, %581, %cst_178 [2] : vector<4x8x8xf32> to vector<4x8xf32>
    %583 = vector.shape_cast %582 : vector<4x8xf32> to vector<4x8x1xf32>
    %584 = vector.broadcast %583 : vector<4x8x1xf32> to vector<4x8x8xf32>
    %585 = arith.subf %581, %584 : vector<4x8x8xf32>
    %586 = math.exp %585 : vector<4x8x8xf32>
    %cst_179 = arith.constant dense<0.000000e+00> : vector<4x8xf32>
    %587 = vector.multi_reduction <add>, %586, %cst_179 [2] : vector<4x8x8xf32> to vector<4x8xf32>
    %588 = vector.shape_cast %587 : vector<4x8xf32> to vector<4x8x1xf32>
    %589 = tpu.reciprocal %588 {approx = true} : vector<4x8x1xf32> -> vector<4x8x1xf32>
    %590 = vector.broadcast %589 : vector<4x8x1xf32> to vector<4x8x8xf32>
    %591 = arith.mulf %586, %590 : vector<4x8x8xf32>
    "tpu.trace_start"() <{level = 10 : i32, message = "hqk,hkd->hqd"}> : () -> ()
    %cst_180 = arith.constant dense<0.000000e+00> : vector<4x8x8xf32>
    %592 = tpu.matmul %591, %575, %cst_180 {dimension_numbers = #tpu.dot_dimension_numbers<[2], [1], [1], [2], [0, 0, 0, 1, 1, 2], [0], [0]>} : vector<4x8x8xf32>, vector<4x8x8xf32>, vector<4x8x8xf32> -> vector<4x8x8xf32>
    "tpu.trace_stop"() : () -> ()
    %c688 = arith.constant 688 : index
    %c0_181 = arith.constant 0 : index
    %593 = vector.load %arg3[%c688, %c0_181] : memref<816x128xf32, #tpu.memory_space<vmem>>, vector<32x32xf32>
    %594 = vector.extract_strided_slice %592 {offsets = [0, 0, 0], sizes = [1, 8, 8], strides = [1, 1, 1]} : vector<4x8x8xf32> to vector<1x8x8xf32>
    %595 = vector.shape_cast %594 : vector<1x8x8xf32> to vector<8x8xf32>
    %596 = vector.extract_strided_slice %593 {offsets = [0, 0], sizes = [8, 32], strides = [1, 1]} : vector<32x32xf32> to vector<8x32xf32>
    %cst_182 = arith.constant dense<0.000000e+00> : vector<8x32xf32>
    %597 = tpu.matmul %595, %596, %cst_182 {dimension_numbers = #tpu.dot_dimension_numbers<[1], [0], [0], [1], [0, 0, 1, 1], [], []>} : vector<8x8xf32>, vector<8x32xf32>, vector<8x32xf32> -> vector<8x32xf32>
    %598 = vector.extract_strided_slice %592 {offsets = [1, 0, 0], sizes = [1, 8, 8], strides = [1, 1, 1]} : vector<4x8x8xf32> to vector<1x8x8xf32>
    %599 = vector.shape_cast %598 : vector<1x8x8xf32> to vector<8x8xf32>
    %600 = vector.extract_strided_slice %593 {offsets = [8, 0], sizes = [8, 32], strides = [1, 1]} : vector<32x32xf32> to vector<8x32xf32>
    %cst_183 = arith.constant dense<0.000000e+00> : vector<8x32xf32>
    %601 = tpu.matmul %599, %600, %cst_183 {dimension_numbers = #tpu.dot_dimension_numbers<[1], [0], [0], [1], [0, 0, 1, 1], [], []>} : vector<8x8xf32>, vector<8x32xf32>, vector<8x32xf32> -> vector<8x32xf32>
    %602 = arith.addf %597, %601 : vector<8x32xf32>
    %603 = vector.extract_strided_slice %592 {offsets = [2, 0, 0], sizes = [1, 8, 8], strides = [1, 1, 1]} : vector<4x8x8xf32> to vector<1x8x8xf32>
    %604 = vector.shape_cast %603 : vector<1x8x8xf32> to vector<8x8xf32>
    %605 = vector.extract_strided_slice %593 {offsets = [16, 0], sizes = [8, 32], strides = [1, 1]} : vector<32x32xf32> to vector<8x32xf32>
    %cst_184 = arith.constant dense<0.000000e+00> : vector<8x32xf32>
    %606 = tpu.matmul %604, %605, %cst_184 {dimension_numbers = #tpu.dot_dimension_numbers<[1], [0], [0], [1], [0, 0, 1, 1], [], []>} : vector<8x8xf32>, vector<8x32xf32>, vector<8x32xf32> -> vector<8x32xf32>
    %607 = arith.addf %602, %606 : vector<8x32xf32>
    %608 = vector.extract_strided_slice %592 {offsets = [3, 0, 0], sizes = [1, 8, 8], strides = [1, 1, 1]} : vector<4x8x8xf32> to vector<1x8x8xf32>
    %609 = vector.shape_cast %608 : vector<1x8x8xf32> to vector<8x8xf32>
    %610 = vector.extract_strided_slice %593 {offsets = [24, 0], sizes = [8, 32], strides = [1, 1]} : vector<32x32xf32> to vector<8x32xf32>
    %cst_185 = arith.constant dense<0.000000e+00> : vector<8x32xf32>
    %611 = tpu.matmul %609, %610, %cst_185 {dimension_numbers = #tpu.dot_dimension_numbers<[1], [0], [0], [1], [0, 0, 1, 1], [], []>} : vector<8x8xf32>, vector<8x32xf32>, vector<8x32xf32> -> vector<8x32xf32>
    %612 = arith.addf %607, %611 : vector<8x32xf32>
    %c33 = arith.constant 33 : index
    %c0_186 = arith.constant 0 : index
    %613 = vector.load %arg4[%c33, %c0_186] : memref<48x128xf32, #tpu.memory_space<vmem>>, vector<1x32xf32>
    %614 = vector.broadcast %613 : vector<1x32xf32> to vector<8x32xf32>
    %615 = arith.addf %612, %614 : vector<8x32xf32>
    %616 = arith.addf %615, %547 : vector<8x32xf32>
    %cst_187 = arith.constant dense<0.000000e+00> : vector<8xf32>
    %617 = vector.multi_reduction <add>, %616, %cst_187 [1] : vector<8x32xf32> to vector<8xf32>
    %618 = vector.shape_cast %617 : vector<8xf32> to vector<8x1xf32>
    %cst_188 = arith.constant 3.200000e+01 : f32
    %619 = vector.broadcast %cst_188 : f32 to vector<8x1xf32>
    %620 = arith.divf %618, %619 : vector<8x1xf32>
    %621 = vector.broadcast %620 : vector<8x1xf32> to vector<8x32xf32>
    %622 = arith.subf %616, %621 : vector<8x32xf32>
    %623 = arith.mulf %622, %622 : vector<8x32xf32>
    %cst_189 = arith.constant dense<0.000000e+00> : vector<8xf32>
    %624 = vector.multi_reduction <add>, %623, %cst_189 [1] : vector<8x32xf32> to vector<8xf32>
    %625 = vector.shape_cast %624 : vector<8xf32> to vector<8x1xf32>
    %cst_190 = arith.constant 3.200000e+01 : f32
    %626 = vector.broadcast %cst_190 : f32 to vector<8x1xf32>
    %627 = arith.divf %625, %626 : vector<8x1xf32>
    %628 = vector.broadcast %620 : vector<8x1xf32> to vector<8x32xf32>
    %629 = arith.subf %616, %628 : vector<8x32xf32>
    %cst_191 = arith.constant 9.99999974E-6 : f32
    %630 = vector.broadcast %cst_191 : f32 to vector<8x1xf32>
    %631 = arith.addf %627, %630 : vector<8x1xf32>
    %632 = math.rsqrt %631 : vector<8x1xf32>
    %633 = vector.broadcast %632 : vector<8x1xf32> to vector<8x32xf32>
    %634 = arith.mulf %629, %633 : vector<8x32xf32>
    %c38 = arith.constant 38 : index
    %c0_192 = arith.constant 0 : index
    %635 = vector.load %arg4[%c38, %c0_192] : memref<48x128xf32, #tpu.memory_space<vmem>>, vector<1x32xf32>
    %636 = vector.broadcast %635 : vector<1x32xf32> to vector<8x32xf32>
    %637 = arith.mulf %634, %636 : vector<8x32xf32>
    %c39 = arith.constant 39 : index
    %c0_193 = arith.constant 0 : index
    %638 = vector.load %arg4[%c39, %c0_193] : memref<48x128xf32, #tpu.memory_space<vmem>>, vector<1x32xf32>
    %639 = vector.broadcast %638 : vector<1x32xf32> to vector<8x32xf32>
    %640 = arith.addf %637, %639 : vector<8x32xf32>
    %c720 = arith.constant 720 : index
    %c0_194 = arith.constant 0 : index
    %641 = vector.load %arg3[%c720, %c0_194] : memref<816x128xf32, #tpu.memory_space<vmem>>, vector<32x64xf32>
    %cst_195 = arith.constant dense<0.000000e+00> : vector<8x64xf32>
    %642 = tpu.matmul %640, %641, %cst_195 {dimension_numbers = #tpu.dot_dimension_numbers<[1], [0], [0], [1], [0, 0, 1, 1], [], []>} : vector<8x32xf32>, vector<32x64xf32>, vector<8x64xf32> -> vector<8x64xf32>
    %c34 = arith.constant 34 : index
    %c0_196 = arith.constant 0 : index
    %643 = vector.load %arg4[%c34, %c0_196] : memref<48x128xf32, #tpu.memory_space<vmem>>, vector<1x64xf32>
    %644 = vector.broadcast %643 : vector<1x64xf32> to vector<8x64xf32>
    %645 = arith.addf %642, %644 : vector<8x64xf32>
    %cst_197 = arith.constant 0.000000e+00 : f32
    %646 = vector.broadcast %cst_197 : f32 to vector<8x64xf32>
    %647 = arith.maximumf %645, %646 : vector<8x64xf32>
    %c752 = arith.constant 752 : index
    %c0_198 = arith.constant 0 : index
    %648 = vector.load %arg3[%c752, %c0_198] : memref<816x128xf32, #tpu.memory_space<vmem>>, vector<64x32xf32>
    %cst_199 = arith.constant dense<0.000000e+00> : vector<8x32xf32>
    %649 = tpu.matmul %647, %648, %cst_199 {dimension_numbers = #tpu.dot_dimension_numbers<[1], [0], [0], [1], [0, 0, 1, 1], [], []>} : vector<8x64xf32>, vector<64x32xf32>, vector<8x32xf32> -> vector<8x32xf32>
    %c35 = arith.constant 35 : index
    %c0_200 = arith.constant 0 : index
    %650 = vector.load %arg4[%c35, %c0_200] : memref<48x128xf32, #tpu.memory_space<vmem>>, vector<1x32xf32>
    %651 = vector.broadcast %650 : vector<1x32xf32> to vector<8x32xf32>
    %652 = arith.addf %649, %651 : vector<8x32xf32>
    %653 = arith.addf %652, %640 : vector<8x32xf32>
    %cst_201 = arith.constant dense<0.000000e+00> : vector<8xf32>
    %654 = vector.multi_reduction <add>, %653, %cst_201 [1] : vector<8x32xf32> to vector<8xf32>
    %655 = vector.shape_cast %654 : vector<8xf32> to vector<8x1xf32>
    %cst_202 = arith.constant 3.200000e+01 : f32
    %656 = vector.broadcast %cst_202 : f32 to vector<8x1xf32>
    %657 = arith.divf %655, %656 : vector<8x1xf32>
    %658 = vector.broadcast %657 : vector<8x1xf32> to vector<8x32xf32>
    %659 = arith.subf %653, %658 : vector<8x32xf32>
    %660 = arith.mulf %659, %659 : vector<8x32xf32>
    %cst_203 = arith.constant dense<0.000000e+00> : vector<8xf32>
    %661 = vector.multi_reduction <add>, %660, %cst_203 [1] : vector<8x32xf32> to vector<8xf32>
    %662 = vector.shape_cast %661 : vector<8xf32> to vector<8x1xf32>
    %cst_204 = arith.constant 3.200000e+01 : f32
    %663 = vector.broadcast %cst_204 : f32 to vector<8x1xf32>
    %664 = arith.divf %662, %663 : vector<8x1xf32>
    %665 = vector.broadcast %657 : vector<8x1xf32> to vector<8x32xf32>
    %666 = arith.subf %653, %665 : vector<8x32xf32>
    %cst_205 = arith.constant 9.99999974E-6 : f32
    %667 = vector.broadcast %cst_205 : f32 to vector<8x1xf32>
    %668 = arith.addf %664, %667 : vector<8x1xf32>
    %669 = math.rsqrt %668 : vector<8x1xf32>
    %670 = vector.broadcast %669 : vector<8x1xf32> to vector<8x32xf32>
    %671 = arith.mulf %666, %670 : vector<8x32xf32>
    %c40 = arith.constant 40 : index
    %c0_206 = arith.constant 0 : index
    %672 = vector.load %arg4[%c40, %c0_206] : memref<48x128xf32, #tpu.memory_space<vmem>>, vector<1x32xf32>
    %673 = vector.broadcast %672 : vector<1x32xf32> to vector<8x32xf32>
    %674 = arith.mulf %671, %673 : vector<8x32xf32>
    %c41 = arith.constant 41 : index
    %c0_207 = arith.constant 0 : index
    %675 = vector.load %arg4[%c41, %c0_207] : memref<48x128xf32, #tpu.memory_space<vmem>>, vector<1x32xf32>
    %676 = vector.broadcast %675 : vector<1x32xf32> to vector<8x32xf32>
    %677 = arith.addf %674, %676 : vector<8x32xf32>
    %c16_208 = arith.constant 16 : index
    %c0_209 = arith.constant 0 : index
    %678 = vector.load %arg3[%c16_208, %c0_209] : memref<816x128xf32, #tpu.memory_space<vmem>>, vector<32x128xf32>
    %cst_210 = arith.constant dense<0.000000e+00> : vector<8x128xf32>
    %679 = tpu.matmul %677, %678, %cst_210 {dimension_numbers = #tpu.dot_dimension_numbers<[1], [0], [0], [1], [0, 0, 1, 1], [], []>} : vector<8x32xf32>, vector<32x128xf32>, vector<8x128xf32> -> vector<8x128xf32>
    %c1 = arith.constant 1 : index
    %c0_211 = arith.constant 0 : index
    %680 = vector.load %arg4[%c1, %c0_211] : memref<48x128xf32, #tpu.memory_space<vmem>>, vector<1x128xf32>
    %681 = vector.broadcast %680 : vector<1x128xf32> to vector<8x128xf32>
    %682 = arith.addf %679, %681 : vector<8x128xf32>
    %cst_212 = arith.constant 0.000000e+00 : f32
    %683 = vector.broadcast %cst_212 : f32 to vector<8x128xf32>
    %684 = arith.maximumf %682, %683 : vector<8x128xf32>
    %c0_213 = arith.constant 0 : index
    %c0_214 = arith.constant 0 : index
    %c0_215 = arith.constant 0 : index
    %685 = vector.load %arg5[%c0_213, %c0_214, %c0_215] : memref<1x8x128xf32, #tpu.memory_space<vmem>>, vector<1x8x128xf32>
    %686 = vector.shape_cast %685 : vector<1x8x128xf32> to vector<8x128xf32>
    %687 = vector.shape_cast %684 : vector<8x128xf32> to vector<1x8x128xf32>
    tpu.vector_store %arg5[%c0_213, %c0_214, %c0_215], %687 {strides = array<i32>} : memref<1x8x128xf32, #tpu.memory_space<vmem>>, vector<1x8x128xf32>,
    return
  }
  func.func @transform_0(%arg0: i32) -> (i32, i32, i32) {
    %c0_i32 = arith.constant 0 : i32
    %c0_i32_0 = arith.constant 0 : i32
    %c0_i32_1 = arith.constant 0 : i32
    return %arg0, %c0_i32, %c0_i32_0 : i32, i32, i32
  }
  func.func @transform_1(%arg0: i32) -> (i32, i32, i32) {
    %c0_i32 = arith.constant 0 : i32
    %c0_i32_0 = arith.constant 0 : i32
    %c0_i32_1 = arith.constant 0 : i32
    return %arg0, %c0_i32, %c0_i32_0 : i32, i32, i32
  }
  func.func @transform_2(%arg0: i32) -> (i32, i32) {
    %c0_i32 = arith.constant 0 : i32
    %c0_i32_0 = arith.constant 0 : i32
    %c0_i32_1 = arith.constant 0 : i32
    return %c0_i32, %c0_i32_0 : i32, i32
  }
  func.func @transform_3(%arg0: i32) -> (i32, i32) {
    %c0_i32 = arith.constant 0 : i32
    %c0_i32_0 = arith.constant 0 : i32
    %c0_i32_1 = arith.constant 0 : i32
    return %c0_i32, %c0_i32_0 : i32, i32
  }
  func.func @transform_4(%arg0: i32) -> (i32, i32, i32) {
    %c0_i32 = arith.constant 0 : i32
    %c0_i32_0 = arith.constant 0 : i32
    %c0_i32_1 = arith.constant 0 : i32
    return %arg0, %c0_i32, %c0_i32_0 : i32, i32, i32
  }
}

</mosaic_0001>

<llo_original>
// kernel: tpu_custom_call.1
$region0: #{tpu_custom_call.1}
  #allocation0 [shape = 'u32[]', space=smem, size = 0x4, offset = 0x4, fixed_abs, tag = 'smem constant byte address 0x4 - core index']
  #allocation1 [shape = 'u32[144,128]{1,0:T(1,128)}', space=vmem, size = 0x12000, scoped, tag = 'internal scratch']
  %s0 = inlined_call_operand.hbm [shape: f32[2,8,4], index: 0, kind: input, shape index: {}]
  %s1 = inlined_call_operand.hbm [shape: f32[2,1,8], index: 1, kind: input, shape index: {}]
  %s2 = inlined_call_operand.hbm [shape: f32[816,128], index: 2, kind: input, shape index: {}]
  %s3 = inlined_call_operand.hbm [shape: f32[48,128], index: 3, kind: input, shape index: {}]
  %s4 = inlined_call_operand.hbm [shape: f32[2,8,128], index: 4, kind: output, shape index: {}]
  %s5 = sld [smem:[#allocation0]]
  $region65: #{tpu_custom_call.1} parent=0
    _
  %s7 = ssub.s32 1, %s5
  %s8 = scalar_select 0, %s7, %s5
  $region1: #{tpu_custom_call.1} parent=0
    #allocation2 [shape = 'u8[8192]{0}', space=vmem, size = 0x2000, scoped, tag = 'input window, operand 0']
    #allocation3 [shape = 's32[2]{0}', space=sflag, size = 0x8, scoped, tag = 'scoped memory for tpu_custom_call.1']
    #allocation4 [shape = 's32[2]{0}', space=sflag, size = 0x8, scoped, tag = 'scoped memory for tpu_custom_call.1']
    #allocation5 [shape = 'u8[1024]{0}', space=vmem, size = 0x400, scoped, tag = 'input window, operand 1']
    #allocation6 [shape = 's32[2]{0}', space=sflag, size = 0x8, scoped, tag = 'scoped memory for tpu_custom_call.1']
    #allocation7 [shape = 'u8[417792]{0}', space=vmem, size = 0x66000, scoped, tag = 'input window, operand 2, single buffered']
    #allocation8 [shape = 'u8[24576]{0}', space=vmem, size = 0x6000, scoped, tag = 'input window, operand 3, single buffered']
    #allocation9 [shape = 's32[1]{0}', space=sflag, size = 0x4, scoped, tag = 'scoped memory for tpu_custom_call.1']
    #allocation10 [shape = 'u8[8192]{0}', space=vmem, size = 0x2000, scoped, tag = 'output window, operand 0']
    %9 = vsyncpa [#allocation3], 0
    %s10 = scalar_lea.sflag [#allocation3], 1
    %11 = vsyncpa %s10, 0
    %12 = vsyncpa [#allocation6], 0
    %s13 = scalar_lea.sflag [#allocation6], 1
    %14 = vsyncpa %s13, 0
    %15 = vsyncpa [#allocation9], 0
    %16 = vsyncpa [#allocation4], 0
    %s17 = scalar_lea.sflag [#allocation4], 1
    %18 = vsyncpa %s17, 0
    loop: start=0, step=1, limit=4
    $region2: #{tpu_custom_call.1} parent=1 // loop_pre_header
      _
    $region3: #{tpu_custom_call.1} parent=1 // loop_header
      %s20 = sphi 0, %s24
      %p21 = scmp.ge.s32.totalorder %s20, 4
      %s30 = sphi 0, %s32
      %s33 = sphi 0, %s30
      %s34 = sphi 0, %s33
      %s50 = sphi 0, %s34
      %s56 = sphi 0, %s58
      %s59 = sphi 0, %s56
      %s60 = sphi 0, %s59
      %s76 = sphi 0, %s60
      %s80 = sphi 0, %s80
      %s82 = sphi 0, %s80
      %s83 = sphi 0, %s82
      %s97 = sphi 0, %s83
      %s101 = sphi 0, %s101
      %s103 = sphi 0, %s101
      %s104 = sphi 0, %s103
      %s118 = sphi 0, %s104
      %s124 = sphi 0, %s126
      %s127 = sphi 0, %s124
      %s128 = sphi 0, %s127
      %s144 = sphi 0, %s128
    $region4: #{tpu_custom_call.1} parent=1 // loop_header_branch
      %23 = sbr.rel (%p21) target = $region8
    $region5: #{tpu_custom_call.1} parent=1 // loop_body
      %s25 = ssub.s32 %s20, 1
      %s26 = ssub.s32 %s20, 2
      %s27 = sadd.s32 %s20, 1
      %s28 = ssub.s32 %s20, %s27
      %p29 = scmp.eq.s32.totalorder %s28, 0
      %s31 = sadd.s32 %s30, 1
      %s32 = scalar_select %p29, %s30, %s31
      %p35 = pneg %p29
      %p36 = scmp.eq.s32.totalorder %s20, 1
      %p37 = por %p35, %p36
      %p38 = scmp.ne.s32.totalorder %s30, %s33
      %p39 = scmp.eq.s32.totalorder %s20, 0
      %p40 = por %p38, %p39
      %p41 = scmp.ne.s32.totalorder %s30, %s33
      %p42 = scmp.eq.s32.totalorder %s25, 1
      %p43 = por %p41, %p42
      %p44 = scmp.ne.s32.totalorder %s33, %s34
      %p45 = scmp.eq.s32.totalorder %s25, 0
      %p46 = por %p44, %p45
      %p47 = scmp.ne.s32.totalorder %s33, %s34
      %p48 = scmp.eq.s32.totalorder %s26, 1
      %p49 = por %p47, %p48
      %p51 = scmp.ne.s32.totalorder %s34, %s50
      %p52 = scmp.eq.s32.totalorder %s26, 0
      %p53 = por %p51, %p52
      %s54 = ssub.s32 %s20, %s27
      %p55 = scmp.eq.s32.totalorder %s54, 0
      %s57 = sadd.s32 %s56, 1
      %s58 = scalar_select %p55, %s56, %s57
      %p61 = pneg %p55
      %p62 = scmp.eq.s32.totalorder %s20, 1
      %p63 = por %p61, %p62
      %p64 = scmp.ne.s32.totalorder %s56, %s59
      %p65 = scmp.eq.s32.totalorder %s20, 0
      %p66 = por %p64, %p65
      %p67 = scmp.ne.s32.totalorder %s56, %s59
      %p68 = scmp.eq.s32.totalorder %s25, 1
      %p69 = por %p67, %p68
      %p70 = scmp.ne.s32.totalorder %s59, %s60
      %p71 = scmp.eq.s32.totalorder %s25, 0
      %p72 = por %p70, %p71
      %p73 = scmp.ne.s32.totalorder %s59, %s60
      %p74 = scmp.eq.s32.totalorder %s26, 1
      %p75 = por %p73, %p74
      %p77 = scmp.ne.s32.totalorder %s60, %s76
      %p78 = scmp.eq.s32.totalorder %s26, 0
      %p79 = por %p77, %p78
      %s81 = sadd.s32 %s80, 1
      %p84 = scmp.eq.s32.totalorder %s20, 1
      %p85 = scmp.ne.s32.totalorder %s80, %s82
      %p86 = scmp.eq.s32.totalorder %s20, 0
      %p87 = por %p85, %p86
      %p88 = scmp.ne.s32.totalorder %s80, %s82
      %p89 = scmp.eq.s32.totalorder %s25, 1
      %p90 = por %p88, %p89
      %p91 = scmp.ne.s32.totalorder %s82, %s83
      %p92 = scmp.eq.s32.totalorder %s25, 0
      %p93 = por %p91, %p92
      %p94 = scmp.ne.s32.totalorder %s82, %s83
      %p95 = scmp.eq.s32.totalorder %s26, 1
      %p96 = por %p94, %p95
      %p98 = scmp.ne.s32.totalorder %s83, %s97
      %p99 = scmp.eq.s32.totalorder %s26, 0
      %p100 = por %p98, %p99
      %s102 = sadd.s32 %s101, 1
      %p105 = scmp.eq.s32.totalorder %s20, 1
      %p106 = scmp.ne.s32.totalorder %s101, %s103
      %p107 = scmp.eq.s32.totalorder %s20, 0
      %p108 = por %p106, %p107
      %p109 = scmp.ne.s32.totalorder %s101, %s103
      %p110 = scmp.eq.s32.totalorder %s25, 1
      %p111 = por %p109, %p110
      %p112 = scmp.ne.s32.totalorder %s103, %s104
      %p113 = scmp.eq.s32.totalorder %s25, 0
      %p114 = por %p112, %p113
      %p115 = scmp.ne.s32.totalorder %s103, %s104
      %p116 = scmp.eq.s32.totalorder %s26, 1
      %p117 = por %p115, %p116
      %p119 = scmp.ne.s32.totalorder %s104, %s118
      %p120 = scmp.eq.s32.totalorder %s26, 0
      %p121 = por %p119, %p120
      %s122 = ssub.s32 %s20, %s27
      %p123 = scmp.eq.s32.totalorder %s122, 0
      %s125 = sadd.s32 %s124, 1
      %s126 = scalar_select %p123, %s124, %s125
      %p129 = pneg %p123
      %p130 = scmp.eq.s32.totalorder %s20, 1
      %p131 = por %p129, %p130
      %p132 = scmp.ne.s32.totalorder %s124, %s127
      %p133 = scmp.eq.s32.totalorder %s20, 0
      %p134 = por %p132, %p133
      %p135 = scmp.ne.s32.totalorder %s124, %s127
      %p136 = scmp.eq.s32.totalorder %s25, 1
      %p137 = por %p135, %p136
      %p138 = scmp.ne.s32.totalorder %s127, %s128
      %p139 = scmp.eq.s32.totalorder %s25, 0
      %p140 = por %p138, %p139
      %p141 = scmp.ne.s32.totalorder %s127, %s128
      %p142 = scmp.eq.s32.totalorder %s26, 1
      %p143 = por %p141, %p142
      %p145 = scmp.ne.s32.totalorder %s128, %s144
      %p146 = scmp.eq.s32.totalorder %s26, 0
      %p147 = por %p145, %p146
      %p148 = scmp.le.s32.totalorder 1, %s20
      %p149 = scmp.lt.s32.totalorder %s20, 3
      %p150 = pnand %p148, %p149
      %p151 = pneg %p150
      // Predicated region
      $region9: #{tpu_custom_call.1} parent=5 // pred_check
        _
      $region10: #{tpu_custom_call.1} parent=5 // pred_check_branch
        %153 = sbr.rel (%p150) target = $region12
      $region11: #{tpu_custom_call.1} parent=5 // pred_region
        %s154 = ssub.s32 %s20, 1
        // Predicated region
        $region13: #{tpu_custom_call.1} parent=11 // pred_check
          %p155 = pneg %p93
        $region14: #{tpu_custom_call.1} parent=11 // pred_check_branch
          %157 = sbr.rel (%p155) target = $region16
        $region15: #{tpu_custom_call.1} parent=11 // pred_region
          %s159 = ssub.s32 13056, 13056
          %160 = vsyncadd [#allocation6], %s159
          %s161 = sshll.u32 [#allocation7], 4
          %s162 = int_to_ptr.vmem [resolvable:$true] %s161
          %167 = dma.hbm_to_vmem [thread:$0]  %s2, 13056, %s162, [#allocation6], 128, 128, 8
        $region16: #{tpu_custom_call.1} parent=11 // pred_fallthru
          _
        // Predicated region
        $region17: #{tpu_custom_call.1} parent=11 // pred_check
          %p168 = pneg %p114
        $region18: #{tpu_custom_call.1} parent=11 // pred_check_branch
          %170 = sbr.rel (%p168) target = $region20
        $region19: #{tpu_custom_call.1} parent=11 // pred_region
          %s172 = ssub.s32 768, 768
          %173 = vsyncadd [#allocation9], %s172
          %s174 = sshll.u32 [#allocation8], 4
          %s175 = int_to_ptr.vmem [resolvable:$true] %s174
          %180 = dma.hbm_to_vmem [thread:$0]  %s3, 768, %s175, [#allocation9], 128, 128, 8
        $region20: #{tpu_custom_call.1} parent=11 // pred_fallthru
          _
      $region12: #{tpu_custom_call.1} parent=5 // pred_fallthru
        _
      %p181 = scmp.lt.s32.totalorder %s20, 2
      // Predicated region
      $region21: #{tpu_custom_call.1} parent=5 // pred_check
        %p182 = pneg %p181
      $region22: #{tpu_custom_call.1} parent=5 // pred_check_branch
        %184 = sbr.rel (%p182) target = $region24
      $region23: #{tpu_custom_call.1} parent=5 // pred_region
        // Predicated region
        $region25: #{tpu_custom_call.1} parent=23 // pred_check
          %p185 = pneg %p40
        $region26: #{tpu_custom_call.1} parent=23 // pred_check_branch
          %187 = sbr.rel (%p185) target = $region28
        $region27: #{tpu_custom_call.1} parent=23 // pred_region
          %s188 = sand.u32 %s30, 1
          %s189 = scalar_lea.sflag [#allocation3], %s188
          %s190 = sand.u32 %s30, 1
          %s191 = smul.addr %s190, 8
          %s192 = scalar_lea.vmem [#allocation2], %s191
          %s194 = ssub.s32 128, 128
          %195 = vsyncadd %s189, %s194
          %s196 = smul.addr %s20, 128
          %s197 = scalar_lea.hbm %s0, %s196
          %s199 = sshll.u32 %s192, 4
          %s200 = int_to_ptr.vmem [resolvable:$true] %s199
          %202 = dma.hbm_to_vmem [thread:$0]  %s197, 128, %s200, %s189
        $region28: #{tpu_custom_call.1} parent=23 // pred_fallthru
          _
        // Predicated region
        $region29: #{tpu_custom_call.1} parent=23 // pred_check
          %p203 = pneg %p66
        $region30: #{tpu_custom_call.1} parent=23 // pred_check_branch
          %205 = sbr.rel (%p203) target = $region32
        $region31: #{tpu_custom_call.1} parent=23 // pred_region
          %s206 = sand.u32 %s20, 1
          %s207 = scalar_lea.sflag [#allocation6], %s206
          %s208 = sand.u32 %s56, 1
          %s209 = scalar_lea.vmem [#allocation5], %s208
          %s211 = ssub.s32 16, 16
          %212 = vsyncadd %s207, %s211
          %s213 = smul.addr %s20, 16
          %s214 = scalar_lea.hbm %s1, %s213
          %s216 = sshll.u32 %s209, 4
          %s217 = int_to_ptr.vmem [resolvable:$true] %s216
          %219 = dma.hbm_to_vmem [thread:$0]  %s214, 16, %s217, %s207
        $region32: #{tpu_custom_call.1} parent=23 // pred_fallthru
          _
      $region24: #{tpu_custom_call.1} parent=5 // pred_fallthru
        _
      %p220 = scmp.le.s32.totalorder 1, %s20
      %p221 = scmp.lt.s32.totalorder %s20, 3
      %p222 = pnand %p220, %p221
      %p223 = pneg %p222
      // Predicated region
      $region33: #{tpu_custom_call.1} parent=5 // pred_check
        _
      $region34: #{tpu_custom_call.1} parent=5 // pred_check_branch
        %225 = sbr.rel (%p222) target = $region36
      $region35: #{tpu_custom_call.1} parent=5 // pred_region
        %s226 = ssub.s32 %s20, 1
        %s227 = sand.u32 %s33, 1
        %s228 = scalar_lea.sflag [#allocation3], %s227
        %s229 = sand.u32 %s33, 1
        %s230 = smul.addr %s229, 8
        %s231 = scalar_lea.vmem [#allocation2], %s230
        // Predicated region
        $region37: #{tpu_custom_call.1} parent=35 // pred_check
          %p232 = pneg %p46
        $region38: #{tpu_custom_call.1} parent=35 // pred_check_branch
          %234 = sbr.rel (%p232) target = $region40
        $region39: #{tpu_custom_call.1} parent=35 // pred_region
          %235 = dma.done %s228, 128
        $region40: #{tpu_custom_call.1} parent=35 // pred_fallthru
          _
        %s236 = sand.u32 %s25, 1
        %s237 = scalar_lea.sflag [#allocation6], %s236
        %s238 = sand.u32 %s59, 1
        %s239 = scalar_lea.vmem [#allocation5], %s238
        // Predicated region
        $region41: #{tpu_custom_call.1} parent=35 // pred_check
          %p240 = pneg %p72
        $region42: #{tpu_custom_call.1} parent=35 // pred_check_branch
          %242 = sbr.rel (%p240) target = $region44
        $region43: #{tpu_custom_call.1} parent=35 // pred_region
          %243 = dma.done %s237, 16
        $region44: #{tpu_custom_call.1} parent=35 // pred_fallthru
          _
        // Predicated region
        $region45: #{tpu_custom_call.1} parent=35 // pred_check
          %p244 = pneg %p93
        $region46: #{tpu_custom_call.1} parent=35 // pred_check_branch
          %246 = sbr.rel (%p244) target = $region48
        $region47: #{tpu_custom_call.1} parent=35 // pred_region
          %247 = dma.done [#allocation6], 13056
        $region48: #{tpu_custom_call.1} parent=35 // pred_fallthru
          _
        // Predicated region
        $region49: #{tpu_custom_call.1} parent=35 // pred_check
          %p248 = pneg %p114
        $region50: #{tpu_custom_call.1} parent=35 // pred_check_branch
          %250 = sbr.rel (%p248) target = $region52
        $region51: #{tpu_custom_call.1} parent=35 // pred_region
          %251 = dma.done [#allocation9], 768
        $region52: #{tpu_custom_call.1} parent=35 // pred_fallthru
          _
        %s252 = sand.u32 %s33, 1
        %s253 = scalar_lea.sflag [#allocation3], %s252
        %s254 = sand.u32 %s33, 1
        %s255 = smul.addr %s254, 8
        %s256 = scalar_lea.vmem [#allocation2], %s255
        %p257 = pneg %p46
        %p258 = pneg %p43
        %s259 = sand.u32 %s25, 1
        %s260 = scalar_lea.sflag [#allocation6], %s259
        %s261 = sand.u32 %s59, 1
        %s262 = scalar_lea.vmem [#allocation5], %s261
        %p263 = pneg %p72
        %p264 = pneg %p69
        %p265 = pneg %p93
        %p266 = pneg %p90
        %p267 = pneg %p114
        %p268 = pneg %p111
        %p269 = pneg %p140
        %p270 = pneg %p137
        %s271 = sand.u32 %s127, 1
        %s272 = scalar_lea.sflag [#allocation4], %s271
        %s273 = sand.u32 %s127, 1
        %s274 = smul.addr %s273, 8
        %s275 = scalar_lea.vmem [#allocation10], %s274
        %v276 = vld [vmem:[%s231] sm:$0xff]
        %v277 = vld [vmem:[%s239] sm:$0x1]
        %vm278 = vcmp.eq.f32.partialorder %v277, 0.0
        %v279 = vsel %vm278, -inf, 0.0
        %v280 = vlaneseq
        %v281 = vshrl.u32 %v280, 7
        %v282 = vlaneseq
        %v283 = vand.u32 %v282, 127
        %vm284 = vcmp.gt.s32.totalorder %v283, %v281
        %v285 = vsel %vm284, -inf, 0.0
        %v286 = vld [vmem:[#allocation7] sm:$0xf]
        %v287 = vld [vmem:[#allocation8] sm:$0x1]
        %v288 = vlaneseq
        %v289 = vshrl.u32 %v288, 7
        %v290 = vsub.s32 0, %v289
        %v291 = vrot.slane %v287, %v290
        %vm292 = vcmask 31744
        %v294 = vsel %vm292, %v276, 0
        %vm296 = vcmask 1043456
        %v298 = vsel %vm296, %v286, 0
        %300 = vmatprep.subr.mxu0 0.0
        %301 = vmatpush1.msra.mxu0 %v298
        %302 = vmatprep.subr.mxu0 0.0
        %303 = vmatpush1.msra.mxu0 0.0
        %304 = vmatprep.subr.mxu0 0.0
        %305 = vmatpush1.msra.mxu0 0.0
        %306 = vmatprep.subr.mxu0 0.0
        %307 = vmatpush1.msra.mxu0 0.0
        %308 = vmatprep.subr.mxu0 0.0
        %309 = vmatpush1.msra.mxu0 0.0
        %310 = vmatprep.subr.mxu0 0.0
        %311 = vmatpush1.msra.mxu0 0.0
        %312 = vmatprep.subr.mxu0 0.0
        %313 = vmatpush1.msra.mxu0 0.0
        %314 = vmatprep.subr.mxu0 0.0
        %315 = vmatpush1.msra.mxu0 0.0
        %316 = vmatprep.subr.mxu0 0.0
        %317 = vmatpush1.msra.mxu0 0.0
        %318 = vmatprep.subr.mxu0 0.0
        %319 = vmatpush1.msra.mxu0 0.0
        %320 = vmatprep.subr.mxu0 0.0
        %321 = vmatpush1.msra.mxu0 0.0
        %322 = vmatprep.subr.mxu0 0.0
        %323 = vmatpush1.msra.mxu0 0.0
        %324 = vmatprep.subr.mxu0 0.0
        %325 = vmatpush1.msra.mxu0 0.0
        %326 = vmatprep.subr.mxu0 0.0
        %327 = vmatpush1.msra.mxu0 0.0
        %328 = vmatprep.subr.mxu0 0.0
        %329 = vmatpush1.msra.mxu0 0.0
        %330 = vmatprep.subr.mxu0 0.0
        %331 = vmatpush1.msra.mxu0 0.0
        %332 = vmatprep.subr.mxu0 0.0
        %333 = vmatpush1.msra.mxu0 0.0
        %334 = vmatprep.subr.mxu0 0.0
        %335 = vmatpush1.msra.mxu0 0.0
        %336 = vmatprep.subr.mxu0 0.0
        %337 = vmatpush1.msra.mxu0 0.0
        %338 = vmatprep.subr.mxu0 0.0
        %339 = vmatpush1.msra.mxu0 0.0
        %340 = vmatprep.subr.mxu0 0.0
        %341 = vmatpush1.msra.mxu0 0.0
        %342 = vmatprep.subr.mxu0 0.0
        %343 = vmatpush1.msra.mxu0 0.0
        %344 = vmatprep.subr.mxu0 0.0
        %345 = vmatpush1.msra.mxu0 0.0
        %346 = vmatprep.subr.mxu0 0.0
        %347 = vmatpush1.msra.mxu0 0.0
        %348 = vmatprep.subr.mxu0 0.0
        %349 = vmatpush1.msra.mxu0 0.0
        %350 = vmatprep.subr.mxu0 0.0
        %351 = vmatpush1.msra.mxu0 0.0
        %352 = vmatprep.subr.mxu0 0.0
        %353 = vmatpush1.msra.mxu0 0.0
        %354 = vmatprep.subr.mxu0 0.0
        %355 = vmatpush1.msra.mxu0 0.0
        %356 = vmatprep.subr.mxu0 0.0
        %357 = vmatpush1.msra.mxu0 0.0
        %358 = vmatprep.subr.mxu0 0.0
        %359 = vmatpush1.msra.mxu0 0.0
        %360 = vmatprep.subr.mxu0 0.0
        %361 = vmatpush1.msra.mxu0 0.0
        %362 = vmatprep.subr.mxu0 0.0
        %363 = vmatpush1.msra.mxu0 0.0
        %364 = vmatprep.mubr.f32.mxu0 0.0
        %365 = vmatmul.mubr.f32.gmra.mrb[0].mxu0 %v294
        %v366 = vpop.f32.mrb[0].mxu0
        %v367 = vadd.f32 %v291, %v366
        %v368 = vpop.f32.mrb[0].mxu0
        %369 = vdwg.mxu0
        %v370 = vld [vmem:[#allocation7 + $0x8] sm:$0xff]
        %v371 = vadd.f32 %v367, %v370
        %v372 = vld [vmem:[#allocation7 + $0x30] sm:$0xff]
        %v373 = vld [vmem:[#allocation7 + $0x38] sm:$0xff]
        %v374 = vld [vmem:[#allocation7 + $0x40] sm:$0xff]
        %v375 = vld [vmem:[#allocation7 + $0x48] sm:$0xff]
        %v376 = vld [vmem:[#allocation8 + $0x2] sm:$0x1]
        %v377 = vlaneseq
        %v378 = vshrl.u32 %v377, 7
        %v379 = vsub.s32 0, %v378
        %v380 = vrot.slane %v376, %v379
        %vm381 = vcmask 261120
        %v383 = vsel %vm381, %v371, 0
        %385 = vmatprep.subr.mxu0 0.0
        %386 = vmatpush1.msra.mxu0 %v372
        %387 = vmatprep.subr.mxu0 0.0
        %388 = vmatpush1.msra.mxu0 %v373
        %389 = vmatprep.subr.mxu0 0.0
        %390 = vmatpush1.msra.mxu0 %v374
        %391 = vmatprep.subr.mxu0 0.0
        %392 = vmatpush1.msra.mxu0 %v375
        %393 = vmatprep.subr.mxu0 0.0
        %394 = vmatpush1.msra.mxu0 0.0
        %395 = vmatprep.subr.mxu0 0.0
        %396 = vmatpush1.msra.mxu0 0.0
        %397 = vmatprep.subr.mxu0 0.0
        %398 = vmatpush1.msra.mxu0 0.0
        %399 = vmatprep.subr.mxu0 0.0
        %400 = vmatpush1.msra.mxu0 0.0
        %401 = vmatprep.subr.mxu0 0.0
        %402 = vmatpush1.msra.mxu0 0.0
        %403 = vmatprep.subr.mxu0 0.0
        %404 = vmatpush1.msra.mxu0 0.0
        %405 = vmatprep.subr.mxu0 0.0
        %406 = vmatpush1.msra.mxu0 0.0
        %407 = vmatprep.subr.mxu0 0.0
        %408 = vmatpush1.msra.mxu0 0.0
        %409 = vmatprep.subr.mxu0 0.0
        %410 = vmatpush1.msra.mxu0 0.0
        %411 = vmatprep.subr.mxu0 0.0
        %412 = vmatpush1.msra.mxu0 0.0
        %413 = vmatprep.subr.mxu0 0.0
        %414 = vmatpush1.msra.mxu0 0.0
        %415 = vmatprep.subr.mxu0 0.0
        %416 = vmatpush1.msra.mxu0 0.0
        %417 = vmatprep.subr.mxu0 0.0
        %418 = vmatpush1.msra.mxu0 0.0
        %419 = vmatprep.subr.mxu0 0.0
        %420 = vmatpush1.msra.mxu0 0.0
        %421 = vmatprep.subr.mxu0 0.0
        %422 = vmatpush1.msra.mxu0 0.0
        %423 = vmatprep.subr.mxu0 0.0
        %424 = vmatpush1.msra.mxu0 0.0
        %425 = vmatprep.subr.mxu0 0.0
        %426 = vmatpush1.msra.mxu0 0.0
        %427 = vmatprep.subr.mxu0 0.0
        %428 = vmatpush1.msra.mxu0 0.0
        %429 = vmatprep.subr.mxu0 0.0
        %430 = vmatpush1.msra.mxu0 0.0
        %431 = vmatprep.subr.mxu0 0.0
        %432 = vmatpush1.msra.mxu0 0.0
        %433 = vmatprep.subr.mxu0 0.0
        %434 = vmatpush1.msra.mxu0 0.0
        %435 = vmatprep.subr.mxu0 0.0
        %436 = vmatpush1.msra.mxu0 0.0
        %437 = vmatprep.subr.mxu0 0.0
        %438 = vmatpush1.msra.mxu0 0.0
        %439 = vmatprep.subr.mxu0 0.0
        %440 = vmatpush1.msra.mxu0 0.0
        %441 = vmatprep.subr.mxu0 0.0
        %442 = vmatpush1.msra.mxu0 0.0
        %443 = vmatprep.subr.mxu0 0.0
        %444 = vmatpush1.msra.mxu0 0.0
        %445 = vmatprep.subr.mxu0 0.0
        %446 = vmatpush1.msra.mxu0 0.0
        %447 = vmatprep.subr.mxu0 0.0
        %448 = vmatpush1.msra.mxu0 0.0
        %449 = vmatprep.mubr.f32.mxu0 0.0
        %450 = vmatmul.mubr.f32.gmra.mrb[0].mxu0 %v383
        %v451 = vpop.f32.mrb[0].mxu0
        %v452 = vadd.f32 %v380, %v451
        %v453 = vpop.f32.mrb[0].mxu0
        %454 = vdwg.mxu0
        %456 = vrot.lane.b32.xlu0 %v452, 120
        %v457 = vpop.permute.xlu0 %456
        %459 = vrot.lane.b32.xlu0 %v452, 112
        %v460 = vpop.permute.xlu0 %459
        %462 = vrot.lane.b32.xlu0 %v452, 104
        %v463 = vpop.permute.xlu0 %462
        %vm465 = vcmask 64512
        %v466 = vsel %vm465, %v452, 0
        %468 = vmatprep.subr.mxu0 0.0
        %469 = vmatpush1.xpose.msra.mxu0 %v466
        %470 = vmatprep.subr.mxu0 0.0
        %471 = vmatpush1.xpose.msra.mxu0 0.0
        %472 = vmatprep.subr.mxu0 0.0
        %473 = vmatpush1.xpose.msra.mxu0 0.0
        %474 = vmatprep.subr.mxu0 0.0
        %475 = vmatpush1.xpose.msra.mxu0 0.0
        %476 = vmatprep.subr.mxu0 0.0
        %477 = vmatpush1.xpose.msra.mxu0 0.0
        %478 = vmatprep.subr.mxu0 0.0
        %479 = vmatpush1.xpose.msra.mxu0 0.0
        %480 = vmatprep.subr.mxu0 0.0
        %481 = vmatpush1.xpose.msra.mxu0 0.0
        %482 = vmatprep.subr.mxu0 0.0
        %483 = vmatpush1.xpose.msra.mxu0 0.0
        %484 = vmatprep.subr.mxu0 0.0
        %485 = vmatpush1.xpose.msra.mxu0 0.0
        %486 = vmatprep.subr.mxu0 0.0
        %487 = vmatpush1.xpose.msra.mxu0 0.0
        %488 = vmatprep.subr.mxu0 0.0
        %489 = vmatpush1.xpose.msra.mxu0 0.0
        %490 = vmatprep.subr.mxu0 0.0
        %491 = vmatpush1.xpose.msra.mxu0 0.0
        %492 = vmatprep.subr.mxu0 0.0
        %493 = vmatpush1.xpose.msra.mxu0 0.0
        %494 = vmatprep.subr.mxu0 0.0
        %495 = vmatpush1.xpose.msra.mxu0 0.0
        %496 = vmatprep.subr.mxu0 0.0
        %497 = vmatpush1.xpose.msra.mxu0 0.0
        %498 = vmatprep.subr.mxu0 0.0
        %499 = vmatpush1.xpose.msra.mxu0 0.0
        %500 = vmatprep.subr.mxu0 0.0
        %501 = vmatpush1.xpose.msra.mxu0 0.0
        %502 = vmatprep.subr.mxu0 0.0
        %503 = vmatpush1.xpose.msra.mxu0 0.0
        %504 = vmatprep.subr.mxu0 0.0
        %505 = vmatpush1.xpose.msra.mxu0 0.0
        %506 = vmatprep.subr.mxu0 0.0
        %507 = vmatpush1.xpose.msra.mxu0 0.0
        %508 = vmatprep.subr.mxu0 0.0
        %509 = vmatpush1.xpose.msra.mxu0 0.0
        %510 = vmatprep.subr.mxu0 0.0
        %511 = vmatpush1.xpose.msra.mxu0 0.0
        %512 = vmatprep.subr.mxu0 0.0
        %513 = vmatpush1.xpose.msra.mxu0 0.0
        %514 = vmatprep.subr.mxu0 0.0
        %515 = vmatpush1.xpose.msra.mxu0 0.0
        %516 = vmatprep.subr.mxu0 0.0
        %517 = vmatpush1.xpose.msra.mxu0 0.0
        %518 = vmatprep.subr.mxu0 0.0
        %519 = vmatpush1.xpose.msra.mxu0 0.0
        %520 = vmatprep.subr.mxu0 0.0
        %521 = vmatpush1.xpose.msra.mxu0 0.0
        %522 = vmatprep.subr.mxu0 0.0
        %523 = vmatpush1.xpose.msra.mxu0 0.0
        %524 = vmatprep.subr.mxu0 0.0
        %525 = vmatpush1.xpose.msra.mxu0 0.0
        %526 = vmatprep.subr.mxu0 0.0
        %527 = vmatpush1.xpose.msra.mxu0 0.0
        %528 = vmatprep.subr.mxu0 0.0
        %529 = vmatpush1.xpose.msra.mxu0 0.0
        %530 = vmatprep.subr.mxu0 0.0
        %531 = vmatpush1.xpose.msra.mxu0 0.0
        %532 = vmatprep.mubr.f32.mxu0 0.0
        %533 = vmatmul.mubr.f32.gmra.mrb[0].mxu0 %v466
        %v534 = vpop.f32.mrb[0].mxu0
        %v535 = vadd.f32 0.0, %v534
        %v536 = vpop.f32.mrb[0].mxu0
        %537 = vdwg.mxu0
        %v538 = vsel %vm465, %v457, 0
        %540 = vmatprep.subr.mxu0 0.0
        %541 = vmatpush1.xpose.msra.mxu0 %v538
        %542 = vmatprep.subr.mxu0 0.0
        %543 = vmatpush1.xpose.msra.mxu0 0.0
        %544 = vmatprep.subr.mxu0 0.0
        %545 = vmatpush1.xpose.msra.mxu0 0.0
        %546 = vmatprep.subr.mxu0 0.0
        %547 = vmatpush1.xpose.msra.mxu0 0.0
        %548 = vmatprep.subr.mxu0 0.0
        %549 = vmatpush1.xpose.msra.mxu0 0.0
        %550 = vmatprep.subr.mxu0 0.0
        %551 = vmatpush1.xpose.msra.mxu0 0.0
        %552 = vmatprep.subr.mxu0 0.0
        %553 = vmatpush1.xpose.msra.mxu0 0.0
        %554 = vmatprep.subr.mxu0 0.0
        %555 = vmatpush1.xpose.msra.mxu0 0.0
        %556 = vmatprep.subr.mxu0 0.0
        %557 = vmatpush1.xpose.msra.mxu0 0.0
        %558 = vmatprep.subr.mxu0 0.0
        %559 = vmatpush1.xpose.msra.mxu0 0.0
        %560 = vmatprep.subr.mxu0 0.0
        %561 = vmatpush1.xpose.msra.mxu0 0.0
        %562 = vmatprep.subr.mxu0 0.0
        %563 = vmatpush1.xpose.msra.mxu0 0.0
        %564 = vmatprep.subr.mxu0 0.0
        %565 = vmatpush1.xpose.msra.mxu0 0.0
        %566 = vmatprep.subr.mxu0 0.0
        %567 = vmatpush1.xpose.msra.mxu0 0.0
        %568 = vmatprep.subr.mxu0 0.0
        %569 = vmatpush1.xpose.msra.mxu0 0.0
        %570 = vmatprep.subr.mxu0 0.0
        %571 = vmatpush1.xpose.msra.mxu0 0.0
        %572 = vmatprep.subr.mxu0 0.0
        %573 = vmatpush1.xpose.msra.mxu0 0.0
        %574 = vmatprep.subr.mxu0 0.0
        %575 = vmatpush1.xpose.msra.mxu0 0.0
        %576 = vmatprep.subr.mxu0 0.0
        %577 = vmatpush1.xpose.msra.mxu0 0.0
        %578 = vmatprep.subr.mxu0 0.0
        %579 = vmatpush1.xpose.msra.mxu0 0.0
        %580 = vmatprep.subr.mxu0 0.0
        %581 = vmatpush1.xpose.msra.mxu0 0.0
        %582 = vmatprep.subr.mxu0 0.0
        %583 = vmatpush1.xpose.msra.mxu0 0.0
        %584 = vmatprep.subr.mxu0 0.0
        %585 = vmatpush1.xpose.msra.mxu0 0.0
        %586 = vmatprep.subr.mxu0 0.0
        %587 = vmatpush1.xpose.msra.mxu0 0.0
        %588 = vmatprep.subr.mxu0 0.0
        %589 = vmatpush1.xpose.msra.mxu0 0.0
        %590 = vmatprep.subr.mxu0 0.0
        %591 = vmatpush1.xpose.msra.mxu0 0.0
        %592 = vmatprep.subr.mxu0 0.0
        %593 = vmatpush1.xpose.msra.mxu0 0.0
        %594 = vmatprep.subr.mxu0 0.0
        %595 = vmatpush1.xpose.msra.mxu0 0.0
        %596 = vmatprep.subr.mxu0 0.0
        %597 = vmatpush1.xpose.msra.mxu0 0.0
        %598 = vmatprep.subr.mxu0 0.0
        %599 = vmatpush1.xpose.msra.mxu0 0.0
        %600 = vmatprep.subr.mxu0 0.0
        %601 = vmatpush1.xpose.msra.mxu0 0.0
        %602 = vmatprep.subr.mxu0 0.0
        %603 = vmatpush1.xpose.msra.mxu0 0.0
        %604 = vmatprep.mubr.f32.mxu0 0.0
        %605 = vmatmul.mubr.f32.gmra.mrb[0].mxu0 %v538
        %v606 = vpop.f32.mrb[0].mxu0
        %v607 = vadd.f32 0.0, %v606
        %v608 = vpop.f32.mrb[0].mxu0
        %609 = vdwg.mxu0
        %v610 = vsel %vm465, %v460, 0
        %612 = vmatprep.subr.mxu0 0.0
        %613 = vmatpush1.xpose.msra.mxu0 %v610
        %614 = vmatprep.subr.mxu0 0.0
        %615 = vmatpush1.xpose.msra.mxu0 0.0
        %616 = vmatprep.subr.mxu0 0.0
        %617 = vmatpush1.xpose.msra.mxu0 0.0
        %618 = vmatprep.subr.mxu0 0.0
        %619 = vmatpush1.xpose.msra.mxu0 0.0
        %620 = vmatprep.subr.mxu0 0.0
        %621 = vmatpush1.xpose.msra.mxu0 0.0
        %622 = vmatprep.subr.mxu0 0.0
        %623 = vmatpush1.xpose.msra.mxu0 0.0
        %624 = vmatprep.subr.mxu0 0.0
        %625 = vmatpush1.xpose.msra.mxu0 0.0
        %626 = vmatprep.subr.mxu0 0.0
        %627 = vmatpush1.xpose.msra.mxu0 0.0
        %628 = vmatprep.subr.mxu0 0.0
        %629 = vmatpush1.xpose.msra.mxu0 0.0
        %630 = vmatprep.subr.mxu0 0.0
        %631 = vmatpush1.xpose.msra.mxu0 0.0
        %632 = vmatprep.subr.mxu0 0.0
        %633 = vmatpush1.xpose.msra.mxu0 0.0
        %634 = vmatprep.subr.mxu0 0.0
        %635 = vmatpush1.xpose.msra.mxu0 0.0
        %636 = vmatprep.subr.mxu0 0.0
        %637 = vmatpush1.xpose.msra.mxu0 0.0
        %638 = vmatprep.subr.mxu0 0.0
        %639 = vmatpush1.xpose.msra.mxu0 0.0
        %640 = vmatprep.subr.mxu0 0.0
        %641 = vmatpush1.xpose.msra.mxu0 0.0
        %642 = vmatprep.subr.mxu0 0.0
        %643 = vmatpush1.xpose.msra.mxu0 0.0
        %644 = vmatprep.subr.mxu0 0.0
        %645 = vmatpush1.xpose.msra.mxu0 0.0
        %646 = vmatprep.subr.mxu0 0.0
        %647 = vmatpush1.xpose.msra.mxu0 0.0
        %648 = vmatprep.subr.mxu0 0.0
        %649 = vmatpush1.xpose.msra.mxu0 0.0
        %650 = vmatprep.subr.mxu0 0.0
        %651 = vmatpush1.xpose.msra.mxu0 0.0
        %652 = vmatprep.subr.mxu0 0.0
        %653 = vmatpush1.xpose.msra.mxu0 0.0
        %654 = vmatprep.subr.mxu0 0.0
        %655 = vmatpush1.xpose.msra.mxu0 0.0
        %656 = vmatprep.subr.mxu0 0.0
        %657 = vmatpush1.xpose.msra.mxu0 0.0
        %658 = vmatprep.subr.mxu0 0.0
        %659 = vmatpush1.xpose.msra.mxu0 0.0
        %660 = vmatprep.subr.mxu0 0.0
        %661 = vmatpush1.xpose.msra.mxu0 0.0
        %662 = vmatprep.subr.mxu0 0.0
        %663 = vmatpush1.xpose.msra.mxu0 0.0
        %664 = vmatprep.subr.mxu0 0.0
        %665 = vmatpush1.xpose.msra.mxu0 0.0
        %666 = vmatprep.subr.mxu0 0.0
        %667 = vmatpush1.xpose.msra.mxu0 0.0
        %668 = vmatprep.subr.mxu0 0.0
        %669 = vmatpush1.xpose.msra.mxu0 0.0
        %670 = vmatprep.subr.mxu0 0.0
        %671 = vmatpush1.xpose.msra.mxu0 0.0
        %672 = vmatprep.subr.mxu0 0.0
        %673 = vmatpush1.xpose.msra.mxu0 0.0
        %674 = vmatprep.subr.mxu0 0.0
        %675 = vmatpush1.xpose.msra.mxu0 0.0
        %676 = vmatprep.mubr.f32.mxu0 0.0
        %677 = vmatmul.mubr.f32.gmra.mrb[0].mxu0 %v610
        %v678 = vpop.f32.mrb[0].mxu0
        %v679 = vadd.f32 0.0, %v678
        %v680 = vpop.f32.mrb[0].mxu0
        %681 = vdwg.mxu0
        %v682 = vsel %vm465, %v463, 0
        %684 = vmatprep.subr.mxu0 0.0
        %685 = vmatpush1.xpose.msra.mxu0 %v682
        %686 = vmatprep.subr.mxu0 0.0
        %687 = vmatpush1.xpose.msra.mxu0 0.0
        %688 = vmatprep.subr.mxu0 0.0
        %689 = vmatpush1.xpose.msra.mxu0 0.0
        %690 = vmatprep.subr.mxu0 0.0
        %691 = vmatpush1.xpose.msra.mxu0 0.0
        %692 = vmatprep.subr.mxu0 0.0
        %693 = vmatpush1.xpose.msra.mxu0 0.0
        %694 = vmatprep.subr.mxu0 0.0
        %695 = vmatpush1.xpose.msra.mxu0 0.0
        %696 = vmatprep.subr.mxu0 0.0
        %697 = vmatpush1.xpose.msra.mxu0 0.0
        %698 = vmatprep.subr.mxu0 0.0
        %699 = vmatpush1.xpose.msra.mxu0 0.0
        %700 = vmatprep.subr.mxu0 0.0
        %701 = vmatpush1.xpose.msra.mxu0 0.0
        %702 = vmatprep.subr.mxu0 0.0
        %703 = vmatpush1.xpose.msra.mxu0 0.0
        %704 = vmatprep.subr.mxu0 0.0
        %705 = vmatpush1.xpose.msra.mxu0 0.0
        %706 = vmatprep.subr.mxu0 0.0
        %707 = vmatpush1.xpose.msra.mxu0 0.0
        %708 = vmatprep.subr.mxu0 0.0
        %709 = vmatpush1.xpose.msra.mxu0 0.0
        %710 = vmatprep.subr.mxu0 0.0
        %711 = vmatpush1.xpose.msra.mxu0 0.0
        %712 = vmatprep.subr.mxu0 0.0
        %713 = vmatpush1.xpose.msra.mxu0 0.0
        %714 = vmatprep.subr.mxu0 0.0
        %715 = vmatpush1.xpose.msra.mxu0 0.0
        %716 = vmatprep.subr.mxu0 0.0
        %717 = vmatpush1.xpose.msra.mxu0 0.0
        %718 = vmatprep.subr.mxu0 0.0
        %719 = vmatpush1.xpose.msra.mxu0 0.0
        %720 = vmatprep.subr.mxu0 0.0
        %721 = vmatpush1.xpose.msra.mxu0 0.0
        %722 = vmatprep.subr.mxu0 0.0
        %723 = vmatpush1.xpose.msra.mxu0 0.0
        %724 = vmatprep.subr.mxu0 0.0
        %725 = vmatpush1.xpose.msra.mxu0 0.0
        %726 = vmatprep.subr.mxu0 0.0
        %727 = vmatpush1.xpose.msra.mxu0 0.0
        %728 = vmatprep.subr.mxu0 0.0
        %729 = vmatpush1.xpose.msra.mxu0 0.0
        %730 = vmatprep.subr.mxu0 0.0
        %731 = vmatpush1.xpose.msra.mxu0 0.0
        %732 = vmatprep.subr.mxu0 0.0
        %733 = vmatpush1.xpose.msra.mxu0 0.0
        %734 = vmatprep.subr.mxu0 0.0
        %735 = vmatpush1.xpose.msra.mxu0 0.0
        %736 = vmatprep.subr.mxu0 0.0
        %737 = vmatpush1.xpose.msra.mxu0 0.0
        %738 = vmatprep.subr.mxu0 0.0
        %739 = vmatpush1.xpose.msra.mxu0 0.0
        %740 = vmatprep.subr.mxu0 0.0
        %741 = vmatpush1.xpose.msra.mxu0 0.0
        %742 = vmatprep.subr.mxu0 0.0
        %743 = vmatpush1.xpose.msra.mxu0 0.0
        %744 = vmatprep.subr.mxu0 0.0
        %745 = vmatpush1.xpose.msra.mxu0 0.0
        %746 = vmatprep.subr.mxu0 0.0
        %747 = vmatpush1.xpose.msra.mxu0 0.0
        %748 = vmatprep.mubr.f32.mxu0 0.0
        %749 = vmatmul.mubr.f32.gmra.mrb[0].mxu0 %v682
        %v750 = vpop.f32.mrb[0].mxu0
        %v751 = vadd.f32 0.0, %v750
        %v752 = vpop.f32.mrb[0].mxu0
        %753 = vdwg.mxu0
        %v754 = vmul.f32 %v535, 0.35355338
        %v755 = vmul.f32 %v607, 0.35355338
        %v756 = vmul.f32 %v679, 0.35355338
        %v757 = vmul.f32 %v751, 0.35355338
        %v759 = vlaneseq
        %v760 = vshrl.u32 %v759, 7
        %v761 = vsub.s32 0, %v760
        %v762 = vrot.slane %v279, %v761
        %v764 = vadd.f32 %v754, %v762
        %v765 = vadd.f32 %v755, %v762
        %v766 = vadd.f32 %v756, %v762
        %v767 = vadd.f32 %v757, %v762
        %v768 = vsel %vm465, %v764, -inf
        %769 = vmax.xlane.f32.xlu0 %v768
        %v770 = vpop.xlane.xlu0 %769
        %v771 = vsel %vm465, %v765, -inf
        %772 = vmax.xlane.f32.xlu0 %v771
        %v773 = vpop.xlane.xlu0 %772
        %v774 = vsel %vm465, %v766, -inf
        %775 = vmax.xlane.f32.xlu0 %v774
        %v776 = vpop.xlane.xlu0 %775
        %v777 = vsel %vm465, %v767, -inf
        %778 = vmax.xlane.f32.xlu0 %v777
        %v779 = vpop.xlane.xlu0 %778
        %v780 = vsub.f32 %v764, %v770
        %v781 = vsub.f32 %v765, %v773
        %v782 = vsub.f32 %v766, %v776
        %v783 = vsub.f32 %v767, %v779
        %v784 = vmul.f32 %v780, 1.442695
        %v785 = vpow.pop %v784
        %v786 = vmul.f32 %v781, 1.442695
        %v787 = vpow.pop %v786
        %v788 = vmul.f32 %v782, 1.442695
        %v789 = vpow.pop %v788
        %v790 = vmul.f32 %v783, 1.442695
        %v791 = vpow.pop %v790
        %v792 = vsel %vm465, %v785, 0.0
        %793 = vadd.xlane.f32.xlu0 %v792
        %v794 = vpop.xlane.xlu0 %793
        %v795 = vsel %vm465, %v787, 0.0
        %796 = vadd.xlane.f32.xlu0 %v795
        %v797 = vpop.xlane.xlu0 %796
        %v798 = vsel %vm465, %v789, 0.0
        %799 = vadd.xlane.f32.xlu0 %v798
        %v800 = vpop.xlane.xlu0 %799
        %v801 = vsel %vm465, %v791, 0.0
        %802 = vadd.xlane.f32.xlu0 %v801
        %v803 = vpop.xlane.xlu0 %802
        %v804 = vrcp.pop %v794
        %v805 = vrcp.pop %v797
        %v806 = vrcp.pop %v800
        %v807 = vrcp.pop %v803
        %v808 = vmul.f32 %v785, %v804
        %v809 = vmul.f32 %v787, %v805
        %v810 = vmul.f32 %v789, %v806
        %v811 = vmul.f32 %v791, %v807
        %v813 = vsel %vm465, %v808, 0
        %815 = vmatprep.subr.mxu0 0.0
        %816 = vmatpush1.msra.mxu0 %v452
        %817 = vmatprep.subr.mxu0 0.0
        %818 = vmatpush1.msra.mxu0 0.0
        %819 = vmatprep.subr.mxu0 0.0
        %820 = vmatpush1.msra.mxu0 0.0
        %821 = vmatprep.subr.mxu0 0.0
        %822 = vmatpush1.msra.mxu0 0.0
        %823 = vmatprep.subr.mxu0 0.0
        %824 = vmatpush1.msra.mxu0 0.0
        %825 = vmatprep.subr.mxu0 0.0
        %826 = vmatpush1.msra.mxu0 0.0
        %827 = vmatprep.subr.mxu0 0.0
        %828 = vmatpush1.msra.mxu0 0.0
        %829 = vmatprep.subr.mxu0 0.0
        %830 = vmatpush1.msra.mxu0 0.0
        %831 = vmatprep.subr.mxu0 0.0
        %832 = vmatpush1.msra.mxu0 0.0
        %833 = vmatprep.subr.mxu0 0.0
        %834 = vmatpush1.msra.mxu0 0.0
        %835 = vmatprep.subr.mxu0 0.0
        %836 = vmatpush1.msra.mxu0 0.0
        %837 = vmatprep.subr.mxu0 0.0
        %838 = vmatpush1.msra.mxu0 0.0
        %839 = vmatprep.subr.mxu0 0.0
        %840 = vmatpush1.msra.mxu0 0.0
        %841 = vmatprep.subr.mxu0 0.0
        %842 = vmatpush1.msra.mxu0 0.0
        %843 = vmatprep.subr.mxu0 0.0
        %844 = vmatpush1.msra.mxu0 0.0
        %845 = vmatprep.subr.mxu0 0.0
        %846 = vmatpush1.msra.mxu0 0.0
        %847 = vmatprep.subr.mxu0 0.0
        %848 = vmatpush1.msra.mxu0 0.0
        %849 = vmatprep.subr.mxu0 0.0
        %850 = vmatpush1.msra.mxu0 0.0
        %851 = vmatprep.subr.mxu0 0.0
        %852 = vmatpush1.msra.mxu0 0.0
        %853 = vmatprep.subr.mxu0 0.0
        %854 = vmatpush1.msra.mxu0 0.0
        %855 = vmatprep.subr.mxu0 0.0
        %856 = vmatpush1.msra.mxu0 0.0
        %857 = vmatprep.subr.mxu0 0.0
        %858 = vmatpush1.msra.mxu0 0.0
        %859 = vmatprep.subr.mxu0 0.0
        %860 = vmatpush1.msra.mxu0 0.0
        %861 = vmatprep.subr.mxu0 0.0
        %862 = vmatpush1.msra.mxu0 0.0
        %863 = vmatprep.subr.mxu0 0.0
        %864 = vmatpush1.msra.mxu0 0.0
        %865 = vmatprep.subr.mxu0 0.0
        %866 = vmatpush1.msra.mxu0 0.0
        %867 = vmatprep.subr.mxu0 0.0
        %868 = vmatpush1.msra.mxu0 0.0
        %869 = vmatprep.subr.mxu0 0.0
        %870 = vmatpush1.msra.mxu0 0.0
        %871 = vmatprep.subr.mxu0 0.0
        %872 = vmatpush1.msra.mxu0 0.0
        %873 = vmatprep.subr.mxu0 0.0
        %874 = vmatpush1.msra.mxu0 0.0
        %875 = vmatprep.subr.mxu0 0.0
        %876 = vmatpush1.msra.mxu0 0.0
        %877 = vmatprep.subr.mxu0 0.0
        %878 = vmatpush1.msra.mxu0 0.0
        %879 = vmatprep.mubr.f32.mxu0 0.0
        %880 = vmatmul.mubr.f32.gmra.mrb[0].mxu0 %v813
        %v881 = vpop.f32.mrb[0].mxu0
        %v882 = vadd.f32 0.0, %v881
        %v883 = vpop.f32.mrb[0].mxu0
        %884 = vdwg.mxu0
        %v886 = vsel %vm465, %v809, 0
        %888 = vmatprep.subr.mxu0 0.0
        %889 = vmatpush1.msra.mxu0 %v457
        %890 = vmatprep.subr.mxu0 0.0
        %891 = vmatpush1.msra.mxu0 0.0
        %892 = vmatprep.subr.mxu0 0.0
        %893 = vmatpush1.msra.mxu0 0.0
        %894 = vmatprep.subr.mxu0 0.0
        %895 = vmatpush1.msra.mxu0 0.0
        %896 = vmatprep.subr.mxu0 0.0
        %897 = vmatpush1.msra.mxu0 0.0
        %898 = vmatprep.subr.mxu0 0.0
        %899 = vmatpush1.msra.mxu0 0.0
        %900 = vmatprep.subr.mxu0 0.0
        %901 = vmatpush1.msra.mxu0 0.0
        %902 = vmatprep.subr.mxu0 0.0
        %903 = vmatpush1.msra.mxu0 0.0
        %904 = vmatprep.subr.mxu0 0.0
        %905 = vmatpush1.msra.mxu0 0.0
        %906 = vmatprep.subr.mxu0 0.0
        %907 = vmatpush1.msra.mxu0 0.0
        %908 = vmatprep.subr.mxu0 0.0
        %909 = vmatpush1.msra.mxu0 0.0
        %910 = vmatprep.subr.mxu0 0.0
        %911 = vmatpush1.msra.mxu0 0.0
        %912 = vmatprep.subr.mxu0 0.0
        %913 = vmatpush1.msra.mxu0 0.0
        %914 = vmatprep.subr.mxu0 0.0
        %915 = vmatpush1.msra.mxu0 0.0
        %916 = vmatprep.subr.mxu0 0.0
        %917 = vmatpush1.msra.mxu0 0.0
        %918 = vmatprep.subr.mxu0 0.0
        %919 = vmatpush1.msra.mxu0 0.0
        %920 = vmatprep.subr.mxu0 0.0
        %921 = vmatpush1.msra.mxu0 0.0
        %922 = vmatprep.subr.mxu0 0.0
        %923 = vmatpush1.msra.mxu0 0.0
        %924 = vmatprep.subr.mxu0 0.0
        %925 = vmatpush1.msra.mxu0 0.0
        %926 = vmatprep.subr.mxu0 0.0
        %927 = vmatpush1.msra.mxu0 0.0
        %928 = vmatprep.subr.mxu0 0.0
        %929 = vmatpush1.msra.mxu0 0.0
        %930 = vmatprep.subr.mxu0 0.0
        %931 = vmatpush1.msra.mxu0 0.0
        %932 = vmatprep.subr.mxu0 0.0
        %933 = vmatpush1.msra.mxu0 0.0
        %934 = vmatprep.subr.mxu0 0.0
        %935 = vmatpush1.msra.mxu0 0.0
        %936 = vmatprep.subr.mxu0 0.0
        %937 = vmatpush1.msra.mxu0 0.0
        %938 = vmatprep.subr.mxu0 0.0
        %939 = vmatpush1.msra.mxu0 0.0
        %940 = vmatprep.subr.mxu0 0.0
        %941 = vmatpush1.msra.mxu0 0.0
        %942 = vmatprep.subr.mxu0 0.0
        %943 = vmatpush1.msra.mxu0 0.0
        %944 = vmatprep.subr.mxu0 0.0
        %945 = vmatpush1.msra.mxu0 0.0
        %946 = vmatprep.subr.mxu0 0.0
        %947 = vmatpush1.msra.mxu0 0.0
        %948 = vmatprep.subr.mxu0 0.0
        %949 = vmatpush1.msra.mxu0 0.0
        %950 = vmatprep.subr.mxu0 0.0
        %951 = vmatpush1.msra.mxu0 0.0
        %952 = vmatprep.mubr.f32.mxu0 0.0
        %953 = vmatmul.mubr.f32.gmra.mrb[0].mxu0 %v886
        %v954 = vpop.f32.mrb[0].mxu0
        %v955 = vadd.f32 0.0, %v954
        %v956 = vpop.f32.mrb[0].mxu0
        %957 = vdwg.mxu0
        %v959 = vsel %vm465, %v810, 0
        %961 = vmatprep.subr.mxu0 0.0
        %962 = vmatpush1.msra.mxu0 %v460
        %963 = vmatprep.subr.mxu0 0.0
        %964 = vmatpush1.msra.mxu0 0.0
        %965 = vmatprep.subr.mxu0 0.0
        %966 = vmatpush1.msra.mxu0 0.0
        %967 = vmatprep.subr.mxu0 0.0
        %968 = vmatpush1.msra.mxu0 0.0
        %969 = vmatprep.subr.mxu0 0.0
        %970 = vmatpush1.msra.mxu0 0.0
        %971 = vmatprep.subr.mxu0 0.0
        %972 = vmatpush1.msra.mxu0 0.0
        %973 = vmatprep.subr.mxu0 0.0
        %974 = vmatpush1.msra.mxu0 0.0
        %975 = vmatprep.subr.mxu0 0.0
        %976 = vmatpush1.msra.mxu0 0.0
        %977 = vmatprep.subr.mxu0 0.0
        %978 = vmatpush1.msra.mxu0 0.0
        %979 = vmatprep.subr.mxu0 0.0
        %980 = vmatpush1.msra.mxu0 0.0
        %981 = vmatprep.subr.mxu0 0.0
        %982 = vmatpush1.msra.mxu0 0.0
        %983 = vmatprep.subr.mxu0 0.0
        %984 = vmatpush1.msra.mxu0 0.0
        %985 = vmatprep.subr.mxu0 0.0
        %986 = vmatpush1.msra.mxu0 0.0
        %987 = vmatprep.subr.mxu0 0.0
        %988 = vmatpush1.msra.mxu0 0.0
        %989 = vmatprep.subr.mxu0 0.0
        %990 = vmatpush1.msra.mxu0 0.0
        %991 = vmatprep.subr.mxu0 0.0
        %992 = vmatpush1.msra.mxu0 0.0
        %993 = vmatprep.subr.mxu0 0.0
        %994 = vmatpush1.msra.mxu0 0.0
        %995 = vmatprep.subr.mxu0 0.0
        %996 = vmatpush1.msra.mxu0 0.0
        %997 = vmatprep.subr.mxu0 0.0
        %998 = vmatpush1.msra.mxu0 0.0
        %999 = vmatprep.subr.mxu0 0.0
        %1000 = vmatpush1.msra.mxu0 0.0
        %1001 = vmatprep.subr.mxu0 0.0
        %1002 = vmatpush1.msra.mxu0 0.0
        %1003 = vmatprep.subr.mxu0 0.0
        %1004 = vmatpush1.msra.mxu0 0.0
        %1005 = vmatprep.subr.mxu0 0.0
        %1006 = vmatpush1.msra.mxu0 0.0
        %1007 = vmatprep.subr.mxu0 0.0
        %1008 = vmatpush1.msra.mxu0 0.0
        %1009 = vmatprep.subr.mxu0 0.0
        %1010 = vmatpush1.msra.mxu0 0.0
        %1011 = vmatprep.subr.mxu0 0.0
        %1012 = vmatpush1.msra.mxu0 0.0
        %1013 = vmatprep.subr.mxu0 0.0
        %1014 = vmatpush1.msra.mxu0 0.0
        %1015 = vmatprep.subr.mxu0 0.0
        %1016 = vmatpush1.msra.mxu0 0.0
        %1017 = vmatprep.subr.mxu0 0.0
        %1018 = vmatpush1.msra.mxu0 0.0
        %1019 = vmatprep.subr.mxu0 0.0
        %1020 = vmatpush1.msra.mxu0 0.0
        %1021 = vmatprep.subr.mxu0 0.0
        %1022 = vmatpush1.msra.mxu0 0.0
        %1023 = vmatprep.subr.mxu0 0.0
        %1024 = vmatpush1.msra.mxu0 0.0
        %1025 = vmatprep.mubr.f32.mxu0 0.0
        %1026 = vmatmul.mubr.f32.gmra.mrb[0].mxu0 %v959
        %v1027 = vpop.f32.mrb[0].mxu0
        %v1028 = vadd.f32 0.0, %v1027
        %v1029 = vpop.f32.mrb[0].mxu0
        %1030 = vdwg.mxu0
        %v1032 = vsel %vm465, %v811, 0
        %1034 = vmatprep.subr.mxu0 0.0
        %1035 = vmatpush1.msra.mxu0 %v463
        %1036 = vmatprep.subr.mxu0 0.0
        %1037 = vmatpush1.msra.mxu0 0.0
        %1038 = vmatprep.subr.mxu0 0.0
        %1039 = vmatpush1.msra.mxu0 0.0
        %1040 = vmatprep.subr.mxu0 0.0
        %1041 = vmatpush1.msra.mxu0 0.0
        %1042 = vmatprep.subr.mxu0 0.0
        %1043 = vmatpush1.msra.mxu0 0.0
        %1044 = vmatprep.subr.mxu0 0.0
        %1045 = vmatpush1.msra.mxu0 0.0
        %1046 = vmatprep.subr.mxu0 0.0
        %1047 = vmatpush1.msra.mxu0 0.0
        %1048 = vmatprep.subr.mxu0 0.0
        %1049 = vmatpush1.msra.mxu0 0.0
        %1050 = vmatprep.subr.mxu0 0.0
        %1051 = vmatpush1.msra.mxu0 0.0
        %1052 = vmatprep.subr.mxu0 0.0
        %1053 = vmatpush1.msra.mxu0 0.0
        %1054 = vmatprep.subr.mxu0 0.0
        %1055 = vmatpush1.msra.mxu0 0.0
        %1056 = vmatprep.subr.mxu0 0.0
        %1057 = vmatpush1.msra.mxu0 0.0
        %1058 = vmatprep.subr.mxu0 0.0
        %1059 = vmatpush1.msra.mxu0 0.0
        %1060 = vmatprep.subr.mxu0 0.0
        %1061 = vmatpush1.msra.mxu0 0.0
        %1062 = vmatprep.subr.mxu0 0.0
        %1063 = vmatpush1.msra.mxu0 0.0
        %1064 = vmatprep.subr.mxu0 0.0
        %1065 = vmatpush1.msra.mxu0 0.0
        %1066 = vmatprep.subr.mxu0 0.0
        %1067 = vmatpush1.msra.mxu0 0.0
        %1068 = vmatprep.subr.mxu0 0.0
        %1069 = vmatpush1.msra.mxu0 0.0
        %1070 = vmatprep.subr.mxu0 0.0
        %1071 = vmatpush1.msra.mxu0 0.0
        %1072 = vmatprep.subr.mxu0 0.0
        %1073 = vmatpush1.msra.mxu0 0.0
        %1074 = vmatprep.subr.mxu0 0.0
        %1075 = vmatpush1.msra.mxu0 0.0
        %1076 = vmatprep.subr.mxu0 0.0
        %1077 = vmatpush1.msra.mxu0 0.0
        %1078 = vmatprep.subr.mxu0 0.0
        %1079 = vmatpush1.msra.mxu0 0.0
        %1080 = vmatprep.subr.mxu0 0.0
        %1081 = vmatpush1.msra.mxu0 0.0
        %1082 = vmatprep.subr.mxu0 0.0
        %1083 = vmatpush1.msra.mxu0 0.0
        %1084 = vmatprep.subr.mxu0 0.0
        %1085 = vmatpush1.msra.mxu0 0.0
        %1086 = vmatprep.subr.mxu0 0.0
        %1087 = vmatpush1.msra.mxu0 0.0
        %1088 = vmatprep.subr.mxu0 0.0
        %1089 = vmatpush1.msra.mxu0 0.0
        %1090 = vmatprep.subr.mxu0 0.0
        %1091 = vmatpush1.msra.mxu0 0.0
        %1092 = vmatprep.subr.mxu0 0.0
        %1093 = vmatpush1.msra.mxu0 0.0
        %1094 = vmatprep.subr.mxu0 0.0
        %1095 = vmatpush1.msra.mxu0 0.0
        %1096 = vmatprep.subr.mxu0 0.0
        %1097 = vmatpush1.msra.mxu0 0.0
        %1098 = vmatprep.mubr.f32.mxu0 0.0
        %1099 = vmatmul.mubr.f32.gmra.mrb[0].mxu0 %v1032
        %v1100 = vpop.f32.mrb[0].mxu0
        %v1101 = vadd.f32 0.0, %v1100
        %v1102 = vpop.f32.mrb[0].mxu0
        %1103 = vdwg.mxu0
        %v1104 = vld [vmem:[#allocation7 + $0x50] sm:$0xff]
        %v1105 = vld [vmem:[#allocation7 + $0x58] sm:$0xff]
        %v1106 = vld [vmem:[#allocation7 + $0x60] sm:$0xff]
        %v1107 = vld [vmem:[#allocation7 + $0x68] sm:$0xff]
        %v1109 = vsel %vm465, %v955, 0
        %1111 = vmatprep.subr.mxu0 0.0
        %1112 = vmatpush1.msra.mxu0 %v1105
        %1113 = vmatprep.subr.mxu0 0.0
        %1114 = vmatpush1.msra.mxu0 0.0
        %1115 = vmatprep.subr.mxu0 0.0
        %1116 = vmatpush1.msra.mxu0 0.0
        %1117 = vmatprep.subr.mxu0 0.0
        %1118 = vmatpush1.msra.mxu0 0.0
        %1119 = vmatprep.subr.mxu0 0.0
        %1120 = vmatpush1.msra.mxu0 0.0
        %1121 = vmatprep.subr.mxu0 0.0
        %1122 = vmatpush1.msra.mxu0 0.0
        %1123 = vmatprep.subr.mxu0 0.0
        %1124 = vmatpush1.msra.mxu0 0.0
        %1125 = vmatprep.subr.mxu0 0.0
        %1126 = vmatpush1.msra.mxu0 0.0
        %1127 = vmatprep.subr.mxu0 0.0
        %1128 = vmatpush1.msra.mxu0 0.0
        %1129 = vmatprep.subr.mxu0 0.0
        %1130 = vmatpush1.msra.mxu0 0.0
        %1131 = vmatprep.subr.mxu0 0.0
        %1132 = vmatpush1.msra.mxu0 0.0
        %1133 = vmatprep.subr.mxu0 0.0
        %1134 = vmatpush1.msra.mxu0 0.0
        %1135 = vmatprep.subr.mxu0 0.0
        %1136 = vmatpush1.msra.mxu0 0.0
        %1137 = vmatprep.subr.mxu0 0.0
        %1138 = vmatpush1.msra.mxu0 0.0
        %1139 = vmatprep.subr.mxu0 0.0
        %1140 = vmatpush1.msra.mxu0 0.0
        %1141 = vmatprep.subr.mxu0 0.0
        %1142 = vmatpush1.msra.mxu0 0.0
        %1143 = vmatprep.subr.mxu0 0.0
        %1144 = vmatpush1.msra.mxu0 0.0
        %1145 = vmatprep.subr.mxu0 0.0
        %1146 = vmatpush1.msra.mxu0 0.0
        %1147 = vmatprep.subr.mxu0 0.0
        %1148 = vmatpush1.msra.mxu0 0.0
        %1149 = vmatprep.subr.mxu0 0.0
        %1150 = vmatpush1.msra.mxu0 0.0
        %1151 = vmatprep.subr.mxu0 0.0
        %1152 = vmatpush1.msra.mxu0 0.0
        %1153 = vmatprep.subr.mxu0 0.0
        %1154 = vmatpush1.msra.mxu0 0.0
        %1155 = vmatprep.subr.mxu0 0.0
        %1156 = vmatpush1.msra.mxu0 0.0
        %1157 = vmatprep.subr.mxu0 0.0
        %1158 = vmatpush1.msra.mxu0 0.0
        %1159 = vmatprep.subr.mxu0 0.0
        %1160 = vmatpush1.msra.mxu0 0.0
        %1161 = vmatprep.subr.mxu0 0.0
        %1162 = vmatpush1.msra.mxu0 0.0
        %1163 = vmatprep.subr.mxu0 0.0
        %1164 = vmatpush1.msra.mxu0 0.0
        %1165 = vmatprep.subr.mxu0 0.0
        %1166 = vmatpush1.msra.mxu0 0.0
        %1167 = vmatprep.subr.mxu0 0.0
        %1168 = vmatpush1.msra.mxu0 0.0
        %1169 = vmatprep.subr.mxu0 0.0
        %1170 = vmatpush1.msra.mxu0 0.0
        %1171 = vmatprep.subr.mxu0 0.0
        %1172 = vmatpush1.msra.mxu0 0.0
        %1173 = vmatprep.subr.mxu0 0.0
        %1174 = vmatpush1.msra.mxu0 0.0
        %1175 = vmatprep.mubr.f32.mxu0 0.0
        %1176 = vmatmul.mubr.f32.gmra.mrb[0].mxu0 %v1109
        %v1177 = vpop.f32.mrb[0].mxu0
        %v1178 = vadd.f32 0.0, %v1177
        %v1179 = vpop.f32.mrb[0].mxu0
        %1180 = vdwg.mxu0
        %v1182 = vsel %vm465, %v882, 0
        %1184 = vmatprep.subr.mxu0 0.0
        %1185 = vmatpush1.msra.mxu0 %v1104
        %1186 = vmatprep.subr.mxu0 0.0
        %1187 = vmatpush1.msra.mxu0 0.0
        %1188 = vmatprep.subr.mxu0 0.0
        %1189 = vmatpush1.msra.mxu0 0.0
        %1190 = vmatprep.subr.mxu0 0.0
        %1191 = vmatpush1.msra.mxu0 0.0
        %1192 = vmatprep.subr.mxu0 0.0
        %1193 = vmatpush1.msra.mxu0 0.0
        %1194 = vmatprep.subr.mxu0 0.0
        %1195 = vmatpush1.msra.mxu0 0.0
        %1196 = vmatprep.subr.mxu0 0.0
        %1197 = vmatpush1.msra.mxu0 0.0
        %1198 = vmatprep.subr.mxu0 0.0
        %1199 = vmatpush1.msra.mxu0 0.0
        %1200 = vmatprep.subr.mxu0 0.0
        %1201 = vmatpush1.msra.mxu0 0.0
        %1202 = vmatprep.subr.mxu0 0.0
        %1203 = vmatpush1.msra.mxu0 0.0
        %1204 = vmatprep.subr.mxu0 0.0
        %1205 = vmatpush1.msra.mxu0 0.0
        %1206 = vmatprep.subr.mxu0 0.0
        %1207 = vmatpush1.msra.mxu0 0.0
        %1208 = vmatprep.subr.mxu0 0.0
        %1209 = vmatpush1.msra.mxu0 0.0
        %1210 = vmatprep.subr.mxu0 0.0
        %1211 = vmatpush1.msra.mxu0 0.0
        %1212 = vmatprep.subr.mxu0 0.0
        %1213 = vmatpush1.msra.mxu0 0.0
        %1214 = vmatprep.subr.mxu0 0.0
        %1215 = vmatpush1.msra.mxu0 0.0
        %1216 = vmatprep.subr.mxu0 0.0
        %1217 = vmatpush1.msra.mxu0 0.0
        %1218 = vmatprep.subr.mxu0 0.0
        %1219 = vmatpush1.msra.mxu0 0.0
        %1220 = vmatprep.subr.mxu0 0.0
        %1221 = vmatpush1.msra.mxu0 0.0
        %1222 = vmatprep.subr.mxu0 0.0
        %1223 = vmatpush1.msra.mxu0 0.0
        %1224 = vmatprep.subr.mxu0 0.0
        %1225 = vmatpush1.msra.mxu0 0.0
        %1226 = vmatprep.subr.mxu0 0.0
        %1227 = vmatpush1.msra.mxu0 0.0
        %1228 = vmatprep.subr.mxu0 0.0
        %1229 = vmatpush1.msra.mxu0 0.0
        %1230 = vmatprep.subr.mxu0 0.0
        %1231 = vmatpush1.msra.mxu0 0.0
        %1232 = vmatprep.subr.mxu0 0.0
        %1233 = vmatpush1.msra.mxu0 0.0
        %1234 = vmatprep.subr.mxu0 0.0
        %1235 = vmatpush1.msra.mxu0 0.0
        %1236 = vmatprep.subr.mxu0 0.0
        %1237 = vmatpush1.msra.mxu0 0.0
        %1238 = vmatprep.subr.mxu0 0.0
        %1239 = vmatpush1.msra.mxu0 0.0
        %1240 = vmatprep.subr.mxu0 0.0
        %1241 = vmatpush1.msra.mxu0 0.0
        %1242 = vmatprep.subr.mxu0 0.0
        %1243 = vmatpush1.msra.mxu0 0.0
        %1244 = vmatprep.subr.mxu0 0.0
        %1245 = vmatpush1.msra.mxu0 0.0
        %1246 = vmatprep.subr.mxu0 0.0
        %1247 = vmatpush1.msra.mxu0 0.0
        %1248 = vmatprep.mubr.f32.mxu0 0.0
        %1249 = vmatmul.mubr.f32.gmra.mrb[0].mxu0 %v1182
        %v1250 = vpop.f32.mrb[0].mxu0
        %v1251 = vadd.f32 %v1178, %v1250
        %v1252 = vpop.f32.mrb[0].mxu0
        %1253 = vdwg.mxu0
        %v1255 = vsel %vm465, %v1028, 0
        %1257 = vmatprep.subr.mxu0 0.0
        %1258 = vmatpush1.msra.mxu0 %v1106
        %1259 = vmatprep.subr.mxu0 0.0
        %1260 = vmatpush1.msra.mxu0 0.0
        %1261 = vmatprep.subr.mxu0 0.0
        %1262 = vmatpush1.msra.mxu0 0.0
        %1263 = vmatprep.subr.mxu0 0.0
        %1264 = vmatpush1.msra.mxu0 0.0
        %1265 = vmatprep.subr.mxu0 0.0
        %1266 = vmatpush1.msra.mxu0 0.0
        %1267 = vmatprep.subr.mxu0 0.0
        %1268 = vmatpush1.msra.mxu0 0.0
        %1269 = vmatprep.subr.mxu0 0.0
        %1270 = vmatpush1.msra.mxu0 0.0
        %1271 = vmatprep.subr.mxu0 0.0
        %1272 = vmatpush1.msra.mxu0 0.0
        %1273 = vmatprep.subr.mxu0 0.0
        %1274 = vmatpush1.msra.mxu0 0.0
        %1275 = vmatprep.subr.mxu0 0.0
        %1276 = vmatpush1.msra.mxu0 0.0
        %1277 = vmatprep.subr.mxu0 0.0
        %1278 = vmatpush1.msra.mxu0 0.0
        %1279 = vmatprep.subr.mxu0 0.0
        %1280 = vmatpush1.msra.mxu0 0.0
        %1281 = vmatprep.subr.mxu0 0.0
        %1282 = vmatpush1.msra.mxu0 0.0
        %1283 = vmatprep.subr.mxu0 0.0
        %1284 = vmatpush1.msra.mxu0 0.0
        %1285 = vmatprep.subr.mxu0 0.0
        %1286 = vmatpush1.msra.mxu0 0.0
        %1287 = vmatprep.subr.mxu0 0.0
        %1288 = vmatpush1.msra.mxu0 0.0
        %1289 = vmatprep.subr.mxu0 0.0
        %1290 = vmatpush1.msra.mxu0 0.0
        %1291 = vmatprep.subr.mxu0 0.0
        %1292 = vmatpush1.msra.mxu0 0.0
        %1293 = vmatprep.subr.mxu0 0.0
        %1294 = vmatpush1.msra.mxu0 0.0
        %1295 = vmatprep.subr.mxu0 0.0
        %1296 = vmatpush1.msra.mxu0 0.0
        %1297 = vmatprep.subr.mxu0 0.0
        %1298 = vmatpush1.msra.mxu0 0.0
        %1299 = vmatprep.subr.mxu0 0.0
        %1300 = vmatpush1.msra.mxu0 0.0
        %1301 = vmatprep.subr.mxu0 0.0
        %1302 = vmatpush1.msra.mxu0 0.0
        %1303 = vmatprep.subr.mxu0 0.0
        %1304 = vmatpush1.msra.mxu0 0.0
        %1305 = vmatprep.subr.mxu0 0.0
        %1306 = vmatpush1.msra.mxu0 0.0
        %1307 = vmatprep.subr.mxu0 0.0
        %1308 = vmatpush1.msra.mxu0 0.0
        %1309 = vmatprep.subr.mxu0 0.0
        %1310 = vmatpush1.msra.mxu0 0.0
        %1311 = vmatprep.subr.mxu0 0.0
        %1312 = vmatpush1.msra.mxu0 0.0
        %1313 = vmatprep.subr.mxu0 0.0
        %1314 = vmatpush1.msra.mxu0 0.0
        %1315 = vmatprep.subr.mxu0 0.0
        %1316 = vmatpush1.msra.mxu0 0.0
        %1317 = vmatprep.subr.mxu0 0.0
        %1318 = vmatpush1.msra.mxu0 0.0
        %1319 = vmatprep.subr.mxu0 0.0
        %1320 = vmatpush1.msra.mxu0 0.0
        %1321 = vmatprep.mubr.f32.mxu0 0.0
        %1322 = vmatmul.mubr.f32.gmra.mrb[0].mxu0 %v1255
        %v1323 = vpop.f32.mrb[0].mxu0
        %v1324 = vadd.f32 0.0, %v1323
        %v1325 = vpop.f32.mrb[0].mxu0
        %1326 = vdwg.mxu0
        %v1327 = vadd.f32 %v1251, %v1324
        %v1329 = vsel %vm465, %v1101, 0
        %1331 = vmatprep.subr.mxu0 0.0
        %1332 = vmatpush1.msra.mxu0 %v1107
        %1333 = vmatprep.subr.mxu0 0.0
        %1334 = vmatpush1.msra.mxu0 0.0
        %1335 = vmatprep.subr.mxu0 0.0
        %1336 = vmatpush1.msra.mxu0 0.0
        %1337 = vmatprep.subr.mxu0 0.0
        %1338 = vmatpush1.msra.mxu0 0.0
        %1339 = vmatprep.subr.mxu0 0.0
        %1340 = vmatpush1.msra.mxu0 0.0
        %1341 = vmatprep.subr.mxu0 0.0
        %1342 = vmatpush1.msra.mxu0 0.0
        %1343 = vmatprep.subr.mxu0 0.0
        %1344 = vmatpush1.msra.mxu0 0.0
        %1345 = vmatprep.subr.mxu0 0.0
        %1346 = vmatpush1.msra.mxu0 0.0
        %1347 = vmatprep.subr.mxu0 0.0
        %1348 = vmatpush1.msra.mxu0 0.0
        %1349 = vmatprep.subr.mxu0 0.0
        %1350 = vmatpush1.msra.mxu0 0.0
        %1351 = vmatprep.subr.mxu0 0.0
        %1352 = vmatpush1.msra.mxu0 0.0
        %1353 = vmatprep.subr.mxu0 0.0
        %1354 = vmatpush1.msra.mxu0 0.0
        %1355 = vmatprep.subr.mxu0 0.0
        %1356 = vmatpush1.msra.mxu0 0.0
        %1357 = vmatprep.subr.mxu0 0.0
        %1358 = vmatpush1.msra.mxu0 0.0
        %1359 = vmatprep.subr.mxu0 0.0
        %1360 = vmatpush1.msra.mxu0 0.0
        %1361 = vmatprep.subr.mxu0 0.0
        %1362 = vmatpush1.msra.mxu0 0.0
        %1363 = vmatprep.subr.mxu0 0.0
        %1364 = vmatpush1.msra.mxu0 0.0
        %1365 = vmatprep.subr.mxu0 0.0
        %1366 = vmatpush1.msra.mxu0 0.0
        %1367 = vmatprep.subr.mxu0 0.0
        %1368 = vmatpush1.msra.mxu0 0.0
        %1369 = vmatprep.subr.mxu0 0.0
        %1370 = vmatpush1.msra.mxu0 0.0
        %1371 = vmatprep.subr.mxu0 0.0
        %1372 = vmatpush1.msra.mxu0 0.0
        %1373 = vmatprep.subr.mxu0 0.0
        %1374 = vmatpush1.msra.mxu0 0.0
        %1375 = vmatprep.subr.mxu0 0.0
        %1376 = vmatpush1.msra.mxu0 0.0
        %1377 = vmatprep.subr.mxu0 0.0
        %1378 = vmatpush1.msra.mxu0 0.0
        %1379 = vmatprep.subr.mxu0 0.0
        %1380 = vmatpush1.msra.mxu0 0.0
        %1381 = vmatprep.subr.mxu0 0.0
        %1382 = vmatpush1.msra.mxu0 0.0
        %1383 = vmatprep.subr.mxu0 0.0
        %1384 = vmatpush1.msra.mxu0 0.0
        %1385 = vmatprep.subr.mxu0 0.0
        %1386 = vmatpush1.msra.mxu0 0.0
        %1387 = vmatprep.subr.mxu0 0.0
        %1388 = vmatpush1.msra.mxu0 0.0
        %1389 = vmatprep.subr.mxu0 0.0
        %1390 = vmatpush1.msra.mxu0 0.0
        %1391 = vmatprep.subr.mxu0 0.0
        %1392 = vmatpush1.msra.mxu0 0.0
        %1393 = vmatprep.subr.mxu0 0.0
        %1394 = vmatpush1.msra.mxu0 0.0
        %1395 = vmatprep.mubr.f32.mxu0 0.0
        %1396 = vmatmul.mubr.f32.gmra.mrb[0].mxu0 %v1329
        %v1397 = vpop.f32.mrb[0].mxu0
        %v1398 = vadd.f32 0.0, %v1397
        %v1399 = vpop.f32.mrb[0].mxu0
        %1400 = vdwg.mxu0
        %v1401 = vadd.f32 %v1327, %v1398
        %v1402 = vld [vmem:[#allocation8 + $0x3] sm:$0x1]
        %v1403 = vlaneseq
        %v1404 = vshrl.u32 %v1403, 7
        %v1405 = vsub.s32 0, %v1404
        %v1406 = vrot.slane %v1402, %v1405
        %v1407 = vadd.f32 %v1401, %v1406
        %v1408 = vadd.f32 %v1407, %v371
        %v1409 = vsel %vm381, %v1408, 0.0
        %1410 = vadd.xlane.f32.xlu0 %v1409
        %v1411 = vpop.xlane.xlu0 %1410
        %v1412 = vrcp.pop 32.0
        %v1413 = vmul.f32 %v1411, %v1412
        %v1414 = vsub.f32 %v1408, %v1413
        %v1415 = vmul.f32 %v1414, %v1414
        %v1416 = vsel %vm381, %v1415, 0.0
        %1417 = vadd.xlane.f32.xlu0 %v1416
        %v1418 = vpop.xlane.xlu0 %1417
        %v1419 = vmul.f32 %v1418, %v1412
        %v1420 = vadd.f32 %v1419, 1e-05
        %v1421 = vrsqrt.pop %v1420
        %v1422 = vmul.f32 %v1414, %v1421
        %v1423 = vld [vmem:[#allocation8 + $0x6] sm:$0x1]
        %v1424 = vlaneseq
        %v1425 = vshrl.u32 %v1424, 7
        %v1426 = vsub.s32 0, %v1425
        %v1427 = vrot.slane %v1423, %v1426
        %v1428 = vmul.f32 %v1422, %v1427
        %v1429 = vld [vmem:[#allocation8 + $0x7] sm:$0x1]
        %v1430 = vlaneseq
        %v1431 = vshrl.u32 %v1430, 7
        %v1432 = vsub.s32 0, %v1431
        %v1433 = vrot.slane %v1429, %v1432
        %v1434 = vadd.f32 %v1428, %v1433
        %v1435 = vld [vmem:[#allocation7 + $0x70] sm:$0xff]
        %v1436 = vld [vmem:[#allocation7 + $0x78] sm:$0xff]
        %v1437 = vld [vmem:[#allocation7 + $0x80] sm:$0xff]
        %v1438 = vld [vmem:[#allocation7 + $0x88] sm:$0xff]
        %v1439 = vld [vmem:[#allocation8 + $0x4] sm:$0x1]
        %v1440 = vlaneseq
        %v1441 = vshrl.u32 %v1440, 7
        %v1442 = vsub.s32 0, %v1441
        %v1443 = vrot.slane %v1439, %v1442
        %v1445 = vsel %vm381, %v1434, 0
        %1447 = vmatprep.subr.mxu0 0.0
        %1448 = vmatpush1.msra.mxu0 %v1435
        %1449 = vmatprep.subr.mxu0 0.0
        %1450 = vmatpush1.msra.mxu0 %v1436
        %1451 = vmatprep.subr.mxu0 0.0
        %1452 = vmatpush1.msra.mxu0 %v1437
        %1453 = vmatprep.subr.mxu0 0.0
        %1454 = vmatpush1.msra.mxu0 %v1438
        %1455 = vmatprep.subr.mxu0 0.0
        %1456 = vmatpush1.msra.mxu0 0.0
        %1457 = vmatprep.subr.mxu0 0.0
        %1458 = vmatpush1.msra.mxu0 0.0
        %1459 = vmatprep.subr.mxu0 0.0
        %1460 = vmatpush1.msra.mxu0 0.0
        %1461 = vmatprep.subr.mxu0 0.0
        %1462 = vmatpush1.msra.mxu0 0.0
        %1463 = vmatprep.subr.mxu0 0.0
        %1464 = vmatpush1.msra.mxu0 0.0
        %1465 = vmatprep.subr.mxu0 0.0
        %1466 = vmatpush1.msra.mxu0 0.0
        %1467 = vmatprep.subr.mxu0 0.0
        %1468 = vmatpush1.msra.mxu0 0.0
        %1469 = vmatprep.subr.mxu0 0.0
        %1470 = vmatpush1.msra.mxu0 0.0
        %1471 = vmatprep.subr.mxu0 0.0
        %1472 = vmatpush1.msra.mxu0 0.0
        %1473 = vmatprep.subr.mxu0 0.0
        %1474 = vmatpush1.msra.mxu0 0.0
        %1475 = vmatprep.subr.mxu0 0.0
        %1476 = vmatpush1.msra.mxu0 0.0
        %1477 = vmatprep.subr.mxu0 0.0
        %1478 = vmatpush1.msra.mxu0 0.0
        %1479 = vmatprep.subr.mxu0 0.0
        %1480 = vmatpush1.msra.mxu0 0.0
        %1481 = vmatprep.subr.mxu0 0.0
        %1482 = vmatpush1.msra.mxu0 0.0
        %1483 = vmatprep.subr.mxu0 0.0
        %1484 = vmatpush1.msra.mxu0 0.0
        %1485 = vmatprep.subr.mxu0 0.0
        %1486 = vmatpush1.msra.mxu0 0.0
        %1487 = vmatprep.subr.mxu0 0.0
        %1488 = vmatpush1.msra.mxu0 0.0
        %1489 = vmatprep.subr.mxu0 0.0
        %1490 = vmatpush1.msra.mxu0 0.0
        %1491 = vmatprep.subr.mxu0 0.0
        %1492 = vmatpush1.msra.mxu0 0.0
        %1493 = vmatprep.subr.mxu0 0.0
        %1494 = vmatpush1.msra.mxu0 0.0
        %1495 = vmatprep.subr.mxu0 0.0
        %1496 = vmatpush1.msra.mxu0 0.0
        %1497 = vmatprep.subr.mxu0 0.0
        %1498 = vmatpush1.msra.mxu0 0.0
        %1499 = vmatprep.subr.mxu0 0.0
        %1500 = vmatpush1.msra.mxu0 0.0
        %1501 = vmatprep.subr.mxu0 0.0
        %1502 = vmatpush1.msra.mxu0 0.0
        %1503 = vmatprep.subr.mxu0 0.0
        %1504 = vmatpush1.msra.mxu0 0.0
        %1505 = vmatprep.subr.mxu0 0.0
        %1506 = vmatpush1.msra.mxu0 0.0
        %1507 = vmatprep.subr.mxu0 0.0
        %1508 = vmatpush1.msra.mxu0 0.0
        %1509 = vmatprep.subr.mxu0 0.0
        %1510 = vmatpush1.msra.mxu0 0.0
        %1511 = vmatprep.mubr.f32.mxu0 0.0
        %1512 = vmatmul.mubr.f32.gmra.mrb[0].mxu0 %v1445
        %v1513 = vpop.f32.mrb[0].mxu0
        %v1514 = vadd.f32 %v1443, %v1513
        %v1515 = vpop.f32.mrb[0].mxu0
        %1516 = vdwg.mxu0
        %v1517 = vmax.f32 %v1514, 0.0
        %v1518 = vld [vmem:[#allocation7 + $0x90] sm:$0xff]
        %v1519 = vld [vmem:[#allocation7 + $0x98] sm:$0xff]
        %v1520 = vld [vmem:[#allocation7 + $0xa0] sm:$0xff]
        %v1521 = vld [vmem:[#allocation7 + $0xa8] sm:$0xff]
        %v1522 = vld [vmem:[#allocation7 + $0xb0] sm:$0xff]
        %v1523 = vld [vmem:[#allocation7 + $0xb8] sm:$0xff]
        %v1524 = vld [vmem:[#allocation7 + $0xc0] sm:$0xff]
        %v1525 = vld [vmem:[#allocation7 + $0xc8] sm:$0xff]
        %v1526 = vld [vmem:[#allocation8 + $0x5] sm:$0x1]
        %v1527 = vlaneseq
        %v1528 = vshrl.u32 %v1527, 7
        %v1529 = vsub.s32 0, %v1528
        %v1530 = vrot.slane %v1526, %v1529
        %vm1531 = vcmask 523264
        %v1533 = vsel %vm1531, %v1517, 0
        %1535 = vmatprep.subr.mxu0 0.0
        %1536 = vmatpush1.msra.mxu0 %v1518
        %1537 = vmatprep.subr.mxu0 0.0
        %1538 = vmatpush1.msra.mxu0 %v1519
        %1539 = vmatprep.subr.mxu0 0.0
        %1540 = vmatpush1.msra.mxu0 %v1520
        %1541 = vmatprep.subr.mxu0 0.0
        %1542 = vmatpush1.msra.mxu0 %v1521
        %1543 = vmatprep.subr.mxu0 0.0
        %1544 = vmatpush1.msra.mxu0 %v1522
        %1545 = vmatprep.subr.mxu0 0.0
        %1546 = vmatpush1.msra.mxu0 %v1523
        %1547 = vmatprep.subr.mxu0 0.0
        %1548 = vmatpush1.msra.mxu0 %v1524
        %1549 = vmatprep.subr.mxu0 0.0
        %1550 = vmatpush1.msra.mxu0 %v1525
        %1551 = vmatprep.subr.mxu0 0.0
        %1552 = vmatpush1.msra.mxu0 0.0
        %1553 = vmatprep.subr.mxu0 0.0
        %1554 = vmatpush1.msra.mxu0 0.0
        %1555 = vmatprep.subr.mxu0 0.0
        %1556 = vmatpush1.msra.mxu0 0.0
        %1557 = vmatprep.subr.mxu0 0.0
        %1558 = vmatpush1.msra.mxu0 0.0
        %1559 = vmatprep.subr.mxu0 0.0
        %1560 = vmatpush1.msra.mxu0 0.0
        %1561 = vmatprep.subr.mxu0 0.0
        %1562 = vmatpush1.msra.mxu0 0.0
        %1563 = vmatprep.subr.mxu0 0.0
        %1564 = vmatpush1.msra.mxu0 0.0
        %1565 = vmatprep.subr.mxu0 0.0
        %1566 = vmatpush1.msra.mxu0 0.0
        %1567 = vmatprep.subr.mxu0 0.0
        %1568 = vmatpush1.msra.mxu0 0.0
        %1569 = vmatprep.subr.mxu0 0.0
        %1570 = vmatpush1.msra.mxu0 0.0
        %1571 = vmatprep.subr.mxu0 0.0
        %1572 = vmatpush1.msra.mxu0 0.0
        %1573 = vmatprep.subr.mxu0 0.0
        %1574 = vmatpush1.msra.mxu0 0.0
        %1575 = vmatprep.subr.mxu0 0.0
        %1576 = vmatpush1.msra.mxu0 0.0
        %1577 = vmatprep.subr.mxu0 0.0
        %1578 = vmatpush1.msra.mxu0 0.0
        %1579 = vmatprep.subr.mxu0 0.0
        %1580 = vmatpush1.msra.mxu0 0.0
        %1581 = vmatprep.subr.mxu0 0.0
        %1582 = vmatpush1.msra.mxu0 0.0
        %1583 = vmatprep.subr.mxu0 0.0
        %1584 = vmatpush1.msra.mxu0 0.0
        %1585 = vmatprep.subr.mxu0 0.0
        %1586 = vmatpush1.msra.mxu0 0.0
        %1587 = vmatprep.subr.mxu0 0.0
        %1588 = vmatpush1.msra.mxu0 0.0
        %1589 = vmatprep.subr.mxu0 0.0
        %1590 = vmatpush1.msra.mxu0 0.0
        %1591 = vmatprep.subr.mxu0 0.0
        %1592 = vmatpush1.msra.mxu0 0.0
        %1593 = vmatprep.subr.mxu0 0.0
        %1594 = vmatpush1.msra.mxu0 0.0
        %1595 = vmatprep.subr.mxu0 0.0
        %1596 = vmatpush1.msra.mxu0 0.0
        %1597 = vmatprep.subr.mxu0 0.0
        %1598 = vmatpush1.msra.mxu0 0.0
        %1599 = vmatprep.mubr.f32.mxu0 0.0
        %1600 = vmatmul.mubr.f32.gmra.mrb[0].mxu0 %v1533
        %v1601 = vpop.f32.mrb[0].mxu0
        %v1602 = vadd.f32 %v1530, %v1601
        %v1603 = vpop.f32.mrb[0].mxu0
        %1604 = vdwg.mxu0
        %v1605 = vadd.f32 %v1602, %v1434
        %v1606 = vsel %vm381, %v1605, 0.0
        %1607 = vadd.xlane.f32.xlu0 %v1606
        %v1608 = vpop.xlane.xlu0 %1607
        %v1609 = vmul.f32 %v1608, %v1412
        %v1610 = vsub.f32 %v1605, %v1609
        %v1611 = vmul.f32 %v1610, %v1610
        %v1612 = vsel %vm381, %v1611, 0.0
        %1613 = vadd.xlane.f32.xlu0 %v1612
        %v1614 = vpop.xlane.xlu0 %1613
        %v1615 = vmul.f32 %v1614, %v1412
        %v1616 = vadd.f32 %v1615, 1e-05
        %v1617 = vrsqrt.pop %v1616
        %v1618 = vmul.f32 %v1610, %v1617
        %v1619 = vld [vmem:[#allocation8 + $0x8] sm:$0x1]
        %v1620 = vlaneseq
        %v1621 = vshrl.u32 %v1620, 7
        %v1622 = vsub.s32 0, %v1621
        %v1623 = vrot.slane %v1619, %v1622
        %v1624 = vmul.f32 %v1618, %v1623
        %v1625 = vld [vmem:[#allocation8 + $0x9] sm:$0x1]
        %v1626 = vlaneseq
        %v1627 = vshrl.u32 %v1626, 7
        %v1628 = vsub.s32 0, %v1627
        %v1629 = vrot.slane %v1625, %v1628
        %v1630 = vadd.f32 %v1624, %v1629
        %v1631 = vld [vmem:[#allocation7 + $0xd0] sm:$0xff]
        %v1632 = vld [vmem:[#allocation7 + $0xd8] sm:$0xff]
        %v1633 = vld [vmem:[#allocation7 + $0xe0] sm:$0xff]
        %v1634 = vld [vmem:[#allocation7 + $0xe8] sm:$0xff]
        %v1635 = vld [vmem:[#allocation8 + $0xa] sm:$0x1]
        %v1636 = vlaneseq
        %v1637 = vshrl.u32 %v1636, 7
        %v1638 = vsub.s32 0, %v1637
        %v1639 = vrot.slane %v1635, %v1638
        %v1641 = vsel %vm381, %v1630, 0
        %1643 = vmatprep.subr.mxu0 0.0
        %1644 = vmatpush1.msra.mxu0 %v1631
        %1645 = vmatprep.subr.mxu0 0.0
        %1646 = vmatpush1.msra.mxu0 %v1632
        %1647 = vmatprep.subr.mxu0 0.0
        %1648 = vmatpush1.msra.mxu0 %v1633
        %1649 = vmatprep.subr.mxu0 0.0
        %1650 = vmatpush1.msra.mxu0 %v1634
        %1651 = vmatprep.subr.mxu0 0.0
        %1652 = vmatpush1.msra.mxu0 0.0
        %1653 = vmatprep.subr.mxu0 0.0
        %1654 = vmatpush1.msra.mxu0 0.0
        %1655 = vmatprep.subr.mxu0 0.0
        %1656 = vmatpush1.msra.mxu0 0.0
        %1657 = vmatprep.subr.mxu0 0.0
        %1658 = vmatpush1.msra.mxu0 0.0
        %1659 = vmatprep.subr.mxu0 0.0
        %1660 = vmatpush1.msra.mxu0 0.0
        %1661 = vmatprep.subr.mxu0 0.0
        %1662 = vmatpush1.msra.mxu0 0.0
        %1663 = vmatprep.subr.mxu0 0.0
        %1664 = vmatpush1.msra.mxu0 0.0
        %1665 = vmatprep.subr.mxu0 0.0
        %1666 = vmatpush1.msra.mxu0 0.0
        %1667 = vmatprep.subr.mxu0 0.0
        %1668 = vmatpush1.msra.mxu0 0.0
        %1669 = vmatprep.subr.mxu0 0.0
        %1670 = vmatpush1.msra.mxu0 0.0
        %1671 = vmatprep.subr.mxu0 0.0
        %1672 = vmatpush1.msra.mxu0 0.0
        %1673 = vmatprep.subr.mxu0 0.0
        %1674 = vmatpush1.msra.mxu0 0.0
        %1675 = vmatprep.subr.mxu0 0.0
        %1676 = vmatpush1.msra.mxu0 0.0
        %1677 = vmatprep.subr.mxu0 0.0
        %1678 = vmatpush1.msra.mxu0 0.0
        %1679 = vmatprep.subr.mxu0 0.0
        %1680 = vmatpush1.msra.mxu0 0.0
        %1681 = vmatprep.subr.mxu0 0.0
        %1682 = vmatpush1.msra.mxu0 0.0
        %1683 = vmatprep.subr.mxu0 0.0
        %1684 = vmatpush1.msra.mxu0 0.0
        %1685 = vmatprep.subr.mxu0 0.0
        %1686 = vmatpush1.msra.mxu0 0.0
        %1687 = vmatprep.subr.mxu0 0.0
        %1688 = vmatpush1.msra.mxu0 0.0
        %1689 = vmatprep.subr.mxu0 0.0
        %1690 = vmatpush1.msra.mxu0 0.0
        %1691 = vmatprep.subr.mxu0 0.0
        %1692 = vmatpush1.msra.mxu0 0.0
        %1693 = vmatprep.subr.mxu0 0.0
        %1694 = vmatpush1.msra.mxu0 0.0
        %1695 = vmatprep.subr.mxu0 0.0
        %1696 = vmatpush1.msra.mxu0 0.0
        %1697 = vmatprep.subr.mxu0 0.0
        %1698 = vmatpush1.msra.mxu0 0.0
        %1699 = vmatprep.subr.mxu0 0.0
        %1700 = vmatpush1.msra.mxu0 0.0
        %1701 = vmatprep.subr.mxu0 0.0
        %1702 = vmatpush1.msra.mxu0 0.0
        %1703 = vmatprep.subr.mxu0 0.0
        %1704 = vmatpush1.msra.mxu0 0.0
        %1705 = vmatprep.subr.mxu0 0.0
        %1706 = vmatpush1.msra.mxu0 0.0
        %1707 = vmatprep.mubr.f32.mxu0 0.0
        %1708 = vmatmul.mubr.f32.gmra.mrb[0].mxu0 %v1641
        %v1709 = vpop.f32.mrb[0].mxu0
        %v1710 = vadd.f32 %v1639, %v1709
        %v1711 = vpop.f32.mrb[0].mxu0
        %1712 = vdwg.mxu0
        %1714 = vrot.lane.b32.xlu0 %v1710, 120
        %v1715 = vpop.permute.xlu0 %1714
        %1717 = vrot.lane.b32.xlu0 %v1710, 112
        %v1718 = vpop.permute.xlu0 %1717
        %1720 = vrot.lane.b32.xlu0 %v1710, 104
        %v1721 = vpop.permute.xlu0 %1720
        %v1723 = vsel %vm465, %v1710, 0
        %1725 = vmatprep.subr.mxu0 0.0
        %1726 = vmatpush1.xpose.msra.mxu0 %v1723
        %1727 = vmatprep.subr.mxu0 0.0
        %1728 = vmatpush1.xpose.msra.mxu0 0.0
        %1729 = vmatprep.subr.mxu0 0.0
        %1730 = vmatpush1.xpose.msra.mxu0 0.0
        %1731 = vmatprep.subr.mxu0 0.0
        %1732 = vmatpush1.xpose.msra.mxu0 0.0
        %1733 = vmatprep.subr.mxu0 0.0
        %1734 = vmatpush1.xpose.msra.mxu0 0.0
        %1735 = vmatprep.subr.mxu0 0.0
        %1736 = vmatpush1.xpose.msra.mxu0 0.0
        %1737 = vmatprep.subr.mxu0 0.0
        %1738 = vmatpush1.xpose.msra.mxu0 0.0
        %1739 = vmatprep.subr.mxu0 0.0
        %1740 = vmatpush1.xpose.msra.mxu0 0.0
        %1741 = vmatprep.subr.mxu0 0.0
        %1742 = vmatpush1.xpose.msra.mxu0 0.0
        %1743 = vmatprep.subr.mxu0 0.0
        %1744 = vmatpush1.xpose.msra.mxu0 0.0
        %1745 = vmatprep.subr.mxu0 0.0
        %1746 = vmatpush1.xpose.msra.mxu0 0.0
        %1747 = vmatprep.subr.mxu0 0.0
        %1748 = vmatpush1.xpose.msra.mxu0 0.0
        %1749 = vmatprep.subr.mxu0 0.0
        %1750 = vmatpush1.xpose.msra.mxu0 0.0
        %1751 = vmatprep.subr.mxu0 0.0
        %1752 = vmatpush1.xpose.msra.mxu0 0.0
        %1753 = vmatprep.subr.mxu0 0.0
        %1754 = vmatpush1.xpose.msra.mxu0 0.0
        %1755 = vmatprep.subr.mxu0 0.0
        %1756 = vmatpush1.xpose.msra.mxu0 0.0
        %1757 = vmatprep.subr.mxu0 0.0
        %1758 = vmatpush1.xpose.msra.mxu0 0.0
        %1759 = vmatprep.subr.mxu0 0.0
        %1760 = vmatpush1.xpose.msra.mxu0 0.0
        %1761 = vmatprep.subr.mxu0 0.0
        %1762 = vmatpush1.xpose.msra.mxu0 0.0
        %1763 = vmatprep.subr.mxu0 0.0
        %1764 = vmatpush1.xpose.msra.mxu0 0.0
        %1765 = vmatprep.subr.mxu0 0.0
        %1766 = vmatpush1.xpose.msra.mxu0 0.0
        %1767 = vmatprep.subr.mxu0 0.0
        %1768 = vmatpush1.xpose.msra.mxu0 0.0
        %1769 = vmatprep.subr.mxu0 0.0
        %1770 = vmatpush1.xpose.msra.mxu0 0.0
        %1771 = vmatprep.subr.mxu0 0.0
        %1772 = vmatpush1.xpose.msra.mxu0 0.0
        %1773 = vmatprep.subr.mxu0 0.0
        %1774 = vmatpush1.xpose.msra.mxu0 0.0
        %1775 = vmatprep.subr.mxu0 0.0
        %1776 = vmatpush1.xpose.msra.mxu0 0.0
        %1777 = vmatprep.subr.mxu0 0.0
        %1778 = vmatpush1.xpose.msra.mxu0 0.0
        %1779 = vmatprep.subr.mxu0 0.0
        %1780 = vmatpush1.xpose.msra.mxu0 0.0
        %1781 = vmatprep.subr.mxu0 0.0
        %1782 = vmatpush1.xpose.msra.mxu0 0.0
        %1783 = vmatprep.subr.mxu0 0.0
        %1784 = vmatpush1.xpose.msra.mxu0 0.0
        %1785 = vmatprep.subr.mxu0 0.0
        %1786 = vmatpush1.xpose.msra.mxu0 0.0
        %1787 = vmatprep.subr.mxu0 0.0
        %1788 = vmatpush1.xpose.msra.mxu0 0.0
        %1789 = vmatprep.mubr.f32.mxu0 0.0
        %1790 = vmatmul.mubr.f32.gmra.mrb[0].mxu0 %v1723
        %v1791 = vpop.f32.mrb[0].mxu0
        %v1792 = vadd.f32 0.0, %v1791
        %v1793 = vpop.f32.mrb[0].mxu0
        %1794 = vdwg.mxu0
        %v1795 = vsel %vm465, %v1715, 0
        %1797 = vmatprep.subr.mxu0 0.0
        %1798 = vmatpush1.xpose.msra.mxu0 %v1795
        %1799 = vmatprep.subr.mxu0 0.0
        %1800 = vmatpush1.xpose.msra.mxu0 0.0
        %1801 = vmatprep.subr.mxu0 0.0
        %1802 = vmatpush1.xpose.msra.mxu0 0.0
        %1803 = vmatprep.subr.mxu0 0.0
        %1804 = vmatpush1.xpose.msra.mxu0 0.0
        %1805 = vmatprep.subr.mxu0 0.0
        %1806 = vmatpush1.xpose.msra.mxu0 0.0
        %1807 = vmatprep.subr.mxu0 0.0
        %1808 = vmatpush1.xpose.msra.mxu0 0.0
        %1809 = vmatprep.subr.mxu0 0.0
        %1810 = vmatpush1.xpose.msra.mxu0 0.0
        %1811 = vmatprep.subr.mxu0 0.0
        %1812 = vmatpush1.xpose.msra.mxu0 0.0
        %1813 = vmatprep.subr.mxu0 0.0
        %1814 = vmatpush1.xpose.msra.mxu0 0.0
        %1815 = vmatprep.subr.mxu0 0.0
        %1816 = vmatpush1.xpose.msra.mxu0 0.0
        %1817 = vmatprep.subr.mxu0 0.0
        %1818 = vmatpush1.xpose.msra.mxu0 0.0
        %1819 = vmatprep.subr.mxu0 0.0
        %1820 = vmatpush1.xpose.msra.mxu0 0.0
        %1821 = vmatprep.subr.mxu0 0.0
        %1822 = vmatpush1.xpose.msra.mxu0 0.0
        %1823 = vmatprep.subr.mxu0 0.0
        %1824 = vmatpush1.xpose.msra.mxu0 0.0
        %1825 = vmatprep.subr.mxu0 0.0
        %1826 = vmatpush1.xpose.msra.mxu0 0.0
        %1827 = vmatprep.subr.mxu0 0.0
        %1828 = vmatpush1.xpose.msra.mxu0 0.0
        %1829 = vmatprep.subr.mxu0 0.0
        %1830 = vmatpush1.xpose.msra.mxu0 0.0
        %1831 = vmatprep.subr.mxu0 0.0
        %1832 = vmatpush1.xpose.msra.mxu0 0.0
        %1833 = vmatprep.subr.mxu0 0.0
        %1834 = vmatpush1.xpose.msra.mxu0 0.0
        %1835 = vmatprep.subr.mxu0 0.0
        %1836 = vmatpush1.xpose.msra.mxu0 0.0
        %1837 = vmatprep.subr.mxu0 0.0
        %1838 = vmatpush1.xpose.msra.mxu0 0.0
        %1839 = vmatprep.subr.mxu0 0.0
        %1840 = vmatpush1.xpose.msra.mxu0 0.0
        %1841 = vmatprep.subr.mxu0 0.0
        %1842 = vmatpush1.xpose.msra.mxu0 0.0
        %1843 = vmatprep.subr.mxu0 0.0
        %1844 = vmatpush1.xpose.msra.mxu0 0.0
        %1845 = vmatprep.subr.mxu0 0.0
        %1846 = vmatpush1.xpose.msra.mxu0 0.0
        %1847 = vmatprep.subr.mxu0 0.0
        %1848 = vmatpush1.xpose.msra.mxu0 0.0
        %1849 = vmatprep.subr.mxu0 0.0
        %1850 = vmatpush1.xpose.msra.mxu0 0.0
        %1851 = vmatprep.subr.mxu0 0.0
        %1852 = vmatpush1.xpose.msra.mxu0 0.0
        %1853 = vmatprep.subr.mxu0 0.0
        %1854 = vmatpush1.xpose.msra.mxu0 0.0
        %1855 = vmatprep.subr.mxu0 0.0
        %1856 = vmatpush1.xpose.msra.mxu0 0.0
        %1857 = vmatprep.subr.mxu0 0.0
        %1858 = vmatpush1.xpose.msra.mxu0 0.0
        %1859 = vmatprep.subr.mxu0 0.0
        %1860 = vmatpush1.xpose.msra.mxu0 0.0
        %1861 = vmatprep.mubr.f32.mxu0 0.0
        %1862 = vmatmul.mubr.f32.gmra.mrb[0].mxu0 %v1795
        %v1863 = vpop.f32.mrb[0].mxu0
        %v1864 = vadd.f32 0.0, %v1863
        %v1865 = vpop.f32.mrb[0].mxu0
        %1866 = vdwg.mxu0
        %v1867 = vsel %vm465, %v1718, 0
        %1869 = vmatprep.subr.mxu0 0.0
        %1870 = vmatpush1.xpose.msra.mxu0 %v1867
        %1871 = vmatprep.subr.mxu0 0.0
        %1872 = vmatpush1.xpose.msra.mxu0 0.0
        %1873 = vmatprep.subr.mxu0 0.0
        %1874 = vmatpush1.xpose.msra.mxu0 0.0
        %1875 = vmatprep.subr.mxu0 0.0
        %1876 = vmatpush1.xpose.msra.mxu0 0.0
        %1877 = vmatprep.subr.mxu0 0.0
        %1878 = vmatpush1.xpose.msra.mxu0 0.0
        %1879 = vmatprep.subr.mxu0 0.0
        %1880 = vmatpush1.xpose.msra.mxu0 0.0
        %1881 = vmatprep.subr.mxu0 0.0
        %1882 = vmatpush1.xpose.msra.mxu0 0.0
        %1883 = vmatprep.subr.mxu0 0.0
        %1884 = vmatpush1.xpose.msra.mxu0 0.0
        %1885 = vmatprep.subr.mxu0 0.0
        %1886 = vmatpush1.xpose.msra.mxu0 0.0
        %1887 = vmatprep.subr.mxu0 0.0
        %1888 = vmatpush1.xpose.msra.mxu0 0.0
        %1889 = vmatprep.subr.mxu0 0.0
        %1890 = vmatpush1.xpose.msra.mxu0 0.0
        %1891 = vmatprep.subr.mxu0 0.0
        %1892 = vmatpush1.xpose.msra.mxu0 0.0
        %1893 = vmatprep.subr.mxu0 0.0
        %1894 = vmatpush1.xpose.msra.mxu0 0.0
        %1895 = vmatprep.subr.mxu0 0.0
        %1896 = vmatpush1.xpose.msra.mxu0 0.0
        %1897 = vmatprep.subr.mxu0 0.0
        %1898 = vmatpush1.xpose.msra.mxu0 0.0
        %1899 = vmatprep.subr.mxu0 0.0
        %1900 = vmatpush1.xpose.msra.mxu0 0.0
        %1901 = vmatprep.subr.mxu0 0.0
        %1902 = vmatpush1.xpose.msra.mxu0 0.0
        %1903 = vmatprep.subr.mxu0 0.0
        %1904 = vmatpush1.xpose.msra.mxu0 0.0
        %1905 = vmatprep.subr.mxu0 0.0
        %1906 = vmatpush1.xpose.msra.mxu0 0.0
        %1907 = vmatprep.subr.mxu0 0.0
        %1908 = vmatpush1.xpose.msra.mxu0 0.0
        %1909 = vmatprep.subr.mxu0 0.0
        %1910 = vmatpush1.xpose.msra.mxu0 0.0
        %1911 = vmatprep.subr.mxu0 0.0
        %1912 = vmatpush1.xpose.msra.mxu0 0.0
        %1913 = vmatprep.subr.mxu0 0.0
        %1914 = vmatpush1.xpose.msra.mxu0 0.0
        %1915 = vmatprep.subr.mxu0 0.0
        %1916 = vmatpush1.xpose.msra.mxu0 0.0
        %1917 = vmatprep.subr.mxu0 0.0
        %1918 = vmatpush1.xpose.msra.mxu0 0.0
        %1919 = vmatprep.subr.mxu0 0.0
        %1920 = vmatpush1.xpose.msra.mxu0 0.0
        %1921 = vmatprep.subr.mxu0 0.0
        %1922 = vmatpush1.xpose.msra.mxu0 0.0
        %1923 = vmatprep.subr.mxu0 0.0
        %1924 = vmatpush1.xpose.msra.mxu0 0.0
        %1925 = vmatprep.subr.mxu0 0.0
        %1926 = vmatpush1.xpose.msra.mxu0 0.0
        %1927 = vmatprep.subr.mxu0 0.0
        %1928 = vmatpush1.xpose.msra.mxu0 0.0
        %1929 = vmatprep.subr.mxu0 0.0
        %1930 = vmatpush1.xpose.msra.mxu0 0.0
        %1931 = vmatprep.subr.mxu0 0.0
        %1932 = vmatpush1.xpose.msra.mxu0 0.0
        %1933 = vmatprep.mubr.f32.mxu0 0.0
        %1934 = vmatmul.mubr.f32.gmra.mrb[0].mxu0 %v1867
        %v1935 = vpop.f32.mrb[0].mxu0
        %v1936 = vadd.f32 0.0, %v1935
        %v1937 = vpop.f32.mrb[0].mxu0
        %1938 = vdwg.mxu0
        %v1939 = vsel %vm465, %v1721, 0
        %1941 = vmatprep.subr.mxu0 0.0
        %1942 = vmatpush1.xpose.msra.mxu0 %v1939
        %1943 = vmatprep.subr.mxu0 0.0
        %1944 = vmatpush1.xpose.msra.mxu0 0.0
        %1945 = vmatprep.subr.mxu0 0.0
        %1946 = vmatpush1.xpose.msra.mxu0 0.0
        %1947 = vmatprep.subr.mxu0 0.0
        %1948 = vmatpush1.xpose.msra.mxu0 0.0
        %1949 = vmatprep.subr.mxu0 0.0
        %1950 = vmatpush1.xpose.msra.mxu0 0.0
        %1951 = vmatprep.subr.mxu0 0.0
        %1952 = vmatpush1.xpose.msra.mxu0 0.0
        %1953 = vmatprep.subr.mxu0 0.0
        %1954 = vmatpush1.xpose.msra.mxu0 0.0
        %1955 = vmatprep.subr.mxu0 0.0
        %1956 = vmatpush1.xpose.msra.mxu0 0.0
        %1957 = vmatprep.subr.mxu0 0.0
        %1958 = vmatpush1.xpose.msra.mxu0 0.0
        %1959 = vmatprep.subr.mxu0 0.0
        %1960 = vmatpush1.xpose.msra.mxu0 0.0
        %1961 = vmatprep.subr.mxu0 0.0
        %1962 = vmatpush1.xpose.msra.mxu0 0.0
        %1963 = vmatprep.subr.mxu0 0.0
        %1964 = vmatpush1.xpose.msra.mxu0 0.0
        %1965 = vmatprep.subr.mxu0 0.0
        %1966 = vmatpush1.xpose.msra.mxu0 0.0
        %1967 = vmatprep.subr.mxu0 0.0
        %1968 = vmatpush1.xpose.msra.mxu0 0.0
        %1969 = vmatprep.subr.mxu0 0.0
        %1970 = vmatpush1.xpose.msra.mxu0 0.0
        %1971 = vmatprep.subr.mxu0 0.0
        %1972 = vmatpush1.xpose.msra.mxu0 0.0
        %1973 = vmatprep.subr.mxu0 0.0
        %1974 = vmatpush1.xpose.msra.mxu0 0.0
        %1975 = vmatprep.subr.mxu0 0.0
        %1976 = vmatpush1.xpose.msra.mxu0 0.0
        %1977 = vmatprep.subr.mxu0 0.0
        %1978 = vmatpush1.xpose.msra.mxu0 0.0
        %1979 = vmatprep.subr.mxu0 0.0
        %1980 = vmatpush1.xpose.msra.mxu0 0.0
        %1981 = vmatprep.subr.mxu0 0.0
        %1982 = vmatpush1.xpose.msra.mxu0 0.0
        %1983 = vmatprep.subr.mxu0 0.0
        %1984 = vmatpush1.xpose.msra.mxu0 0.0
        %1985 = vmatprep.subr.mxu0 0.0
        %1986 = vmatpush1.xpose.msra.mxu0 0.0
        %1987 = vmatprep.subr.mxu0 0.0
        %1988 = vmatpush1.xpose.msra.mxu0 0.0
        %1989 = vmatprep.subr.mxu0 0.0
        %1990 = vmatpush1.xpose.msra.mxu0 0.0
        %1991 = vmatprep.subr.mxu0 0.0
        %1992 = vmatpush1.xpose.msra.mxu0 0.0
        %1993 = vmatprep.subr.mxu0 0.0
        %1994 = vmatpush1.xpose.msra.mxu0 0.0
        %1995 = vmatprep.subr.mxu0 0.0
        %1996 = vmatpush1.xpose.msra.mxu0 0.0
        %1997 = vmatprep.subr.mxu0 0.0
        %1998 = vmatpush1.xpose.msra.mxu0 0.0
        %1999 = vmatprep.subr.mxu0 0.0
        %2000 = vmatpush1.xpose.msra.mxu0 0.0
        %2001 = vmatprep.subr.mxu0 0.0
        %2002 = vmatpush1.xpose.msra.mxu0 0.0
        %2003 = vmatprep.subr.mxu0 0.0
        %2004 = vmatpush1.xpose.msra.mxu0 0.0
        %2005 = vmatprep.mubr.f32.mxu0 0.0
        %2006 = vmatmul.mubr.f32.gmra.mrb[0].mxu0 %v1939
        %v2007 = vpop.f32.mrb[0].mxu0
        %v2008 = vadd.f32 0.0, %v2007
        %v2009 = vpop.f32.mrb[0].mxu0
        %2010 = vdwg.mxu0
        %v2011 = vmul.f32 %v1792, 0.35355338
        %v2012 = vmul.f32 %v1864, 0.35355338
        %v2013 = vmul.f32 %v1936, 0.35355338
        %v2014 = vmul.f32 %v2008, 0.35355338
        %v2015 = vadd.f32 %v2011, %v762
        %v2016 = vadd.f32 %v2012, %v762
        %v2017 = vadd.f32 %v2013, %v762
        %v2018 = vadd.f32 %v2014, %v762
        %v2019 = vsel %vm465, %v2015, -inf
        %2020 = vmax.xlane.f32.xlu0 %v2019
        %v2021 = vpop.xlane.xlu0 %2020
        %v2022 = vsel %vm465, %v2016, -inf
        %2023 = vmax.xlane.f32.xlu0 %v2022
        %v2024 = vpop.xlane.xlu0 %2023
        %v2025 = vsel %vm465, %v2017, -inf
        %2026 = vmax.xlane.f32.xlu0 %v2025
        %v2027 = vpop.xlane.xlu0 %2026
        %v2028 = vsel %vm465, %v2018, -inf
        %2029 = vmax.xlane.f32.xlu0 %v2028
        %v2030 = vpop.xlane.xlu0 %2029
        %v2031 = vsub.f32 %v2015, %v2021
        %v2032 = vsub.f32 %v2016, %v2024
        %v2033 = vsub.f32 %v2017, %v2027
        %v2034 = vsub.f32 %v2018, %v2030
        %v2035 = vmul.f32 %v2031, 1.442695
        %v2036 = vpow.pop %v2035
        %v2037 = vmul.f32 %v2032, 1.442695
        %v2038 = vpow.pop %v2037
        %v2039 = vmul.f32 %v2033, 1.442695
        %v2040 = vpow.pop %v2039
        %v2041 = vmul.f32 %v2034, 1.442695
        %v2042 = vpow.pop %v2041
        %v2043 = vsel %vm465, %v2036, 0.0
        %2044 = vadd.xlane.f32.xlu0 %v2043
        %v2045 = vpop.xlane.xlu0 %2044
        %v2046 = vsel %vm465, %v2038, 0.0
        %2047 = vadd.xlane.f32.xlu0 %v2046
        %v2048 = vpop.xlane.xlu0 %2047
        %v2049 = vsel %vm465, %v2040, 0.0
        %2050 = vadd.xlane.f32.xlu0 %v2049
        %v2051 = vpop.xlane.xlu0 %2050
        %v2052 = vsel %vm465, %v2042, 0.0
        %2053 = vadd.xlane.f32.xlu0 %v2052
        %v2054 = vpop.xlane.xlu0 %2053
        %v2055 = vrcp.pop %v2045
        %v2056 = vrcp.pop %v2048
        %v2057 = vrcp.pop %v2051
        %v2058 = vrcp.pop %v2054
        %v2059 = vmul.f32 %v2036, %v2055
        %v2060 = vmul.f32 %v2038, %v2056
        %v2061 = vmul.f32 %v2040, %v2057
        %v2062 = vmul.f32 %v2042, %v2058
        %v2064 = vsel %vm465, %v2059, 0
        %2066 = vmatprep.subr.mxu0 0.0
        %2067 = vmatpush1.msra.mxu0 %v1710
        %2068 = vmatprep.subr.mxu0 0.0
        %2069 = vmatpush1.msra.mxu0 0.0
        %2070 = vmatprep.subr.mxu0 0.0
        %2071 = vmatpush1.msra.mxu0 0.0
        %2072 = vmatprep.subr.mxu0 0.0
        %2073 = vmatpush1.msra.mxu0 0.0
        %2074 = vmatprep.subr.mxu0 0.0
        %2075 = vmatpush1.msra.mxu0 0.0
        %2076 = vmatprep.subr.mxu0 0.0
        %2077 = vmatpush1.msra.mxu0 0.0
        %2078 = vmatprep.subr.mxu0 0.0
        %2079 = vmatpush1.msra.mxu0 0.0
        %2080 = vmatprep.subr.mxu0 0.0
        %2081 = vmatpush1.msra.mxu0 0.0
        %2082 = vmatprep.subr.mxu0 0.0
        %2083 = vmatpush1.msra.mxu0 0.0
        %2084 = vmatprep.subr.mxu0 0.0
        %2085 = vmatpush1.msra.mxu0 0.0
        %2086 = vmatprep.subr.mxu0 0.0
        %2087 = vmatpush1.msra.mxu0 0.0
        %2088 = vmatprep.subr.mxu0 0.0
        %2089 = vmatpush1.msra.mxu0 0.0
        %2090 = vmatprep.subr.mxu0 0.0
        %2091 = vmatpush1.msra.mxu0 0.0
        %2092 = vmatprep.subr.mxu0 0.0
        %2093 = vmatpush1.msra.mxu0 0.0
        %2094 = vmatprep.subr.mxu0 0.0
        %2095 = vmatpush1.msra.mxu0 0.0
        %2096 = vmatprep.subr.mxu0 0.0
        %2097 = vmatpush1.msra.mxu0 0.0
        %2098 = vmatprep.subr.mxu0 0.0
        %2099 = vmatpush1.msra.mxu0 0.0
        %2100 = vmatprep.subr.mxu0 0.0
        %2101 = vmatpush1.msra.mxu0 0.0
        %2102 = vmatprep.subr.mxu0 0.0
        %2103 = vmatpush1.msra.mxu0 0.0
        %2104 = vmatprep.subr.mxu0 0.0
        %2105 = vmatpush1.msra.mxu0 0.0
        %2106 = vmatprep.subr.mxu0 0.0
        %2107 = vmatpush1.msra.mxu0 0.0
        %2108 = vmatprep.subr.mxu0 0.0
        %2109 = vmatpush1.msra.mxu0 0.0
        %2110 = vmatprep.subr.mxu0 0.0
        %2111 = vmatpush1.msra.mxu0 0.0
        %2112 = vmatprep.subr.mxu0 0.0
        %2113 = vmatpush1.msra.mxu0 0.0
        %2114 = vmatprep.subr.mxu0 0.0
        %2115 = vmatpush1.msra.mxu0 0.0
        %2116 = vmatprep.subr.mxu0 0.0
        %2117 = vmatpush1.msra.mxu0 0.0
        %2118 = vmatprep.subr.mxu0 0.0
        %2119 = vmatpush1.msra.mxu0 0.0
        %2120 = vmatprep.subr.mxu0 0.0
        %2121 = vmatpush1.msra.mxu0 0.0
        %2122 = vmatprep.subr.mxu0 0.0
        %2123 = vmatpush1.msra.mxu0 0.0
        %2124 = vmatprep.subr.mxu0 0.0
        %2125 = vmatpush1.msra.mxu0 0.0
        %2126 = vmatprep.subr.mxu0 0.0
        %2127 = vmatpush1.msra.mxu0 0.0
        %2128 = vmatprep.subr.mxu0 0.0
        %2129 = vmatpush1.msra.mxu0 0.0
        %2130 = vmatprep.mubr.f32.mxu0 0.0
        %2131 = vmatmul.mubr.f32.gmra.mrb[0].mxu0 %v2064
        %v2132 = vpop.f32.mrb[0].mxu0
        %v2133 = vadd.f32 0.0, %v2132
        %v2134 = vpop.f32.mrb[0].mxu0
        %2135 = vdwg.mxu0
        %v2137 = vsel %vm465, %v2060, 0
        %2139 = vmatprep.subr.mxu0 0.0
        %2140 = vmatpush1.msra.mxu0 %v1715
        %2141 = vmatprep.subr.mxu0 0.0
        %2142 = vmatpush1.msra.mxu0 0.0
        %2143 = vmatprep.subr.mxu0 0.0
        %2144 = vmatpush1.msra.mxu0 0.0
        %2145 = vmatprep.subr.mxu0 0.0
        %2146 = vmatpush1.msra.mxu0 0.0
        %2147 = vmatprep.subr.mxu0 0.0
        %2148 = vmatpush1.msra.mxu0 0.0
        %2149 = vmatprep.subr.mxu0 0.0
        %2150 = vmatpush1.msra.mxu0 0.0
        %2151 = vmatprep.subr.mxu0 0.0
        %2152 = vmatpush1.msra.mxu0 0.0
        %2153 = vmatprep.subr.mxu0 0.0
        %2154 = vmatpush1.msra.mxu0 0.0
        %2155 = vmatprep.subr.mxu0 0.0
        %2156 = vmatpush1.msra.mxu0 0.0
        %2157 = vmatprep.subr.mxu0 0.0
        %2158 = vmatpush1.msra.mxu0 0.0
        %2159 = vmatprep.subr.mxu0 0.0
        %2160 = vmatpush1.msra.mxu0 0.0
        %2161 = vmatprep.subr.mxu0 0.0
        %2162 = vmatpush1.msra.mxu0 0.0
        %2163 = vmatprep.subr.mxu0 0.0
        %2164 = vmatpush1.msra.mxu0 0.0
        %2165 = vmatprep.subr.mxu0 0.0
        %2166 = vmatpush1.msra.mxu0 0.0
        %2167 = vmatprep.subr.mxu0 0.0
        %2168 = vmatpush1.msra.mxu0 0.0
        %2169 = vmatprep.subr.mxu0 0.0
        %2170 = vmatpush1.msra.mxu0 0.0
        %2171 = vmatprep.subr.mxu0 0.0
        %2172 = vmatpush1.msra.mxu0 0.0
        %2173 = vmatprep.subr.mxu0 0.0
        %2174 = vmatpush1.msra.mxu0 0.0
        %2175 = vmatprep.subr.mxu0 0.0
        %2176 = vmatpush1.msra.mxu0 0.0
        %2177 = vmatprep.subr.mxu0 0.0
        %2178 = vmatpush1.msra.mxu0 0.0
        %2179 = vmatprep.subr.mxu0 0.0
        %2180 = vmatpush1.msra.mxu0 0.0
        %2181 = vmatprep.subr.mxu0 0.0
        %2182 = vmatpush1.msra.mxu0 0.0
        %2183 = vmatprep.subr.mxu0 0.0
        %2184 = vmatpush1.msra.mxu0 0.0
        %2185 = vmatprep.subr.mxu0 0.0
        %2186 = vmatpush1.msra.mxu0 0.0
        %2187 = vmatprep.subr.mxu0 0.0
        %2188 = vmatpush1.msra.mxu0 0.0
        %2189 = vmatprep.subr.mxu0 0.0
        %2190 = vmatpush1.msra.mxu0 0.0
        %2191 = vmatprep.subr.mxu0 0.0
        %2192 = vmatpush1.msra.mxu0 0.0
        %2193 = vmatprep.subr.mxu0 0.0
        %2194 = vmatpush1.msra.mxu0 0.0
        %2195 = vmatprep.subr.mxu0 0.0
        %2196 = vmatpush1.msra.mxu0 0.0
        %2197 = vmatprep.subr.mxu0 0.0
        %2198 = vmatpush1.msra.mxu0 0.0
        %2199 = vmatprep.subr.mxu0 0.0
        %2200 = vmatpush1.msra.mxu0 0.0
        %2201 = vmatprep.subr.mxu0 0.0
        %2202 = vmatpush1.msra.mxu0 0.0
        %2203 = vmatprep.mubr.f32.mxu0 0.0
        %2204 = vmatmul.mubr.f32.gmra.mrb[0].mxu0 %v2137
        %v2205 = vpop.f32.mrb[0].mxu0
        %v2206 = vadd.f32 0.0, %v2205
        %v2207 = vpop.f32.mrb[0].mxu0
        %2208 = vdwg.mxu0
        %v2210 = vsel %vm465, %v2061, 0
        %2212 = vmatprep.subr.mxu0 0.0
        %2213 = vmatpush1.msra.mxu0 %v1718
        %2214 = vmatprep.subr.mxu0 0.0
        %2215 = vmatpush1.msra.mxu0 0.0
        %2216 = vmatprep.subr.mxu0 0.0
        %2217 = vmatpush1.msra.mxu0 0.0
        %2218 = vmatprep.subr.mxu0 0.0
        %2219 = vmatpush1.msra.mxu0 0.0
        %2220 = vmatprep.subr.mxu0 0.0
        %2221 = vmatpush1.msra.mxu0 0.0
        %2222 = vmatprep.subr.mxu0 0.0
        %2223 = vmatpush1.msra.mxu0 0.0
        %2224 = vmatprep.subr.mxu0 0.0
        %2225 = vmatpush1.msra.mxu0 0.0
        %2226 = vmatprep.subr.mxu0 0.0
        %2227 = vmatpush1.msra.mxu0 0.0
        %2228 = vmatprep.subr.mxu0 0.0
        %2229 = vmatpush1.msra.mxu0 0.0
        %2230 = vmatprep.subr.mxu0 0.0
        %2231 = vmatpush1.msra.mxu0 0.0
        %2232 = vmatprep.subr.mxu0 0.0
        %2233 = vmatpush1.msra.mxu0 0.0
        %2234 = vmatprep.subr.mxu0 0.0
        %2235 = vmatpush1.msra.mxu0 0.0
        %2236 = vmatprep.subr.mxu0 0.0
        %2237 = vmatpush1.msra.mxu0 0.0
        %2238 = vmatprep.subr.mxu0 0.0
        %2239 = vmatpush1.msra.mxu0 0.0
        %2240 = vmatprep.subr.mxu0 0.0
        %2241 = vmatpush1.msra.mxu0 0.0
        %2242 = vmatprep.subr.mxu0 0.0
        %2243 = vmatpush1.msra.mxu0 0.0
        %2244 = vmatprep.subr.mxu0 0.0
        %2245 = vmatpush1.msra.mxu0 0.0
        %2246 = vmatprep.subr.mxu0 0.0
        %2247 = vmatpush1.msra.mxu0 0.0
        %2248 = vmatprep.subr.mxu0 0.0
        %2249 = vmatpush1.msra.mxu0 0.0
        %2250 = vmatprep.subr.mxu0 0.0
        %2251 = vmatpush1.msra.mxu0 0.0
        %2252 = vmatprep.subr.mxu0 0.0
        %2253 = vmatpush1.msra.mxu0 0.0
        %2254 = vmatprep.subr.mxu0 0.0
        %2255 = vmatpush1.msra.mxu0 0.0
        %2256 = vmatprep.subr.mxu0 0.0
        %2257 = vmatpush1.msra.mxu0 0.0
        %2258 = vmatprep.subr.mxu0 0.0
        %2259 = vmatpush1.msra.mxu0 0.0
        %2260 = vmatprep.subr.mxu0 0.0
        %2261 = vmatpush1.msra.mxu0 0.0
        %2262 = vmatprep.subr.mxu0 0.0
        %2263 = vmatpush1.msra.mxu0 0.0
        %2264 = vmatprep.subr.mxu0 0.0
        %2265 = vmatpush1.msra.mxu0 0.0
        %2266 = vmatprep.subr.mxu0 0.0
        %2267 = vmatpush1.msra.mxu0 0.0
        %2268 = vmatprep.subr.mxu0 0.0
        %2269 = vmatpush1.msra.mxu0 0.0
        %2270 = vmatprep.subr.mxu0 0.0
        %2271 = vmatpush1.msra.mxu0 0.0
        %2272 = vmatprep.subr.mxu0 0.0
        %2273 = vmatpush1.msra.mxu0 0.0
        %2274 = vmatprep.subr.mxu0 0.0
        %2275 = vmatpush1.msra.mxu0 0.0
        %2276 = vmatprep.mubr.f32.mxu0 0.0
        %2277 = vmatmul.mubr.f32.gmra.mrb[0].mxu0 %v2210
        %v2278 = vpop.f32.mrb[0].mxu0
        %v2279 = vadd.f32 0.0, %v2278
        %v2280 = vpop.f32.mrb[0].mxu0
        %2281 = vdwg.mxu0
        %v2283 = vsel %vm465, %v2062, 0
        %2285 = vmatprep.subr.mxu0 0.0
        %2286 = vmatpush1.msra.mxu0 %v1721
        %2287 = vmatprep.subr.mxu0 0.0
        %2288 = vmatpush1.msra.mxu0 0.0
        %2289 = vmatprep.subr.mxu0 0.0
        %2290 = vmatpush1.msra.mxu0 0.0
        %2291 = vmatprep.subr.mxu0 0.0
        %2292 = vmatpush1.msra.mxu0 0.0
        %2293 = vmatprep.subr.mxu0 0.0
        %2294 = vmatpush1.msra.mxu0 0.0
        %2295 = vmatprep.subr.mxu0 0.0
        %2296 = vmatpush1.msra.mxu0 0.0
        %2297 = vmatprep.subr.mxu0 0.0
        %2298 = vmatpush1.msra.mxu0 0.0
        %2299 = vmatprep.subr.mxu0 0.0
        %2300 = vmatpush1.msra.mxu0 0.0
        %2301 = vmatprep.subr.mxu0 0.0
        %2302 = vmatpush1.msra.mxu0 0.0
        %2303 = vmatprep.subr.mxu0 0.0
        %2304 = vmatpush1.msra.mxu0 0.0
        %2305 = vmatprep.subr.mxu0 0.0
        %2306 = vmatpush1.msra.mxu0 0.0
        %2307 = vmatprep.subr.mxu0 0.0
        %2308 = vmatpush1.msra.mxu0 0.0
        %2309 = vmatprep.subr.mxu0 0.0
        %2310 = vmatpush1.msra.mxu0 0.0
        %2311 = vmatprep.subr.mxu0 0.0
        %2312 = vmatpush1.msra.mxu0 0.0
        %2313 = vmatprep.subr.mxu0 0.0
        %2314 = vmatpush1.msra.mxu0 0.0
        %2315 = vmatprep.subr.mxu0 0.0
        %2316 = vmatpush1.msra.mxu0 0.0
        %2317 = vmatprep.subr.mxu0 0.0
        %2318 = vmatpush1.msra.mxu0 0.0
        %2319 = vmatprep.subr.mxu0 0.0
        %2320 = vmatpush1.msra.mxu0 0.0
        %2321 = vmatprep.subr.mxu0 0.0
        %2322 = vmatpush1.msra.mxu0 0.0
        %2323 = vmatprep.subr.mxu0 0.0
        %2324 = vmatpush1.msra.mxu0 0.0
        %2325 = vmatprep.subr.mxu0 0.0
        %2326 = vmatpush1.msra.mxu0 0.0
        %2327 = vmatprep.subr.mxu0 0.0
        %2328 = vmatpush1.msra.mxu0 0.0
        %2329 = vmatprep.subr.mxu0 0.0
        %2330 = vmatpush1.msra.mxu0 0.0
        %2331 = vmatprep.subr.mxu0 0.0
        %2332 = vmatpush1.msra.mxu0 0.0
        %2333 = vmatprep.subr.mxu0 0.0
        %2334 = vmatpush1.msra.mxu0 0.0
        %2335 = vmatprep.subr.mxu0 0.0
        %2336 = vmatpush1.msra.mxu0 0.0
        %2337 = vmatprep.subr.mxu0 0.0
        %2338 = vmatpush1.msra.mxu0 0.0
        %2339 = vmatprep.subr.mxu0 0.0
        %2340 = vmatpush1.msra.mxu0 0.0
        %2341 = vmatprep.subr.mxu0 0.0
        %2342 = vmatpush1.msra.mxu0 0.0
        %2343 = vmatprep.subr.mxu0 0.0
        %2344 = vmatpush1.msra.mxu0 0.0
        %2345 = vmatprep.subr.mxu0 0.0
        %2346 = vmatpush1.msra.mxu0 0.0
        %2347 = vmatprep.subr.mxu0 0.0
        %2348 = vmatpush1.msra.mxu0 0.0
        %2349 = vmatprep.mubr.f32.mxu0 0.0
        %2350 = vmatmul.mubr.f32.gmra.mrb[0].mxu0 %v2283
        %v2351 = vpop.f32.mrb[0].mxu0
        %v2352 = vadd.f32 0.0, %v2351
        %v2353 = vpop.f32.mrb[0].mxu0
        %2354 = vdwg.mxu0
        %v2355 = vld [vmem:[#allocation7 + $0xf0] sm:$0xff]
        %v2356 = vld [vmem:[#allocation7 + $0xf8] sm:$0xff]
        %v2357 = vld [vmem:[#allocation7 + $0x100] sm:$0xff]
        %v2358 = vld [vmem:[#allocation7 + $0x108] sm:$0xff]
        %v2360 = vsel %vm465, %v2206, 0
        %2362 = vmatprep.subr.mxu0 0.0
        %2363 = vmatpush1.msra.mxu0 %v2356
        %2364 = vmatprep.subr.mxu0 0.0
        %2365 = vmatpush1.msra.mxu0 0.0
        %2366 = vmatprep.subr.mxu0 0.0
        %2367 = vmatpush1.msra.mxu0 0.0
        %2368 = vmatprep.subr.mxu0 0.0
        %2369 = vmatpush1.msra.mxu0 0.0
        %2370 = vmatprep.subr.mxu0 0.0
        %2371 = vmatpush1.msra.mxu0 0.0
        %2372 = vmatprep.subr.mxu0 0.0
        %2373 = vmatpush1.msra.mxu0 0.0
        %2374 = vmatprep.subr.mxu0 0.0
        %2375 = vmatpush1.msra.mxu0 0.0
        %2376 = vmatprep.subr.mxu0 0.0
        %2377 = vmatpush1.msra.mxu0 0.0
        %2378 = vmatprep.subr.mxu0 0.0
        %2379 = vmatpush1.msra.mxu0 0.0
        %2380 = vmatprep.subr.mxu0 0.0
        %2381 = vmatpush1.msra.mxu0 0.0
        %2382 = vmatprep.subr.mxu0 0.0
        %2383 = vmatpush1.msra.mxu0 0.0
        %2384 = vmatprep.subr.mxu0 0.0
        %2385 = vmatpush1.msra.mxu0 0.0
        %2386 = vmatprep.subr.mxu0 0.0
        %2387 = vmatpush1.msra.mxu0 0.0
        %2388 = vmatprep.subr.mxu0 0.0
        %2389 = vmatpush1.msra.mxu0 0.0
        %2390 = vmatprep.subr.mxu0 0.0
        %2391 = vmatpush1.msra.mxu0 0.0
        %2392 = vmatprep.subr.mxu0 0.0
        %2393 = vmatpush1.msra.mxu0 0.0
        %2394 = vmatprep.subr.mxu0 0.0
        %2395 = vmatpush1.msra.mxu0 0.0
        %2396 = vmatprep.subr.mxu0 0.0
        %2397 = vmatpush1.msra.mxu0 0.0
        %2398 = vmatprep.subr.mxu0 0.0
        %2399 = vmatpush1.msra.mxu0 0.0
        %2400 = vmatprep.subr.mxu0 0.0
        %2401 = vmatpush1.msra.mxu0 0.0
        %2402 = vmatprep.subr.mxu0 0.0
        %2403 = vmatpush1.msra.mxu0 0.0
        %2404 = vmatprep.subr.mxu0 0.0
        %2405 = vmatpush1.msra.mxu0 0.0
        %2406 = vmatprep.subr.mxu0 0.0
        %2407 = vmatpush1.msra.mxu0 0.0
        %2408 = vmatprep.subr.mxu0 0.0
        %2409 = vmatpush1.msra.mxu0 0.0
        %2410 = vmatprep.subr.mxu0 0.0
        %2411 = vmatpush1.msra.mxu0 0.0
        %2412 = vmatprep.subr.mxu0 0.0
        %2413 = vmatpush1.msra.mxu0 0.0
        %2414 = vmatprep.subr.mxu0 0.0
        %2415 = vmatpush1.msra.mxu0 0.0
        %2416 = vmatprep.subr.mxu0 0.0
        %2417 = vmatpush1.msra.mxu0 0.0
        %2418 = vmatprep.subr.mxu0 0.0
        %2419 = vmatpush1.msra.mxu0 0.0
        %2420 = vmatprep.subr.mxu0 0.0
        %2421 = vmatpush1.msra.mxu0 0.0
        %2422 = vmatprep.subr.mxu0 0.0
        %2423 = vmatpush1.msra.mxu0 0.0
        %2424 = vmatprep.subr.mxu0 0.0
        %2425 = vmatpush1.msra.mxu0 0.0
        %2426 = vmatprep.mubr.f32.mxu0 0.0
        %2427 = vmatmul.mubr.f32.gmra.mrb[0].mxu0 %v2360
        %v2428 = vpop.f32.mrb[0].mxu0
        %v2429 = vadd.f32 0.0, %v2428
        %v2430 = vpop.f32.mrb[0].mxu0
        %2431 = vdwg.mxu0
        %v2433 = vsel %vm465, %v2133, 0
        %2435 = vmatprep.subr.mxu0 0.0
        %2436 = vmatpush1.msra.mxu0 %v2355
        %2437 = vmatprep.subr.mxu0 0.0
        %2438 = vmatpush1.msra.mxu0 0.0
        %2439 = vmatprep.subr.mxu0 0.0
        %2440 = vmatpush1.msra.mxu0 0.0
        %2441 = vmatprep.subr.mxu0 0.0
        %2442 = vmatpush1.msra.mxu0 0.0
        %2443 = vmatprep.subr.mxu0 0.0
        %2444 = vmatpush1.msra.mxu0 0.0
        %2445 = vmatprep.subr.mxu0 0.0
        %2446 = vmatpush1.msra.mxu0 0.0
        %2447 = vmatprep.subr.mxu0 0.0
        %2448 = vmatpush1.msra.mxu0 0.0
        %2449 = vmatprep.subr.mxu0 0.0
        %2450 = vmatpush1.msra.mxu0 0.0
        %2451 = vmatprep.subr.mxu0 0.0
        %2452 = vmatpush1.msra.mxu0 0.0
        %2453 = vmatprep.subr.mxu0 0.0
        %2454 = vmatpush1.msra.mxu0 0.0
        %2455 = vmatprep.subr.mxu0 0.0
        %2456 = vmatpush1.msra.mxu0 0.0
        %2457 = vmatprep.subr.mxu0 0.0
        %2458 = vmatpush1.msra.mxu0 0.0
        %2459 = vmatprep.subr.mxu0 0.0
        %2460 = vmatpush1.msra.mxu0 0.0
        %2461 = vmatprep.subr.mxu0 0.0
        %2462 = vmatpush1.msra.mxu0 0.0
        %2463 = vmatprep.subr.mxu0 0.0
        %2464 = vmatpush1.msra.mxu0 0.0
        %2465 = vmatprep.subr.mxu0 0.0
        %2466 = vmatpush1.msra.mxu0 0.0
        %2467 = vmatprep.subr.mxu0 0.0
        %2468 = vmatpush1.msra.mxu0 0.0
        %2469 = vmatprep.subr.mxu0 0.0
        %2470 = vmatpush1.msra.mxu0 0.0
        %2471 = vmatprep.subr.mxu0 0.0
        %2472 = vmatpush1.msra.mxu0 0.0
        %2473 = vmatprep.subr.mxu0 0.0
        %2474 = vmatpush1.msra.mxu0 0.0
        %2475 = vmatprep.subr.mxu0 0.0
        %2476 = vmatpush1.msra.mxu0 0.0
        %2477 = vmatprep.subr.mxu0 0.0
        %2478 = vmatpush1.msra.mxu0 0.0
        %2479 = vmatprep.subr.mxu0 0.0
        %2480 = vmatpush1.msra.mxu0 0.0
        %2481 = vmatprep.subr.mxu0 0.0
        %2482 = vmatpush1.msra.mxu0 0.0
        %2483 = vmatprep.subr.mxu0 0.0
        %2484 = vmatpush1.msra.mxu0 0.0
        %2485 = vmatprep.subr.mxu0 0.0
        %2486 = vmatpush1.msra.mxu0 0.0
        %2487 = vmatprep.subr.mxu0 0.0
        %2488 = vmatpush1.msra.mxu0 0.0
        %2489 = vmatprep.subr.mxu0 0.0
        %2490 = vmatpush1.msra.mxu0 0.0
        %2491 = vmatprep.subr.mxu0 0.0
        %2492 = vmatpush1.msra.mxu0 0.0
        %2493 = vmatprep.subr.mxu0 0.0
        %2494 = vmatpush1.msra.mxu0 0.0
        %2495 = vmatprep.subr.mxu0 0.0
        %2496 = vmatpush1.msra.mxu0 0.0
        %2497 = vmatprep.subr.mxu0 0.0
        %2498 = vmatpush1.msra.mxu0 0.0
        %2499 = vmatprep.mubr.f32.mxu0 0.0
        %2500 = vmatmul.mubr.f32.gmra.mrb[0].mxu0 %v2433
        %v2501 = vpop.f32.mrb[0].mxu0
        %v2502 = vadd.f32 %v2429, %v2501
        %v2503 = vpop.f32.mrb[0].mxu0
        %2504 = vdwg.mxu0
        %v2506 = vsel %vm465, %v2279, 0
        %2508 = vmatprep.subr.mxu0 0.0
        %2509 = vmatpush1.msra.mxu0 %v2357
        %2510 = vmatprep.subr.mxu0 0.0
        %2511 = vmatpush1.msra.mxu0 0.0
        %2512 = vmatprep.subr.mxu0 0.0
        %2513 = vmatpush1.msra.mxu0 0.0
        %2514 = vmatprep.subr.mxu0 0.0
        %2515 = vmatpush1.msra.mxu0 0.0
        %2516 = vmatprep.subr.mxu0 0.0
        %2517 = vmatpush1.msra.mxu0 0.0
        %2518 = vmatprep.subr.mxu0 0.0
        %2519 = vmatpush1.msra.mxu0 0.0
        %2520 = vmatprep.subr.mxu0 0.0
        %2521 = vmatpush1.msra.mxu0 0.0
        %2522 = vmatprep.subr.mxu0 0.0
        %2523 = vmatpush1.msra.mxu0 0.0
        %2524 = vmatprep.subr.mxu0 0.0
        %2525 = vmatpush1.msra.mxu0 0.0
        %2526 = vmatprep.subr.mxu0 0.0
        %2527 = vmatpush1.msra.mxu0 0.0
        %2528 = vmatprep.subr.mxu0 0.0
        %2529 = vmatpush1.msra.mxu0 0.0
        %2530 = vmatprep.subr.mxu0 0.0
        %2531 = vmatpush1.msra.mxu0 0.0
        %2532 = vmatprep.subr.mxu0 0.0
        %2533 = vmatpush1.msra.mxu0 0.0
        %2534 = vmatprep.subr.mxu0 0.0
        %2535 = vmatpush1.msra.mxu0 0.0
        %2536 = vmatprep.subr.mxu0 0.0
        %2537 = vmatpush1.msra.mxu0 0.0
        %2538 = vmatprep.subr.mxu0 0.0
        %2539 = vmatpush1.msra.mxu0 0.0
        %2540 = vmatprep.subr.mxu0 0.0
        %2541 = vmatpush1.msra.mxu0 0.0
        %2542 = vmatprep.subr.mxu0 0.0
        %2543 = vmatpush1.msra.mxu0 0.0
        %2544 = vmatprep.subr.mxu0 0.0
        %2545 = vmatpush1.msra.mxu0 0.0
        %2546 = vmatprep.subr.mxu0 0.0
        %2547 = vmatpush1.msra.mxu0 0.0
        %2548 = vmatprep.subr.mxu0 0.0
        %2549 = vmatpush1.msra.mxu0 0.0
        %2550 = vmatprep.subr.mxu0 0.0
        %2551 = vmatpush1.msra.mxu0 0.0
        %2552 = vmatprep.subr.mxu0 0.0
        %2553 = vmatpush1.msra.mxu0 0.0
        %2554 = vmatprep.subr.mxu0 0.0
        %2555 = vmatpush1.msra.mxu0 0.0
        %2556 = vmatprep.subr.mxu0 0.0
        %2557 = vmatpush1.msra.mxu0 0.0
        %2558 = vmatprep.subr.mxu0 0.0
        %2559 = vmatpush1.msra.mxu0 0.0
        %2560 = vmatprep.subr.mxu0 0.0
        %2561 = vmatpush1.msra.mxu0 0.0
        %2562 = vmatprep.subr.mxu0 0.0
        %2563 = vmatpush1.msra.mxu0 0.0
        %2564 = vmatprep.subr.mxu0 0.0
        %2565 = vmatpush1.msra.mxu0 0.0
        %2566 = vmatprep.subr.mxu0 0.0
        %2567 = vmatpush1.msra.mxu0 0.0
        %2568 = vmatprep.subr.mxu0 0.0
        %2569 = vmatpush1.msra.mxu0 0.0
        %2570 = vmatprep.subr.mxu0 0.0
        %2571 = vmatpush1.msra.mxu0 0.0
        %2572 = vmatprep.mubr.f32.mxu0 0.0
        %2573 = vmatmul.mubr.f32.gmra.mrb[0].mxu0 %v2506
        %v2574 = vpop.f32.mrb[0].mxu0
        %v2575 = vadd.f32 0.0, %v2574
        %v2576 = vpop.f32.mrb[0].mxu0
        %2577 = vdwg.mxu0
        %v2578 = vadd.f32 %v2502, %v2575
        %v2580 = vsel %vm465, %v2352, 0
        %2582 = vmatprep.subr.mxu0 0.0
        %2583 = vmatpush1.msra.mxu0 %v2358
        %2584 = vmatprep.subr.mxu0 0.0
        %2585 = vmatpush1.msra.mxu0 0.0
        %2586 = vmatprep.subr.mxu0 0.0
        %2587 = vmatpush1.msra.mxu0 0.0
        %2588 = vmatprep.subr.mxu0 0.0
        %2589 = vmatpush1.msra.mxu0 0.0
        %2590 = vmatprep.subr.mxu0 0.0
        %2591 = vmatpush1.msra.mxu0 0.0
        %2592 = vmatprep.subr.mxu0 0.0
        %2593 = vmatpush1.msra.mxu0 0.0
        %2594 = vmatprep.subr.mxu0 0.0
        %2595 = vmatpush1.msra.mxu0 0.0
        %2596 = vmatprep.subr.mxu0 0.0
        %2597 = vmatpush1.msra.mxu0 0.0
        %2598 = vmatprep.subr.mxu0 0.0
        %2599 = vmatpush1.msra.mxu0 0.0
        %2600 = vmatprep.subr.mxu0 0.0
        %2601 = vmatpush1.msra.mxu0 0.0
        %2602 = vmatprep.subr.mxu0 0.0
        %2603 = vmatpush1.msra.mxu0 0.0
        %2604 = vmatprep.subr.mxu0 0.0
        %2605 = vmatpush1.msra.mxu0 0.0
        %2606 = vmatprep.subr.mxu0 0.0
        %2607 = vmatpush1.msra.mxu0 0.0
        %2608 = vmatprep.subr.mxu0 0.0
        %2609 = vmatpush1.msra.mxu0 0.0
        %2610 = vmatprep.subr.mxu0 0.0
        %2611 = vmatpush1.msra.mxu0 0.0
        %2612 = vmatprep.subr.mxu0 0.0
        %2613 = vmatpush1.msra.mxu0 0.0
        %2614 = vmatprep.subr.mxu0 0.0
        %2615 = vmatpush1.msra.mxu0 0.0
        %2616 = vmatprep.subr.mxu0 0.0
        %2617 = vmatpush1.msra.mxu0 0.0
        %2618 = vmatprep.subr.mxu0 0.0
        %2619 = vmatpush1.msra.mxu0 0.0
        %2620 = vmatprep.subr.mxu0 0.0
        %2621 = vmatpush1.msra.mxu0 0.0
        %2622 = vmatprep.subr.mxu0 0.0
        %2623 = vmatpush1.msra.mxu0 0.0
        %2624 = vmatprep.subr.mxu0 0.0
        %2625 = vmatpush1.msra.mxu0 0.0
        %2626 = vmatprep.subr.mxu0 0.0
        %2627 = vmatpush1.msra.mxu0 0.0
        %2628 = vmatprep.subr.mxu0 0.0
        %2629 = vmatpush1.msra.mxu0 0.0
        %2630 = vmatprep.subr.mxu0 0.0
        %2631 = vmatpush1.msra.mxu0 0.0
        %2632 = vmatprep.subr.mxu0 0.0
        %2633 = vmatpush1.msra.mxu0 0.0
        %2634 = vmatprep.subr.mxu0 0.0
        %2635 = vmatpush1.msra.mxu0 0.0
        %2636 = vmatprep.subr.mxu0 0.0
        %2637 = vmatpush1.msra.mxu0 0.0
        %2638 = vmatprep.subr.mxu0 0.0
        %2639 = vmatpush1.msra.mxu0 0.0
        %2640 = vmatprep.subr.mxu0 0.0
        %2641 = vmatpush1.msra.mxu0 0.0
        %2642 = vmatprep.subr.mxu0 0.0
        %2643 = vmatpush1.msra.mxu0 0.0
        %2644 = vmatprep.subr.mxu0 0.0
        %2645 = vmatpush1.msra.mxu0 0.0
        %2646 = vmatprep.mubr.f32.mxu0 0.0
        %2647 = vmatmul.mubr.f32.gmra.mrb[0].mxu0 %v2580
        %v2648 = vpop.f32.mrb[0].mxu0
        %v2649 = vadd.f32 0.0, %v2648
        %v2650 = vpop.f32.mrb[0].mxu0
        %2651 = vdwg.mxu0
        %v2652 = vadd.f32 %v2578, %v2649
        %v2653 = vld [vmem:[#allocation8 + $0xb] sm:$0x1]
        %v2654 = vlaneseq
        %v2655 = vshrl.u32 %v2654, 7
        %v2656 = vsub.s32 0, %v2655
        %v2657 = vrot.slane %v2653, %v2656
        %v2658 = vadd.f32 %v2652, %v2657
        %v2659 = vadd.f32 %v2658, %v1630
        %v2660 = vsel %vm381, %v2659, 0.0
        %2661 = vadd.xlane.f32.xlu0 %v2660
        %v2662 = vpop.xlane.xlu0 %2661
        %v2663 = vmul.f32 %v2662, %v1412
        %v2664 = vsub.f32 %v2659, %v2663
        %v2665 = vmul.f32 %v2664, %v2664
        %v2666 = vsel %vm381, %v2665, 0.0
        %2667 = vadd.xlane.f32.xlu0 %v2666
        %v2668 = vpop.xlane.xlu0 %2667
        %v2669 = vmul.f32 %v2668, %v1412
        %v2670 = vadd.f32 %v2669, 1e-05
        %v2671 = vrsqrt.pop %v2670
        %v2672 = vmul.f32 %v2664, %v2671
        %v2673 = vld [vmem:[#allocation8 + $0xe] sm:$0x1]
        %v2674 = vlaneseq
        %v2675 = vshrl.u32 %v2674, 7
        %v2676 = vsub.s32 0, %v2675
        %v2677 = vrot.slane %v2673, %v2676
        %v2678 = vmul.f32 %v2672, %v2677
        %v2679 = vld [vmem:[#allocation8 + $0xf] sm:$0x1]
        %v2680 = vlaneseq
        %v2681 = vshrl.u32 %v2680, 7
        %v2682 = vsub.s32 0, %v2681
        %v2683 = vrot.slane %v2679, %v2682
        %v2684 = vadd.f32 %v2678, %v2683
        %v2685 = vld [vmem:[#allocation7 + $0x110] sm:$0xff]
        %v2686 = vld [vmem:[#allocation7 + $0x118] sm:$0xff]
        %v2687 = vld [vmem:[#allocation7 + $0x120] sm:$0xff]
        %v2688 = vld [vmem:[#allocation7 + $0x128] sm:$0xff]
        %v2689 = vld [vmem:[#allocation8 + $0xc] sm:$0x1]
        %v2690 = vlaneseq
        %v2691 = vshrl.u32 %v2690, 7
        %v2692 = vsub.s32 0, %v2691
        %v2693 = vrot.slane %v2689, %v2692
        %v2695 = vsel %vm381, %v2684, 0
        %2697 = vmatprep.subr.mxu0 0.0
        %2698 = vmatpush1.msra.mxu0 %v2685
        %2699 = vmatprep.subr.mxu0 0.0
        %2700 = vmatpush1.msra.mxu0 %v2686
        %2701 = vmatprep.subr.mxu0 0.0
        %2702 = vmatpush1.msra.mxu0 %v2687
        %2703 = vmatprep.subr.mxu0 0.0
        %2704 = vmatpush1.msra.mxu0 %v2688
        %2705 = vmatprep.subr.mxu0 0.0
        %2706 = vmatpush1.msra.mxu0 0.0
        %2707 = vmatprep.subr.mxu0 0.0
        %2708 = vmatpush1.msra.mxu0 0.0
        %2709 = vmatprep.subr.mxu0 0.0
        %2710 = vmatpush1.msra.mxu0 0.0
        %2711 = vmatprep.subr.mxu0 0.0
        %2712 = vmatpush1.msra.mxu0 0.0
        %2713 = vmatprep.subr.mxu0 0.0
        %2714 = vmatpush1.msra.mxu0 0.0
        %2715 = vmatprep.subr.mxu0 0.0
        %2716 = vmatpush1.msra.mxu0 0.0
        %2717 = vmatprep.subr.mxu0 0.0
        %2718 = vmatpush1.msra.mxu0 0.0
        %2719 = vmatprep.subr.mxu0 0.0
        %2720 = vmatpush1.msra.mxu0 0.0
        %2721 = vmatprep.subr.mxu0 0.0
        %2722 = vmatpush1.msra.mxu0 0.0
        %2723 = vmatprep.subr.mxu0 0.0
        %2724 = vmatpush1.msra.mxu0 0.0
        %2725 = vmatprep.subr.mxu0 0.0
        %2726 = vmatpush1.msra.mxu0 0.0
        %2727 = vmatprep.subr.mxu0 0.0
        %2728 = vmatpush1.msra.mxu0 0.0
        %2729 = vmatprep.subr.mxu0 0.0
        %2730 = vmatpush1.msra.mxu0 0.0
        %2731 = vmatprep.subr.mxu0 0.0
        %2732 = vmatpush1.msra.mxu0 0.0
        %2733 = vmatprep.subr.mxu0 0.0
        %2734 = vmatpush1.msra.mxu0 0.0
        %2735 = vmatprep.subr.mxu0 0.0
        %2736 = vmatpush1.msra.mxu0 0.0
        %2737 = vmatprep.subr.mxu0 0.0
        %2738 = vmatpush1.msra.mxu0 0.0
        %2739 = vmatprep.subr.mxu0 0.0
        %2740 = vmatpush1.msra.mxu0 0.0
        %2741 = vmatprep.subr.mxu0 0.0
        %2742 = vmatpush1.msra.mxu0 0.0
        %2743 = vmatprep.subr.mxu0 0.0
        %2744 = vmatpush1.msra.mxu0 0.0
        %2745 = vmatprep.subr.mxu0 0.0
        %2746 = vmatpush1.msra.mxu0 0.0
        %2747 = vmatprep.subr.mxu0 0.0
        %2748 = vmatpush1.msra.mxu0 0.0
        %2749 = vmatprep.subr.mxu0 0.0
        %2750 = vmatpush1.msra.mxu0 0.0
        %2751 = vmatprep.subr.mxu0 0.0
        %2752 = vmatpush1.msra.mxu0 0.0
        %2753 = vmatprep.subr.mxu0 0.0
        %2754 = vmatpush1.msra.mxu0 0.0
        %2755 = vmatprep.subr.mxu0 0.0
        %2756 = vmatpush1.msra.mxu0 0.0
        %2757 = vmatprep.subr.mxu0 0.0
        %2758 = vmatpush1.msra.mxu0 0.0
        %2759 = vmatprep.subr.mxu0 0.0
        %2760 = vmatpush1.msra.mxu0 0.0
        %2761 = vmatprep.mubr.f32.mxu0 0.0
        %2762 = vmatmul.mubr.f32.gmra.mrb[0].mxu0 %v2695
        %v2763 = vpop.f32.mrb[0].mxu0
        %v2764 = vadd.f32 %v2693, %v2763
        %v2765 = vpop.f32.mrb[0].mxu0
        %2766 = vdwg.mxu0
        %v2767 = vmax.f32 %v2764, 0.0
        %v2768 = vld [vmem:[#allocation7 + $0x130] sm:$0xff]
        %v2769 = vld [vmem:[#allocation7 + $0x138] sm:$0xff]
        %v2770 = vld [vmem:[#allocation7 + $0x140] sm:$0xff]
        %v2771 = vld [vmem:[#allocation7 + $0x148] sm:$0xff]
        %v2772 = vld [vmem:[#allocation7 + $0x150] sm:$0xff]
        %v2773 = vld [vmem:[#allocation7 + $0x158] sm:$0xff]
        %v2774 = vld [vmem:[#allocation7 + $0x160] sm:$0xff]
        %v2775 = vld [vmem:[#allocation7 + $0x168] sm:$0xff]
        %v2776 = vld [vmem:[#allocation8 + $0xd] sm:$0x1]
        %v2777 = vlaneseq
        %v2778 = vshrl.u32 %v2777, 7
        %v2779 = vsub.s32 0, %v2778
        %v2780 = vrot.slane %v2776, %v2779
        %v2782 = vsel %vm1531, %v2767, 0
        %2784 = vmatprep.subr.mxu0 0.0
        %2785 = vmatpush1.msra.mxu0 %v2768
        %2786 = vmatprep.subr.mxu0 0.0
        %2787 = vmatpush1.msra.mxu0 %v2769
        %2788 = vmatprep.subr.mxu0 0.0
        %2789 = vmatpush1.msra.mxu0 %v2770
        %2790 = vmatprep.subr.mxu0 0.0
        %2791 = vmatpush1.msra.mxu0 %v2771
        %2792 = vmatprep.subr.mxu0 0.0
        %2793 = vmatpush1.msra.mxu0 %v2772
        %2794 = vmatprep.subr.mxu0 0.0
        %2795 = vmatpush1.msra.mxu0 %v2773
        %2796 = vmatprep.subr.mxu0 0.0
        %2797 = vmatpush1.msra.mxu0 %v2774
        %2798 = vmatprep.subr.mxu0 0.0
        %2799 = vmatpush1.msra.mxu0 %v2775
        %2800 = vmatprep.subr.mxu0 0.0
        %2801 = vmatpush1.msra.mxu0 0.0
        %2802 = vmatprep.subr.mxu0 0.0
        %2803 = vmatpush1.msra.mxu0 0.0
        %2804 = vmatprep.subr.mxu0 0.0
        %2805 = vmatpush1.msra.mxu0 0.0
        %2806 = vmatprep.subr.mxu0 0.0
        %2807 = vmatpush1.msra.mxu0 0.0
        %2808 = vmatprep.subr.mxu0 0.0
        %2809 = vmatpush1.msra.mxu0 0.0
        %2810 = vmatprep.subr.mxu0 0.0
        %2811 = vmatpush1.msra.mxu0 0.0
        %2812 = vmatprep.subr.mxu0 0.0
        %2813 = vmatpush1.msra.mxu0 0.0
        %2814 = vmatprep.subr.mxu0 0.0
        %2815 = vmatpush1.msra.mxu0 0.0
        %2816 = vmatprep.subr.mxu0 0.0
        %2817 = vmatpush1.msra.mxu0 0.0
        %2818 = vmatprep.subr.mxu0 0.0
        %2819 = vmatpush1.msra.mxu0 0.0
        %2820 = vmatprep.subr.mxu0 0.0
        %2821 = vmatpush1.msra.mxu0 0.0
        %2822 = vmatprep.subr.mxu0 0.0
        %2823 = vmatpush1.msra.mxu0 0.0
        %2824 = vmatprep.subr.mxu0 0.0
        %2825 = vmatpush1.msra.mxu0 0.0
        %2826 = vmatprep.subr.mxu0 0.0
        %2827 = vmatpush1.msra.mxu0 0.0
        %2828 = vmatprep.subr.mxu0 0.0
        %2829 = vmatpush1.msra.mxu0 0.0
        %2830 = vmatprep.subr.mxu0 0.0
        %2831 = vmatpush1.msra.mxu0 0.0
        %2832 = vmatprep.subr.mxu0 0.0
        %2833 = vmatpush1.msra.mxu0 0.0
        %2834 = vmatprep.subr.mxu0 0.0
        %2835 = vmatpush1.msra.mxu0 0.0
        %2836 = vmatprep.subr.mxu0 0.0
        %2837 = vmatpush1.msra.mxu0 0.0
        %2838 = vmatprep.subr.mxu0 0.0
        %2839 = vmatpush1.msra.mxu0 0.0
        %2840 = vmatprep.subr.mxu0 0.0
        %2841 = vmatpush1.msra.mxu0 0.0
        %2842 = vmatprep.subr.mxu0 0.0
        %2843 = vmatpush1.msra.mxu0 0.0
        %2844 = vmatprep.subr.mxu0 0.0
        %2845 = vmatpush1.msra.mxu0 0.0
        %2846 = vmatprep.subr.mxu0 0.0
        %2847 = vmatpush1.msra.mxu0 0.0
        %2848 = vmatprep.mubr.f32.mxu0 0.0
        %2849 = vmatmul.mubr.f32.gmra.mrb[0].mxu0 %v2782
        %v2850 = vpop.f32.mrb[0].mxu0
        %v2851 = vadd.f32 %v2780, %v2850
        %v2852 = vpop.f32.mrb[0].mxu0
        %2853 = vdwg.mxu0
        %v2854 = vadd.f32 %v2851, %v2684
        %v2855 = vsel %vm381, %v2854, 0.0
        %2856 = vadd.xlane.f32.xlu0 %v2855
        %v2857 = vpop.xlane.xlu0 %2856
        %v2858 = vmul.f32 %v2857, %v1412
        %v2859 = vsub.f32 %v2854, %v2858
        %v2860 = vmul.f32 %v2859, %v2859
        %v2861 = vsel %vm381, %v2860, 0.0
        %2862 = vadd.xlane.f32.xlu0 %v2861
        %v2863 = vpop.xlane.xlu0 %2862
        %v2864 = vmul.f32 %v2863, %v1412
        %v2865 = vadd.f32 %v2864, 1e-05
        %v2866 = vrsqrt.pop %v2865
        %v2867 = vmul.f32 %v2859, %v2866
        %v2868 = vld [vmem:[#allocation8 + $0x10] sm:$0x1]
        %v2869 = vlaneseq
        %v2870 = vshrl.u32 %v2869, 7
        %v2871 = vsub.s32 0, %v2870
        %v2872 = vrot.slane %v2868, %v2871
        %v2873 = vmul.f32 %v2867, %v2872
        %v2874 = vld [vmem:[#allocation8 + $0x11] sm:$0x1]
        %v2875 = vlaneseq
        %v2876 = vshrl.u32 %v2875, 7
        %v2877 = vsub.s32 0, %v2876
        %v2878 = vrot.slane %v2874, %v2877
        %v2879 = vadd.f32 %v2873, %v2878
        %v2880 = vld [vmem:[#allocation7 + $0x170] sm:$0xff]
        %v2881 = vld [vmem:[#allocation7 + $0x178] sm:$0xff]
        %v2882 = vld [vmem:[#allocation7 + $0x180] sm:$0xff]
        %v2883 = vld [vmem:[#allocation7 + $0x188] sm:$0xff]
        %v2884 = vld [vmem:[#allocation8 + $0x12] sm:$0x1]
        %v2885 = vlaneseq
        %v2886 = vshrl.u32 %v2885, 7
        %v2887 = vsub.s32 0, %v2886
        %v2888 = vrot.slane %v2884, %v2887
        %v2890 = vsel %vm381, %v2879, 0
        %2892 = vmatprep.subr.mxu0 0.0
        %2893 = vmatpush1.msra.mxu0 %v2880
        %2894 = vmatprep.subr.mxu0 0.0
        %2895 = vmatpush1.msra.mxu0 %v2881
        %2896 = vmatprep.subr.mxu0 0.0
        %2897 = vmatpush1.msra.mxu0 %v2882
        %2898 = vmatprep.subr.mxu0 0.0
        %2899 = vmatpush1.msra.mxu0 %v2883
        %2900 = vmatprep.subr.mxu0 0.0
        %2901 = vmatpush1.msra.mxu0 0.0
        %2902 = vmatprep.subr.mxu0 0.0
        %2903 = vmatpush1.msra.mxu0 0.0
        %2904 = vmatprep.subr.mxu0 0.0
        %2905 = vmatpush1.msra.mxu0 0.0
        %2906 = vmatprep.subr.mxu0 0.0
        %2907 = vmatpush1.msra.mxu0 0.0
        %2908 = vmatprep.subr.mxu0 0.0
        %2909 = vmatpush1.msra.mxu0 0.0
        %2910 = vmatprep.subr.mxu0 0.0
        %2911 = vmatpush1.msra.mxu0 0.0
        %2912 = vmatprep.subr.mxu0 0.0
        %2913 = vmatpush1.msra.mxu0 0.0
        %2914 = vmatprep.subr.mxu0 0.0
        %2915 = vmatpush1.msra.mxu0 0.0
        %2916 = vmatprep.subr.mxu0 0.0
        %2917 = vmatpush1.msra.mxu0 0.0
        %2918 = vmatprep.subr.mxu0 0.0
        %2919 = vmatpush1.msra.mxu0 0.0
        %2920 = vmatprep.subr.mxu0 0.0
        %2921 = vmatpush1.msra.mxu0 0.0
        %2922 = vmatprep.subr.mxu0 0.0
        %2923 = vmatpush1.msra.mxu0 0.0
        %2924 = vmatprep.subr.mxu0 0.0
        %2925 = vmatpush1.msra.mxu0 0.0
        %2926 = vmatprep.subr.mxu0 0.0
        %2927 = vmatpush1.msra.mxu0 0.0
        %2928 = vmatprep.subr.mxu0 0.0
        %2929 = vmatpush1.msra.mxu0 0.0
        %2930 = vmatprep.subr.mxu0 0.0
        %2931 = vmatpush1.msra.mxu0 0.0
        %2932 = vmatprep.subr.mxu0 0.0
        %2933 = vmatpush1.msra.mxu0 0.0
        %2934 = vmatprep.subr.mxu0 0.0
        %2935 = vmatpush1.msra.mxu0 0.0
        %2936 = vmatprep.subr.mxu0 0.0
        %2937 = vmatpush1.msra.mxu0 0.0
        %2938 = vmatprep.subr.mxu0 0.0
        %2939 = vmatpush1.msra.mxu0 0.0
        %2940 = vmatprep.subr.mxu0 0.0
        %2941 = vmatpush1.msra.mxu0 0.0
        %2942 = vmatprep.subr.mxu0 0.0
        %2943 = vmatpush1.msra.mxu0 0.0
        %2944 = vmatprep.subr.mxu0 0.0
        %2945 = vmatpush1.msra.mxu0 0.0
        %2946 = vmatprep.subr.mxu0 0.0
        %2947 = vmatpush1.msra.mxu0 0.0
        %2948 = vmatprep.subr.mxu0 0.0
        %2949 = vmatpush1.msra.mxu0 0.0
        %2950 = vmatprep.subr.mxu0 0.0
        %2951 = vmatpush1.msra.mxu0 0.0
        %2952 = vmatprep.subr.mxu0 0.0
        %2953 = vmatpush1.msra.mxu0 0.0
        %2954 = vmatprep.subr.mxu0 0.0
        %2955 = vmatpush1.msra.mxu0 0.0
        %2956 = vmatprep.mubr.f32.mxu0 0.0
        %2957 = vmatmul.mubr.f32.gmra.mrb[0].mxu0 %v2890
        %v2958 = vpop.f32.mrb[0].mxu0
        %v2959 = vadd.f32 %v2888, %v2958
        %v2960 = vpop.f32.mrb[0].mxu0
        %2961 = vdwg.mxu0
        %2963 = vrot.lane.b32.xlu0 %v2959, 120
        %v2964 = vpop.permute.xlu0 %2963
        %2966 = vrot.lane.b32.xlu0 %v2959, 112
        %v2967 = vpop.permute.xlu0 %2966
        %2969 = vrot.lane.b32.xlu0 %v2959, 104
        %v2970 = vpop.permute.xlu0 %2969
        %v2972 = vsel %vm465, %v2959, 0
        %2974 = vmatprep.subr.mxu0 0.0
        %2975 = vmatpush1.xpose.msra.mxu0 %v2972
        %2976 = vmatprep.subr.mxu0 0.0
        %2977 = vmatpush1.xpose.msra.mxu0 0.0
        %2978 = vmatprep.subr.mxu0 0.0
        %2979 = vmatpush1.xpose.msra.mxu0 0.0
        %2980 = vmatprep.subr.mxu0 0.0
        %2981 = vmatpush1.xpose.msra.mxu0 0.0
        %2982 = vmatprep.subr.mxu0 0.0
        %2983 = vmatpush1.xpose.msra.mxu0 0.0
        %2984 = vmatprep.subr.mxu0 0.0
        %2985 = vmatpush1.xpose.msra.mxu0 0.0
        %2986 = vmatprep.subr.mxu0 0.0
        %2987 = vmatpush1.xpose.msra.mxu0 0.0
        %2988 = vmatprep.subr.mxu0 0.0
        %2989 = vmatpush1.xpose.msra.mxu0 0.0
        %2990 = vmatprep.subr.mxu0 0.0
        %2991 = vmatpush1.xpose.msra.mxu0 0.0
        %2992 = vmatprep.subr.mxu0 0.0
        %2993 = vmatpush1.xpose.msra.mxu0 0.0
        %2994 = vmatprep.subr.mxu0 0.0
        %2995 = vmatpush1.xpose.msra.mxu0 0.0
        %2996 = vmatprep.subr.mxu0 0.0
        %2997 = vmatpush1.xpose.msra.mxu0 0.0
        %2998 = vmatprep.subr.mxu0 0.0
        %2999 = vmatpush1.xpose.msra.mxu0 0.0
        %3000 = vmatprep.subr.mxu0 0.0
        %3001 = vmatpush1.xpose.msra.mxu0 0.0
        %3002 = vmatprep.subr.mxu0 0.0
        %3003 = vmatpush1.xpose.msra.mxu0 0.0
        %3004 = vmatprep.subr.mxu0 0.0
        %3005 = vmatpush1.xpose.msra.mxu0 0.0
        %3006 = vmatprep.subr.mxu0 0.0
        %3007 = vmatpush1.xpose.msra.mxu0 0.0
        %3008 = vmatprep.subr.mxu0 0.0
        %3009 = vmatpush1.xpose.msra.mxu0 0.0
        %3010 = vmatprep.subr.mxu0 0.0
        %3011 = vmatpush1.xpose.msra.mxu0 0.0
        %3012 = vmatprep.subr.mxu0 0.0
        %3013 = vmatpush1.xpose.msra.mxu0 0.0
        %3014 = vmatprep.subr.mxu0 0.0
        %3015 = vmatpush1.xpose.msra.mxu0 0.0
        %3016 = vmatprep.subr.mxu0 0.0
        %3017 = vmatpush1.xpose.msra.mxu0 0.0
        %3018 = vmatprep.subr.mxu0 0.0
        %3019 = vmatpush1.xpose.msra.mxu0 0.0
        %3020 = vmatprep.subr.mxu0 0.0
        %3021 = vmatpush1.xpose.msra.mxu0 0.0
        %3022 = vmatprep.subr.mxu0 0.0
        %3023 = vmatpush1.xpose.msra.mxu0 0.0
        %3024 = vmatprep.subr.mxu0 0.0
        %3025 = vmatpush1.xpose.msra.mxu0 0.0
        %3026 = vmatprep.subr.mxu0 0.0
        %3027 = vmatpush1.xpose.msra.mxu0 0.0
        %3028 = vmatprep.subr.mxu0 0.0
        %3029 = vmatpush1.xpose.msra.mxu0 0.0
        %3030 = vmatprep.subr.mxu0 0.0
        %3031 = vmatpush1.xpose.msra.mxu0 0.0
        %3032 = vmatprep.subr.mxu0 0.0
        %3033 = vmatpush1.xpose.msra.mxu0 0.0
        %3034 = vmatprep.subr.mxu0 0.0
        %3035 = vmatpush1.xpose.msra.mxu0 0.0
        %3036 = vmatprep.subr.mxu0 0.0
        %3037 = vmatpush1.xpose.msra.mxu0 0.0
        %3038 = vmatprep.mubr.f32.mxu0 0.0
        %3039 = vmatmul.mubr.f32.gmra.mrb[0].mxu0 %v2972
        %v3040 = vpop.f32.mrb[0].mxu0
        %v3041 = vadd.f32 0.0, %v3040
        %v3042 = vpop.f32.mrb[0].mxu0
        %3043 = vdwg.mxu0
        %v3044 = vsel %vm465, %v2964, 0
        %3046 = vmatprep.subr.mxu0 0.0
        %3047 = vmatpush1.xpose.msra.mxu0 %v3044
        %3048 = vmatprep.subr.mxu0 0.0
        %3049 = vmatpush1.xpose.msra.mxu0 0.0
        %3050 = vmatprep.subr.mxu0 0.0
        %3051 = vmatpush1.xpose.msra.mxu0 0.0
        %3052 = vmatprep.subr.mxu0 0.0
        %3053 = vmatpush1.xpose.msra.mxu0 0.0
        %3054 = vmatprep.subr.mxu0 0.0
        %3055 = vmatpush1.xpose.msra.mxu0 0.0
        %3056 = vmatprep.subr.mxu0 0.0
        %3057 = vmatpush1.xpose.msra.mxu0 0.0
        %3058 = vmatprep.subr.mxu0 0.0
        %3059 = vmatpush1.xpose.msra.mxu0 0.0
        %3060 = vmatprep.subr.mxu0 0.0
        %3061 = vmatpush1.xpose.msra.mxu0 0.0
        %3062 = vmatprep.subr.mxu0 0.0
        %3063 = vmatpush1.xpose.msra.mxu0 0.0
        %3064 = vmatprep.subr.mxu0 0.0
        %3065 = vmatpush1.xpose.msra.mxu0 0.0
        %3066 = vmatprep.subr.mxu0 0.0
        %3067 = vmatpush1.xpose.msra.mxu0 0.0
        %3068 = vmatprep.subr.mxu0 0.0
        %3069 = vmatpush1.xpose.msra.mxu0 0.0
        %3070 = vmatprep.subr.mxu0 0.0
        %3071 = vmatpush1.xpose.msra.mxu0 0.0
        %3072 = vmatprep.subr.mxu0 0.0
        %3073 = vmatpush1.xpose.msra.mxu0 0.0
        %3074 = vmatprep.subr.mxu0 0.0
        %3075 = vmatpush1.xpose.msra.mxu0 0.0
        %3076 = vmatprep.subr.mxu0 0.0
        %3077 = vmatpush1.xpose.msra.mxu0 0.0
        %3078 = vmatprep.subr.mxu0 0.0
        %3079 = vmatpush1.xpose.msra.mxu0 0.0
        %3080 = vmatprep.subr.mxu0 0.0
        %3081 = vmatpush1.xpose.msra.mxu0 0.0
        %3082 = vmatprep.subr.mxu0 0.0
        %3083 = vmatpush1.xpose.msra.mxu0 0.0
        %3084 = vmatprep.subr.mxu0 0.0
        %3085 = vmatpush1.xpose.msra.mxu0 0.0
        %3086 = vmatprep.subr.mxu0 0.0
        %3087 = vmatpush1.xpose.msra.mxu0 0.0
        %3088 = vmatprep.subr.mxu0 0.0
        %3089 = vmatpush1.xpose.msra.mxu0 0.0
        %3090 = vmatprep.subr.mxu0 0.0
        %3091 = vmatpush1.xpose.msra.mxu0 0.0
        %3092 = vmatprep.subr.mxu0 0.0
        %3093 = vmatpush1.xpose.msra.mxu0 0.0
        %3094 = vmatprep.subr.mxu0 0.0
        %3095 = vmatpush1.xpose.msra.mxu0 0.0
        %3096 = vmatprep.subr.mxu0 0.0
        %3097 = vmatpush1.xpose.msra.mxu0 0.0
        %3098 = vmatprep.subr.mxu0 0.0
        %3099 = vmatpush1.xpose.msra.mxu0 0.0
        %3100 = vmatprep.subr.mxu0 0.0
        %3101 = vmatpush1.xpose.msra.mxu0 0.0
        %3102 = vmatprep.subr.mxu0 0.0
        %3103 = vmatpush1.xpose.msra.mxu0 0.0
        %3104 = vmatprep.subr.mxu0 0.0
        %3105 = vmatpush1.xpose.msra.mxu0 0.0
        %3106 = vmatprep.subr.mxu0 0.0
        %3107 = vmatpush1.xpose.msra.mxu0 0.0
        %3108 = vmatprep.subr.mxu0 0.0
        %3109 = vmatpush1.xpose.msra.mxu0 0.0
        %3110 = vmatprep.mubr.f32.mxu0 0.0
        %3111 = vmatmul.mubr.f32.gmra.mrb[0].mxu0 %v3044
        %v3112 = vpop.f32.mrb[0].mxu0
        %v3113 = vadd.f32 0.0, %v3112
        %v3114 = vpop.f32.mrb[0].mxu0
        %3115 = vdwg.mxu0
        %v3116 = vsel %vm465, %v2967, 0
        %3118 = vmatprep.subr.mxu0 0.0
        %3119 = vmatpush1.xpose.msra.mxu0 %v3116
        %3120 = vmatprep.subr.mxu0 0.0
        %3121 = vmatpush1.xpose.msra.mxu0 0.0
        %3122 = vmatprep.subr.mxu0 0.0
        %3123 = vmatpush1.xpose.msra.mxu0 0.0
        %3124 = vmatprep.subr.mxu0 0.0
        %3125 = vmatpush1.xpose.msra.mxu0 0.0
        %3126 = vmatprep.subr.mxu0 0.0
        %3127 = vmatpush1.xpose.msra.mxu0 0.0
        %3128 = vmatprep.subr.mxu0 0.0
        %3129 = vmatpush1.xpose.msra.mxu0 0.0
        %3130 = vmatprep.subr.mxu0 0.0
        %3131 = vmatpush1.xpose.msra.mxu0 0.0
        %3132 = vmatprep.subr.mxu0 0.0
        %3133 = vmatpush1.xpose.msra.mxu0 0.0
        %3134 = vmatprep.subr.mxu0 0.0
        %3135 = vmatpush1.xpose.msra.mxu0 0.0
        %3136 = vmatprep.subr.mxu0 0.0
        %3137 = vmatpush1.xpose.msra.mxu0 0.0
        %3138 = vmatprep.subr.mxu0 0.0
        %3139 = vmatpush1.xpose.msra.mxu0 0.0
        %3140 = vmatprep.subr.mxu0 0.0
        %3141 = vmatpush1.xpose.msra.mxu0 0.0
        %3142 = vmatprep.subr.mxu0 0.0
        %3143 = vmatpush1.xpose.msra.mxu0 0.0
        %3144 = vmatprep.subr.mxu0 0.0
        %3145 = vmatpush1.xpose.msra.mxu0 0.0
        %3146 = vmatprep.subr.mxu0 0.0
        %3147 = vmatpush1.xpose.msra.mxu0 0.0
        %3148 = vmatprep.subr.mxu0 0.0
        %3149 = vmatpush1.xpose.msra.mxu0 0.0
        %3150 = vmatprep.subr.mxu0 0.0
        %3151 = vmatpush1.xpose.msra.mxu0 0.0
        %3152 = vmatprep.subr.mxu0 0.0
        %3153 = vmatpush1.xpose.msra.mxu0 0.0
        %3154 = vmatprep.subr.mxu0 0.0
        %3155 = vmatpush1.xpose.msra.mxu0 0.0
        %3156 = vmatprep.subr.mxu0 0.0
        %3157 = vmatpush1.xpose.msra.mxu0 0.0
        %3158 = vmatprep.subr.mxu0 0.0
        %3159 = vmatpush1.xpose.msra.mxu0 0.0
        %3160 = vmatprep.subr.mxu0 0.0
        %3161 = vmatpush1.xpose.msra.mxu0 0.0
        %3162 = vmatprep.subr.mxu0 0.0
        %3163 = vmatpush1.xpose.msra.mxu0 0.0
        %3164 = vmatprep.subr.mxu0 0.0
        %3165 = vmatpush1.xpose.msra.mxu0 0.0
        %3166 = vmatprep.subr.mxu0 0.0
        %3167 = vmatpush1.xpose.msra.mxu0 0.0
        %3168 = vmatprep.subr.mxu0 0.0
        %3169 = vmatpush1.xpose.msra.mxu0 0.0
        %3170 = vmatprep.subr.mxu0 0.0
        %3171 = vmatpush1.xpose.msra.mxu0 0.0
        %3172 = vmatprep.subr.mxu0 0.0
        %3173 = vmatpush1.xpose.msra.mxu0 0.0
        %3174 = vmatprep.subr.mxu0 0.0
        %3175 = vmatpush1.xpose.msra.mxu0 0.0
        %3176 = vmatprep.subr.mxu0 0.0
        %3177 = vmatpush1.xpose.msra.mxu0 0.0
        %3178 = vmatprep.subr.mxu0 0.0
        %3179 = vmatpush1.xpose.msra.mxu0 0.0
        %3180 = vmatprep.subr.mxu0 0.0
        %3181 = vmatpush1.xpose.msra.mxu0 0.0
        %3182 = vmatprep.mubr.f32.mxu0 0.0
        %3183 = vmatmul.mubr.f32.gmra.mrb[0].mxu0 %v3116
        %v3184 = vpop.f32.mrb[0].mxu0
        %v3185 = vadd.f32 0.0, %v3184
        %v3186 = vpop.f32.mrb[0].mxu0
        %3187 = vdwg.mxu0
        %v3188 = vsel %vm465, %v2970, 0
        %3190 = vmatprep.subr.mxu0 0.0
        %3191 = vmatpush1.xpose.msra.mxu0 %v3188
        %3192 = vmatprep.subr.mxu0 0.0
        %3193 = vmatpush1.xpose.msra.mxu0 0.0
        %3194 = vmatprep.subr.mxu0 0.0
        %3195 = vmatpush1.xpose.msra.mxu0 0.0
        %3196 = vmatprep.subr.mxu0 0.0
        %3197 = vmatpush1.xpose.msra.mxu0 0.0
        %3198 = vmatprep.subr.mxu0 0.0
        %3199 = vmatpush1.xpose.msra.mxu0 0.0
        %3200 = vmatprep.subr.mxu0 0.0
        %3201 = vmatpush1.xpose.msra.mxu0 0.0
        %3202 = vmatprep.subr.mxu0 0.0
        %3203 = vmatpush1.xpose.msra.mxu0 0.0
        %3204 = vmatprep.subr.mxu0 0.0
        %3205 = vmatpush1.xpose.msra.mxu0 0.0
        %3206 = vmatprep.subr.mxu0 0.0
        %3207 = vmatpush1.xpose.msra.mxu0 0.0
        %3208 = vmatprep.subr.mxu0 0.0
        %3209 = vmatpush1.xpose.msra.mxu0 0.0
        %3210 = vmatprep.subr.mxu0 0.0
        %3211 = vmatpush1.xpose.msra.mxu0 0.0
        %3212 = vmatprep.subr.mxu0 0.0
        %3213 = vmatpush1.xpose.msra.mxu0 0.0
        %3214 = vmatprep.subr.mxu0 0.0
        %3215 = vmatpush1.xpose.msra.mxu0 0.0
        %3216 = vmatprep.subr.mxu0 0.0
        %3217 = vmatpush1.xpose.msra.mxu0 0.0
        %3218 = vmatprep.subr.mxu0 0.0
        %3219 = vmatpush1.xpose.msra.mxu0 0.0
        %3220 = vmatprep.subr.mxu0 0.0
        %3221 = vmatpush1.xpose.msra.mxu0 0.0
        %3222 = vmatprep.subr.mxu0 0.0
        %3223 = vmatpush1.xpose.msra.mxu0 0.0
        %3224 = vmatprep.subr.mxu0 0.0
        %3225 = vmatpush1.xpose.msra.mxu0 0.0
        %3226 = vmatprep.subr.mxu0 0.0
        %3227 = vmatpush1.xpose.msra.mxu0 0.0
        %3228 = vmatprep.subr.mxu0 0.0
        %3229 = vmatpush1.xpose.msra.mxu0 0.0
        %3230 = vmatprep.subr.mxu0 0.0
        %3231 = vmatpush1.xpose.msra.mxu0 0.0
        %3232 = vmatprep.subr.mxu0 0.0
        %3233 = vmatpush1.xpose.msra.mxu0 0.0
        %3234 = vmatprep.subr.mxu0 0.0
        %3235 = vmatpush1.xpose.msra.mxu0 0.0
        %3236 = vmatprep.subr.mxu0 0.0
        %3237 = vmatpush1.xpose.msra.mxu0 0.0
        %3238 = vmatprep.subr.mxu0 0.0
        %3239 = vmatpush1.xpose.msra.mxu0 0.0
        %3240 = vmatprep.subr.mxu0 0.0
        %3241 = vmatpush1.xpose.msra.mxu0 0.0
        %3242 = vmatprep.subr.mxu0 0.0
        %3243 = vmatpush1.xpose.msra.mxu0 0.0
        %3244 = vmatprep.subr.mxu0 0.0
        %3245 = vmatpush1.xpose.msra.mxu0 0.0
        %3246 = vmatprep.subr.mxu0 0.0
        %3247 = vmatpush1.xpose.msra.mxu0 0.0
        %3248 = vmatprep.subr.mxu0 0.0
        %3249 = vmatpush1.xpose.msra.mxu0 0.0
        %3250 = vmatprep.subr.mxu0 0.0
        %3251 = vmatpush1.xpose.msra.mxu0 0.0
        %3252 = vmatprep.subr.mxu0 0.0
        %3253 = vmatpush1.xpose.msra.mxu0 0.0
        %3254 = vmatprep.mubr.f32.mxu0 0.0
        %3255 = vmatmul.mubr.f32.gmra.mrb[0].mxu0 %v3188
        %v3256 = vpop.f32.mrb[0].mxu0
        %v3257 = vadd.f32 0.0, %v3256
        %v3258 = vpop.f32.mrb[0].mxu0
        %3259 = vdwg.mxu0
        %v3260 = vmul.f32 %v3041, 0.35355338
        %v3261 = vmul.f32 %v3113, 0.35355338
        %v3262 = vmul.f32 %v3185, 0.35355338
        %v3263 = vmul.f32 %v3257, 0.35355338
        %v3264 = vadd.f32 %v3260, %v762
        %v3265 = vadd.f32 %v3261, %v762
        %v3266 = vadd.f32 %v3262, %v762
        %v3267 = vadd.f32 %v3263, %v762
        %v3268 = vadd.f32 %v3264, %v285
        %v3269 = vadd.f32 %v3265, %v285
        %v3270 = vadd.f32 %v3266, %v285
        %v3271 = vadd.f32 %v3267, %v285
        %v3272 = vsel %vm465, %v3268, -inf
        %3273 = vmax.xlane.f32.xlu0 %v3272
        %v3274 = vpop.xlane.xlu0 %3273
        %v3275 = vsel %vm465, %v3269, -inf
        %3276 = vmax.xlane.f32.xlu0 %v3275
        %v3277 = vpop.xlane.xlu0 %3276
        %v3278 = vsel %vm465, %v3270, -inf
        %3279 = vmax.xlane.f32.xlu0 %v3278
        %v3280 = vpop.xlane.xlu0 %3279
        %v3281 = vsel %vm465, %v3271, -inf
        %3282 = vmax.xlane.f32.xlu0 %v3281
        %v3283 = vpop.xlane.xlu0 %3282
        %v3284 = vsub.f32 %v3268, %v3274
        %v3285 = vsub.f32 %v3269, %v3277
        %v3286 = vsub.f32 %v3270, %v3280
        %v3287 = vsub.f32 %v3271, %v3283
        %v3288 = vmul.f32 %v3284, 1.442695
        %v3289 = vpow.pop %v3288
        %v3290 = vmul.f32 %v3285, 1.442695
        %v3291 = vpow.pop %v3290
        %v3292 = vmul.f32 %v3286, 1.442695
        %v3293 = vpow.pop %v3292
        %v3294 = vmul.f32 %v3287, 1.442695
        %v3295 = vpow.pop %v3294
        %v3296 = vsel %vm465, %v3289, 0.0
        %3297 = vadd.xlane.f32.xlu0 %v3296
        %v3298 = vpop.xlane.xlu0 %3297
        %v3299 = vsel %vm465, %v3291, 0.0
        %3300 = vadd.xlane.f32.xlu0 %v3299
        %v3301 = vpop.xlane.xlu0 %3300
        %v3302 = vsel %vm465, %v3293, 0.0
        %3303 = vadd.xlane.f32.xlu0 %v3302
        %v3304 = vpop.xlane.xlu0 %3303
        %v3305 = vsel %vm465, %v3295, 0.0
        %3306 = vadd.xlane.f32.xlu0 %v3305
        %v3307 = vpop.xlane.xlu0 %3306
        %v3308 = vrcp.pop %v3298
        %v3309 = vrcp.pop %v3301
        %v3310 = vrcp.pop %v3304
        %v3311 = vrcp.pop %v3307
        %v3312 = vmul.f32 %v3289, %v3308
        %v3313 = vmul.f32 %v3291, %v3309
        %v3314 = vmul.f32 %v3293, %v3310
        %v3315 = vmul.f32 %v3295, %v3311
        %v3317 = vsel %vm465, %v3312, 0
        %3319 = vmatprep.subr.mxu0 0.0
        %3320 = vmatpush1.msra.mxu0 %v2959
        %3321 = vmatprep.subr.mxu0 0.0
        %3322 = vmatpush1.msra.mxu0 0.0
        %3323 = vmatprep.subr.mxu0 0.0
        %3324 = vmatpush1.msra.mxu0 0.0
        %3325 = vmatprep.subr.mxu0 0.0
        %3326 = vmatpush1.msra.mxu0 0.0
        %3327 = vmatprep.subr.mxu0 0.0
        %3328 = vmatpush1.msra.mxu0 0.0
        %3329 = vmatprep.subr.mxu0 0.0
        %3330 = vmatpush1.msra.mxu0 0.0
        %3331 = vmatprep.subr.mxu0 0.0
        %3332 = vmatpush1.msra.mxu0 0.0
        %3333 = vmatprep.subr.mxu0 0.0
        %3334 = vmatpush1.msra.mxu0 0.0
        %3335 = vmatprep.subr.mxu0 0.0
        %3336 = vmatpush1.msra.mxu0 0.0
        %3337 = vmatprep.subr.mxu0 0.0
        %3338 = vmatpush1.msra.mxu0 0.0
        %3339 = vmatprep.subr.mxu0 0.0
        %3340 = vmatpush1.msra.mxu0 0.0
        %3341 = vmatprep.subr.mxu0 0.0
        %3342 = vmatpush1.msra.mxu0 0.0
        %3343 = vmatprep.subr.mxu0 0.0
        %3344 = vmatpush1.msra.mxu0 0.0
        %3345 = vmatprep.subr.mxu0 0.0
        %3346 = vmatpush1.msra.mxu0 0.0
        %3347 = vmatprep.subr.mxu0 0.0
        %3348 = vmatpush1.msra.mxu0 0.0
        %3349 = vmatprep.subr.mxu0 0.0
        %3350 = vmatpush1.msra.mxu0 0.0
        %3351 = vmatprep.subr.mxu0 0.0
        %3352 = vmatpush1.msra.mxu0 0.0
        %3353 = vmatprep.subr.mxu0 0.0
        %3354 = vmatpush1.msra.mxu0 0.0
        %3355 = vmatprep.subr.mxu0 0.0
        %3356 = vmatpush1.msra.mxu0 0.0
        %3357 = vmatprep.subr.mxu0 0.0
        %3358 = vmatpush1.msra.mxu0 0.0
        %3359 = vmatprep.subr.mxu0 0.0
        %3360 = vmatpush1.msra.mxu0 0.0
        %3361 = vmatprep.subr.mxu0 0.0
        %3362 = vmatpush1.msra.mxu0 0.0
        %3363 = vmatprep.subr.mxu0 0.0
        %3364 = vmatpush1.msra.mxu0 0.0
        %3365 = vmatprep.subr.mxu0 0.0
        %3366 = vmatpush1.msra.mxu0 0.0
        %3367 = vmatprep.subr.mxu0 0.0
        %3368 = vmatpush1.msra.mxu0 0.0
        %3369 = vmatprep.subr.mxu0 0.0
        %3370 = vmatpush1.msra.mxu0 0.0
        %3371 = vmatprep.subr.mxu0 0.0
        %3372 = vmatpush1.msra.mxu0 0.0
        %3373 = vmatprep.subr.mxu0 0.0
        %3374 = vmatpush1.msra.mxu0 0.0
        %3375 = vmatprep.subr.mxu0 0.0
        %3376 = vmatpush1.msra.mxu0 0.0
        %3377 = vmatprep.subr.mxu0 0.0
        %3378 = vmatpush1.msra.mxu0 0.0
        %3379 = vmatprep.subr.mxu0 0.0
        %3380 = vmatpush1.msra.mxu0 0.0
        %3381 = vmatprep.subr.mxu0 0.0
        %3382 = vmatpush1.msra.mxu0 0.0
        %3383 = vmatprep.mubr.f32.mxu0 0.0
        %3384 = vmatmul.mubr.f32.gmra.mrb[0].mxu0 %v3317
        %v3385 = vpop.f32.mrb[0].mxu0
        %v3386 = vadd.f32 0.0, %v3385
        %v3387 = vpop.f32.mrb[0].mxu0
        %3388 = vdwg.mxu0
        %v3390 = vsel %vm465, %v3313, 0
        %3392 = vmatprep.subr.mxu0 0.0
        %3393 = vmatpush1.msra.mxu0 %v2964
        %3394 = vmatprep.subr.mxu0 0.0
        %3395 = vmatpush1.msra.mxu0 0.0
        %3396 = vmatprep.subr.mxu0 0.0
        %3397 = vmatpush1.msra.mxu0 0.0
        %3398 = vmatprep.subr.mxu0 0.0
        %3399 = vmatpush1.msra.mxu0 0.0
        %3400 = vmatprep.subr.mxu0 0.0
        %3401 = vmatpush1.msra.mxu0 0.0
        %3402 = vmatprep.subr.mxu0 0.0
        %3403 = vmatpush1.msra.mxu0 0.0
        %3404 = vmatprep.subr.mxu0 0.0
        %3405 = vmatpush1.msra.mxu0 0.0
        %3406 = vmatprep.subr.mxu0 0.0
        %3407 = vmatpush1.msra.mxu0 0.0
        %3408 = vmatprep.subr.mxu0 0.0
        %3409 = vmatpush1.msra.mxu0 0.0
        %3410 = vmatprep.subr.mxu0 0.0
        %3411 = vmatpush1.msra.mxu0 0.0
        %3412 = vmatprep.subr.mxu0 0.0
        %3413 = vmatpush1.msra.mxu0 0.0
        %3414 = vmatprep.subr.mxu0 0.0
        %3415 = vmatpush1.msra.mxu0 0.0
        %3416 = vmatprep.subr.mxu0 0.0
        %3417 = vmatpush1.msra.mxu0 0.0
        %3418 = vmatprep.subr.mxu0 0.0
        %3419 = vmatpush1.msra.mxu0 0.0
        %3420 = vmatprep.subr.mxu0 0.0
        %3421 = vmatpush1.msra.mxu0 0.0
        %3422 = vmatprep.subr.mxu0 0.0
        %3423 = vmatpush1.msra.mxu0 0.0
        %3424 = vmatprep.subr.mxu0 0.0
        %3425 = vmatpush1.msra.mxu0 0.0
        %3426 = vmatprep.subr.mxu0 0.0
        %3427 = vmatpush1.msra.mxu0 0.0
        %3428 = vmatprep.subr.mxu0 0.0
        %3429 = vmatpush1.msra.mxu0 0.0
        %3430 = vmatprep.subr.mxu0 0.0
        %3431 = vmatpush1.msra.mxu0 0.0
        %3432 = vmatprep.subr.mxu0 0.0
        %3433 = vmatpush1.msra.mxu0 0.0
        %3434 = vmatprep.subr.mxu0 0.0
        %3435 = vmatpush1.msra.mxu0 0.0
        %3436 = vmatprep.subr.mxu0 0.0
        %3437 = vmatpush1.msra.mxu0 0.0
        %3438 = vmatprep.subr.mxu0 0.0
        %3439 = vmatpush1.msra.mxu0 0.0
        %3440 = vmatprep.subr.mxu0 0.0
        %3441 = vmatpush1.msra.mxu0 0.0
        %3442 = vmatprep.subr.mxu0 0.0
        %3443 = vmatpush1.msra.mxu0 0.0
        %3444 = vmatprep.subr.mxu0 0.0
        %3445 = vmatpush1.msra.mxu0 0.0
        %3446 = vmatprep.subr.mxu0 0.0
        %3447 = vmatpush1.msra.mxu0 0.0
        %3448 = vmatprep.subr.mxu0 0.0
        %3449 = vmatpush1.msra.mxu0 0.0
        %3450 = vmatprep.subr.mxu0 0.0
        %3451 = vmatpush1.msra.mxu0 0.0
        %3452 = vmatprep.subr.mxu0 0.0
        %3453 = vmatpush1.msra.mxu0 0.0
        %3454 = vmatprep.subr.mxu0 0.0
        %3455 = vmatpush1.msra.mxu0 0.0
        %3456 = vmatprep.mubr.f32.mxu0 0.0
        %3457 = vmatmul.mubr.f32.gmra.mrb[0].mxu0 %v3390
        %v3458 = vpop.f32.mrb[0].mxu0
        %v3459 = vadd.f32 0.0, %v3458
        %v3460 = vpop.f32.mrb[0].mxu0
        %3461 = vdwg.mxu0
        %v3463 = vsel %vm465, %v3314, 0
        %3465 = vmatprep.subr.mxu0 0.0
        %3466 = vmatpush1.msra.mxu0 %v2967
        %3467 = vmatprep.subr.mxu0 0.0
        %3468 = vmatpush1.msra.mxu0 0.0
        %3469 = vmatprep.subr.mxu0 0.0
        %3470 = vmatpush1.msra.mxu0 0.0
        %3471 = vmatprep.subr.mxu0 0.0
        %3472 = vmatpush1.msra.mxu0 0.0
        %3473 = vmatprep.subr.mxu0 0.0
        %3474 = vmatpush1.msra.mxu0 0.0
        %3475 = vmatprep.subr.mxu0 0.0
        %3476 = vmatpush1.msra.mxu0 0.0
        %3477 = vmatprep.subr.mxu0 0.0
        %3478 = vmatpush1.msra.mxu0 0.0
        %3479 = vmatprep.subr.mxu0 0.0
        %3480 = vmatpush1.msra.mxu0 0.0
        %3481 = vmatprep.subr.mxu0 0.0
        %3482 = vmatpush1.msra.mxu0 0.0
        %3483 = vmatprep.subr.mxu0 0.0
        %3484 = vmatpush1.msra.mxu0 0.0
        %3485 = vmatprep.subr.mxu0 0.0
        %3486 = vmatpush1.msra.mxu0 0.0
        %3487 = vmatprep.subr.mxu0 0.0
        %3488 = vmatpush1.msra.mxu0 0.0
        %3489 = vmatprep.subr.mxu0 0.0
        %3490 = vmatpush1.msra.mxu0 0.0
        %3491 = vmatprep.subr.mxu0 0.0
        %3492 = vmatpush1.msra.mxu0 0.0
        %3493 = vmatprep.subr.mxu0 0.0
        %3494 = vmatpush1.msra.mxu0 0.0
        %3495 = vmatprep.subr.mxu0 0.0
        %3496 = vmatpush1.msra.mxu0 0.0
        %3497 = vmatprep.subr.mxu0 0.0
        %3498 = vmatpush1.msra.mxu0 0.0
        %3499 = vmatprep.subr.mxu0 0.0
        %3500 = vmatpush1.msra.mxu0 0.0
        %3501 = vmatprep.subr.mxu0 0.0
        %3502 = vmatpush1.msra.mxu0 0.0
        %3503 = vmatprep.subr.mxu0 0.0
        %3504 = vmatpush1.msra.mxu0 0.0
        %3505 = vmatprep.subr.mxu0 0.0
        %3506 = vmatpush1.msra.mxu0 0.0
        %3507 = vmatprep.subr.mxu0 0.0
        %3508 = vmatpush1.msra.mxu0 0.0
        %3509 = vmatprep.subr.mxu0 0.0
        %3510 = vmatpush1.msra.mxu0 0.0
        %3511 = vmatprep.subr.mxu0 0.0
        %3512 = vmatpush1.msra.mxu0 0.0
        %3513 = vmatprep.subr.mxu0 0.0
        %3514 = vmatpush1.msra.mxu0 0.0
        %3515 = vmatprep.subr.mxu0 0.0
        %3516 = vmatpush1.msra.mxu0 0.0
        %3517 = vmatprep.subr.mxu0 0.0
        %3518 = vmatpush1.msra.mxu0 0.0
        %3519 = vmatprep.subr.mxu0 0.0
        %3520 = vmatpush1.msra.mxu0 0.0
        %3521 = vmatprep.subr.mxu0 0.0
        %3522 = vmatpush1.msra.mxu0 0.0
        %3523 = vmatprep.subr.mxu0 0.0
        %3524 = vmatpush1.msra.mxu0 0.0
        %3525 = vmatprep.subr.mxu0 0.0
        %3526 = vmatpush1.msra.mxu0 0.0
        %3527 = vmatprep.subr.mxu0 0.0
        %3528 = vmatpush1.msra.mxu0 0.0
        %3529 = vmatprep.mubr.f32.mxu0 0.0
        %3530 = vmatmul.mubr.f32.gmra.mrb[0].mxu0 %v3463
        %v3531 = vpop.f32.mrb[0].mxu0
        %v3532 = vadd.f32 0.0, %v3531
        %v3533 = vpop.f32.mrb[0].mxu0
        %3534 = vdwg.mxu0
        %v3536 = vsel %vm465, %v3315, 0
        %3538 = vmatprep.subr.mxu0 0.0
        %3539 = vmatpush1.msra.mxu0 %v2970
        %3540 = vmatprep.subr.mxu0 0.0
        %3541 = vmatpush1.msra.mxu0 0.0
        %3542 = vmatprep.subr.mxu0 0.0
        %3543 = vmatpush1.msra.mxu0 0.0
        %3544 = vmatprep.subr.mxu0 0.0
        %3545 = vmatpush1.msra.mxu0 0.0
        %3546 = vmatprep.subr.mxu0 0.0
        %3547 = vmatpush1.msra.mxu0 0.0
        %3548 = vmatprep.subr.mxu0 0.0
        %3549 = vmatpush1.msra.mxu0 0.0
        %3550 = vmatprep.subr.mxu0 0.0
        %3551 = vmatpush1.msra.mxu0 0.0
        %3552 = vmatprep.subr.mxu0 0.0
        %3553 = vmatpush1.msra.mxu0 0.0
        %3554 = vmatprep.subr.mxu0 0.0
        %3555 = vmatpush1.msra.mxu0 0.0
        %3556 = vmatprep.subr.mxu0 0.0
        %3557 = vmatpush1.msra.mxu0 0.0
        %3558 = vmatprep.subr.mxu0 0.0
        %3559 = vmatpush1.msra.mxu0 0.0
        %3560 = vmatprep.subr.mxu0 0.0
        %3561 = vmatpush1.msra.mxu0 0.0
        %3562 = vmatprep.subr.mxu0 0.0
        %3563 = vmatpush1.msra.mxu0 0.0
        %3564 = vmatprep.subr.mxu0 0.0
        %3565 = vmatpush1.msra.mxu0 0.0
        %3566 = vmatprep.subr.mxu0 0.0
        %3567 = vmatpush1.msra.mxu0 0.0
        %3568 = vmatprep.subr.mxu0 0.0
        %3569 = vmatpush1.msra.mxu0 0.0
        %3570 = vmatprep.subr.mxu0 0.0
        %3571 = vmatpush1.msra.mxu0 0.0
        %3572 = vmatprep.subr.mxu0 0.0
        %3573 = vmatpush1.msra.mxu0 0.0
        %3574 = vmatprep.subr.mxu0 0.0
        %3575 = vmatpush1.msra.mxu0 0.0
        %3576 = vmatprep.subr.mxu0 0.0
        %3577 = vmatpush1.msra.mxu0 0.0
        %3578 = vmatprep.subr.mxu0 0.0
        %3579 = vmatpush1.msra.mxu0 0.0
        %3580 = vmatprep.subr.mxu0 0.0
        %3581 = vmatpush1.msra.mxu0 0.0
        %3582 = vmatprep.subr.mxu0 0.0
        %3583 = vmatpush1.msra.mxu0 0.0
        %3584 = vmatprep.subr.mxu0 0.0
        %3585 = vmatpush1.msra.mxu0 0.0
        %3586 = vmatprep.subr.mxu0 0.0
        %3587 = vmatpush1.msra.mxu0 0.0
        %3588 = vmatprep.subr.mxu0 0.0
        %3589 = vmatpush1.msra.mxu0 0.0
        %3590 = vmatprep.subr.mxu0 0.0
        %3591 = vmatpush1.msra.mxu0 0.0
        %3592 = vmatprep.subr.mxu0 0.0
        %3593 = vmatpush1.msra.mxu0 0.0
        %3594 = vmatprep.subr.mxu0 0.0
        %3595 = vmatpush1.msra.mxu0 0.0
        %3596 = vmatprep.subr.mxu0 0.0
        %3597 = vmatpush1.msra.mxu0 0.0
        %3598 = vmatprep.subr.mxu0 0.0
        %3599 = vmatpush1.msra.mxu0 0.0
        %3600 = vmatprep.subr.mxu0 0.0
        %3601 = vmatpush1.msra.mxu0 0.0
        %3602 = vmatprep.mubr.f32.mxu0 0.0
        %3603 = vmatmul.mubr.f32.gmra.mrb[0].mxu0 %v3536
        %v3604 = vpop.f32.mrb[0].mxu0
        %v3605 = vadd.f32 0.0, %v3604
        %v3606 = vpop.f32.mrb[0].mxu0
        %3607 = vdwg.mxu0
        %v3608 = vld [vmem:[#allocation7 + $0x190] sm:$0xff]
        %v3609 = vld [vmem:[#allocation7 + $0x198] sm:$0xff]
        %v3610 = vld [vmem:[#allocation7 + $0x1a0] sm:$0xff]
        %v3611 = vld [vmem:[#allocation7 + $0x1a8] sm:$0xff]
        %v3613 = vsel %vm465, %v3459, 0
        %3615 = vmatprep.subr.mxu0 0.0
        %3616 = vmatpush1.msra.mxu0 %v3609
        %3617 = vmatprep.subr.mxu0 0.0
        %3618 = vmatpush1.msra.mxu0 0.0
        %3619 = vmatprep.subr.mxu0 0.0
        %3620 = vmatpush1.msra.mxu0 0.0
        %3621 = vmatprep.subr.mxu0 0.0
        %3622 = vmatpush1.msra.mxu0 0.0
        %3623 = vmatprep.subr.mxu0 0.0
        %3624 = vmatpush1.msra.mxu0 0.0
        %3625 = vmatprep.subr.mxu0 0.0
        %3626 = vmatpush1.msra.mxu0 0.0
        %3627 = vmatprep.subr.mxu0 0.0
        %3628 = vmatpush1.msra.mxu0 0.0
        %3629 = vmatprep.subr.mxu0 0.0
        %3630 = vmatpush1.msra.mxu0 0.0
        %3631 = vmatprep.subr.mxu0 0.0
        %3632 = vmatpush1.msra.mxu0 0.0
        %3633 = vmatprep.subr.mxu0 0.0
        %3634 = vmatpush1.msra.mxu0 0.0
        %3635 = vmatprep.subr.mxu0 0.0
        %3636 = vmatpush1.msra.mxu0 0.0
        %3637 = vmatprep.subr.mxu0 0.0
        %3638 = vmatpush1.msra.mxu0 0.0
        %3639 = vmatprep.subr.mxu0 0.0
        %3640 = vmatpush1.msra.mxu0 0.0
        %3641 = vmatprep.subr.mxu0 0.0
        %3642 = vmatpush1.msra.mxu0 0.0
        %3643 = vmatprep.subr.mxu0 0.0
        %3644 = vmatpush1.msra.mxu0 0.0
        %3645 = vmatprep.subr.mxu0 0.0
        %3646 = vmatpush1.msra.mxu0 0.0
        %3647 = vmatprep.subr.mxu0 0.0
        %3648 = vmatpush1.msra.mxu0 0.0
        %3649 = vmatprep.subr.mxu0 0.0
        %3650 = vmatpush1.msra.mxu0 0.0
        %3651 = vmatprep.subr.mxu0 0.0
        %3652 = vmatpush1.msra.mxu0 0.0
        %3653 = vmatprep.subr.mxu0 0.0
        %3654 = vmatpush1.msra.mxu0 0.0
        %3655 = vmatprep.subr.mxu0 0.0
        %3656 = vmatpush1.msra.mxu0 0.0
        %3657 = vmatprep.subr.mxu0 0.0
        %3658 = vmatpush1.msra.mxu0 0.0
        %3659 = vmatprep.subr.mxu0 0.0
        %3660 = vmatpush1.msra.mxu0 0.0
        %3661 = vmatprep.subr.mxu0 0.0
        %3662 = vmatpush1.msra.mxu0 0.0
        %3663 = vmatprep.subr.mxu0 0.0
        %3664 = vmatpush1.msra.mxu0 0.0
        %3665 = vmatprep.subr.mxu0 0.0
        %3666 = vmatpush1.msra.mxu0 0.0
        %3667 = vmatprep.subr.mxu0 0.0
        %3668 = vmatpush1.msra.mxu0 0.0
        %3669 = vmatprep.subr.mxu0 0.0
        %3670 = vmatpush1.msra.mxu0 0.0
        %3671 = vmatprep.subr.mxu0 0.0
        %3672 = vmatpush1.msra.mxu0 0.0
        %3673 = vmatprep.subr.mxu0 0.0
        %3674 = vmatpush1.msra.mxu0 0.0
        %3675 = vmatprep.subr.mxu0 0.0
        %3676 = vmatpush1.msra.mxu0 0.0
        %3677 = vmatprep.subr.mxu0 0.0
        %3678 = vmatpush1.msra.mxu0 0.0
        %3679 = vmatprep.mubr.f32.mxu0 0.0
        %3680 = vmatmul.mubr.f32.gmra.mrb[0].mxu0 %v3613
        %v3681 = vpop.f32.mrb[0].mxu0
        %v3682 = vadd.f32 0.0, %v3681
        %v3683 = vpop.f32.mrb[0].mxu0
        %3684 = vdwg.mxu0
        %v3686 = vsel %vm465, %v3386, 0
        %3688 = vmatprep.subr.mxu0 0.0
        %3689 = vmatpush1.msra.mxu0 %v3608
        %3690 = vmatprep.subr.mxu0 0.0
        %3691 = vmatpush1.msra.mxu0 0.0
        %3692 = vmatprep.subr.mxu0 0.0
        %3693 = vmatpush1.msra.mxu0 0.0
        %3694 = vmatprep.subr.mxu0 0.0
        %3695 = vmatpush1.msra.mxu0 0.0
        %3696 = vmatprep.subr.mxu0 0.0
        %3697 = vmatpush1.msra.mxu0 0.0
        %3698 = vmatprep.subr.mxu0 0.0
        %3699 = vmatpush1.msra.mxu0 0.0
        %3700 = vmatprep.subr.mxu0 0.0
        %3701 = vmatpush1.msra.mxu0 0.0
        %3702 = vmatprep.subr.mxu0 0.0
        %3703 = vmatpush1.msra.mxu0 0.0
        %3704 = vmatprep.subr.mxu0 0.0
        %3705 = vmatpush1.msra.mxu0 0.0
        %3706 = vmatprep.subr.mxu0 0.0
        %3707 = vmatpush1.msra.mxu0 0.0
        %3708 = vmatprep.subr.mxu0 0.0
        %3709 = vmatpush1.msra.mxu0 0.0
        %3710 = vmatprep.subr.mxu0 0.0
        %3711 = vmatpush1.msra.mxu0 0.0
        %3712 = vmatprep.subr.mxu0 0.0
        %3713 = vmatpush1.msra.mxu0 0.0
        %3714 = vmatprep.subr.mxu0 0.0
        %3715 = vmatpush1.msra.mxu0 0.0
        %3716 = vmatprep.subr.mxu0 0.0
        %3717 = vmatpush1.msra.mxu0 0.0
        %3718 = vmatprep.subr.mxu0 0.0
        %3719 = vmatpush1.msra.mxu0 0.0
        %3720 = vmatprep.subr.mxu0 0.0
        %3721 = vmatpush1.msra.mxu0 0.0
        %3722 = vmatprep.subr.mxu0 0.0
        %3723 = vmatpush1.msra.mxu0 0.0
        %3724 = vmatprep.subr.mxu0 0.0
        %3725 = vmatpush1.msra.mxu0 0.0
        %3726 = vmatprep.subr.mxu0 0.0
        %3727 = vmatpush1.msra.mxu0 0.0
        %3728 = vmatprep.subr.mxu0 0.0
        %3729 = vmatpush1.msra.mxu0 0.0
        %3730 = vmatprep.subr.mxu0 0.0
        %3731 = vmatpush1.msra.mxu0 0.0
        %3732 = vmatprep.subr.mxu0 0.0
        %3733 = vmatpush1.msra.mxu0 0.0
        %3734 = vmatprep.subr.mxu0 0.0
        %3735 = vmatpush1.msra.mxu0 0.0
        %3736 = vmatprep.subr.mxu0 0.0
        %3737 = vmatpush1.msra.mxu0 0.0
        %3738 = vmatprep.subr.mxu0 0.0
        %3739 = vmatpush1.msra.mxu0 0.0
        %3740 = vmatprep.subr.mxu0 0.0
        %3741 = vmatpush1.msra.mxu0 0.0
        %3742 = vmatprep.subr.mxu0 0.0
        %3743 = vmatpush1.msra.mxu0 0.0
        %3744 = vmatprep.subr.mxu0 0.0
        %3745 = vmatpush1.msra.mxu0 0.0
        %3746 = vmatprep.subr.mxu0 0.0
        %3747 = vmatpush1.msra.mxu0 0.0
        %3748 = vmatprep.subr.mxu0 0.0
        %3749 = vmatpush1.msra.mxu0 0.0
        %3750 = vmatprep.subr.mxu0 0.0
        %3751 = vmatpush1.msra.mxu0 0.0
        %3752 = vmatprep.mubr.f32.mxu0 0.0
        %3753 = vmatmul.mubr.f32.gmra.mrb[0].mxu0 %v3686
        %v3754 = vpop.f32.mrb[0].mxu0
        %v3755 = vadd.f32 %v3682, %v3754
        %v3756 = vpop.f32.mrb[0].mxu0
        %3757 = vdwg.mxu0
        %v3759 = vsel %vm465, %v3532, 0
        %3761 = vmatprep.subr.mxu0 0.0
        %3762 = vmatpush1.msra.mxu0 %v3610
        %3763 = vmatprep.subr.mxu0 0.0
        %3764 = vmatpush1.msra.mxu0 0.0
        %3765 = vmatprep.subr.mxu0 0.0
        %3766 = vmatpush1.msra.mxu0 0.0
        %3767 = vmatprep.subr.mxu0 0.0
        %3768 = vmatpush1.msra.mxu0 0.0
        %3769 = vmatprep.subr.mxu0 0.0
        %3770 = vmatpush1.msra.mxu0 0.0
        %3771 = vmatprep.subr.mxu0 0.0
        %3772 = vmatpush1.msra.mxu0 0.0
        %3773 = vmatprep.subr.mxu0 0.0
        %3774 = vmatpush1.msra.mxu0 0.0
        %3775 = vmatprep.subr.mxu0 0.0
        %3776 = vmatpush1.msra.mxu0 0.0
        %3777 = vmatprep.subr.mxu0 0.0
        %3778 = vmatpush1.msra.mxu0 0.0
        %3779 = vmatprep.subr.mxu0 0.0
        %3780 = vmatpush1.msra.mxu0 0.0
        %3781 = vmatprep.subr.mxu0 0.0
        %3782 = vmatpush1.msra.mxu0 0.0
        %3783 = vmatprep.subr.mxu0 0.0
        %3784 = vmatpush1.msra.mxu0 0.0
        %3785 = vmatprep.subr.mxu0 0.0
        %3786 = vmatpush1.msra.mxu0 0.0
        %3787 = vmatprep.subr.mxu0 0.0
        %3788 = vmatpush1.msra.mxu0 0.0
        %3789 = vmatprep.subr.mxu0 0.0
        %3790 = vmatpush1.msra.mxu0 0.0
        %3791 = vmatprep.subr.mxu0 0.0
        %3792 = vmatpush1.msra.mxu0 0.0
        %3793 = vmatprep.subr.mxu0 0.0
        %3794 = vmatpush1.msra.mxu0 0.0
        %3795 = vmatprep.subr.mxu0 0.0
        %3796 = vmatpush1.msra.mxu0 0.0
        %3797 = vmatprep.subr.mxu0 0.0
        %3798 = vmatpush1.msra.mxu0 0.0
        %3799 = vmatprep.subr.mxu0 0.0
        %3800 = vmatpush1.msra.mxu0 0.0
        %3801 = vmatprep.subr.mxu0 0.0
        %3802 = vmatpush1.msra.mxu0 0.0
        %3803 = vmatprep.subr.mxu0 0.0
        %3804 = vmatpush1.msra.mxu0 0.0
        %3805 = vmatprep.subr.mxu0 0.0
        %3806 = vmatpush1.msra.mxu0 0.0
        %3807 = vmatprep.subr.mxu0 0.0
        %3808 = vmatpush1.msra.mxu0 0.0
        %3809 = vmatprep.subr.mxu0 0.0
        %3810 = vmatpush1.msra.mxu0 0.0
        %3811 = vmatprep.subr.mxu0 0.0
        %3812 = vmatpush1.msra.mxu0 0.0
        %3813 = vmatprep.subr.mxu0 0.0
        %3814 = vmatpush1.msra.mxu0 0.0
        %3815 = vmatprep.subr.mxu0 0.0
        %3816 = vmatpush1.msra.mxu0 0.0
        %3817 = vmatprep.subr.mxu0 0.0
        %3818 = vmatpush1.msra.mxu0 0.0
        %3819 = vmatprep.subr.mxu0 0.0
        %3820 = vmatpush1.msra.mxu0 0.0
        %3821 = vmatprep.subr.mxu0 0.0
        %3822 = vmatpush1.msra.mxu0 0.0
        %3823 = vmatprep.subr.mxu0 0.0
        %3824 = vmatpush1.msra.mxu0 0.0
        %3825 = vmatprep.mubr.f32.mxu0 0.0
        %3826 = vmatmul.mubr.f32.gmra.mrb[0].mxu0 %v3759
        %v3827 = vpop.f32.mrb[0].mxu0
        %v3828 = vadd.f32 0.0, %v3827
        %v3829 = vpop.f32.mrb[0].mxu0
        %3830 = vdwg.mxu0
        %v3831 = vadd.f32 %v3755, %v3828
        %v3833 = vsel %vm465, %v3605, 0
        %3835 = vmatprep.subr.mxu0 0.0
        %3836 = vmatpush1.msra.mxu0 %v3611
        %3837 = vmatprep.subr.mxu0 0.0
        %3838 = vmatpush1.msra.mxu0 0.0
        %3839 = vmatprep.subr.mxu0 0.0
        %3840 = vmatpush1.msra.mxu0 0.0
        %3841 = vmatprep.subr.mxu0 0.0
        %3842 = vmatpush1.msra.mxu0 0.0
        %3843 = vmatprep.subr.mxu0 0.0
        %3844 = vmatpush1.msra.mxu0 0.0
        %3845 = vmatprep.subr.mxu0 0.0
        %3846 = vmatpush1.msra.mxu0 0.0
        %3847 = vmatprep.subr.mxu0 0.0
        %3848 = vmatpush1.msra.mxu0 0.0
        %3849 = vmatprep.subr.mxu0 0.0
        %3850 = vmatpush1.msra.mxu0 0.0
        %3851 = vmatprep.subr.mxu0 0.0
        %3852 = vmatpush1.msra.mxu0 0.0
        %3853 = vmatprep.subr.mxu0 0.0
        %3854 = vmatpush1.msra.mxu0 0.0
        %3855 = vmatprep.subr.mxu0 0.0
        %3856 = vmatpush1.msra.mxu0 0.0
        %3857 = vmatprep.subr.mxu0 0.0
        %3858 = vmatpush1.msra.mxu0 0.0
        %3859 = vmatprep.subr.mxu0 0.0
        %3860 = vmatpush1.msra.mxu0 0.0
        %3861 = vmatprep.subr.mxu0 0.0
        %3862 = vmatpush1.msra.mxu0 0.0
        %3863 = vmatprep.subr.mxu0 0.0
        %3864 = vmatpush1.msra.mxu0 0.0
        %3865 = vmatprep.subr.mxu0 0.0
        %3866 = vmatpush1.msra.mxu0 0.0
        %3867 = vmatprep.subr.mxu0 0.0
        %3868 = vmatpush1.msra.mxu0 0.0
        %3869 = vmatprep.subr.mxu0 0.0
        %3870 = vmatpush1.msra.mxu0 0.0
        %3871 = vmatprep.subr.mxu0 0.0
        %3872 = vmatpush1.msra.mxu0 0.0
        %3873 = vmatprep.subr.mxu0 0.0
        %3874 = vmatpush1.msra.mxu0 0.0
        %3875 = vmatprep.subr.mxu0 0.0
        %3876 = vmatpush1.msra.mxu0 0.0
        %3877 = vmatprep.subr.mxu0 0.0
        %3878 = vmatpush1.msra.mxu0 0.0
        %3879 = vmatprep.subr.mxu0 0.0
        %3880 = vmatpush1.msra.mxu0 0.0
        %3881 = vmatprep.subr.mxu0 0.0
        %3882 = vmatpush1.msra.mxu0 0.0
        %3883 = vmatprep.subr.mxu0 0.0
        %3884 = vmatpush1.msra.mxu0 0.0
        %3885 = vmatprep.subr.mxu0 0.0
        %3886 = vmatpush1.msra.mxu0 0.0
        %3887 = vmatprep.subr.mxu0 0.0
        %3888 = vmatpush1.msra.mxu0 0.0
        %3889 = vmatprep.subr.mxu0 0.0
        %3890 = vmatpush1.msra.mxu0 0.0
        %3891 = vmatprep.subr.mxu0 0.0
        %3892 = vmatpush1.msra.mxu0 0.0
        %3893 = vmatprep.subr.mxu0 0.0
        %3894 = vmatpush1.msra.mxu0 0.0
        %3895 = vmatprep.subr.mxu0 0.0
        %3896 = vmatpush1.msra.mxu0 0.0
        %3897 = vmatprep.subr.mxu0 0.0
        %3898 = vmatpush1.msra.mxu0 0.0
        %3899 = vmatprep.mubr.f32.mxu0 0.0
        %3900 = vmatmul.mubr.f32.gmra.mrb[0].mxu0 %v3833
        %v3901 = vpop.f32.mrb[0].mxu0
        %v3902 = vadd.f32 0.0, %v3901
        %v3903 = vpop.f32.mrb[0].mxu0
        %3904 = vdwg.mxu0
        %v3905 = vadd.f32 %v3831, %v3902
        %v3906 = vld [vmem:[#allocation8 + $0x13] sm:$0x1]
        %v3907 = vlaneseq
        %v3908 = vshrl.u32 %v3907, 7
        %v3909 = vsub.s32 0, %v3908
        %v3910 = vrot.slane %v3906, %v3909
        %v3911 = vadd.f32 %v3905, %v3910
        %v3912 = vadd.f32 %v3911, %v2879
        %v3913 = vsel %vm381, %v3912, 0.0
        %3914 = vadd.xlane.f32.xlu0 %v3913
        %v3915 = vpop.xlane.xlu0 %3914
        %v3916 = vmul.f32 %v3915, %v1412
        %v3917 = vsub.f32 %v3912, %v3916
        %v3918 = vmul.f32 %v3917, %v3917
        %v3919 = vsel %vm381, %v3918, 0.0
        %3920 = vadd.xlane.f32.xlu0 %v3919
        %v3921 = vpop.xlane.xlu0 %3920
        %v3922 = vmul.f32 %v3921, %v1412
        %v3923 = vadd.f32 %v3922, 1e-05
        %v3924 = vrsqrt.pop %v3923
        %v3925 = vmul.f32 %v3917, %v3924
        %v3926 = vld [vmem:[#allocation8 + $0x18] sm:$0x1]
        %v3927 = vlaneseq
        %v3928 = vshrl.u32 %v3927, 7
        %v3929 = vsub.s32 0, %v3928
        %v3930 = vrot.slane %v3926, %v3929
        %v3931 = vmul.f32 %v3925, %v3930
        %v3932 = vld [vmem:[#allocation8 + $0x19] sm:$0x1]
        %v3933 = vlaneseq
        %v3934 = vshrl.u32 %v3933, 7
        %v3935 = vsub.s32 0, %v3934
        %v3936 = vrot.slane %v3932, %v3935
        %v3937 = vadd.f32 %v3931, %v3936
        %v3938 = vld [vmem:[#allocation7 + $0x1b0] sm:$0xff]
        %v3939 = vld [vmem:[#allocation7 + $0x1b8] sm:$0xff]
        %v3940 = vld [vmem:[#allocation7 + $0x1c0] sm:$0xff]
        %v3941 = vld [vmem:[#allocation7 + $0x1c8] sm:$0xff]
        %v3942 = vld [vmem:[#allocation8 + $0x14] sm:$0x1]
        %v3943 = vlaneseq
        %v3944 = vshrl.u32 %v3943, 7
        %v3945 = vsub.s32 0, %v3944
        %v3946 = vrot.slane %v3942, %v3945
        %v3948 = vsel %vm381, %v3937, 0
        %3950 = vmatprep.subr.mxu0 0.0
        %3951 = vmatpush1.msra.mxu0 %v3938
        %3952 = vmatprep.subr.mxu0 0.0
        %3953 = vmatpush1.msra.mxu0 %v3939
        %3954 = vmatprep.subr.mxu0 0.0
        %3955 = vmatpush1.msra.mxu0 %v3940
        %3956 = vmatprep.subr.mxu0 0.0
        %3957 = vmatpush1.msra.mxu0 %v3941
        %3958 = vmatprep.subr.mxu0 0.0
        %3959 = vmatpush1.msra.mxu0 0.0
        %3960 = vmatprep.subr.mxu0 0.0
        %3961 = vmatpush1.msra.mxu0 0.0
        %3962 = vmatprep.subr.mxu0 0.0
        %3963 = vmatpush1.msra.mxu0 0.0
        %3964 = vmatprep.subr.mxu0 0.0
        %3965 = vmatpush1.msra.mxu0 0.0
        %3966 = vmatprep.subr.mxu0 0.0
        %3967 = vmatpush1.msra.mxu0 0.0
        %3968 = vmatprep.subr.mxu0 0.0
        %3969 = vmatpush1.msra.mxu0 0.0
        %3970 = vmatprep.subr.mxu0 0.0
        %3971 = vmatpush1.msra.mxu0 0.0
        %3972 = vmatprep.subr.mxu0 0.0
        %3973 = vmatpush1.msra.mxu0 0.0
        %3974 = vmatprep.subr.mxu0 0.0
        %3975 = vmatpush1.msra.mxu0 0.0
        %3976 = vmatprep.subr.mxu0 0.0
        %3977 = vmatpush1.msra.mxu0 0.0
        %3978 = vmatprep.subr.mxu0 0.0
        %3979 = vmatpush1.msra.mxu0 0.0
        %3980 = vmatprep.subr.mxu0 0.0
        %3981 = vmatpush1.msra.mxu0 0.0
        %3982 = vmatprep.subr.mxu0 0.0
        %3983 = vmatpush1.msra.mxu0 0.0
        %3984 = vmatprep.subr.mxu0 0.0
        %3985 = vmatpush1.msra.mxu0 0.0
        %3986 = vmatprep.subr.mxu0 0.0
        %3987 = vmatpush1.msra.mxu0 0.0
        %3988 = vmatprep.subr.mxu0 0.0
        %3989 = vmatpush1.msra.mxu0 0.0
        %3990 = vmatprep.subr.mxu0 0.0
        %3991 = vmatpush1.msra.mxu0 0.0
        %3992 = vmatprep.subr.mxu0 0.0
        %3993 = vmatpush1.msra.mxu0 0.0
        %3994 = vmatprep.subr.mxu0 0.0
        %3995 = vmatpush1.msra.mxu0 0.0
        %3996 = vmatprep.subr.mxu0 0.0
        %3997 = vmatpush1.msra.mxu0 0.0
        %3998 = vmatprep.subr.mxu0 0.0
        %3999 = vmatpush1.msra.mxu0 0.0
        %4000 = vmatprep.subr.mxu0 0.0
        %4001 = vmatpush1.msra.mxu0 0.0
        %4002 = vmatprep.subr.mxu0 0.0
        %4003 = vmatpush1.msra.mxu0 0.0
        %4004 = vmatprep.subr.mxu0 0.0
        %4005 = vmatpush1.msra.mxu0 0.0
        %4006 = vmatprep.subr.mxu0 0.0
        %4007 = vmatpush1.msra.mxu0 0.0
        %4008 = vmatprep.subr.mxu0 0.0
        %4009 = vmatpush1.msra.mxu0 0.0
        %4010 = vmatprep.subr.mxu0 0.0
        %4011 = vmatpush1.msra.mxu0 0.0
        %4012 = vmatprep.subr.mxu0 0.0
        %4013 = vmatpush1.msra.mxu0 0.0
        %4014 = vmatprep.mubr.f32.mxu0 0.0
        %4015 = vmatmul.mubr.f32.gmra.mrb[0].mxu0 %v3948
        %v4016 = vpop.f32.mrb[0].mxu0
        %v4017 = vadd.f32 %v3946, %v4016
        %v4018 = vpop.f32.mrb[0].mxu0
        %4019 = vdwg.mxu0
        %4021 = vrot.lane.b32.xlu0 %v4017, 120
        %v4022 = vpop.permute.xlu0 %4021
        %4023 = vrot.lane.b32.xlu0 %v4017, 112
        %v4024 = vpop.permute.xlu0 %4023
        %4025 = vrot.lane.b32.xlu0 %v4017, 104
        %v4026 = vpop.permute.xlu0 %4025
        %4027 = vmatprep.subr.mxu0 0.0
        %4028 = vmatpush1.msra.mxu0 %v3938
        %4029 = vmatprep.subr.mxu0 0.0
        %4030 = vmatpush1.msra.mxu0 %v3939
        %4031 = vmatprep.subr.mxu0 0.0
        %4032 = vmatpush1.msra.mxu0 %v3940
        %4033 = vmatprep.subr.mxu0 0.0
        %4034 = vmatpush1.msra.mxu0 %v3941
        %4035 = vmatprep.subr.mxu0 0.0
        %4036 = vmatpush1.msra.mxu0 0.0
        %4037 = vmatprep.subr.mxu0 0.0
        %4038 = vmatpush1.msra.mxu0 0.0
        %4039 = vmatprep.subr.mxu0 0.0
        %4040 = vmatpush1.msra.mxu0 0.0
        %4041 = vmatprep.subr.mxu0 0.0
        %4042 = vmatpush1.msra.mxu0 0.0
        %4043 = vmatprep.subr.mxu0 0.0
        %4044 = vmatpush1.msra.mxu0 0.0
        %4045 = vmatprep.subr.mxu0 0.0
        %4046 = vmatpush1.msra.mxu0 0.0
        %4047 = vmatprep.subr.mxu0 0.0
        %4048 = vmatpush1.msra.mxu0 0.0
        %4049 = vmatprep.subr.mxu0 0.0
        %4050 = vmatpush1.msra.mxu0 0.0
        %4051 = vmatprep.subr.mxu0 0.0
        %4052 = vmatpush1.msra.mxu0 0.0
        %4053 = vmatprep.subr.mxu0 0.0
        %4054 = vmatpush1.msra.mxu0 0.0
        %4055 = vmatprep.subr.mxu0 0.0
        %4056 = vmatpush1.msra.mxu0 0.0
        %4057 = vmatprep.subr.mxu0 0.0
        %4058 = vmatpush1.msra.mxu0 0.0
        %4059 = vmatprep.subr.mxu0 0.0
        %4060 = vmatpush1.msra.mxu0 0.0
        %4061 = vmatprep.subr.mxu0 0.0
        %4062 = vmatpush1.msra.mxu0 0.0
        %4063 = vmatprep.subr.mxu0 0.0
        %4064 = vmatpush1.msra.mxu0 0.0
        %4065 = vmatprep.subr.mxu0 0.0
        %4066 = vmatpush1.msra.mxu0 0.0
        %4067 = vmatprep.subr.mxu0 0.0
        %4068 = vmatpush1.msra.mxu0 0.0
        %4069 = vmatprep.subr.mxu0 0.0
        %4070 = vmatpush1.msra.mxu0 0.0
        %4071 = vmatprep.subr.mxu0 0.0
        %4072 = vmatpush1.msra.mxu0 0.0
        %4073 = vmatprep.subr.mxu0 0.0
        %4074 = vmatpush1.msra.mxu0 0.0
        %4075 = vmatprep.subr.mxu0 0.0
        %4076 = vmatpush1.msra.mxu0 0.0
        %4077 = vmatprep.subr.mxu0 0.0
        %4078 = vmatpush1.msra.mxu0 0.0
        %4079 = vmatprep.subr.mxu0 0.0
        %4080 = vmatpush1.msra.mxu0 0.0
        %4081 = vmatprep.subr.mxu0 0.0
        %4082 = vmatpush1.msra.mxu0 0.0
        %4083 = vmatprep.subr.mxu0 0.0
        %4084 = vmatpush1.msra.mxu0 0.0
        %4085 = vmatprep.subr.mxu0 0.0
        %4086 = vmatpush1.msra.mxu0 0.0
        %4087 = vmatprep.subr.mxu0 0.0
        %4088 = vmatpush1.msra.mxu0 0.0
        %4089 = vmatprep.subr.mxu0 0.0
        %4090 = vmatpush1.msra.mxu0 0.0
        %4091 = vmatprep.mubr.f32.mxu0 0.0
        %4092 = vmatmul.mubr.f32.gmra.mrb[0].mxu0 %v2890
        %v4093 = vpop.f32.mrb[0].mxu0
        %v4094 = vadd.f32 %v3946, %v4093
        %v4095 = vpop.f32.mrb[0].mxu0
        %4096 = vdwg.mxu0
        %4098 = vrot.lane.b32.xlu0 %v4094, 120
        %v4099 = vpop.permute.xlu0 %4098
        %4101 = vrot.lane.b32.xlu0 %v4094, 112
        %v4102 = vpop.permute.xlu0 %4101
        %4104 = vrot.lane.b32.xlu0 %v4094, 104
        %v4105 = vpop.permute.xlu0 %4104
        %v4107 = vsel %vm465, %v4017, 0
        %v4109 = vsel %vm465, %v4094, 0
        %4111 = vmatprep.subr.mxu0 0.0
        %4112 = vmatpush1.xpose.msra.mxu0 %v4109
        %4113 = vmatprep.subr.mxu0 0.0
        %4114 = vmatpush1.xpose.msra.mxu0 0.0
        %4115 = vmatprep.subr.mxu0 0.0
        %4116 = vmatpush1.xpose.msra.mxu0 0.0
        %4117 = vmatprep.subr.mxu0 0.0
        %4118 = vmatpush1.xpose.msra.mxu0 0.0
        %4119 = vmatprep.subr.mxu0 0.0
        %4120 = vmatpush1.xpose.msra.mxu0 0.0
        %4121 = vmatprep.subr.mxu0 0.0
        %4122 = vmatpush1.xpose.msra.mxu0 0.0
        %4123 = vmatprep.subr.mxu0 0.0
        %4124 = vmatpush1.xpose.msra.mxu0 0.0
        %4125 = vmatprep.subr.mxu0 0.0
        %4126 = vmatpush1.xpose.msra.mxu0 0.0
        %4127 = vmatprep.subr.mxu0 0.0
        %4128 = vmatpush1.xpose.msra.mxu0 0.0
        %4129 = vmatprep.subr.mxu0 0.0
        %4130 = vmatpush1.xpose.msra.mxu0 0.0
        %4131 = vmatprep.subr.mxu0 0.0
        %4132 = vmatpush1.xpose.msra.mxu0 0.0
        %4133 = vmatprep.subr.mxu0 0.0
        %4134 = vmatpush1.xpose.msra.mxu0 0.0
        %4135 = vmatprep.subr.mxu0 0.0
        %4136 = vmatpush1.xpose.msra.mxu0 0.0
        %4137 = vmatprep.subr.mxu0 0.0
        %4138 = vmatpush1.xpose.msra.mxu0 0.0
        %4139 = vmatprep.subr.mxu0 0.0
        %4140 = vmatpush1.xpose.msra.mxu0 0.0
        %4141 = vmatprep.subr.mxu0 0.0
        %4142 = vmatpush1.xpose.msra.mxu0 0.0
        %4143 = vmatprep.subr.mxu0 0.0
        %4144 = vmatpush1.xpose.msra.mxu0 0.0
        %4145 = vmatprep.subr.mxu0 0.0
        %4146 = vmatpush1.xpose.msra.mxu0 0.0
        %4147 = vmatprep.subr.mxu0 0.0
        %4148 = vmatpush1.xpose.msra.mxu0 0.0
        %4149 = vmatprep.subr.mxu0 0.0
        %4150 = vmatpush1.xpose.msra.mxu0 0.0
        %4151 = vmatprep.subr.mxu0 0.0
        %4152 = vmatpush1.xpose.msra.mxu0 0.0
        %4153 = vmatprep.subr.mxu0 0.0
        %4154 = vmatpush1.xpose.msra.mxu0 0.0
        %4155 = vmatprep.subr.mxu0 0.0
        %4156 = vmatpush1.xpose.msra.mxu0 0.0
        %4157 = vmatprep.subr.mxu0 0.0
        %4158 = vmatpush1.xpose.msra.mxu0 0.0
        %4159 = vmatprep.subr.mxu0 0.0
        %4160 = vmatpush1.xpose.msra.mxu0 0.0
        %4161 = vmatprep.subr.mxu0 0.0
        %4162 = vmatpush1.xpose.msra.mxu0 0.0
        %4163 = vmatprep.subr.mxu0 0.0
        %4164 = vmatpush1.xpose.msra.mxu0 0.0
        %4165 = vmatprep.subr.mxu0 0.0
        %4166 = vmatpush1.xpose.msra.mxu0 0.0
        %4167 = vmatprep.subr.mxu0 0.0
        %4168 = vmatpush1.xpose.msra.mxu0 0.0
        %4169 = vmatprep.subr.mxu0 0.0
        %4170 = vmatpush1.xpose.msra.mxu0 0.0
        %4171 = vmatprep.subr.mxu0 0.0
        %4172 = vmatpush1.xpose.msra.mxu0 0.0
        %4173 = vmatprep.subr.mxu0 0.0
        %4174 = vmatpush1.xpose.msra.mxu0 0.0
        %4175 = vmatprep.mubr.f32.mxu0 0.0
        %4176 = vmatmul.mubr.f32.gmra.mrb[0].mxu0 %v4107
        %v4177 = vpop.f32.mrb[0].mxu0
        %v4178 = vadd.f32 0.0, %v4177
        %v4179 = vpop.f32.mrb[0].mxu0
        %4180 = vdwg.mxu0
        %v4181 = vsel %vm465, %v4022, 0
        %v4183 = vsel %vm465, %v4099, 0
        %4185 = vmatprep.subr.mxu0 0.0
        %4186 = vmatpush1.xpose.msra.mxu0 %v4183
        %4187 = vmatprep.subr.mxu0 0.0
        %4188 = vmatpush1.xpose.msra.mxu0 0.0
        %4189 = vmatprep.subr.mxu0 0.0
        %4190 = vmatpush1.xpose.msra.mxu0 0.0
        %4191 = vmatprep.subr.mxu0 0.0
        %4192 = vmatpush1.xpose.msra.mxu0 0.0
        %4193 = vmatprep.subr.mxu0 0.0
        %4194 = vmatpush1.xpose.msra.mxu0 0.0
        %4195 = vmatprep.subr.mxu0 0.0
        %4196 = vmatpush1.xpose.msra.mxu0 0.0
        %4197 = vmatprep.subr.mxu0 0.0
        %4198 = vmatpush1.xpose.msra.mxu0 0.0
        %4199 = vmatprep.subr.mxu0 0.0
        %4200 = vmatpush1.xpose.msra.mxu0 0.0
        %4201 = vmatprep.subr.mxu0 0.0
        %4202 = vmatpush1.xpose.msra.mxu0 0.0
        %4203 = vmatprep.subr.mxu0 0.0
        %4204 = vmatpush1.xpose.msra.mxu0 0.0
        %4205 = vmatprep.subr.mxu0 0.0
        %4206 = vmatpush1.xpose.msra.mxu0 0.0
        %4207 = vmatprep.subr.mxu0 0.0
        %4208 = vmatpush1.xpose.msra.mxu0 0.0
        %4209 = vmatprep.subr.mxu0 0.0
        %4210 = vmatpush1.xpose.msra.mxu0 0.0
        %4211 = vmatprep.subr.mxu0 0.0
        %4212 = vmatpush1.xpose.msra.mxu0 0.0
        %4213 = vmatprep.subr.mxu0 0.0
        %4214 = vmatpush1.xpose.msra.mxu0 0.0
        %4215 = vmatprep.subr.mxu0 0.0
        %4216 = vmatpush1.xpose.msra.mxu0 0.0
        %4217 = vmatprep.subr.mxu0 0.0
        %4218 = vmatpush1.xpose.msra.mxu0 0.0
        %4219 = vmatprep.subr.mxu0 0.0
        %4220 = vmatpush1.xpose.msra.mxu0 0.0
        %4221 = vmatprep.subr.mxu0 0.0
        %4222 = vmatpush1.xpose.msra.mxu0 0.0
        %4223 = vmatprep.subr.mxu0 0.0
        %4224 = vmatpush1.xpose.msra.mxu0 0.0
        %4225 = vmatprep.subr.mxu0 0.0
        %4226 = vmatpush1.xpose.msra.mxu0 0.0
        %4227 = vmatprep.subr.mxu0 0.0
        %4228 = vmatpush1.xpose.msra.mxu0 0.0
        %4229 = vmatprep.subr.mxu0 0.0
        %4230 = vmatpush1.xpose.msra.mxu0 0.0
        %4231 = vmatprep.subr.mxu0 0.0
        %4232 = vmatpush1.xpose.msra.mxu0 0.0
        %4233 = vmatprep.subr.mxu0 0.0
        %4234 = vmatpush1.xpose.msra.mxu0 0.0
        %4235 = vmatprep.subr.mxu0 0.0
        %4236 = vmatpush1.xpose.msra.mxu0 0.0
        %4237 = vmatprep.subr.mxu0 0.0
        %4238 = vmatpush1.xpose.msra.mxu0 0.0
        %4239 = vmatprep.subr.mxu0 0.0
        %4240 = vmatpush1.xpose.msra.mxu0 0.0
        %4241 = vmatprep.subr.mxu0 0.0
        %4242 = vmatpush1.xpose.msra.mxu0 0.0
        %4243 = vmatprep.subr.mxu0 0.0
        %4244 = vmatpush1.xpose.msra.mxu0 0.0
        %4245 = vmatprep.subr.mxu0 0.0
        %4246 = vmatpush1.xpose.msra.mxu0 0.0
        %4247 = vmatprep.subr.mxu0 0.0
        %4248 = vmatpush1.xpose.msra.mxu0 0.0
        %4249 = vmatprep.mubr.f32.mxu0 0.0
        %4250 = vmatmul.mubr.f32.gmra.mrb[0].mxu0 %v4181
        %v4251 = vpop.f32.mrb[0].mxu0
        %v4252 = vadd.f32 0.0, %v4251
        %v4253 = vpop.f32.mrb[0].mxu0
        %4254 = vdwg.mxu0
        %v4255 = vsel %vm465, %v4024, 0
        %v4257 = vsel %vm465, %v4102, 0
        %4259 = vmatprep.subr.mxu0 0.0
        %4260 = vmatpush1.xpose.msra.mxu0 %v4257
        %4261 = vmatprep.subr.mxu0 0.0
        %4262 = vmatpush1.xpose.msra.mxu0 0.0
        %4263 = vmatprep.subr.mxu0 0.0
        %4264 = vmatpush1.xpose.msra.mxu0 0.0
        %4265 = vmatprep.subr.mxu0 0.0
        %4266 = vmatpush1.xpose.msra.mxu0 0.0
        %4267 = vmatprep.subr.mxu0 0.0
        %4268 = vmatpush1.xpose.msra.mxu0 0.0
        %4269 = vmatprep.subr.mxu0 0.0
        %4270 = vmatpush1.xpose.msra.mxu0 0.0
        %4271 = vmatprep.subr.mxu0 0.0
        %4272 = vmatpush1.xpose.msra.mxu0 0.0
        %4273 = vmatprep.subr.mxu0 0.0
        %4274 = vmatpush1.xpose.msra.mxu0 0.0
        %4275 = vmatprep.subr.mxu0 0.0
        %4276 = vmatpush1.xpose.msra.mxu0 0.0
        %4277 = vmatprep.subr.mxu0 0.0
        %4278 = vmatpush1.xpose.msra.mxu0 0.0
        %4279 = vmatprep.subr.mxu0 0.0
        %4280 = vmatpush1.xpose.msra.mxu0 0.0
        %4281 = vmatprep.subr.mxu0 0.0
        %4282 = vmatpush1.xpose.msra.mxu0 0.0
        %4283 = vmatprep.subr.mxu0 0.0
        %4284 = vmatpush1.xpose.msra.mxu0 0.0
        %4285 = vmatprep.subr.mxu0 0.0
        %4286 = vmatpush1.xpose.msra.mxu0 0.0
        %4287 = vmatprep.subr.mxu0 0.0
        %4288 = vmatpush1.xpose.msra.mxu0 0.0
        %4289 = vmatprep.subr.mxu0 0.0
        %4290 = vmatpush1.xpose.msra.mxu0 0.0
        %4291 = vmatprep.subr.mxu0 0.0
        %4292 = vmatpush1.xpose.msra.mxu0 0.0
        %4293 = vmatprep.subr.mxu0 0.0
        %4294 = vmatpush1.xpose.msra.mxu0 0.0
        %4295 = vmatprep.subr.mxu0 0.0
        %4296 = vmatpush1.xpose.msra.mxu0 0.0
        %4297 = vmatprep.subr.mxu0 0.0
        %4298 = vmatpush1.xpose.msra.mxu0 0.0
        %4299 = vmatprep.subr.mxu0 0.0
        %4300 = vmatpush1.xpose.msra.mxu0 0.0
        %4301 = vmatprep.subr.mxu0 0.0
        %4302 = vmatpush1.xpose.msra.mxu0 0.0
        %4303 = vmatprep.subr.mxu0 0.0
        %4304 = vmatpush1.xpose.msra.mxu0 0.0
        %4305 = vmatprep.subr.mxu0 0.0
        %4306 = vmatpush1.xpose.msra.mxu0 0.0
        %4307 = vmatprep.subr.mxu0 0.0
        %4308 = vmatpush1.xpose.msra.mxu0 0.0
        %4309 = vmatprep.subr.mxu0 0.0
        %4310 = vmatpush1.xpose.msra.mxu0 0.0
        %4311 = vmatprep.subr.mxu0 0.0
        %4312 = vmatpush1.xpose.msra.mxu0 0.0
        %4313 = vmatprep.subr.mxu0 0.0
        %4314 = vmatpush1.xpose.msra.mxu0 0.0
        %4315 = vmatprep.subr.mxu0 0.0
        %4316 = vmatpush1.xpose.msra.mxu0 0.0
        %4317 = vmatprep.subr.mxu0 0.0
        %4318 = vmatpush1.xpose.msra.mxu0 0.0
        %4319 = vmatprep.subr.mxu0 0.0
        %4320 = vmatpush1.xpose.msra.mxu0 0.0
        %4321 = vmatprep.subr.mxu0 0.0
        %4322 = vmatpush1.xpose.msra.mxu0 0.0
        %4323 = vmatprep.mubr.f32.mxu0 0.0
        %4324 = vmatmul.mubr.f32.gmra.mrb[0].mxu0 %v4255
        %v4325 = vpop.f32.mrb[0].mxu0
        %v4326 = vadd.f32 0.0, %v4325
        %v4327 = vpop.f32.mrb[0].mxu0
        %4328 = vdwg.mxu0
        %v4329 = vsel %vm465, %v4026, 0
        %v4331 = vsel %vm465, %v4105, 0
        %4333 = vmatprep.subr.mxu0 0.0
        %4334 = vmatpush1.xpose.msra.mxu0 %v4331
        %4335 = vmatprep.subr.mxu0 0.0
        %4336 = vmatpush1.xpose.msra.mxu0 0.0
        %4337 = vmatprep.subr.mxu0 0.0
        %4338 = vmatpush1.xpose.msra.mxu0 0.0
        %4339 = vmatprep.subr.mxu0 0.0
        %4340 = vmatpush1.xpose.msra.mxu0 0.0
        %4341 = vmatprep.subr.mxu0 0.0
        %4342 = vmatpush1.xpose.msra.mxu0 0.0
        %4343 = vmatprep.subr.mxu0 0.0
        %4344 = vmatpush1.xpose.msra.mxu0 0.0
        %4345 = vmatprep.subr.mxu0 0.0
        %4346 = vmatpush1.xpose.msra.mxu0 0.0
        %4347 = vmatprep.subr.mxu0 0.0
        %4348 = vmatpush1.xpose.msra.mxu0 0.0
        %4349 = vmatprep.subr.mxu0 0.0
        %4350 = vmatpush1.xpose.msra.mxu0 0.0
        %4351 = vmatprep.subr.mxu0 0.0
        %4352 = vmatpush1.xpose.msra.mxu0 0.0
        %4353 = vmatprep.subr.mxu0 0.0
        %4354 = vmatpush1.xpose.msra.mxu0 0.0
        %4355 = vmatprep.subr.mxu0 0.0
        %4356 = vmatpush1.xpose.msra.mxu0 0.0
        %4357 = vmatprep.subr.mxu0 0.0
        %4358 = vmatpush1.xpose.msra.mxu0 0.0
        %4359 = vmatprep.subr.mxu0 0.0
        %4360 = vmatpush1.xpose.msra.mxu0 0.0
        %4361 = vmatprep.subr.mxu0 0.0
        %4362 = vmatpush1.xpose.msra.mxu0 0.0
        %4363 = vmatprep.subr.mxu0 0.0
        %4364 = vmatpush1.xpose.msra.mxu0 0.0
        %4365 = vmatprep.subr.mxu0 0.0
        %4366 = vmatpush1.xpose.msra.mxu0 0.0
        %4367 = vmatprep.subr.mxu0 0.0
        %4368 = vmatpush1.xpose.msra.mxu0 0.0
        %4369 = vmatprep.subr.mxu0 0.0
        %4370 = vmatpush1.xpose.msra.mxu0 0.0
        %4371 = vmatprep.subr.mxu0 0.0
        %4372 = vmatpush1.xpose.msra.mxu0 0.0
        %4373 = vmatprep.subr.mxu0 0.0
        %4374 = vmatpush1.xpose.msra.mxu0 0.0
        %4375 = vmatprep.subr.mxu0 0.0
        %4376 = vmatpush1.xpose.msra.mxu0 0.0
        %4377 = vmatprep.subr.mxu0 0.0
        %4378 = vmatpush1.xpose.msra.mxu0 0.0
        %4379 = vmatprep.subr.mxu0 0.0
        %4380 = vmatpush1.xpose.msra.mxu0 0.0
        %4381 = vmatprep.subr.mxu0 0.0
        %4382 = vmatpush1.xpose.msra.mxu0 0.0
        %4383 = vmatprep.subr.mxu0 0.0
        %4384 = vmatpush1.xpose.msra.mxu0 0.0
        %4385 = vmatprep.subr.mxu0 0.0
        %4386 = vmatpush1.xpose.msra.mxu0 0.0
        %4387 = vmatprep.subr.mxu0 0.0
        %4388 = vmatpush1.xpose.msra.mxu0 0.0
        %4389 = vmatprep.subr.mxu0 0.0
        %4390 = vmatpush1.xpose.msra.mxu0 0.0
        %4391 = vmatprep.subr.mxu0 0.0
        %4392 = vmatpush1.xpose.msra.mxu0 0.0
        %4393 = vmatprep.subr.mxu0 0.0
        %4394 = vmatpush1.xpose.msra.mxu0 0.0
        %4395 = vmatprep.subr.mxu0 0.0
        %4396 = vmatpush1.xpose.msra.mxu0 0.0
        %4397 = vmatprep.mubr.f32.mxu0 0.0
        %4398 = vmatmul.mubr.f32.gmra.mrb[0].mxu0 %v4329
        %v4399 = vpop.f32.mrb[0].mxu0
        %v4400 = vadd.f32 0.0, %v4399
        %v4401 = vpop.f32.mrb[0].mxu0
        %4402 = vdwg.mxu0
        %v4403 = vmul.f32 %v4178, 0.35355338
        %v4404 = vmul.f32 %v4252, 0.35355338
        %v4405 = vmul.f32 %v4326, 0.35355338
        %v4406 = vmul.f32 %v4400, 0.35355338
        %v4407 = vadd.f32 %v4403, %v762
        %v4408 = vadd.f32 %v4404, %v762
        %v4409 = vadd.f32 %v4405, %v762
        %v4410 = vadd.f32 %v4406, %v762
        %v4411 = vsel %vm465, %v4407, -inf
        %4412 = vmax.xlane.f32.xlu0 %v4411
        %v4413 = vpop.xlane.xlu0 %4412
        %v4414 = vsel %vm465, %v4408, -inf
        %4415 = vmax.xlane.f32.xlu0 %v4414
        %v4416 = vpop.xlane.xlu0 %4415
        %v4417 = vsel %vm465, %v4409, -inf
        %4418 = vmax.xlane.f32.xlu0 %v4417
        %v4419 = vpop.xlane.xlu0 %4418
        %v4420 = vsel %vm465, %v4410, -inf
        %4421 = vmax.xlane.f32.xlu0 %v4420
        %v4422 = vpop.xlane.xlu0 %4421
        %v4423 = vsub.f32 %v4407, %v4413
        %v4424 = vsub.f32 %v4408, %v4416
        %v4425 = vsub.f32 %v4409, %v4419
        %v4426 = vsub.f32 %v4410, %v4422
        %v4427 = vmul.f32 %v4423, 1.442695
        %v4428 = vpow.pop %v4427
        %v4429 = vmul.f32 %v4424, 1.442695
        %v4430 = vpow.pop %v4429
        %v4431 = vmul.f32 %v4425, 1.442695
        %v4432 = vpow.pop %v4431
        %v4433 = vmul.f32 %v4426, 1.442695
        %v4434 = vpow.pop %v4433
        %v4435 = vsel %vm465, %v4428, 0.0
        %4436 = vadd.xlane.f32.xlu0 %v4435
        %v4437 = vpop.xlane.xlu0 %4436
        %v4438 = vsel %vm465, %v4430, 0.0
        %4439 = vadd.xlane.f32.xlu0 %v4438
        %v4440 = vpop.xlane.xlu0 %4439
        %v4441 = vsel %vm465, %v4432, 0.0
        %4442 = vadd.xlane.f32.xlu0 %v4441
        %v4443 = vpop.xlane.xlu0 %4442
        %v4444 = vsel %vm465, %v4434, 0.0
        %4445 = vadd.xlane.f32.xlu0 %v4444
        %v4446 = vpop.xlane.xlu0 %4445
        %v4447 = vrcp.pop %v4437
        %v4448 = vrcp.pop %v4440
        %v4449 = vrcp.pop %v4443
        %v4450 = vrcp.pop %v4446
        %v4451 = vmul.f32 %v4428, %v4447
        %v4452 = vmul.f32 %v4430, %v4448
        %v4453 = vmul.f32 %v4432, %v4449
        %v4454 = vmul.f32 %v4434, %v4450
        %v4456 = vsel %vm465, %v4451, 0
        %4458 = vmatprep.subr.mxu0 0.0
        %4459 = vmatpush1.msra.mxu0 %v4094
        %4460 = vmatprep.subr.mxu0 0.0
        %4461 = vmatpush1.msra.mxu0 0.0
        %4462 = vmatprep.subr.mxu0 0.0
        %4463 = vmatpush1.msra.mxu0 0.0
        %4464 = vmatprep.subr.mxu0 0.0
        %4465 = vmatpush1.msra.mxu0 0.0
        %4466 = vmatprep.subr.mxu0 0.0
        %4467 = vmatpush1.msra.mxu0 0.0
        %4468 = vmatprep.subr.mxu0 0.0
        %4469 = vmatpush1.msra.mxu0 0.0
        %4470 = vmatprep.subr.mxu0 0.0
        %4471 = vmatpush1.msra.mxu0 0.0
        %4472 = vmatprep.subr.mxu0 0.0
        %4473 = vmatpush1.msra.mxu0 0.0
        %4474 = vmatprep.subr.mxu0 0.0
        %4475 = vmatpush1.msra.mxu0 0.0
        %4476 = vmatprep.subr.mxu0 0.0
        %4477 = vmatpush1.msra.mxu0 0.0
        %4478 = vmatprep.subr.mxu0 0.0
        %4479 = vmatpush1.msra.mxu0 0.0
        %4480 = vmatprep.subr.mxu0 0.0
        %4481 = vmatpush1.msra.mxu0 0.0
        %4482 = vmatprep.subr.mxu0 0.0
        %4483 = vmatpush1.msra.mxu0 0.0
        %4484 = vmatprep.subr.mxu0 0.0
        %4485 = vmatpush1.msra.mxu0 0.0
        %4486 = vmatprep.subr.mxu0 0.0
        %4487 = vmatpush1.msra.mxu0 0.0
        %4488 = vmatprep.subr.mxu0 0.0
        %4489 = vmatpush1.msra.mxu0 0.0
        %4490 = vmatprep.subr.mxu0 0.0
        %4491 = vmatpush1.msra.mxu0 0.0
        %4492 = vmatprep.subr.mxu0 0.0
        %4493 = vmatpush1.msra.mxu0 0.0
        %4494 = vmatprep.subr.mxu0 0.0
        %4495 = vmatpush1.msra.mxu0 0.0
        %4496 = vmatprep.subr.mxu0 0.0
        %4497 = vmatpush1.msra.mxu0 0.0
        %4498 = vmatprep.subr.mxu0 0.0
        %4499 = vmatpush1.msra.mxu0 0.0
        %4500 = vmatprep.subr.mxu0 0.0
        %4501 = vmatpush1.msra.mxu0 0.0
        %4502 = vmatprep.subr.mxu0 0.0
        %4503 = vmatpush1.msra.mxu0 0.0
        %4504 = vmatprep.subr.mxu0 0.0
        %4505 = vmatpush1.msra.mxu0 0.0
        %4506 = vmatprep.subr.mxu0 0.0
        %4507 = vmatpush1.msra.mxu0 0.0
        %4508 = vmatprep.subr.mxu0 0.0
        %4509 = vmatpush1.msra.mxu0 0.0
        %4510 = vmatprep.subr.mxu0 0.0
        %4511 = vmatpush1.msra.mxu0 0.0
        %4512 = vmatprep.subr.mxu0 0.0
        %4513 = vmatpush1.msra.mxu0 0.0
        %4514 = vmatprep.subr.mxu0 0.0
        %4515 = vmatpush1.msra.mxu0 0.0
        %4516 = vmatprep.subr.mxu0 0.0
        %4517 = vmatpush1.msra.mxu0 0.0
        %4518 = vmatprep.subr.mxu0 0.0
        %4519 = vmatpush1.msra.mxu0 0.0
        %4520 = vmatprep.subr.mxu0 0.0
        %4521 = vmatpush1.msra.mxu0 0.0
        %4522 = vmatprep.mubr.f32.mxu0 0.0
        %4523 = vmatmul.mubr.f32.gmra.mrb[0].mxu0 %v4456
        %v4524 = vpop.f32.mrb[0].mxu0
        %v4525 = vadd.f32 0.0, %v4524
        %v4526 = vpop.f32.mrb[0].mxu0
        %4527 = vdwg.mxu0
        %v4529 = vsel %vm465, %v4452, 0
        %4531 = vmatprep.subr.mxu0 0.0
        %4532 = vmatpush1.msra.mxu0 %v4099
        %4533 = vmatprep.subr.mxu0 0.0
        %4534 = vmatpush1.msra.mxu0 0.0
        %4535 = vmatprep.subr.mxu0 0.0
        %4536 = vmatpush1.msra.mxu0 0.0
        %4537 = vmatprep.subr.mxu0 0.0
        %4538 = vmatpush1.msra.mxu0 0.0
        %4539 = vmatprep.subr.mxu0 0.0
        %4540 = vmatpush1.msra.mxu0 0.0
        %4541 = vmatprep.subr.mxu0 0.0
        %4542 = vmatpush1.msra.mxu0 0.0
        %4543 = vmatprep.subr.mxu0 0.0
        %4544 = vmatpush1.msra.mxu0 0.0
        %4545 = vmatprep.subr.mxu0 0.0
        %4546 = vmatpush1.msra.mxu0 0.0
        %4547 = vmatprep.subr.mxu0 0.0
        %4548 = vmatpush1.msra.mxu0 0.0
        %4549 = vmatprep.subr.mxu0 0.0
        %4550 = vmatpush1.msra.mxu0 0.0
        %4551 = vmatprep.subr.mxu0 0.0
        %4552 = vmatpush1.msra.mxu0 0.0
        %4553 = vmatprep.subr.mxu0 0.0
        %4554 = vmatpush1.msra.mxu0 0.0
        %4555 = vmatprep.subr.mxu0 0.0
        %4556 = vmatpush1.msra.mxu0 0.0
        %4557 = vmatprep.subr.mxu0 0.0
        %4558 = vmatpush1.msra.mxu0 0.0
        %4559 = vmatprep.subr.mxu0 0.0
        %4560 = vmatpush1.msra.mxu0 0.0
        %4561 = vmatprep.subr.mxu0 0.0
        %4562 = vmatpush1.msra.mxu0 0.0
        %4563 = vmatprep.subr.mxu0 0.0
        %4564 = vmatpush1.msra.mxu0 0.0
        %4565 = vmatprep.subr.mxu0 0.0
        %4566 = vmatpush1.msra.mxu0 0.0
        %4567 = vmatprep.subr.mxu0 0.0
        %4568 = vmatpush1.msra.mxu0 0.0
        %4569 = vmatprep.subr.mxu0 0.0
        %4570 = vmatpush1.msra.mxu0 0.0
        %4571 = vmatprep.subr.mxu0 0.0
        %4572 = vmatpush1.msra.mxu0 0.0
        %4573 = vmatprep.subr.mxu0 0.0
        %4574 = vmatpush1.msra.mxu0 0.0
        %4575 = vmatprep.subr.mxu0 0.0
        %4576 = vmatpush1.msra.mxu0 0.0
        %4577 = vmatprep.subr.mxu0 0.0
        %4578 = vmatpush1.msra.mxu0 0.0
        %4579 = vmatprep.subr.mxu0 0.0
        %4580 = vmatpush1.msra.mxu0 0.0
        %4581 = vmatprep.subr.mxu0 0.0
        %4582 = vmatpush1.msra.mxu0 0.0
        %4583 = vmatprep.subr.mxu0 0.0
        %4584 = vmatpush1.msra.mxu0 0.0
        %4585 = vmatprep.subr.mxu0 0.0
        %4586 = vmatpush1.msra.mxu0 0.0
        %4587 = vmatprep.subr.mxu0 0.0
        %4588 = vmatpush1.msra.mxu0 0.0
        %4589 = vmatprep.subr.mxu0 0.0
        %4590 = vmatpush1.msra.mxu0 0.0
        %4591 = vmatprep.subr.mxu0 0.0
        %4592 = vmatpush1.msra.mxu0 0.0
        %4593 = vmatprep.subr.mxu0 0.0
        %4594 = vmatpush1.msra.mxu0 0.0
        %4595 = vmatprep.mubr.f32.mxu0 0.0
        %4596 = vmatmul.mubr.f32.gmra.mrb[0].mxu0 %v4529
        %v4597 = vpop.f32.mrb[0].mxu0
        %v4598 = vadd.f32 0.0, %v4597
        %v4599 = vpop.f32.mrb[0].mxu0
        %4600 = vdwg.mxu0
        %v4602 = vsel %vm465, %v4453, 0
        %4604 = vmatprep.subr.mxu0 0.0
        %4605 = vmatpush1.msra.mxu0 %v4102
        %4606 = vmatprep.subr.mxu0 0.0
        %4607 = vmatpush1.msra.mxu0 0.0
        %4608 = vmatprep.subr.mxu0 0.0
        %4609 = vmatpush1.msra.mxu0 0.0
        %4610 = vmatprep.subr.mxu0 0.0
        %4611 = vmatpush1.msra.mxu0 0.0
        %4612 = vmatprep.subr.mxu0 0.0
        %4613 = vmatpush1.msra.mxu0 0.0
        %4614 = vmatprep.subr.mxu0 0.0
        %4615 = vmatpush1.msra.mxu0 0.0
        %4616 = vmatprep.subr.mxu0 0.0
        %4617 = vmatpush1.msra.mxu0 0.0
        %4618 = vmatprep.subr.mxu0 0.0
        %4619 = vmatpush1.msra.mxu0 0.0
        %4620 = vmatprep.subr.mxu0 0.0
        %4621 = vmatpush1.msra.mxu0 0.0
        %4622 = vmatprep.subr.mxu0 0.0
        %4623 = vmatpush1.msra.mxu0 0.0
        %4624 = vmatprep.subr.mxu0 0.0
        %4625 = vmatpush1.msra.mxu0 0.0
        %4626 = vmatprep.subr.mxu0 0.0
        %4627 = vmatpush1.msra.mxu0 0.0
        %4628 = vmatprep.subr.mxu0 0.0
        %4629 = vmatpush1.msra.mxu0 0.0
        %4630 = vmatprep.subr.mxu0 0.0
        %4631 = vmatpush1.msra.mxu0 0.0
        %4632 = vmatprep.subr.mxu0 0.0
        %4633 = vmatpush1.msra.mxu0 0.0
        %4634 = vmatprep.subr.mxu0 0.0
        %4635 = vmatpush1.msra.mxu0 0.0
        %4636 = vmatprep.subr.mxu0 0.0
        %4637 = vmatpush1.msra.mxu0 0.0
        %4638 = vmatprep.subr.mxu0 0.0
        %4639 = vmatpush1.msra.mxu0 0.0
        %4640 = vmatprep.subr.mxu0 0.0
        %4641 = vmatpush1.msra.mxu0 0.0
        %4642 = vmatprep.subr.mxu0 0.0
        %4643 = vmatpush1.msra.mxu0 0.0
        %4644 = vmatprep.subr.mxu0 0.0
        %4645 = vmatpush1.msra.mxu0 0.0
        %4646 = vmatprep.subr.mxu0 0.0
        %4647 = vmatpush1.msra.mxu0 0.0
        %4648 = vmatprep.subr.mxu0 0.0
        %4649 = vmatpush1.msra.mxu0 0.0
        %4650 = vmatprep.subr.mxu0 0.0
        %4651 = vmatpush1.msra.mxu0 0.0
        %4652 = vmatprep.subr.mxu0 0.0
        %4653 = vmatpush1.msra.mxu0 0.0
        %4654 = vmatprep.subr.mxu0 0.0
        %4655 = vmatpush1.msra.mxu0 0.0
        %4656 = vmatprep.subr.mxu0 0.0
        %4657 = vmatpush1.msra.mxu0 0.0
        %4658 = vmatprep.subr.mxu0 0.0
        %4659 = vmatpush1.msra.mxu0 0.0
        %4660 = vmatprep.subr.mxu0 0.0
        %4661 = vmatpush1.msra.mxu0 0.0
        %4662 = vmatprep.subr.mxu0 0.0
        %4663 = vmatpush1.msra.mxu0 0.0
        %4664 = vmatprep.subr.mxu0 0.0
        %4665 = vmatpush1.msra.mxu0 0.0
        %4666 = vmatprep.subr.mxu0 0.0
        %4667 = vmatpush1.msra.mxu0 0.0
        %4668 = vmatprep.mubr.f32.mxu0 0.0
        %4669 = vmatmul.mubr.f32.gmra.mrb[0].mxu0 %v4602
        %v4670 = vpop.f32.mrb[0].mxu0
        %v4671 = vadd.f32 0.0, %v4670
        %v4672 = vpop.f32.mrb[0].mxu0
        %4673 = vdwg.mxu0
        %v4675 = vsel %vm465, %v4454, 0
        %4677 = vmatprep.subr.mxu0 0.0
        %4678 = vmatpush1.msra.mxu0 %v4105
        %4679 = vmatprep.subr.mxu0 0.0
        %4680 = vmatpush1.msra.mxu0 0.0
        %4681 = vmatprep.subr.mxu0 0.0
        %4682 = vmatpush1.msra.mxu0 0.0
        %4683 = vmatprep.subr.mxu0 0.0
        %4684 = vmatpush1.msra.mxu0 0.0
        %4685 = vmatprep.subr.mxu0 0.0
        %4686 = vmatpush1.msra.mxu0 0.0
        %4687 = vmatprep.subr.mxu0 0.0
        %4688 = vmatpush1.msra.mxu0 0.0
        %4689 = vmatprep.subr.mxu0 0.0
        %4690 = vmatpush1.msra.mxu0 0.0
        %4691 = vmatprep.subr.mxu0 0.0
        %4692 = vmatpush1.msra.mxu0 0.0
        %4693 = vmatprep.subr.mxu0 0.0
        %4694 = vmatpush1.msra.mxu0 0.0
        %4695 = vmatprep.subr.mxu0 0.0
        %4696 = vmatpush1.msra.mxu0 0.0
        %4697 = vmatprep.subr.mxu0 0.0
        %4698 = vmatpush1.msra.mxu0 0.0
        %4699 = vmatprep.subr.mxu0 0.0
        %4700 = vmatpush1.msra.mxu0 0.0
        %4701 = vmatprep.subr.mxu0 0.0
        %4702 = vmatpush1.msra.mxu0 0.0
        %4703 = vmatprep.subr.mxu0 0.0
        %4704 = vmatpush1.msra.mxu0 0.0
        %4705 = vmatprep.subr.mxu0 0.0
        %4706 = vmatpush1.msra.mxu0 0.0
        %4707 = vmatprep.subr.mxu0 0.0
        %4708 = vmatpush1.msra.mxu0 0.0
        %4709 = vmatprep.subr.mxu0 0.0
        %4710 = vmatpush1.msra.mxu0 0.0
        %4711 = vmatprep.subr.mxu0 0.0
        %4712 = vmatpush1.msra.mxu0 0.0
        %4713 = vmatprep.subr.mxu0 0.0
        %4714 = vmatpush1.msra.mxu0 0.0
        %4715 = vmatprep.subr.mxu0 0.0
        %4716 = vmatpush1.msra.mxu0 0.0
        %4717 = vmatprep.subr.mxu0 0.0
        %4718 = vmatpush1.msra.mxu0 0.0
        %4719 = vmatprep.subr.mxu0 0.0
        %4720 = vmatpush1.msra.mxu0 0.0
        %4721 = vmatprep.subr.mxu0 0.0
        %4722 = vmatpush1.msra.mxu0 0.0
        %4723 = vmatprep.subr.mxu0 0.0
        %4724 = vmatpush1.msra.mxu0 0.0
        %4725 = vmatprep.subr.mxu0 0.0
        %4726 = vmatpush1.msra.mxu0 0.0
        %4727 = vmatprep.subr.mxu0 0.0
        %4728 = vmatpush1.msra.mxu0 0.0
        %4729 = vmatprep.subr.mxu0 0.0
        %4730 = vmatpush1.msra.mxu0 0.0
        %4731 = vmatprep.subr.mxu0 0.0
        %4732 = vmatpush1.msra.mxu0 0.0
        %4733 = vmatprep.subr.mxu0 0.0
        %4734 = vmatpush1.msra.mxu0 0.0
        %4735 = vmatprep.subr.mxu0 0.0
        %4736 = vmatpush1.msra.mxu0 0.0
        %4737 = vmatprep.subr.mxu0 0.0
        %4738 = vmatpush1.msra.mxu0 0.0
        %4739 = vmatprep.subr.mxu0 0.0
        %4740 = vmatpush1.msra.mxu0 0.0
        %4741 = vmatprep.mubr.f32.mxu0 0.0
        %4742 = vmatmul.mubr.f32.gmra.mrb[0].mxu0 %v4675
        %v4743 = vpop.f32.mrb[0].mxu0
        %v4744 = vadd.f32 0.0, %v4743
        %v4745 = vpop.f32.mrb[0].mxu0
        %4746 = vdwg.mxu0
        %v4747 = vld [vmem:[#allocation7 + $0x1d0] sm:$0xff]
        %v4748 = vld [vmem:[#allocation7 + $0x1d8] sm:$0xff]
        %v4749 = vld [vmem:[#allocation7 + $0x1e0] sm:$0xff]
        %v4750 = vld [vmem:[#allocation7 + $0x1e8] sm:$0xff]
        %v4752 = vsel %vm465, %v4598, 0
        %4754 = vmatprep.subr.mxu0 0.0
        %4755 = vmatpush1.msra.mxu0 %v4748
        %4756 = vmatprep.subr.mxu0 0.0
        %4757 = vmatpush1.msra.mxu0 0.0
        %4758 = vmatprep.subr.mxu0 0.0
        %4759 = vmatpush1.msra.mxu0 0.0
        %4760 = vmatprep.subr.mxu0 0.0
        %4761 = vmatpush1.msra.mxu0 0.0
        %4762 = vmatprep.subr.mxu0 0.0
        %4763 = vmatpush1.msra.mxu0 0.0
        %4764 = vmatprep.subr.mxu0 0.0
        %4765 = vmatpush1.msra.mxu0 0.0
        %4766 = vmatprep.subr.mxu0 0.0
        %4767 = vmatpush1.msra.mxu0 0.0
        %4768 = vmatprep.subr.mxu0 0.0
        %4769 = vmatpush1.msra.mxu0 0.0
        %4770 = vmatprep.subr.mxu0 0.0
        %4771 = vmatpush1.msra.mxu0 0.0
        %4772 = vmatprep.subr.mxu0 0.0
        %4773 = vmatpush1.msra.mxu0 0.0
        %4774 = vmatprep.subr.mxu0 0.0
        %4775 = vmatpush1.msra.mxu0 0.0
        %4776 = vmatprep.subr.mxu0 0.0
        %4777 = vmatpush1.msra.mxu0 0.0
        %4778 = vmatprep.subr.mxu0 0.0
        %4779 = vmatpush1.msra.mxu0 0.0
        %4780 = vmatprep.subr.mxu0 0.0
        %4781 = vmatpush1.msra.mxu0 0.0
        %4782 = vmatprep.subr.mxu0 0.0
        %4783 = vmatpush1.msra.mxu0 0.0
        %4784 = vmatprep.subr.mxu0 0.0
        %4785 = vmatpush1.msra.mxu0 0.0
        %4786 = vmatprep.subr.mxu0 0.0
        %4787 = vmatpush1.msra.mxu0 0.0
        %4788 = vmatprep.subr.mxu0 0.0
        %4789 = vmatpush1.msra.mxu0 0.0
        %4790 = vmatprep.subr.mxu0 0.0
        %4791 = vmatpush1.msra.mxu0 0.0
        %4792 = vmatprep.subr.mxu0 0.0
        %4793 = vmatpush1.msra.mxu0 0.0
        %4794 = vmatprep.subr.mxu0 0.0
        %4795 = vmatpush1.msra.mxu0 0.0
        %4796 = vmatprep.subr.mxu0 0.0
        %4797 = vmatpush1.msra.mxu0 0.0
        %4798 = vmatprep.subr.mxu0 0.0
        %4799 = vmatpush1.msra.mxu0 0.0
        %4800 = vmatprep.subr.mxu0 0.0
        %4801 = vmatpush1.msra.mxu0 0.0
        %4802 = vmatprep.subr.mxu0 0.0
        %4803 = vmatpush1.msra.mxu0 0.0
        %4804 = vmatprep.subr.mxu0 0.0
        %4805 = vmatpush1.msra.mxu0 0.0
        %4806 = vmatprep.subr.mxu0 0.0
        %4807 = vmatpush1.msra.mxu0 0.0
        %4808 = vmatprep.subr.mxu0 0.0
        %4809 = vmatpush1.msra.mxu0 0.0
        %4810 = vmatprep.subr.mxu0 0.0
        %4811 = vmatpush1.msra.mxu0 0.0
        %4812 = vmatprep.subr.mxu0 0.0
        %4813 = vmatpush1.msra.mxu0 0.0
        %4814 = vmatprep.subr.mxu0 0.0
        %4815 = vmatpush1.msra.mxu0 0.0
        %4816 = vmatprep.subr.mxu0 0.0
        %4817 = vmatpush1.msra.mxu0 0.0
        %4818 = vmatprep.mubr.f32.mxu0 0.0
        %4819 = vmatmul.mubr.f32.gmra.mrb[0].mxu0 %v4752
        %v4820 = vpop.f32.mrb[0].mxu0
        %v4821 = vadd.f32 0.0, %v4820
        %v4822 = vpop.f32.mrb[0].mxu0
        %4823 = vdwg.mxu0
        %v4825 = vsel %vm465, %v4525, 0
        %4827 = vmatprep.subr.mxu0 0.0
        %4828 = vmatpush1.msra.mxu0 %v4747
        %4829 = vmatprep.subr.mxu0 0.0
        %4830 = vmatpush1.msra.mxu0 0.0
        %4831 = vmatprep.subr.mxu0 0.0
        %4832 = vmatpush1.msra.mxu0 0.0
        %4833 = vmatprep.subr.mxu0 0.0
        %4834 = vmatpush1.msra.mxu0 0.0
        %4835 = vmatprep.subr.mxu0 0.0
        %4836 = vmatpush1.msra.mxu0 0.0
        %4837 = vmatprep.subr.mxu0 0.0
        %4838 = vmatpush1.msra.mxu0 0.0
        %4839 = vmatprep.subr.mxu0 0.0
        %4840 = vmatpush1.msra.mxu0 0.0
        %4841 = vmatprep.subr.mxu0 0.0
        %4842 = vmatpush1.msra.mxu0 0.0
        %4843 = vmatprep.subr.mxu0 0.0
        %4844 = vmatpush1.msra.mxu0 0.0
        %4845 = vmatprep.subr.mxu0 0.0
        %4846 = vmatpush1.msra.mxu0 0.0
        %4847 = vmatprep.subr.mxu0 0.0
        %4848 = vmatpush1.msra.mxu0 0.0
        %4849 = vmatprep.subr.mxu0 0.0
        %4850 = vmatpush1.msra.mxu0 0.0
        %4851 = vmatprep.subr.mxu0 0.0
        %4852 = vmatpush1.msra.mxu0 0.0
        %4853 = vmatprep.subr.mxu0 0.0
        %4854 = vmatpush1.msra.mxu0 0.0
        %4855 = vmatprep.subr.mxu0 0.0
        %4856 = vmatpush1.msra.mxu0 0.0
        %4857 = vmatprep.subr.mxu0 0.0
        %4858 = vmatpush1.msra.mxu0 0.0
        %4859 = vmatprep.subr.mxu0 0.0
        %4860 = vmatpush1.msra.mxu0 0.0
        %4861 = vmatprep.subr.mxu0 0.0
        %4862 = vmatpush1.msra.mxu0 0.0
        %4863 = vmatprep.subr.mxu0 0.0
        %4864 = vmatpush1.msra.mxu0 0.0
        %4865 = vmatprep.subr.mxu0 0.0
        %4866 = vmatpush1.msra.mxu0 0.0
        %4867 = vmatprep.subr.mxu0 0.0
        %4868 = vmatpush1.msra.mxu0 0.0
        %4869 = vmatprep.subr.mxu0 0.0
        %4870 = vmatpush1.msra.mxu0 0.0
        %4871 = vmatprep.subr.mxu0 0.0
        %4872 = vmatpush1.msra.mxu0 0.0
        %4873 = vmatprep.subr.mxu0 0.0
        %4874 = vmatpush1.msra.mxu0 0.0
        %4875 = vmatprep.subr.mxu0 0.0
        %4876 = vmatpush1.msra.mxu0 0.0
        %4877 = vmatprep.subr.mxu0 0.0
        %4878 = vmatpush1.msra.mxu0 0.0
        %4879 = vmatprep.subr.mxu0 0.0
        %4880 = vmatpush1.msra.mxu0 0.0
        %4881 = vmatprep.subr.mxu0 0.0
        %4882 = vmatpush1.msra.mxu0 0.0
        %4883 = vmatprep.subr.mxu0 0.0
        %4884 = vmatpush1.msra.mxu0 0.0
        %4885 = vmatprep.subr.mxu0 0.0
        %4886 = vmatpush1.msra.mxu0 0.0
        %4887 = vmatprep.subr.mxu0 0.0
        %4888 = vmatpush1.msra.mxu0 0.0
        %4889 = vmatprep.subr.mxu0 0.0
        %4890 = vmatpush1.msra.mxu0 0.0
        %4891 = vmatprep.mubr.f32.mxu0 0.0
        %4892 = vmatmul.mubr.f32.gmra.mrb[0].mxu0 %v4825
        %v4893 = vpop.f32.mrb[0].mxu0
        %v4894 = vadd.f32 %v4821, %v4893
        %v4895 = vpop.f32.mrb[0].mxu0
        %4896 = vdwg.mxu0
        %v4898 = vsel %vm465, %v4671, 0
        %4900 = vmatprep.subr.mxu0 0.0
        %4901 = vmatpush1.msra.mxu0 %v4749
        %4902 = vmatprep.subr.mxu0 0.0
        %4903 = vmatpush1.msra.mxu0 0.0
        %4904 = vmatprep.subr.mxu0 0.0
        %4905 = vmatpush1.msra.mxu0 0.0
        %4906 = vmatprep.subr.mxu0 0.0
        %4907 = vmatpush1.msra.mxu0 0.0
        %4908 = vmatprep.subr.mxu0 0.0
        %4909 = vmatpush1.msra.mxu0 0.0
        %4910 = vmatprep.subr.mxu0 0.0
        %4911 = vmatpush1.msra.mxu0 0.0
        %4912 = vmatprep.subr.mxu0 0.0
        %4913 = vmatpush1.msra.mxu0 0.0
        %4914 = vmatprep.subr.mxu0 0.0
        %4915 = vmatpush1.msra.mxu0 0.0
        %4916 = vmatprep.subr.mxu0 0.0
        %4917 = vmatpush1.msra.mxu0 0.0
        %4918 = vmatprep.subr.mxu0 0.0
        %4919 = vmatpush1.msra.mxu0 0.0
        %4920 = vmatprep.subr.mxu0 0.0
        %4921 = vmatpush1.msra.mxu0 0.0
        %4922 = vmatprep.subr.mxu0 0.0
        %4923 = vmatpush1.msra.mxu0 0.0
        %4924 = vmatprep.subr.mxu0 0.0
        %4925 = vmatpush1.msra.mxu0 0.0
        %4926 = vmatprep.subr.mxu0 0.0
        %4927 = vmatpush1.msra.mxu0 0.0
        %4928 = vmatprep.subr.mxu0 0.0
        %4929 = vmatpush1.msra.mxu0 0.0
        %4930 = vmatprep.subr.mxu0 0.0
        %4931 = vmatpush1.msra.mxu0 0.0
        %4932 = vmatprep.subr.mxu0 0.0
        %4933 = vmatpush1.msra.mxu0 0.0
        %4934 = vmatprep.subr.mxu0 0.0
        %4935 = vmatpush1.msra.mxu0 0.0
        %4936 = vmatprep.subr.mxu0 0.0
        %4937 = vmatpush1.msra.mxu0 0.0
        %4938 = vmatprep.subr.mxu0 0.0
        %4939 = vmatpush1.msra.mxu0 0.0
        %4940 = vmatprep.subr.mxu0 0.0
        %4941 = vmatpush1.msra.mxu0 0.0
        %4942 = vmatprep.subr.mxu0 0.0
        %4943 = vmatpush1.msra.mxu0 0.0
        %4944 = vmatprep.subr.mxu0 0.0
        %4945 = vmatpush1.msra.mxu0 0.0
        %4946 = vmatprep.subr.mxu0 0.0
        %4947 = vmatpush1.msra.mxu0 0.0
        %4948 = vmatprep.subr.mxu0 0.0
        %4949 = vmatpush1.msra.mxu0 0.0
        %4950 = vmatprep.subr.mxu0 0.0
        %4951 = vmatpush1.msra.mxu0 0.0
        %4952 = vmatprep.subr.mxu0 0.0
        %4953 = vmatpush1.msra.mxu0 0.0
        %4954 = vmatprep.subr.mxu0 0.0
        %4955 = vmatpush1.msra.mxu0 0.0
        %4956 = vmatprep.subr.mxu0 0.0
        %4957 = vmatpush1.msra.mxu0 0.0
        %4958 = vmatprep.subr.mxu0 0.0
        %4959 = vmatpush1.msra.mxu0 0.0
        %4960 = vmatprep.subr.mxu0 0.0
        %4961 = vmatpush1.msra.mxu0 0.0
        %4962 = vmatprep.subr.mxu0 0.0
        %4963 = vmatpush1.msra.mxu0 0.0
        %4964 = vmatprep.mubr.f32.mxu0 0.0
        %4965 = vmatmul.mubr.f32.gmra.mrb[0].mxu0 %v4898
        %v4966 = vpop.f32.mrb[0].mxu0
        %v4967 = vadd.f32 0.0, %v4966
        %v4968 = vpop.f32.mrb[0].mxu0
        %4969 = vdwg.mxu0
        %v4970 = vadd.f32 %v4894, %v4967
        %v4972 = vsel %vm465, %v4744, 0
        %4974 = vmatprep.subr.mxu0 0.0
        %4975 = vmatpush1.msra.mxu0 %v4750
        %4976 = vmatprep.subr.mxu0 0.0
        %4977 = vmatpush1.msra.mxu0 0.0
        %4978 = vmatprep.subr.mxu0 0.0
        %4979 = vmatpush1.msra.mxu0 0.0
        %4980 = vmatprep.subr.mxu0 0.0
        %4981 = vmatpush1.msra.mxu0 0.0
        %4982 = vmatprep.subr.mxu0 0.0
        %4983 = vmatpush1.msra.mxu0 0.0
        %4984 = vmatprep.subr.mxu0 0.0
        %4985 = vmatpush1.msra.mxu0 0.0
        %4986 = vmatprep.subr.mxu0 0.0
        %4987 = vmatpush1.msra.mxu0 0.0
        %4988 = vmatprep.subr.mxu0 0.0
        %4989 = vmatpush1.msra.mxu0 0.0
        %4990 = vmatprep.subr.mxu0 0.0
        %4991 = vmatpush1.msra.mxu0 0.0
        %4992 = vmatprep.subr.mxu0 0.0
        %4993 = vmatpush1.msra.mxu0 0.0
        %4994 = vmatprep.subr.mxu0 0.0
        %4995 = vmatpush1.msra.mxu0 0.0
        %4996 = vmatprep.subr.mxu0 0.0
        %4997 = vmatpush1.msra.mxu0 0.0
        %4998 = vmatprep.subr.mxu0 0.0
        %4999 = vmatpush1.msra.mxu0 0.0
        %5000 = vmatprep.subr.mxu0 0.0
        %5001 = vmatpush1.msra.mxu0 0.0
        %5002 = vmatprep.subr.mxu0 0.0
        %5003 = vmatpush1.msra.mxu0 0.0
        %5004 = vmatprep.subr.mxu0 0.0
        %5005 = vmatpush1.msra.mxu0 0.0
        %5006 = vmatprep.subr.mxu0 0.0
        %5007 = vmatpush1.msra.mxu0 0.0
        %5008 = vmatprep.subr.mxu0 0.0
        %5009 = vmatpush1.msra.mxu0 0.0
        %5010 = vmatprep.subr.mxu0 0.0
        %5011 = vmatpush1.msra.mxu0 0.0
        %5012 = vmatprep.subr.mxu0 0.0
        %5013 = vmatpush1.msra.mxu0 0.0
        %5014 = vmatprep.subr.mxu0 0.0
        %5015 = vmatpush1.msra.mxu0 0.0
        %5016 = vmatprep.subr.mxu0 0.0
        %5017 = vmatpush1.msra.mxu0 0.0
        %5018 = vmatprep.subr.mxu0 0.0
        %5019 = vmatpush1.msra.mxu0 0.0
        %5020 = vmatprep.subr.mxu0 0.0
        %5021 = vmatpush1.msra.mxu0 0.0
        %5022 = vmatprep.subr.mxu0 0.0
        %5023 = vmatpush1.msra.mxu0 0.0
        %5024 = vmatprep.subr.mxu0 0.0
        %5025 = vmatpush1.msra.mxu0 0.0
        %5026 = vmatprep.subr.mxu0 0.0
        %5027 = vmatpush1.msra.mxu0 0.0
        %5028 = vmatprep.subr.mxu0 0.0
        %5029 = vmatpush1.msra.mxu0 0.0
        %5030 = vmatprep.subr.mxu0 0.0
        %5031 = vmatpush1.msra.mxu0 0.0
        %5032 = vmatprep.subr.mxu0 0.0
        %5033 = vmatpush1.msra.mxu0 0.0
        %5034 = vmatprep.subr.mxu0 0.0
        %5035 = vmatpush1.msra.mxu0 0.0
        %5036 = vmatprep.subr.mxu0 0.0
        %5037 = vmatpush1.msra.mxu0 0.0
        %5038 = vmatprep.mubr.f32.mxu0 0.0
        %5039 = vmatmul.mubr.f32.gmra.mrb[0].mxu0 %v4972
        %v5040 = vpop.f32.mrb[0].mxu0
        %v5041 = vadd.f32 0.0, %v5040
        %v5042 = vpop.f32.mrb[0].mxu0
        %5043 = vdwg.mxu0
        %v5044 = vadd.f32 %v4970, %v5041
        %v5045 = vld [vmem:[#allocation8 + $0x15] sm:$0x1]
        %v5046 = vlaneseq
        %v5047 = vshrl.u32 %v5046, 7
        %v5048 = vsub.s32 0, %v5047
        %v5049 = vrot.slane %v5045, %v5048
        %v5050 = vadd.f32 %v5044, %v5049
        %v5051 = vadd.f32 %v5050, %v3937
        %v5052 = vsel %vm381, %v5051, 0.0
        %5053 = vadd.xlane.f32.xlu0 %v5052
        %v5054 = vpop.xlane.xlu0 %5053
        %v5055 = vmul.f32 %v5054, %v1412
        %v5056 = vsub.f32 %v5051, %v5055
        %v5057 = vmul.f32 %v5056, %v5056
        %v5058 = vsel %vm381, %v5057, 0.0
        %5059 = vadd.xlane.f32.xlu0 %v5058
        %v5060 = vpop.xlane.xlu0 %5059
        %v5061 = vmul.f32 %v5060, %v1412
        %v5062 = vadd.f32 %v5061, 1e-05
        %v5063 = vrsqrt.pop %v5062
        %v5064 = vmul.f32 %v5056, %v5063
        %v5065 = vld [vmem:[#allocation8 + $0x1a] sm:$0x1]
        %v5066 = vlaneseq
        %v5067 = vshrl.u32 %v5066, 7
        %v5068 = vsub.s32 0, %v5067
        %v5069 = vrot.slane %v5065, %v5068
        %v5070 = vmul.f32 %v5064, %v5069
        %v5071 = vld [vmem:[#allocation8 + $0x1b] sm:$0x1]
        %v5072 = vlaneseq
        %v5073 = vshrl.u32 %v5072, 7
        %v5074 = vsub.s32 0, %v5073
        %v5075 = vrot.slane %v5071, %v5074
        %v5076 = vadd.f32 %v5070, %v5075
        %v5077 = vld [vmem:[#allocation7 + $0x1f0] sm:$0xff]
        %v5078 = vld [vmem:[#allocation7 + $0x1f8] sm:$0xff]
        %v5079 = vld [vmem:[#allocation7 + $0x200] sm:$0xff]
        %v5080 = vld [vmem:[#allocation7 + $0x208] sm:$0xff]
        %v5081 = vld [vmem:[#allocation8 + $0x16] sm:$0x1]
        %v5082 = vlaneseq
        %v5083 = vshrl.u32 %v5082, 7
        %v5084 = vsub.s32 0, %v5083
        %v5085 = vrot.slane %v5081, %v5084
        %v5087 = vsel %vm381, %v5076, 0
        %5089 = vmatprep.subr.mxu0 0.0
        %5090 = vmatpush1.msra.mxu0 %v5077
        %5091 = vmatprep.subr.mxu0 0.0
        %5092 = vmatpush1.msra.mxu0 %v5078
        %5093 = vmatprep.subr.mxu0 0.0
        %5094 = vmatpush1.msra.mxu0 %v5079
        %5095 = vmatprep.subr.mxu0 0.0
        %5096 = vmatpush1.msra.mxu0 %v5080
        %5097 = vmatprep.subr.mxu0 0.0
        %5098 = vmatpush1.msra.mxu0 0.0
        %5099 = vmatprep.subr.mxu0 0.0
        %5100 = vmatpush1.msra.mxu0 0.0
        %5101 = vmatprep.subr.mxu0 0.0
        %5102 = vmatpush1.msra.mxu0 0.0
        %5103 = vmatprep.subr.mxu0 0.0
        %5104 = vmatpush1.msra.mxu0 0.0
        %5105 = vmatprep.subr.mxu0 0.0
        %5106 = vmatpush1.msra.mxu0 0.0
        %5107 = vmatprep.subr.mxu0 0.0
        %5108 = vmatpush1.msra.mxu0 0.0
        %5109 = vmatprep.subr.mxu0 0.0
        %5110 = vmatpush1.msra.mxu0 0.0
        %5111 = vmatprep.subr.mxu0 0.0
        %5112 = vmatpush1.msra.mxu0 0.0
        %5113 = vmatprep.subr.mxu0 0.0
        %5114 = vmatpush1.msra.mxu0 0.0
        %5115 = vmatprep.subr.mxu0 0.0
        %5116 = vmatpush1.msra.mxu0 0.0
        %5117 = vmatprep.subr.mxu0 0.0
        %5118 = vmatpush1.msra.mxu0 0.0
        %5119 = vmatprep.subr.mxu0 0.0
        %5120 = vmatpush1.msra.mxu0 0.0
        %5121 = vmatprep.subr.mxu0 0.0
        %5122 = vmatpush1.msra.mxu0 0.0
        %5123 = vmatprep.subr.mxu0 0.0
        %5124 = vmatpush1.msra.mxu0 0.0
        %5125 = vmatprep.subr.mxu0 0.0
        %5126 = vmatpush1.msra.mxu0 0.0
        %5127 = vmatprep.subr.mxu0 0.0
        %5128 = vmatpush1.msra.mxu0 0.0
        %5129 = vmatprep.subr.mxu0 0.0
        %5130 = vmatpush1.msra.mxu0 0.0
        %5131 = vmatprep.subr.mxu0 0.0
        %5132 = vmatpush1.msra.mxu0 0.0
        %5133 = vmatprep.subr.mxu0 0.0
        %5134 = vmatpush1.msra.mxu0 0.0
        %5135 = vmatprep.subr.mxu0 0.0
        %5136 = vmatpush1.msra.mxu0 0.0
        %5137 = vmatprep.subr.mxu0 0.0
        %5138 = vmatpush1.msra.mxu0 0.0
        %5139 = vmatprep.subr.mxu0 0.0
        %5140 = vmatpush1.msra.mxu0 0.0
        %5141 = vmatprep.subr.mxu0 0.0
        %5142 = vmatpush1.msra.mxu0 0.0
        %5143 = vmatprep.subr.mxu0 0.0
        %5144 = vmatpush1.msra.mxu0 0.0
        %5145 = vmatprep.subr.mxu0 0.0
        %5146 = vmatpush1.msra.mxu0 0.0
        %5147 = vmatprep.subr.mxu0 0.0
        %5148 = vmatpush1.msra.mxu0 0.0
        %5149 = vmatprep.subr.mxu0 0.0
        %5150 = vmatpush1.msra.mxu0 0.0
        %5151 = vmatprep.subr.mxu0 0.0
        %5152 = vmatpush1.msra.mxu0 0.0
        %5153 = vmatprep.mubr.f32.mxu0 0.0
        %5154 = vmatmul.mubr.f32.gmra.mrb[0].mxu0 %v5087
        %v5155 = vpop.f32.mrb[0].mxu0
        %v5156 = vadd.f32 %v5085, %v5155
        %v5157 = vpop.f32.mrb[0].mxu0
        %5158 = vdwg.mxu0
        %v5159 = vmax.f32 %v5156, 0.0
        %v5160 = vld [vmem:[#allocation7 + $0x210] sm:$0xff]
        %v5161 = vld [vmem:[#allocation7 + $0x218] sm:$0xff]
        %v5162 = vld [vmem:[#allocation7 + $0x220] sm:$0xff]
        %v5163 = vld [vmem:[#allocation7 + $0x228] sm:$0xff]
        %v5164 = vld [vmem:[#allocation7 + $0x230] sm:$0xff]
        %v5165 = vld [vmem:[#allocation7 + $0x238] sm:$0xff]
        %v5166 = vld [vmem:[#allocation7 + $0x240] sm:$0xff]
        %v5167 = vld [vmem:[#allocation7 + $0x248] sm:$0xff]
        %v5168 = vld [vmem:[#allocation8 + $0x17] sm:$0x1]
        %v5169 = vlaneseq
        %v5170 = vshrl.u32 %v5169, 7
        %v5171 = vsub.s32 0, %v5170
        %v5172 = vrot.slane %v5168, %v5171
        %v5174 = vsel %vm1531, %v5159, 0
        %5176 = vmatprep.subr.mxu0 0.0
        %5177 = vmatpush1.msra.mxu0 %v5160
        %5178 = vmatprep.subr.mxu0 0.0
        %5179 = vmatpush1.msra.mxu0 %v5161
        %5180 = vmatprep.subr.mxu0 0.0
        %5181 = vmatpush1.msra.mxu0 %v5162
        %5182 = vmatprep.subr.mxu0 0.0
        %5183 = vmatpush1.msra.mxu0 %v5163
        %5184 = vmatprep.subr.mxu0 0.0
        %5185 = vmatpush1.msra.mxu0 %v5164
        %5186 = vmatprep.subr.mxu0 0.0
        %5187 = vmatpush1.msra.mxu0 %v5165
        %5188 = vmatprep.subr.mxu0 0.0
        %5189 = vmatpush1.msra.mxu0 %v5166
        %5190 = vmatprep.subr.mxu0 0.0
        %5191 = vmatpush1.msra.mxu0 %v5167
        %5192 = vmatprep.subr.mxu0 0.0
        %5193 = vmatpush1.msra.mxu0 0.0
        %5194 = vmatprep.subr.mxu0 0.0
        %5195 = vmatpush1.msra.mxu0 0.0
        %5196 = vmatprep.subr.mxu0 0.0
        %5197 = vmatpush1.msra.mxu0 0.0
        %5198 = vmatprep.subr.mxu0 0.0
        %5199 = vmatpush1.msra.mxu0 0.0
        %5200 = vmatprep.subr.mxu0 0.0
        %5201 = vmatpush1.msra.mxu0 0.0
        %5202 = vmatprep.subr.mxu0 0.0
        %5203 = vmatpush1.msra.mxu0 0.0
        %5204 = vmatprep.subr.mxu0 0.0
        %5205 = vmatpush1.msra.mxu0 0.0
        %5206 = vmatprep.subr.mxu0 0.0
        %5207 = vmatpush1.msra.mxu0 0.0
        %5208 = vmatprep.subr.mxu0 0.0
        %5209 = vmatpush1.msra.mxu0 0.0
        %5210 = vmatprep.subr.mxu0 0.0
        %5211 = vmatpush1.msra.mxu0 0.0
        %5212 = vmatprep.subr.mxu0 0.0
        %5213 = vmatpush1.msra.mxu0 0.0
        %5214 = vmatprep.subr.mxu0 0.0
        %5215 = vmatpush1.msra.mxu0 0.0
        %5216 = vmatprep.subr.mxu0 0.0
        %5217 = vmatpush1.msra.mxu0 0.0
        %5218 = vmatprep.subr.mxu0 0.0
        %5219 = vmatpush1.msra.mxu0 0.0
        %5220 = vmatprep.subr.mxu0 0.0
        %5221 = vmatpush1.msra.mxu0 0.0
        %5222 = vmatprep.subr.mxu0 0.0
        %5223 = vmatpush1.msra.mxu0 0.0
        %5224 = vmatprep.subr.mxu0 0.0
        %5225 = vmatpush1.msra.mxu0 0.0
        %5226 = vmatprep.subr.mxu0 0.0
        %5227 = vmatpush1.msra.mxu0 0.0
        %5228 = vmatprep.subr.mxu0 0.0
        %5229 = vmatpush1.msra.mxu0 0.0
        %5230 = vmatprep.subr.mxu0 0.0
        %5231 = vmatpush1.msra.mxu0 0.0
        %5232 = vmatprep.subr.mxu0 0.0
        %5233 = vmatpush1.msra.mxu0 0.0
        %5234 = vmatprep.subr.mxu0 0.0
        %5235 = vmatpush1.msra.mxu0 0.0
        %5236 = vmatprep.subr.mxu0 0.0
        %5237 = vmatpush1.msra.mxu0 0.0
        %5238 = vmatprep.subr.mxu0 0.0
        %5239 = vmatpush1.msra.mxu0 0.0
        %5240 = vmatprep.mubr.f32.mxu0 0.0
        %5241 = vmatmul.mubr.f32.gmra.mrb[0].mxu0 %v5174
        %v5242 = vpop.f32.mrb[0].mxu0
        %v5243 = vadd.f32 %v5172, %v5242
        %v5244 = vpop.f32.mrb[0].mxu0
        %5245 = vdwg.mxu0
        %v5246 = vadd.f32 %v5243, %v5076
        %v5247 = vsel %vm381, %v5246, 0.0
        %5248 = vadd.xlane.f32.xlu0 %v5247
        %v5249 = vpop.xlane.xlu0 %5248
        %v5250 = vmul.f32 %v5249, %v1412
        %v5251 = vsub.f32 %v5246, %v5250
        %v5252 = vmul.f32 %v5251, %v5251
        %v5253 = vsel %vm381, %v5252, 0.0
        %5254 = vadd.xlane.f32.xlu0 %v5253
        %v5255 = vpop.xlane.xlu0 %5254
        %v5256 = vmul.f32 %v5255, %v1412
        %v5257 = vadd.f32 %v5256, 1e-05
        %v5258 = vrsqrt.pop %v5257
        %v5259 = vmul.f32 %v5251, %v5258
        %v5260 = vld [vmem:[#allocation8 + $0x1c] sm:$0x1]
        %v5261 = vlaneseq
        %v5262 = vshrl.u32 %v5261, 7
        %v5263 = vsub.s32 0, %v5262
        %v5264 = vrot.slane %v5260, %v5263
        %v5265 = vmul.f32 %v5259, %v5264
        %v5266 = vld [vmem:[#allocation8 + $0x1d] sm:$0x1]
        %v5267 = vlaneseq
        %v5268 = vshrl.u32 %v5267, 7
        %v5269 = vsub.s32 0, %v5268
        %v5270 = vrot.slane %v5266, %v5269
        %v5271 = vadd.f32 %v5265, %v5270
        %v5272 = vld [vmem:[#allocation7 + $0x250] sm:$0xff]
        %v5273 = vld [vmem:[#allocation7 + $0x258] sm:$0xff]
        %v5274 = vld [vmem:[#allocation7 + $0x260] sm:$0xff]
        %v5275 = vld [vmem:[#allocation7 + $0x268] sm:$0xff]
        %v5276 = vld [vmem:[#allocation8 + $0x1e] sm:$0x1]
        %v5277 = vlaneseq
        %v5278 = vshrl.u32 %v5277, 7
        %v5279 = vsub.s32 0, %v5278
        %v5280 = vrot.slane %v5276, %v5279
        %v5282 = vsel %vm381, %v5271, 0
        %5284 = vmatprep.subr.mxu0 0.0
        %5285 = vmatpush1.msra.mxu0 %v5272
        %5286 = vmatprep.subr.mxu0 0.0
        %5287 = vmatpush1.msra.mxu0 %v5273
        %5288 = vmatprep.subr.mxu0 0.0
        %5289 = vmatpush1.msra.mxu0 %v5274
        %5290 = vmatprep.subr.mxu0 0.0
        %5291 = vmatpush1.msra.mxu0 %v5275
        %5292 = vmatprep.subr.mxu0 0.0
        %5293 = vmatpush1.msra.mxu0 0.0
        %5294 = vmatprep.subr.mxu0 0.0
        %5295 = vmatpush1.msra.mxu0 0.0
        %5296 = vmatprep.subr.mxu0 0.0
        %5297 = vmatpush1.msra.mxu0 0.0
        %5298 = vmatprep.subr.mxu0 0.0
        %5299 = vmatpush1.msra.mxu0 0.0
        %5300 = vmatprep.subr.mxu0 0.0
        %5301 = vmatpush1.msra.mxu0 0.0
        %5302 = vmatprep.subr.mxu0 0.0
        %5303 = vmatpush1.msra.mxu0 0.0
        %5304 = vmatprep.subr.mxu0 0.0
        %5305 = vmatpush1.msra.mxu0 0.0
        %5306 = vmatprep.subr.mxu0 0.0
        %5307 = vmatpush1.msra.mxu0 0.0
        %5308 = vmatprep.subr.mxu0 0.0
        %5309 = vmatpush1.msra.mxu0 0.0
        %5310 = vmatprep.subr.mxu0 0.0
        %5311 = vmatpush1.msra.mxu0 0.0
        %5312 = vmatprep.subr.mxu0 0.0
        %5313 = vmatpush1.msra.mxu0 0.0
        %5314 = vmatprep.subr.mxu0 0.0
        %5315 = vmatpush1.msra.mxu0 0.0
        %5316 = vmatprep.subr.mxu0 0.0
        %5317 = vmatpush1.msra.mxu0 0.0
        %5318 = vmatprep.subr.mxu0 0.0
        %5319 = vmatpush1.msra.mxu0 0.0
        %5320 = vmatprep.subr.mxu0 0.0
        %5321 = vmatpush1.msra.mxu0 0.0
        %5322 = vmatprep.subr.mxu0 0.0
        %5323 = vmatpush1.msra.mxu0 0.0
        %5324 = vmatprep.subr.mxu0 0.0
        %5325 = vmatpush1.msra.mxu0 0.0
        %5326 = vmatprep.subr.mxu0 0.0
        %5327 = vmatpush1.msra.mxu0 0.0
        %5328 = vmatprep.subr.mxu0 0.0
        %5329 = vmatpush1.msra.mxu0 0.0
        %5330 = vmatprep.subr.mxu0 0.0
        %5331 = vmatpush1.msra.mxu0 0.0
        %5332 = vmatprep.subr.mxu0 0.0
        %5333 = vmatpush1.msra.mxu0 0.0
        %5334 = vmatprep.subr.mxu0 0.0
        %5335 = vmatpush1.msra.mxu0 0.0
        %5336 = vmatprep.subr.mxu0 0.0
        %5337 = vmatpush1.msra.mxu0 0.0
        %5338 = vmatprep.subr.mxu0 0.0
        %5339 = vmatpush1.msra.mxu0 0.0
        %5340 = vmatprep.subr.mxu0 0.0
        %5341 = vmatpush1.msra.mxu0 0.0
        %5342 = vmatprep.subr.mxu0 0.0
        %5343 = vmatpush1.msra.mxu0 0.0
        %5344 = vmatprep.subr.mxu0 0.0
        %5345 = vmatpush1.msra.mxu0 0.0
        %5346 = vmatprep.subr.mxu0 0.0
        %5347 = vmatpush1.msra.mxu0 0.0
        %5348 = vmatprep.mubr.f32.mxu0 0.0
        %5349 = vmatmul.mubr.f32.gmra.mrb[0].mxu0 %v5282
        %v5350 = vpop.f32.mrb[0].mxu0
        %v5351 = vadd.f32 %v5280, %v5350
        %v5352 = vpop.f32.mrb[0].mxu0
        %5353 = vdwg.mxu0
        %5355 = vrot.lane.b32.xlu0 %v5351, 120
        %v5356 = vpop.permute.xlu0 %5355
        %5358 = vrot.lane.b32.xlu0 %v5351, 112
        %v5359 = vpop.permute.xlu0 %5358
        %5361 = vrot.lane.b32.xlu0 %v5351, 104
        %v5362 = vpop.permute.xlu0 %5361
        %v5364 = vsel %vm465, %v5351, 0
        %5366 = vmatprep.subr.mxu0 0.0
        %5367 = vmatpush1.xpose.msra.mxu0 %v5364
        %5368 = vmatprep.subr.mxu0 0.0
        %5369 = vmatpush1.xpose.msra.mxu0 0.0
        %5370 = vmatprep.subr.mxu0 0.0
        %5371 = vmatpush1.xpose.msra.mxu0 0.0
        %5372 = vmatprep.subr.mxu0 0.0
        %5373 = vmatpush1.xpose.msra.mxu0 0.0
        %5374 = vmatprep.subr.mxu0 0.0
        %5375 = vmatpush1.xpose.msra.mxu0 0.0
        %5376 = vmatprep.subr.mxu0 0.0
        %5377 = vmatpush1.xpose.msra.mxu0 0.0
        %5378 = vmatprep.subr.mxu0 0.0
        %5379 = vmatpush1.xpose.msra.mxu0 0.0
        %5380 = vmatprep.subr.mxu0 0.0
        %5381 = vmatpush1.xpose.msra.mxu0 0.0
        %5382 = vmatprep.subr.mxu0 0.0
        %5383 = vmatpush1.xpose.msra.mxu0 0.0
        %5384 = vmatprep.subr.mxu0 0.0
        %5385 = vmatpush1.xpose.msra.mxu0 0.0
        %5386 = vmatprep.subr.mxu0 0.0
        %5387 = vmatpush1.xpose.msra.mxu0 0.0
        %5388 = vmatprep.subr.mxu0 0.0
        %5389 = vmatpush1.xpose.msra.mxu0 0.0
        %5390 = vmatprep.subr.mxu0 0.0
        %5391 = vmatpush1.xpose.msra.mxu0 0.0
        %5392 = vmatprep.subr.mxu0 0.0
        %5393 = vmatpush1.xpose.msra.mxu0 0.0
        %5394 = vmatprep.subr.mxu0 0.0
        %5395 = vmatpush1.xpose.msra.mxu0 0.0
        %5396 = vmatprep.subr.mxu0 0.0
        %5397 = vmatpush1.xpose.msra.mxu0 0.0
        %5398 = vmatprep.subr.mxu0 0.0
        %5399 = vmatpush1.xpose.msra.mxu0 0.0
        %5400 = vmatprep.subr.mxu0 0.0
        %5401 = vmatpush1.xpose.msra.mxu0 0.0
        %5402 = vmatprep.subr.mxu0 0.0
        %5403 = vmatpush1.xpose.msra.mxu0 0.0
        %5404 = vmatprep.subr.mxu0 0.0
        %5405 = vmatpush1.xpose.msra.mxu0 0.0
        %5406 = vmatprep.subr.mxu0 0.0
        %5407 = vmatpush1.xpose.msra.mxu0 0.0
        %5408 = vmatprep.subr.mxu0 0.0
        %5409 = vmatpush1.xpose.msra.mxu0 0.0
        %5410 = vmatprep.subr.mxu0 0.0
        %5411 = vmatpush1.xpose.msra.mxu0 0.0
        %5412 = vmatprep.subr.mxu0 0.0
        %5413 = vmatpush1.xpose.msra.mxu0 0.0
        %5414 = vmatprep.subr.mxu0 0.0
        %5415 = vmatpush1.xpose.msra.mxu0 0.0
        %5416 = vmatprep.subr.mxu0 0.0
        %5417 = vmatpush1.xpose.msra.mxu0 0.0
        %5418 = vmatprep.subr.mxu0 0.0
        %5419 = vmatpush1.xpose.msra.mxu0 0.0
        %5420 = vmatprep.subr.mxu0 0.0
        %5421 = vmatpush1.xpose.msra.mxu0 0.0
        %5422 = vmatprep.subr.mxu0 0.0
        %5423 = vmatpush1.xpose.msra.mxu0 0.0
        %5424 = vmatprep.subr.mxu0 0.0
        %5425 = vmatpush1.xpose.msra.mxu0 0.0
        %5426 = vmatprep.subr.mxu0 0.0
        %5427 = vmatpush1.xpose.msra.mxu0 0.0
        %5428 = vmatprep.subr.mxu0 0.0
        %5429 = vmatpush1.xpose.msra.mxu0 0.0
        %5430 = vmatprep.mubr.f32.mxu0 0.0
        %5431 = vmatmul.mubr.f32.gmra.mrb[0].mxu0 %v5364
        %v5432 = vpop.f32.mrb[0].mxu0
        %v5433 = vadd.f32 0.0, %v5432
        %v5434 = vpop.f32.mrb[0].mxu0
        %5435 = vdwg.mxu0
        %v5436 = vsel %vm465, %v5356, 0
        %5438 = vmatprep.subr.mxu0 0.0
        %5439 = vmatpush1.xpose.msra.mxu0 %v5436
        %5440 = vmatprep.subr.mxu0 0.0
        %5441 = vmatpush1.xpose.msra.mxu0 0.0
        %5442 = vmatprep.subr.mxu0 0.0
        %5443 = vmatpush1.xpose.msra.mxu0 0.0
        %5444 = vmatprep.subr.mxu0 0.0
        %5445 = vmatpush1.xpose.msra.mxu0 0.0
        %5446 = vmatprep.subr.mxu0 0.0
        %5447 = vmatpush1.xpose.msra.mxu0 0.0
        %5448 = vmatprep.subr.mxu0 0.0
        %5449 = vmatpush1.xpose.msra.mxu0 0.0
        %5450 = vmatprep.subr.mxu0 0.0
        %5451 = vmatpush1.xpose.msra.mxu0 0.0
        %5452 = vmatprep.subr.mxu0 0.0
        %5453 = vmatpush1.xpose.msra.mxu0 0.0
        %5454 = vmatprep.subr.mxu0 0.0
        %5455 = vmatpush1.xpose.msra.mxu0 0.0
        %5456 = vmatprep.subr.mxu0 0.0
        %5457 = vmatpush1.xpose.msra.mxu0 0.0
        %5458 = vmatprep.subr.mxu0 0.0
        %5459 = vmatpush1.xpose.msra.mxu0 0.0
        %5460 = vmatprep.subr.mxu0 0.0
        %5461 = vmatpush1.xpose.msra.mxu0 0.0
        %5462 = vmatprep.subr.mxu0 0.0
        %5463 = vmatpush1.xpose.msra.mxu0 0.0
        %5464 = vmatprep.subr.mxu0 0.0
        %5465 = vmatpush1.xpose.msra.mxu0 0.0
        %5466 = vmatprep.subr.mxu0 0.0
        %5467 = vmatpush1.xpose.msra.mxu0 0.0
        %5468 = vmatprep.subr.mxu0 0.0
        %5469 = vmatpush1.xpose.msra.mxu0 0.0
        %5470 = vmatprep.subr.mxu0 0.0
        %5471 = vmatpush1.xpose.msra.mxu0 0.0
        %5472 = vmatprep.subr.mxu0 0.0
        %5473 = vmatpush1.xpose.msra.mxu0 0.0
        %5474 = vmatprep.subr.mxu0 0.0
        %5475 = vmatpush1.xpose.msra.mxu0 0.0
        %5476 = vmatprep.subr.mxu0 0.0
        %5477 = vmatpush1.xpose.msra.mxu0 0.0
        %5478 = vmatprep.subr.mxu0 0.0
        %5479 = vmatpush1.xpose.msra.mxu0 0.0
        %5480 = vmatprep.subr.mxu0 0.0
        %5481 = vmatpush1.xpose.msra.mxu0 0.0
        %5482 = vmatprep.subr.mxu0 0.0
        %5483 = vmatpush1.xpose.msra.mxu0 0.0
        %5484 = vmatprep.subr.mxu0 0.0
        %5485 = vmatpush1.xpose.msra.mxu0 0.0
        %5486 = vmatprep.subr.mxu0 0.0
        %5487 = vmatpush1.xpose.msra.mxu0 0.0
        %5488 = vmatprep.subr.mxu0 0.0
        %5489 = vmatpush1.xpose.msra.mxu0 0.0
        %5490 = vmatprep.subr.mxu0 0.0
        %5491 = vmatpush1.xpose.msra.mxu0 0.0
        %5492 = vmatprep.subr.mxu0 0.0
        %5493 = vmatpush1.xpose.msra.mxu0 0.0
        %5494 = vmatprep.subr.mxu0 0.0
        %5495 = vmatpush1.xpose.msra.mxu0 0.0
        %5496 = vmatprep.subr.mxu0 0.0
        %5497 = vmatpush1.xpose.msra.mxu0 0.0
        %5498 = vmatprep.subr.mxu0 0.0
        %5499 = vmatpush1.xpose.msra.mxu0 0.0
        %5500 = vmatprep.subr.mxu0 0.0
        %5501 = vmatpush1.xpose.msra.mxu0 0.0
        %5502 = vmatprep.mubr.f32.mxu0 0.0
        %5503 = vmatmul.mubr.f32.gmra.mrb[0].mxu0 %v5436
        %v5504 = vpop.f32.mrb[0].mxu0
        %v5505 = vadd.f32 0.0, %v5504
        %v5506 = vpop.f32.mrb[0].mxu0
        %5507 = vdwg.mxu0
        %v5508 = vsel %vm465, %v5359, 0
        %5510 = vmatprep.subr.mxu0 0.0
        %5511 = vmatpush1.xpose.msra.mxu0 %v5508
        %5512 = vmatprep.subr.mxu0 0.0
        %5513 = vmatpush1.xpose.msra.mxu0 0.0
        %5514 = vmatprep.subr.mxu0 0.0
        %5515 = vmatpush1.xpose.msra.mxu0 0.0
        %5516 = vmatprep.subr.mxu0 0.0
        %5517 = vmatpush1.xpose.msra.mxu0 0.0
        %5518 = vmatprep.subr.mxu0 0.0
        %5519 = vmatpush1.xpose.msra.mxu0 0.0
        %5520 = vmatprep.subr.mxu0 0.0
        %5521 = vmatpush1.xpose.msra.mxu0 0.0
        %5522 = vmatprep.subr.mxu0 0.0
        %5523 = vmatpush1.xpose.msra.mxu0 0.0
        %5524 = vmatprep.subr.mxu0 0.0
        %5525 = vmatpush1.xpose.msra.mxu0 0.0
        %5526 = vmatprep.subr.mxu0 0.0
        %5527 = vmatpush1.xpose.msra.mxu0 0.0
        %5528 = vmatprep.subr.mxu0 0.0
        %5529 = vmatpush1.xpose.msra.mxu0 0.0
        %5530 = vmatprep.subr.mxu0 0.0
        %5531 = vmatpush1.xpose.msra.mxu0 0.0
        %5532 = vmatprep.subr.mxu0 0.0
        %5533 = vmatpush1.xpose.msra.mxu0 0.0
        %5534 = vmatprep.subr.mxu0 0.0
        %5535 = vmatpush1.xpose.msra.mxu0 0.0
        %5536 = vmatprep.subr.mxu0 0.0
        %5537 = vmatpush1.xpose.msra.mxu0 0.0
        %5538 = vmatprep.subr.mxu0 0.0
        %5539 = vmatpush1.xpose.msra.mxu0 0.0
        %5540 = vmatprep.subr.mxu0 0.0
        %5541 = vmatpush1.xpose.msra.mxu0 0.0
        %5542 = vmatprep.subr.mxu0 0.0
        %5543 = vmatpush1.xpose.msra.mxu0 0.0
        %5544 = vmatprep.subr.mxu0 0.0
        %5545 = vmatpush1.xpose.msra.mxu0 0.0
        %5546 = vmatprep.subr.mxu0 0.0
        %5547 = vmatpush1.xpose.msra.mxu0 0.0
        %5548 = vmatprep.subr.mxu0 0.0
        %5549 = vmatpush1.xpose.msra.mxu0 0.0
        %5550 = vmatprep.subr.mxu0 0.0
        %5551 = vmatpush1.xpose.msra.mxu0 0.0
        %5552 = vmatprep.subr.mxu0 0.0
        %5553 = vmatpush1.xpose.msra.mxu0 0.0
        %5554 = vmatprep.subr.mxu0 0.0
        %5555 = vmatpush1.xpose.msra.mxu0 0.0
        %5556 = vmatprep.subr.mxu0 0.0
        %5557 = vmatpush1.xpose.msra.mxu0 0.0
        %5558 = vmatprep.subr.mxu0 0.0
        %5559 = vmatpush1.xpose.msra.mxu0 0.0
        %5560 = vmatprep.subr.mxu0 0.0
        %5561 = vmatpush1.xpose.msra.mxu0 0.0
        %5562 = vmatprep.subr.mxu0 0.0
        %5563 = vmatpush1.xpose.msra.mxu0 0.0
        %5564 = vmatprep.subr.mxu0 0.0
        %5565 = vmatpush1.xpose.msra.mxu0 0.0
        %5566 = vmatprep.subr.mxu0 0.0
        %5567 = vmatpush1.xpose.msra.mxu0 0.0
        %5568 = vmatprep.subr.mxu0 0.0
        %5569 = vmatpush1.xpose.msra.mxu0 0.0
        %5570 = vmatprep.subr.mxu0 0.0
        %5571 = vmatpush1.xpose.msra.mxu0 0.0
        %5572 = vmatprep.subr.mxu0 0.0
        %5573 = vmatpush1.xpose.msra.mxu0 0.0
        %5574 = vmatprep.mubr.f32.mxu0 0.0
        %5575 = vmatmul.mubr.f32.gmra.mrb[0].mxu0 %v5508
        %v5576 = vpop.f32.mrb[0].mxu0
        %v5577 = vadd.f32 0.0, %v5576
        %v5578 = vpop.f32.mrb[0].mxu0
        %5579 = vdwg.mxu0
        %v5580 = vsel %vm465, %v5362, 0
        %5582 = vmatprep.subr.mxu0 0.0
        %5583 = vmatpush1.xpose.msra.mxu0 %v5580
        %5584 = vmatprep.subr.mxu0 0.0
        %5585 = vmatpush1.xpose.msra.mxu0 0.0
        %5586 = vmatprep.subr.mxu0 0.0
        %5587 = vmatpush1.xpose.msra.mxu0 0.0
        %5588 = vmatprep.subr.mxu0 0.0
        %5589 = vmatpush1.xpose.msra.mxu0 0.0
        %5590 = vmatprep.subr.mxu0 0.0
        %5591 = vmatpush1.xpose.msra.mxu0 0.0
        %5592 = vmatprep.subr.mxu0 0.0
        %5593 = vmatpush1.xpose.msra.mxu0 0.0
        %5594 = vmatprep.subr.mxu0 0.0
        %5595 = vmatpush1.xpose.msra.mxu0 0.0
        %5596 = vmatprep.subr.mxu0 0.0
        %5597 = vmatpush1.xpose.msra.mxu0 0.0
        %5598 = vmatprep.subr.mxu0 0.0
        %5599 = vmatpush1.xpose.msra.mxu0 0.0
        %5600 = vmatprep.subr.mxu0 0.0
        %5601 = vmatpush1.xpose.msra.mxu0 0.0
        %5602 = vmatprep.subr.mxu0 0.0
        %5603 = vmatpush1.xpose.msra.mxu0 0.0
        %5604 = vmatprep.subr.mxu0 0.0
        %5605 = vmatpush1.xpose.msra.mxu0 0.0
        %5606 = vmatprep.subr.mxu0 0.0
        %5607 = vmatpush1.xpose.msra.mxu0 0.0
        %5608 = vmatprep.subr.mxu0 0.0
        %5609 = vmatpush1.xpose.msra.mxu0 0.0
        %5610 = vmatprep.subr.mxu0 0.0
        %5611 = vmatpush1.xpose.msra.mxu0 0.0
        %5612 = vmatprep.subr.mxu0 0.0
        %5613 = vmatpush1.xpose.msra.mxu0 0.0
        %5614 = vmatprep.subr.mxu0 0.0
        %5615 = vmatpush1.xpose.msra.mxu0 0.0
        %5616 = vmatprep.subr.mxu0 0.0
        %5617 = vmatpush1.xpose.msra.mxu0 0.0
        %5618 = vmatprep.subr.mxu0 0.0
        %5619 = vmatpush1.xpose.msra.mxu0 0.0
        %5620 = vmatprep.subr.mxu0 0.0
        %5621 = vmatpush1.xpose.msra.mxu0 0.0
        %5622 = vmatprep.subr.mxu0 0.0
        %5623 = vmatpush1.xpose.msra.mxu0 0.0
        %5624 = vmatprep.subr.mxu0 0.0
        %5625 = vmatpush1.xpose.msra.mxu0 0.0
        %5626 = vmatprep.subr.mxu0 0.0
        %5627 = vmatpush1.xpose.msra.mxu0 0.0
        %5628 = vmatprep.subr.mxu0 0.0
        %5629 = vmatpush1.xpose.msra.mxu0 0.0
        %5630 = vmatprep.subr.mxu0 0.0
        %5631 = vmatpush1.xpose.msra.mxu0 0.0
        %5632 = vmatprep.subr.mxu0 0.0
        %5633 = vmatpush1.xpose.msra.mxu0 0.0
        %5634 = vmatprep.subr.mxu0 0.0
        %5635 = vmatpush1.xpose.msra.mxu0 0.0
        %5636 = vmatprep.subr.mxu0 0.0
        %5637 = vmatpush1.xpose.msra.mxu0 0.0
        %5638 = vmatprep.subr.mxu0 0.0
        %5639 = vmatpush1.xpose.msra.mxu0 0.0
        %5640 = vmatprep.subr.mxu0 0.0
        %5641 = vmatpush1.xpose.msra.mxu0 0.0
        %5642 = vmatprep.subr.mxu0 0.0
        %5643 = vmatpush1.xpose.msra.mxu0 0.0
        %5644 = vmatprep.subr.mxu0 0.0
        %5645 = vmatpush1.xpose.msra.mxu0 0.0
        %5646 = vmatprep.mubr.f32.mxu0 0.0
        %5647 = vmatmul.mubr.f32.gmra.mrb[0].mxu0 %v5580
        %v5648 = vpop.f32.mrb[0].mxu0
        %v5649 = vadd.f32 0.0, %v5648
        %v5650 = vpop.f32.mrb[0].mxu0
        %5651 = vdwg.mxu0
        %v5652 = vmul.f32 %v5433, 0.35355338
        %v5653 = vmul.f32 %v5505, 0.35355338
        %v5654 = vmul.f32 %v5577, 0.35355338
        %v5655 = vmul.f32 %v5649, 0.35355338
        %v5656 = vadd.f32 %v5652, %v762
        %v5657 = vadd.f32 %v5653, %v762
        %v5658 = vadd.f32 %v5654, %v762
        %v5659 = vadd.f32 %v5655, %v762
        %v5660 = vadd.f32 %v5656, %v285
        %v5661 = vadd.f32 %v5657, %v285
        %v5662 = vadd.f32 %v5658, %v285
        %v5663 = vadd.f32 %v5659, %v285
        %v5664 = vsel %vm465, %v5660, -inf
        %5665 = vmax.xlane.f32.xlu0 %v5664
        %v5666 = vpop.xlane.xlu0 %5665
        %v5667 = vsel %vm465, %v5661, -inf
        %5668 = vmax.xlane.f32.xlu0 %v5667
        %v5669 = vpop.xlane.xlu0 %5668
        %v5670 = vsel %vm465, %v5662, -inf
        %5671 = vmax.xlane.f32.xlu0 %v5670
        %v5672 = vpop.xlane.xlu0 %5671
        %v5673 = vsel %vm465, %v5663, -inf
        %5674 = vmax.xlane.f32.xlu0 %v5673
        %v5675 = vpop.xlane.xlu0 %5674
        %v5676 = vsub.f32 %v5660, %v5666
        %v5677 = vsub.f32 %v5661, %v5669
        %v5678 = vsub.f32 %v5662, %v5672
        %v5679 = vsub.f32 %v5663, %v5675
        %v5680 = vmul.f32 %v5676, 1.442695
        %v5681 = vpow.pop %v5680
        %v5682 = vmul.f32 %v5677, 1.442695
        %v5683 = vpow.pop %v5682
        %v5684 = vmul.f32 %v5678, 1.442695
        %v5685 = vpow.pop %v5684
        %v5686 = vmul.f32 %v5679, 1.442695
        %v5687 = vpow.pop %v5686
        %v5688 = vsel %vm465, %v5681, 0.0
        %5689 = vadd.xlane.f32.xlu0 %v5688
        %v5690 = vpop.xlane.xlu0 %5689
        %v5691 = vsel %vm465, %v5683, 0.0
        %5692 = vadd.xlane.f32.xlu0 %v5691
        %v5693 = vpop.xlane.xlu0 %5692
        %v5694 = vsel %vm465, %v5685, 0.0
        %5695 = vadd.xlane.f32.xlu0 %v5694
        %v5696 = vpop.xlane.xlu0 %5695
        %v5697 = vsel %vm465, %v5687, 0.0
        %5698 = vadd.xlane.f32.xlu0 %v5697
        %v5699 = vpop.xlane.xlu0 %5698
        %v5700 = vrcp.pop %v5690
        %v5701 = vrcp.pop %v5693
        %v5702 = vrcp.pop %v5696
        %v5703 = vrcp.pop %v5699
        %v5704 = vmul.f32 %v5681, %v5700
        %v5705 = vmul.f32 %v5683, %v5701
        %v5706 = vmul.f32 %v5685, %v5702
        %v5707 = vmul.f32 %v5687, %v5703
        %v5709 = vsel %vm465, %v5704, 0
        %5711 = vmatprep.subr.mxu0 0.0
        %5712 = vmatpush1.msra.mxu0 %v5351
        %5713 = vmatprep.subr.mxu0 0.0
        %5714 = vmatpush1.msra.mxu0 0.0
        %5715 = vmatprep.subr.mxu0 0.0
        %5716 = vmatpush1.msra.mxu0 0.0
        %5717 = vmatprep.subr.mxu0 0.0
        %5718 = vmatpush1.msra.mxu0 0.0
        %5719 = vmatprep.subr.mxu0 0.0
        %5720 = vmatpush1.msra.mxu0 0.0
        %5721 = vmatprep.subr.mxu0 0.0
        %5722 = vmatpush1.msra.mxu0 0.0
        %5723 = vmatprep.subr.mxu0 0.0
        %5724 = vmatpush1.msra.mxu0 0.0
        %5725 = vmatprep.subr.mxu0 0.0
        %5726 = vmatpush1.msra.mxu0 0.0
        %5727 = vmatprep.subr.mxu0 0.0
        %5728 = vmatpush1.msra.mxu0 0.0
        %5729 = vmatprep.subr.mxu0 0.0
        %5730 = vmatpush1.msra.mxu0 0.0
        %5731 = vmatprep.subr.mxu0 0.0
        %5732 = vmatpush1.msra.mxu0 0.0
        %5733 = vmatprep.subr.mxu0 0.0
        %5734 = vmatpush1.msra.mxu0 0.0
        %5735 = vmatprep.subr.mxu0 0.0
        %5736 = vmatpush1.msra.mxu0 0.0
        %5737 = vmatprep.subr.mxu0 0.0
        %5738 = vmatpush1.msra.mxu0 0.0
        %5739 = vmatprep.subr.mxu0 0.0
        %5740 = vmatpush1.msra.mxu0 0.0
        %5741 = vmatprep.subr.mxu0 0.0
        %5742 = vmatpush1.msra.mxu0 0.0
        %5743 = vmatprep.subr.mxu0 0.0
        %5744 = vmatpush1.msra.mxu0 0.0
        %5745 = vmatprep.subr.mxu0 0.0
        %5746 = vmatpush1.msra.mxu0 0.0
        %5747 = vmatprep.subr.mxu0 0.0
        %5748 = vmatpush1.msra.mxu0 0.0
        %5749 = vmatprep.subr.mxu0 0.0
        %5750 = vmatpush1.msra.mxu0 0.0
        %5751 = vmatprep.subr.mxu0 0.0
        %5752 = vmatpush1.msra.mxu0 0.0
        %5753 = vmatprep.subr.mxu0 0.0
        %5754 = vmatpush1.msra.mxu0 0.0
        %5755 = vmatprep.subr.mxu0 0.0
        %5756 = vmatpush1.msra.mxu0 0.0
        %5757 = vmatprep.subr.mxu0 0.0
        %5758 = vmatpush1.msra.mxu0 0.0
        %5759 = vmatprep.subr.mxu0 0.0
        %5760 = vmatpush1.msra.mxu0 0.0
        %5761 = vmatprep.subr.mxu0 0.0
        %5762 = vmatpush1.msra.mxu0 0.0
        %5763 = vmatprep.subr.mxu0 0.0
        %5764 = vmatpush1.msra.mxu0 0.0
        %5765 = vmatprep.subr.mxu0 0.0
        %5766 = vmatpush1.msra.mxu0 0.0
        %5767 = vmatprep.subr.mxu0 0.0
        %5768 = vmatpush1.msra.mxu0 0.0
        %5769 = vmatprep.subr.mxu0 0.0
        %5770 = vmatpush1.msra.mxu0 0.0
        %5771 = vmatprep.subr.mxu0 0.0
        %5772 = vmatpush1.msra.mxu0 0.0
        %5773 = vmatprep.subr.mxu0 0.0
        %5774 = vmatpush1.msra.mxu0 0.0
        %5775 = vmatprep.mubr.f32.mxu0 0.0
        %5776 = vmatmul.mubr.f32.gmra.mrb[0].mxu0 %v5709
        %v5777 = vpop.f32.mrb[0].mxu0
        %v5778 = vadd.f32 0.0, %v5777
        %v5779 = vpop.f32.mrb[0].mxu0
        %5780 = vdwg.mxu0
        %v5782 = vsel %vm465, %v5705, 0
        %5784 = vmatprep.subr.mxu0 0.0
        %5785 = vmatpush1.msra.mxu0 %v5356
        %5786 = vmatprep.subr.mxu0 0.0
        %5787 = vmatpush1.msra.mxu0 0.0
        %5788 = vmatprep.subr.mxu0 0.0
        %5789 = vmatpush1.msra.mxu0 0.0
        %5790 = vmatprep.subr.mxu0 0.0
        %5791 = vmatpush1.msra.mxu0 0.0
        %5792 = vmatprep.subr.mxu0 0.0
        %5793 = vmatpush1.msra.mxu0 0.0
        %5794 = vmatprep.subr.mxu0 0.0
        %5795 = vmatpush1.msra.mxu0 0.0
        %5796 = vmatprep.subr.mxu0 0.0
        %5797 = vmatpush1.msra.mxu0 0.0
        %5798 = vmatprep.subr.mxu0 0.0
        %5799 = vmatpush1.msra.mxu0 0.0
        %5800 = vmatprep.subr.mxu0 0.0
        %5801 = vmatpush1.msra.mxu0 0.0
        %5802 = vmatprep.subr.mxu0 0.0
        %5803 = vmatpush1.msra.mxu0 0.0
        %5804 = vmatprep.subr.mxu0 0.0
        %5805 = vmatpush1.msra.mxu0 0.0
        %5806 = vmatprep.subr.mxu0 0.0
        %5807 = vmatpush1.msra.mxu0 0.0
        %5808 = vmatprep.subr.mxu0 0.0
        %5809 = vmatpush1.msra.mxu0 0.0
        %5810 = vmatprep.subr.mxu0 0.0
        %5811 = vmatpush1.msra.mxu0 0.0
        %5812 = vmatprep.subr.mxu0 0.0
        %5813 = vmatpush1.msra.mxu0 0.0
        %5814 = vmatprep.subr.mxu0 0.0
        %5815 = vmatpush1.msra.mxu0 0.0
        %5816 = vmatprep.subr.mxu0 0.0
        %5817 = vmatpush1.msra.mxu0 0.0
        %5818 = vmatprep.subr.mxu0 0.0
        %5819 = vmatpush1.msra.mxu0 0.0
        %5820 = vmatprep.subr.mxu0 0.0
        %5821 = vmatpush1.msra.mxu0 0.0
        %5822 = vmatprep.subr.mxu0 0.0
        %5823 = vmatpush1.msra.mxu0 0.0
        %5824 = vmatprep.subr.mxu0 0.0
        %5825 = vmatpush1.msra.mxu0 0.0
        %5826 = vmatprep.subr.mxu0 0.0
        %5827 = vmatpush1.msra.mxu0 0.0
        %5828 = vmatprep.subr.mxu0 0.0
        %5829 = vmatpush1.msra.mxu0 0.0
        %5830 = vmatprep.subr.mxu0 0.0
        %5831 = vmatpush1.msra.mxu0 0.0
        %5832 = vmatprep.subr.mxu0 0.0
        %5833 = vmatpush1.msra.mxu0 0.0
        %5834 = vmatprep.subr.mxu0 0.0
        %5835 = vmatpush1.msra.mxu0 0.0
        %5836 = vmatprep.subr.mxu0 0.0
        %5837 = vmatpush1.msra.mxu0 0.0
        %5838 = vmatprep.subr.mxu0 0.0
        %5839 = vmatpush1.msra.mxu0 0.0
        %5840 = vmatprep.subr.mxu0 0.0
        %5841 = vmatpush1.msra.mxu0 0.0
        %5842 = vmatprep.subr.mxu0 0.0
        %5843 = vmatpush1.msra.mxu0 0.0
        %5844 = vmatprep.subr.mxu0 0.0
        %5845 = vmatpush1.msra.mxu0 0.0
        %5846 = vmatprep.subr.mxu0 0.0
        %5847 = vmatpush1.msra.mxu0 0.0
        %5848 = vmatprep.mubr.f32.mxu0 0.0
        %5849 = vmatmul.mubr.f32.gmra.mrb[0].mxu0 %v5782
        %v5850 = vpop.f32.mrb[0].mxu0
        %v5851 = vadd.f32 0.0, %v5850
        %v5852 = vpop.f32.mrb[0].mxu0
        %5853 = vdwg.mxu0
        %v5855 = vsel %vm465, %v5706, 0
        %5857 = vmatprep.subr.mxu0 0.0
        %5858 = vmatpush1.msra.mxu0 %v5359
        %5859 = vmatprep.subr.mxu0 0.0
        %5860 = vmatpush1.msra.mxu0 0.0
        %5861 = vmatprep.subr.mxu0 0.0
        %5862 = vmatpush1.msra.mxu0 0.0
        %5863 = vmatprep.subr.mxu0 0.0
        %5864 = vmatpush1.msra.mxu0 0.0
        %5865 = vmatprep.subr.mxu0 0.0
        %5866 = vmatpush1.msra.mxu0 0.0
        %5867 = vmatprep.subr.mxu0 0.0
        %5868 = vmatpush1.msra.mxu0 0.0
        %5869 = vmatprep.subr.mxu0 0.0
        %5870 = vmatpush1.msra.mxu0 0.0
        %5871 = vmatprep.subr.mxu0 0.0
        %5872 = vmatpush1.msra.mxu0 0.0
        %5873 = vmatprep.subr.mxu0 0.0
        %5874 = vmatpush1.msra.mxu0 0.0
        %5875 = vmatprep.subr.mxu0 0.0
        %5876 = vmatpush1.msra.mxu0 0.0
        %5877 = vmatprep.subr.mxu0 0.0
        %5878 = vmatpush1.msra.mxu0 0.0
        %5879 = vmatprep.subr.mxu0 0.0
        %5880 = vmatpush1.msra.mxu0 0.0
        %5881 = vmatprep.subr.mxu0 0.0
        %5882 = vmatpush1.msra.mxu0 0.0
        %5883 = vmatprep.subr.mxu0 0.0
        %5884 = vmatpush1.msra.mxu0 0.0
        %5885 = vmatprep.subr.mxu0 0.0
        %5886 = vmatpush1.msra.mxu0 0.0
        %5887 = vmatprep.subr.mxu0 0.0
        %5888 = vmatpush1.msra.mxu0 0.0
        %5889 = vmatprep.subr.mxu0 0.0
        %5890 = vmatpush1.msra.mxu0 0.0
        %5891 = vmatprep.subr.mxu0 0.0
        %5892 = vmatpush1.msra.mxu0 0.0
        %5893 = vmatprep.subr.mxu0 0.0
        %5894 = vmatpush1.msra.mxu0 0.0
        %5895 = vmatprep.subr.mxu0 0.0
        %5896 = vmatpush1.msra.mxu0 0.0
        %5897 = vmatprep.subr.mxu0 0.0
        %5898 = vmatpush1.msra.mxu0 0.0
        %5899 = vmatprep.subr.mxu0 0.0
        %5900 = vmatpush1.msra.mxu0 0.0
        %5901 = vmatprep.subr.mxu0 0.0
        %5902 = vmatpush1.msra.mxu0 0.0
        %5903 = vmatprep.subr.mxu0 0.0
        %5904 = vmatpush1.msra.mxu0 0.0
        %5905 = vmatprep.subr.mxu0 0.0
        %5906 = vmatpush1.msra.mxu0 0.0
        %5907 = vmatprep.subr.mxu0 0.0
        %5908 = vmatpush1.msra.mxu0 0.0
        %5909 = vmatprep.subr.mxu0 0.0
        %5910 = vmatpush1.msra.mxu0 0.0
        %5911 = vmatprep.subr.mxu0 0.0
        %5912 = vmatpush1.msra.mxu0 0.0
        %5913 = vmatprep.subr.mxu0 0.0
        %5914 = vmatpush1.msra.mxu0 0.0
        %5915 = vmatprep.subr.mxu0 0.0
        %5916 = vmatpush1.msra.mxu0 0.0
        %5917 = vmatprep.subr.mxu0 0.0
        %5918 = vmatpush1.msra.mxu0 0.0
        %5919 = vmatprep.subr.mxu0 0.0
        %5920 = vmatpush1.msra.mxu0 0.0
        %5921 = vmatprep.mubr.f32.mxu0 0.0
        %5922 = vmatmul.mubr.f32.gmra.mrb[0].mxu0 %v5855
        %v5923 = vpop.f32.mrb[0].mxu0
        %v5924 = vadd.f32 0.0, %v5923
        %v5925 = vpop.f32.mrb[0].mxu0
        %5926 = vdwg.mxu0
        %v5928 = vsel %vm465, %v5707, 0
        %5930 = vmatprep.subr.mxu0 0.0
        %5931 = vmatpush1.msra.mxu0 %v5362
        %5932 = vmatprep.subr.mxu0 0.0
        %5933 = vmatpush1.msra.mxu0 0.0
        %5934 = vmatprep.subr.mxu0 0.0
        %5935 = vmatpush1.msra.mxu0 0.0
        %5936 = vmatprep.subr.mxu0 0.0
        %5937 = vmatpush1.msra.mxu0 0.0
        %5938 = vmatprep.subr.mxu0 0.0
        %5939 = vmatpush1.msra.mxu0 0.0
        %5940 = vmatprep.subr.mxu0 0.0
        %5941 = vmatpush1.msra.mxu0 0.0
        %5942 = vmatprep.subr.mxu0 0.0
        %5943 = vmatpush1.msra.mxu0 0.0
        %5944 = vmatprep.subr.mxu0 0.0
        %5945 = vmatpush1.msra.mxu0 0.0
        %5946 = vmatprep.subr.mxu0 0.0
        %5947 = vmatpush1.msra.mxu0 0.0
        %5948 = vmatprep.subr.mxu0 0.0
        %5949 = vmatpush1.msra.mxu0 0.0
        %5950 = vmatprep.subr.mxu0 0.0
        %5951 = vmatpush1.msra.mxu0 0.0
        %5952 = vmatprep.subr.mxu0 0.0
        %5953 = vmatpush1.msra.mxu0 0.0
        %5954 = vmatprep.subr.mxu0 0.0
        %5955 = vmatpush1.msra.mxu0 0.0
        %5956 = vmatprep.subr.mxu0 0.0
        %5957 = vmatpush1.msra.mxu0 0.0
        %5958 = vmatprep.subr.mxu0 0.0
        %5959 = vmatpush1.msra.mxu0 0.0
        %5960 = vmatprep.subr.mxu0 0.0
        %5961 = vmatpush1.msra.mxu0 0.0
        %5962 = vmatprep.subr.mxu0 0.0
        %5963 = vmatpush1.msra.mxu0 0.0
        %5964 = vmatprep.subr.mxu0 0.0
        %5965 = vmatpush1.msra.mxu0 0.0
        %5966 = vmatprep.subr.mxu0 0.0
        %5967 = vmatpush1.msra.mxu0 0.0
        %5968 = vmatprep.subr.mxu0 0.0
        %5969 = vmatpush1.msra.mxu0 0.0
        %5970 = vmatprep.subr.mxu0 0.0
        %5971 = vmatpush1.msra.mxu0 0.0
        %5972 = vmatprep.subr.mxu0 0.0
        %5973 = vmatpush1.msra.mxu0 0.0
        %5974 = vmatprep.subr.mxu0 0.0
        %5975 = vmatpush1.msra.mxu0 0.0
        %5976 = vmatprep.subr.mxu0 0.0
        %5977 = vmatpush1.msra.mxu0 0.0
        %5978 = vmatprep.subr.mxu0 0.0
        %5979 = vmatpush1.msra.mxu0 0.0
        %5980 = vmatprep.subr.mxu0 0.0
        %5981 = vmatpush1.msra.mxu0 0.0
        %5982 = vmatprep.subr.mxu0 0.0
        %5983 = vmatpush1.msra.mxu0 0.0
        %5984 = vmatprep.subr.mxu0 0.0
        %5985 = vmatpush1.msra.mxu0 0.0
        %5986 = vmatprep.subr.mxu0 0.0
        %5987 = vmatpush1.msra.mxu0 0.0
        %5988 = vmatprep.subr.mxu0 0.0
        %5989 = vmatpush1.msra.mxu0 0.0
        %5990 = vmatprep.subr.mxu0 0.0
        %5991 = vmatpush1.msra.mxu0 0.0
        %5992 = vmatprep.subr.mxu0 0.0
        %5993 = vmatpush1.msra.mxu0 0.0
        %5994 = vmatprep.mubr.f32.mxu0 0.0
        %5995 = vmatmul.mubr.f32.gmra.mrb[0].mxu0 %v5928
        %v5996 = vpop.f32.mrb[0].mxu0
        %v5997 = vadd.f32 0.0, %v5996
        %v5998 = vpop.f32.mrb[0].mxu0
        %5999 = vdwg.mxu0
        %v6000 = vld [vmem:[#allocation7 + $0x270] sm:$0xff]
        %v6001 = vld [vmem:[#allocation7 + $0x278] sm:$0xff]
        %v6002 = vld [vmem:[#allocation7 + $0x280] sm:$0xff]
        %v6003 = vld [vmem:[#allocation7 + $0x288] sm:$0xff]
        %v6005 = vsel %vm465, %v5851, 0
        %6007 = vmatprep.subr.mxu0 0.0
        %6008 = vmatpush1.msra.mxu0 %v6001
        %6009 = vmatprep.subr.mxu0 0.0
        %6010 = vmatpush1.msra.mxu0 0.0
        %6011 = vmatprep.subr.mxu0 0.0
        %6012 = vmatpush1.msra.mxu0 0.0
        %6013 = vmatprep.subr.mxu0 0.0
        %6014 = vmatpush1.msra.mxu0 0.0
        %6015 = vmatprep.subr.mxu0 0.0
        %6016 = vmatpush1.msra.mxu0 0.0
        %6017 = vmatprep.subr.mxu0 0.0
        %6018 = vmatpush1.msra.mxu0 0.0
        %6019 = vmatprep.subr.mxu0 0.0
        %6020 = vmatpush1.msra.mxu0 0.0
        %6021 = vmatprep.subr.mxu0 0.0
        %6022 = vmatpush1.msra.mxu0 0.0
        %6023 = vmatprep.subr.mxu0 0.0
        %6024 = vmatpush1.msra.mxu0 0.0
        %6025 = vmatprep.subr.mxu0 0.0
        %6026 = vmatpush1.msra.mxu0 0.0
        %6027 = vmatprep.subr.mxu0 0.0
        %6028 = vmatpush1.msra.mxu0 0.0
        %6029 = vmatprep.subr.mxu0 0.0
        %6030 = vmatpush1.msra.mxu0 0.0
        %6031 = vmatprep.subr.mxu0 0.0
        %6032 = vmatpush1.msra.mxu0 0.0
        %6033 = vmatprep.subr.mxu0 0.0
        %6034 = vmatpush1.msra.mxu0 0.0
        %6035 = vmatprep.subr.mxu0 0.0
        %6036 = vmatpush1.msra.mxu0 0.0
        %6037 = vmatprep.subr.mxu0 0.0
        %6038 = vmatpush1.msra.mxu0 0.0
        %6039 = vmatprep.subr.mxu0 0.0
        %6040 = vmatpush1.msra.mxu0 0.0
        %6041 = vmatprep.subr.mxu0 0.0
        %6042 = vmatpush1.msra.mxu0 0.0
        %6043 = vmatprep.subr.mxu0 0.0
        %6044 = vmatpush1.msra.mxu0 0.0
        %6045 = vmatprep.subr.mxu0 0.0
        %6046 = vmatpush1.msra.mxu0 0.0
        %6047 = vmatprep.subr.mxu0 0.0
        %6048 = vmatpush1.msra.mxu0 0.0
        %6049 = vmatprep.subr.mxu0 0.0
        %6050 = vmatpush1.msra.mxu0 0.0
        %6051 = vmatprep.subr.mxu0 0.0
        %6052 = vmatpush1.msra.mxu0 0.0
        %6053 = vmatprep.subr.mxu0 0.0
        %6054 = vmatpush1.msra.mxu0 0.0
        %6055 = vmatprep.subr.mxu0 0.0
        %6056 = vmatpush1.msra.mxu0 0.0
        %6057 = vmatprep.subr.mxu0 0.0
        %6058 = vmatpush1.msra.mxu0 0.0
        %6059 = vmatprep.subr.mxu0 0.0
        %6060 = vmatpush1.msra.mxu0 0.0
        %6061 = vmatprep.subr.mxu0 0.0
        %6062 = vmatpush1.msra.mxu0 0.0
        %6063 = vmatprep.subr.mxu0 0.0
        %6064 = vmatpush1.msra.mxu0 0.0
        %6065 = vmatprep.subr.mxu0 0.0
        %6066 = vmatpush1.msra.mxu0 0.0
        %6067 = vmatprep.subr.mxu0 0.0
        %6068 = vmatpush1.msra.mxu0 0.0
        %6069 = vmatprep.subr.mxu0 0.0
        %6070 = vmatpush1.msra.mxu0 0.0
        %6071 = vmatprep.mubr.f32.mxu0 0.0
        %6072 = vmatmul.mubr.f32.gmra.mrb[0].mxu0 %v6005
        %v6073 = vpop.f32.mrb[0].mxu0
        %v6074 = vadd.f32 0.0, %v6073
        %v6075 = vpop.f32.mrb[0].mxu0
        %6076 = vdwg.mxu0
        %v6078 = vsel %vm465, %v5778, 0
        %6080 = vmatprep.subr.mxu0 0.0
        %6081 = vmatpush1.msra.mxu0 %v6000
        %6082 = vmatprep.subr.mxu0 0.0
        %6083 = vmatpush1.msra.mxu0 0.0
        %6084 = vmatprep.subr.mxu0 0.0
        %6085 = vmatpush1.msra.mxu0 0.0
        %6086 = vmatprep.subr.mxu0 0.0
        %6087 = vmatpush1.msra.mxu0 0.0
        %6088 = vmatprep.subr.mxu0 0.0
        %6089 = vmatpush1.msra.mxu0 0.0
        %6090 = vmatprep.subr.mxu0 0.0
        %6091 = vmatpush1.msra.mxu0 0.0
        %6092 = vmatprep.subr.mxu0 0.0
        %6093 = vmatpush1.msra.mxu0 0.0
        %6094 = vmatprep.subr.mxu0 0.0
        %6095 = vmatpush1.msra.mxu0 0.0
        %6096 = vmatprep.subr.mxu0 0.0
        %6097 = vmatpush1.msra.mxu0 0.0
        %6098 = vmatprep.subr.mxu0 0.0
        %6099 = vmatpush1.msra.mxu0 0.0
        %6100 = vmatprep.subr.mxu0 0.0
        %6101 = vmatpush1.msra.mxu0 0.0
        %6102 = vmatprep.subr.mxu0 0.0
        %6103 = vmatpush1.msra.mxu0 0.0
        %6104 = vmatprep.subr.mxu0 0.0
        %6105 = vmatpush1.msra.mxu0 0.0
        %6106 = vmatprep.subr.mxu0 0.0
        %6107 = vmatpush1.msra.mxu0 0.0
        %6108 = vmatprep.subr.mxu0 0.0
        %6109 = vmatpush1.msra.mxu0 0.0
        %6110 = vmatprep.subr.mxu0 0.0
        %6111 = vmatpush1.msra.mxu0 0.0
        %6112 = vmatprep.subr.mxu0 0.0
        %6113 = vmatpush1.msra.mxu0 0.0
        %6114 = vmatprep.subr.mxu0 0.0
        %6115 = vmatpush1.msra.mxu0 0.0
        %6116 = vmatprep.subr.mxu0 0.0
        %6117 = vmatpush1.msra.mxu0 0.0
        %6118 = vmatprep.subr.mxu0 0.0
        %6119 = vmatpush1.msra.mxu0 0.0
        %6120 = vmatprep.subr.mxu0 0.0
        %6121 = vmatpush1.msra.mxu0 0.0
        %6122 = vmatprep.subr.mxu0 0.0
        %6123 = vmatpush1.msra.mxu0 0.0
        %6124 = vmatprep.subr.mxu0 0.0
        %6125 = vmatpush1.msra.mxu0 0.0
        %6126 = vmatprep.subr.mxu0 0.0
        %6127 = vmatpush1.msra.mxu0 0.0
        %6128 = vmatprep.subr.mxu0 0.0
        %6129 = vmatpush1.msra.mxu0 0.0
        %6130 = vmatprep.subr.mxu0 0.0
        %6131 = vmatpush1.msra.mxu0 0.0
        %6132 = vmatprep.subr.mxu0 0.0
        %6133 = vmatpush1.msra.mxu0 0.0
        %6134 = vmatprep.subr.mxu0 0.0
        %6135 = vmatpush1.msra.mxu0 0.0
        %6136 = vmatprep.subr.mxu0 0.0
        %6137 = vmatpush1.msra.mxu0 0.0
        %6138 = vmatprep.subr.mxu0 0.0
        %6139 = vmatpush1.msra.mxu0 0.0
        %6140 = vmatprep.subr.mxu0 0.0
        %6141 = vmatpush1.msra.mxu0 0.0
        %6142 = vmatprep.subr.mxu0 0.0
        %6143 = vmatpush1.msra.mxu0 0.0
        %6144 = vmatprep.mubr.f32.mxu0 0.0
        %6145 = vmatmul.mubr.f32.gmra.mrb[0].mxu0 %v6078
        %v6146 = vpop.f32.mrb[0].mxu0
        %v6147 = vadd.f32 %v6074, %v6146
        %v6148 = vpop.f32.mrb[0].mxu0
        %6149 = vdwg.mxu0
        %v6151 = vsel %vm465, %v5924, 0
        %6153 = vmatprep.subr.mxu0 0.0
        %6154 = vmatpush1.msra.mxu0 %v6002
        %6155 = vmatprep.subr.mxu0 0.0
        %6156 = vmatpush1.msra.mxu0 0.0
        %6157 = vmatprep.subr.mxu0 0.0
        %6158 = vmatpush1.msra.mxu0 0.0
        %6159 = vmatprep.subr.mxu0 0.0
        %6160 = vmatpush1.msra.mxu0 0.0
        %6161 = vmatprep.subr.mxu0 0.0
        %6162 = vmatpush1.msra.mxu0 0.0
        %6163 = vmatprep.subr.mxu0 0.0
        %6164 = vmatpush1.msra.mxu0 0.0
        %6165 = vmatprep.subr.mxu0 0.0
        %6166 = vmatpush1.msra.mxu0 0.0
        %6167 = vmatprep.subr.mxu0 0.0
        %6168 = vmatpush1.msra.mxu0 0.0
        %6169 = vmatprep.subr.mxu0 0.0
        %6170 = vmatpush1.msra.mxu0 0.0
        %6171 = vmatprep.subr.mxu0 0.0
        %6172 = vmatpush1.msra.mxu0 0.0
        %6173 = vmatprep.subr.mxu0 0.0
        %6174 = vmatpush1.msra.mxu0 0.0
        %6175 = vmatprep.subr.mxu0 0.0
        %6176 = vmatpush1.msra.mxu0 0.0
        %6177 = vmatprep.subr.mxu0 0.0
        %6178 = vmatpush1.msra.mxu0 0.0
        %6179 = vmatprep.subr.mxu0 0.0
        %6180 = vmatpush1.msra.mxu0 0.0
        %6181 = vmatprep.subr.mxu0 0.0
        %6182 = vmatpush1.msra.mxu0 0.0
        %6183 = vmatprep.subr.mxu0 0.0
        %6184 = vmatpush1.msra.mxu0 0.0
        %6185 = vmatprep.subr.mxu0 0.0
        %6186 = vmatpush1.msra.mxu0 0.0
        %6187 = vmatprep.subr.mxu0 0.0
        %6188 = vmatpush1.msra.mxu0 0.0
        %6189 = vmatprep.subr.mxu0 0.0
        %6190 = vmatpush1.msra.mxu0 0.0
        %6191 = vmatprep.subr.mxu0 0.0
        %6192 = vmatpush1.msra.mxu0 0.0
        %6193 = vmatprep.subr.mxu0 0.0
        %6194 = vmatpush1.msra.mxu0 0.0
        %6195 = vmatprep.subr.mxu0 0.0
        %6196 = vmatpush1.msra.mxu0 0.0
        %6197 = vmatprep.subr.mxu0 0.0
        %6198 = vmatpush1.msra.mxu0 0.0
        %6199 = vmatprep.subr.mxu0 0.0
        %6200 = vmatpush1.msra.mxu0 0.0
        %6201 = vmatprep.subr.mxu0 0.0
        %6202 = vmatpush1.msra.mxu0 0.0
        %6203 = vmatprep.subr.mxu0 0.0
        %6204 = vmatpush1.msra.mxu0 0.0
        %6205 = vmatprep.subr.mxu0 0.0
        %6206 = vmatpush1.msra.mxu0 0.0
        %6207 = vmatprep.subr.mxu0 0.0
        %6208 = vmatpush1.msra.mxu0 0.0
        %6209 = vmatprep.subr.mxu0 0.0
        %6210 = vmatpush1.msra.mxu0 0.0
        %6211 = vmatprep.subr.mxu0 0.0
        %6212 = vmatpush1.msra.mxu0 0.0
        %6213 = vmatprep.subr.mxu0 0.0
        %6214 = vmatpush1.msra.mxu0 0.0
        %6215 = vmatprep.subr.mxu0 0.0
        %6216 = vmatpush1.msra.mxu0 0.0
        %6217 = vmatprep.mubr.f32.mxu0 0.0
        %6218 = vmatmul.mubr.f32.gmra.mrb[0].mxu0 %v6151
        %v6219 = vpop.f32.mrb[0].mxu0
        %v6220 = vadd.f32 0.0, %v6219
        %v6221 = vpop.f32.mrb[0].mxu0
        %6222 = vdwg.mxu0
        %v6223 = vadd.f32 %v6147, %v6220
        %v6225 = vsel %vm465, %v5997, 0
        %6227 = vmatprep.subr.mxu0 0.0
        %6228 = vmatpush1.msra.mxu0 %v6003
        %6229 = vmatprep.subr.mxu0 0.0
        %6230 = vmatpush1.msra.mxu0 0.0
        %6231 = vmatprep.subr.mxu0 0.0
        %6232 = vmatpush1.msra.mxu0 0.0
        %6233 = vmatprep.subr.mxu0 0.0
        %6234 = vmatpush1.msra.mxu0 0.0
        %6235 = vmatprep.subr.mxu0 0.0
        %6236 = vmatpush1.msra.mxu0 0.0
        %6237 = vmatprep.subr.mxu0 0.0
        %6238 = vmatpush1.msra.mxu0 0.0
        %6239 = vmatprep.subr.mxu0 0.0
        %6240 = vmatpush1.msra.mxu0 0.0
        %6241 = vmatprep.subr.mxu0 0.0
        %6242 = vmatpush1.msra.mxu0 0.0
        %6243 = vmatprep.subr.mxu0 0.0
        %6244 = vmatpush1.msra.mxu0 0.0
        %6245 = vmatprep.subr.mxu0 0.0
        %6246 = vmatpush1.msra.mxu0 0.0
        %6247 = vmatprep.subr.mxu0 0.0
        %6248 = vmatpush1.msra.mxu0 0.0
        %6249 = vmatprep.subr.mxu0 0.0
        %6250 = vmatpush1.msra.mxu0 0.0
        %6251 = vmatprep.subr.mxu0 0.0
        %6252 = vmatpush1.msra.mxu0 0.0
        %6253 = vmatprep.subr.mxu0 0.0
        %6254 = vmatpush1.msra.mxu0 0.0
        %6255 = vmatprep.subr.mxu0 0.0
        %6256 = vmatpush1.msra.mxu0 0.0
        %6257 = vmatprep.subr.mxu0 0.0
        %6258 = vmatpush1.msra.mxu0 0.0
        %6259 = vmatprep.subr.mxu0 0.0
        %6260 = vmatpush1.msra.mxu0 0.0
        %6261 = vmatprep.subr.mxu0 0.0
        %6262 = vmatpush1.msra.mxu0 0.0
        %6263 = vmatprep.subr.mxu0 0.0
        %6264 = vmatpush1.msra.mxu0 0.0
        %6265 = vmatprep.subr.mxu0 0.0
        %6266 = vmatpush1.msra.mxu0 0.0
        %6267 = vmatprep.subr.mxu0 0.0
        %6268 = vmatpush1.msra.mxu0 0.0
        %6269 = vmatprep.subr.mxu0 0.0
        %6270 = vmatpush1.msra.mxu0 0.0
        %6271 = vmatprep.subr.mxu0 0.0
        %6272 = vmatpush1.msra.mxu0 0.0
        %6273 = vmatprep.subr.mxu0 0.0
        %6274 = vmatpush1.msra.mxu0 0.0
        %6275 = vmatprep.subr.mxu0 0.0
        %6276 = vmatpush1.msra.mxu0 0.0
        %6277 = vmatprep.subr.mxu0 0.0
        %6278 = vmatpush1.msra.mxu0 0.0
        %6279 = vmatprep.subr.mxu0 0.0
        %6280 = vmatpush1.msra.mxu0 0.0
        %6281 = vmatprep.subr.mxu0 0.0
        %6282 = vmatpush1.msra.mxu0 0.0
        %6283 = vmatprep.subr.mxu0 0.0
        %6284 = vmatpush1.msra.mxu0 0.0
        %6285 = vmatprep.subr.mxu0 0.0
        %6286 = vmatpush1.msra.mxu0 0.0
        %6287 = vmatprep.subr.mxu0 0.0
        %6288 = vmatpush1.msra.mxu0 0.0
        %6289 = vmatprep.subr.mxu0 0.0
        %6290 = vmatpush1.msra.mxu0 0.0
        %6291 = vmatprep.mubr.f32.mxu0 0.0
        %6292 = vmatmul.mubr.f32.gmra.mrb[0].mxu0 %v6225
        %v6293 = vpop.f32.mrb[0].mxu0
        %v6294 = vadd.f32 0.0, %v6293
        %v6295 = vpop.f32.mrb[0].mxu0
        %6296 = vdwg.mxu0
        %v6297 = vadd.f32 %v6223, %v6294
        %v6298 = vld [vmem:[#allocation8 + $0x1f] sm:$0x1]
        %v6299 = vlaneseq
        %v6300 = vshrl.u32 %v6299, 7
        %v6301 = vsub.s32 0, %v6300
        %v6302 = vrot.slane %v6298, %v6301
        %v6303 = vadd.f32 %v6297, %v6302
        %v6304 = vadd.f32 %v6303, %v5271
        %v6305 = vsel %vm381, %v6304, 0.0
        %6306 = vadd.xlane.f32.xlu0 %v6305
        %v6307 = vpop.xlane.xlu0 %6306
        %v6308 = vmul.f32 %v6307, %v1412
        %v6309 = vsub.f32 %v6304, %v6308
        %v6310 = vmul.f32 %v6309, %v6309
        %v6311 = vsel %vm381, %v6310, 0.0
        %6312 = vadd.xlane.f32.xlu0 %v6311
        %v6313 = vpop.xlane.xlu0 %6312
        %v6314 = vmul.f32 %v6313, %v1412
        %v6315 = vadd.f32 %v6314, 1e-05
        %v6316 = vrsqrt.pop %v6315
        %v6317 = vmul.f32 %v6309, %v6316
        %v6318 = vld [vmem:[#allocation8 + $0x24] sm:$0x1]
        %v6319 = vlaneseq
        %v6320 = vshrl.u32 %v6319, 7
        %v6321 = vsub.s32 0, %v6320
        %v6322 = vrot.slane %v6318, %v6321
        %v6323 = vmul.f32 %v6317, %v6322
        %v6324 = vld [vmem:[#allocation8 + $0x25] sm:$0x1]
        %v6325 = vlaneseq
        %v6326 = vshrl.u32 %v6325, 7
        %v6327 = vsub.s32 0, %v6326
        %v6328 = vrot.slane %v6324, %v6327
        %v6329 = vadd.f32 %v6323, %v6328
        %v6330 = vld [vmem:[#allocation7 + $0x290] sm:$0xff]
        %v6331 = vld [vmem:[#allocation7 + $0x298] sm:$0xff]
        %v6332 = vld [vmem:[#allocation7 + $0x2a0] sm:$0xff]
        %v6333 = vld [vmem:[#allocation7 + $0x2a8] sm:$0xff]
        %v6334 = vld [vmem:[#allocation8 + $0x20] sm:$0x1]
        %v6335 = vlaneseq
        %v6336 = vshrl.u32 %v6335, 7
        %v6337 = vsub.s32 0, %v6336
        %v6338 = vrot.slane %v6334, %v6337
        %v6340 = vsel %vm381, %v6329, 0
        %6342 = vmatprep.subr.mxu0 0.0
        %6343 = vmatpush1.msra.mxu0 %v6330
        %6344 = vmatprep.subr.mxu0 0.0
        %6345 = vmatpush1.msra.mxu0 %v6331
        %6346 = vmatprep.subr.mxu0 0.0
        %6347 = vmatpush1.msra.mxu0 %v6332
        %6348 = vmatprep.subr.mxu0 0.0
        %6349 = vmatpush1.msra.mxu0 %v6333
        %6350 = vmatprep.subr.mxu0 0.0
        %6351 = vmatpush1.msra.mxu0 0.0
        %6352 = vmatprep.subr.mxu0 0.0
        %6353 = vmatpush1.msra.mxu0 0.0
        %6354 = vmatprep.subr.mxu0 0.0
        %6355 = vmatpush1.msra.mxu0 0.0
        %6356 = vmatprep.subr.mxu0 0.0
        %6357 = vmatpush1.msra.mxu0 0.0
        %6358 = vmatprep.subr.mxu0 0.0
        %6359 = vmatpush1.msra.mxu0 0.0
        %6360 = vmatprep.subr.mxu0 0.0
        %6361 = vmatpush1.msra.mxu0 0.0
        %6362 = vmatprep.subr.mxu0 0.0
        %6363 = vmatpush1.msra.mxu0 0.0
        %6364 = vmatprep.subr.mxu0 0.0
        %6365 = vmatpush1.msra.mxu0 0.0
        %6366 = vmatprep.subr.mxu0 0.0
        %6367 = vmatpush1.msra.mxu0 0.0
        %6368 = vmatprep.subr.mxu0 0.0
        %6369 = vmatpush1.msra.mxu0 0.0
        %6370 = vmatprep.subr.mxu0 0.0
        %6371 = vmatpush1.msra.mxu0 0.0
        %6372 = vmatprep.subr.mxu0 0.0
        %6373 = vmatpush1.msra.mxu0 0.0
        %6374 = vmatprep.subr.mxu0 0.0
        %6375 = vmatpush1.msra.mxu0 0.0
        %6376 = vmatprep.subr.mxu0 0.0
        %6377 = vmatpush1.msra.mxu0 0.0
        %6378 = vmatprep.subr.mxu0 0.0
        %6379 = vmatpush1.msra.mxu0 0.0
        %6380 = vmatprep.subr.mxu0 0.0
        %6381 = vmatpush1.msra.mxu0 0.0
        %6382 = vmatprep.subr.mxu0 0.0
        %6383 = vmatpush1.msra.mxu0 0.0
        %6384 = vmatprep.subr.mxu0 0.0
        %6385 = vmatpush1.msra.mxu0 0.0
        %6386 = vmatprep.subr.mxu0 0.0
        %6387 = vmatpush1.msra.mxu0 0.0
        %6388 = vmatprep.subr.mxu0 0.0
        %6389 = vmatpush1.msra.mxu0 0.0
        %6390 = vmatprep.subr.mxu0 0.0
        %6391 = vmatpush1.msra.mxu0 0.0
        %6392 = vmatprep.subr.mxu0 0.0
        %6393 = vmatpush1.msra.mxu0 0.0
        %6394 = vmatprep.subr.mxu0 0.0
        %6395 = vmatpush1.msra.mxu0 0.0
        %6396 = vmatprep.subr.mxu0 0.0
        %6397 = vmatpush1.msra.mxu0 0.0
        %6398 = vmatprep.subr.mxu0 0.0
        %6399 = vmatpush1.msra.mxu0 0.0
        %6400 = vmatprep.subr.mxu0 0.0
        %6401 = vmatpush1.msra.mxu0 0.0
        %6402 = vmatprep.subr.mxu0 0.0
        %6403 = vmatpush1.msra.mxu0 0.0
        %6404 = vmatprep.subr.mxu0 0.0
        %6405 = vmatpush1.msra.mxu0 0.0
        %6406 = vmatprep.mubr.f32.mxu0 0.0
        %6407 = vmatmul.mubr.f32.gmra.mrb[0].mxu0 %v6340
        %v6408 = vpop.f32.mrb[0].mxu0
        %v6409 = vadd.f32 %v6338, %v6408
        %v6410 = vpop.f32.mrb[0].mxu0
        %6411 = vdwg.mxu0
        %6413 = vrot.lane.b32.xlu0 %v6409, 120
        %v6414 = vpop.permute.xlu0 %6413
        %6415 = vrot.lane.b32.xlu0 %v6409, 112
        %v6416 = vpop.permute.xlu0 %6415
        %6417 = vrot.lane.b32.xlu0 %v6409, 104
        %v6418 = vpop.permute.xlu0 %6417
        %6419 = vmatprep.subr.mxu0 0.0
        %6420 = vmatpush1.msra.mxu0 %v6330
        %6421 = vmatprep.subr.mxu0 0.0
        %6422 = vmatpush1.msra.mxu0 %v6331
        %6423 = vmatprep.subr.mxu0 0.0
        %6424 = vmatpush1.msra.mxu0 %v6332
        %6425 = vmatprep.subr.mxu0 0.0
        %6426 = vmatpush1.msra.mxu0 %v6333
        %6427 = vmatprep.subr.mxu0 0.0
        %6428 = vmatpush1.msra.mxu0 0.0
        %6429 = vmatprep.subr.mxu0 0.0
        %6430 = vmatpush1.msra.mxu0 0.0
        %6431 = vmatprep.subr.mxu0 0.0
        %6432 = vmatpush1.msra.mxu0 0.0
        %6433 = vmatprep.subr.mxu0 0.0
        %6434 = vmatpush1.msra.mxu0 0.0
        %6435 = vmatprep.subr.mxu0 0.0
        %6436 = vmatpush1.msra.mxu0 0.0
        %6437 = vmatprep.subr.mxu0 0.0
        %6438 = vmatpush1.msra.mxu0 0.0
        %6439 = vmatprep.subr.mxu0 0.0
        %6440 = vmatpush1.msra.mxu0 0.0
        %6441 = vmatprep.subr.mxu0 0.0
        %6442 = vmatpush1.msra.mxu0 0.0
        %6443 = vmatprep.subr.mxu0 0.0
        %6444 = vmatpush1.msra.mxu0 0.0
        %6445 = vmatprep.subr.mxu0 0.0
        %6446 = vmatpush1.msra.mxu0 0.0
        %6447 = vmatprep.subr.mxu0 0.0
        %6448 = vmatpush1.msra.mxu0 0.0
        %6449 = vmatprep.subr.mxu0 0.0
        %6450 = vmatpush1.msra.mxu0 0.0
        %6451 = vmatprep.subr.mxu0 0.0
        %6452 = vmatpush1.msra.mxu0 0.0
        %6453 = vmatprep.subr.mxu0 0.0
        %6454 = vmatpush1.msra.mxu0 0.0
        %6455 = vmatprep.subr.mxu0 0.0
        %6456 = vmatpush1.msra.mxu0 0.0
        %6457 = vmatprep.subr.mxu0 0.0
        %6458 = vmatpush1.msra.mxu0 0.0
        %6459 = vmatprep.subr.mxu0 0.0
        %6460 = vmatpush1.msra.mxu0 0.0
        %6461 = vmatprep.subr.mxu0 0.0
        %6462 = vmatpush1.msra.mxu0 0.0
        %6463 = vmatprep.subr.mxu0 0.0
        %6464 = vmatpush1.msra.mxu0 0.0
        %6465 = vmatprep.subr.mxu0 0.0
        %6466 = vmatpush1.msra.mxu0 0.0
        %6467 = vmatprep.subr.mxu0 0.0
        %6468 = vmatpush1.msra.mxu0 0.0
        %6469 = vmatprep.subr.mxu0 0.0
        %6470 = vmatpush1.msra.mxu0 0.0
        %6471 = vmatprep.subr.mxu0 0.0
        %6472 = vmatpush1.msra.mxu0 0.0
        %6473 = vmatprep.subr.mxu0 0.0
        %6474 = vmatpush1.msra.mxu0 0.0
        %6475 = vmatprep.subr.mxu0 0.0
        %6476 = vmatpush1.msra.mxu0 0.0
        %6477 = vmatprep.subr.mxu0 0.0
        %6478 = vmatpush1.msra.mxu0 0.0
        %6479 = vmatprep.subr.mxu0 0.0
        %6480 = vmatpush1.msra.mxu0 0.0
        %6481 = vmatprep.subr.mxu0 0.0
        %6482 = vmatpush1.msra.mxu0 0.0
        %6483 = vmatprep.mubr.f32.mxu0 0.0
        %6484 = vmatmul.mubr.f32.gmra.mrb[0].mxu0 %v2890
        %v6485 = vpop.f32.mrb[0].mxu0
        %v6486 = vadd.f32 %v6338, %v6485
        %v6487 = vpop.f32.mrb[0].mxu0
        %6488 = vdwg.mxu0
        %6490 = vrot.lane.b32.xlu0 %v6486, 120
        %v6491 = vpop.permute.xlu0 %6490
        %6493 = vrot.lane.b32.xlu0 %v6486, 112
        %v6494 = vpop.permute.xlu0 %6493
        %6496 = vrot.lane.b32.xlu0 %v6486, 104
        %v6497 = vpop.permute.xlu0 %6496
        %v6499 = vsel %vm465, %v6409, 0
        %v6501 = vsel %vm465, %v6486, 0
        %6503 = vmatprep.subr.mxu0 0.0
        %6504 = vmatpush1.xpose.msra.mxu0 %v6501
        %6505 = vmatprep.subr.mxu0 0.0
        %6506 = vmatpush1.xpose.msra.mxu0 0.0
        %6507 = vmatprep.subr.mxu0 0.0
        %6508 = vmatpush1.xpose.msra.mxu0 0.0
        %6509 = vmatprep.subr.mxu0 0.0
        %6510 = vmatpush1.xpose.msra.mxu0 0.0
        %6511 = vmatprep.subr.mxu0 0.0
        %6512 = vmatpush1.xpose.msra.mxu0 0.0
        %6513 = vmatprep.subr.mxu0 0.0
        %6514 = vmatpush1.xpose.msra.mxu0 0.0
        %6515 = vmatprep.subr.mxu0 0.0
        %6516 = vmatpush1.xpose.msra.mxu0 0.0
        %6517 = vmatprep.subr.mxu0 0.0
        %6518 = vmatpush1.xpose.msra.mxu0 0.0
        %6519 = vmatprep.subr.mxu0 0.0
        %6520 = vmatpush1.xpose.msra.mxu0 0.0
        %6521 = vmatprep.subr.mxu0 0.0
        %6522 = vmatpush1.xpose.msra.mxu0 0.0
        %6523 = vmatprep.subr.mxu0 0.0
        %6524 = vmatpush1.xpose.msra.mxu0 0.0
        %6525 = vmatprep.subr.mxu0 0.0
        %6526 = vmatpush1.xpose.msra.mxu0 0.0
        %6527 = vmatprep.subr.mxu0 0.0
        %6528 = vmatpush1.xpose.msra.mxu0 0.0
        %6529 = vmatprep.subr.mxu0 0.0
        %6530 = vmatpush1.xpose.msra.mxu0 0.0
        %6531 = vmatprep.subr.mxu0 0.0
        %6532 = vmatpush1.xpose.msra.mxu0 0.0
        %6533 = vmatprep.subr.mxu0 0.0
        %6534 = vmatpush1.xpose.msra.mxu0 0.0
        %6535 = vmatprep.subr.mxu0 0.0
        %6536 = vmatpush1.xpose.msra.mxu0 0.0
        %6537 = vmatprep.subr.mxu0 0.0
        %6538 = vmatpush1.xpose.msra.mxu0 0.0
        %6539 = vmatprep.subr.mxu0 0.0
        %6540 = vmatpush1.xpose.msra.mxu0 0.0
        %6541 = vmatprep.subr.mxu0 0.0
        %6542 = vmatpush1.xpose.msra.mxu0 0.0
        %6543 = vmatprep.subr.mxu0 0.0
        %6544 = vmatpush1.xpose.msra.mxu0 0.0
        %6545 = vmatprep.subr.mxu0 0.0
        %6546 = vmatpush1.xpose.msra.mxu0 0.0
        %6547 = vmatprep.subr.mxu0 0.0
        %6548 = vmatpush1.xpose.msra.mxu0 0.0
        %6549 = vmatprep.subr.mxu0 0.0
        %6550 = vmatpush1.xpose.msra.mxu0 0.0
        %6551 = vmatprep.subr.mxu0 0.0
        %6552 = vmatpush1.xpose.msra.mxu0 0.0
        %6553 = vmatprep.subr.mxu0 0.0
        %6554 = vmatpush1.xpose.msra.mxu0 0.0
        %6555 = vmatprep.subr.mxu0 0.0
        %6556 = vmatpush1.xpose.msra.mxu0 0.0
        %6557 = vmatprep.subr.mxu0 0.0
        %6558 = vmatpush1.xpose.msra.mxu0 0.0
        %6559 = vmatprep.subr.mxu0 0.0
        %6560 = vmatpush1.xpose.msra.mxu0 0.0
        %6561 = vmatprep.subr.mxu0 0.0
        %6562 = vmatpush1.xpose.msra.mxu0 0.0
        %6563 = vmatprep.subr.mxu0 0.0
        %6564 = vmatpush1.xpose.msra.mxu0 0.0
        %6565 = vmatprep.subr.mxu0 0.0
        %6566 = vmatpush1.xpose.msra.mxu0 0.0
        %6567 = vmatprep.mubr.f32.mxu0 0.0
        %6568 = vmatmul.mubr.f32.gmra.mrb[0].mxu0 %v6499
        %v6569 = vpop.f32.mrb[0].mxu0
        %v6570 = vadd.f32 0.0, %v6569
        %v6571 = vpop.f32.mrb[0].mxu0
        %6572 = vdwg.mxu0
        %v6573 = vsel %vm465, %v6414, 0
        %v6575 = vsel %vm465, %v6491, 0
        %6577 = vmatprep.subr.mxu0 0.0
        %6578 = vmatpush1.xpose.msra.mxu0 %v6575
        %6579 = vmatprep.subr.mxu0 0.0
        %6580 = vmatpush1.xpose.msra.mxu0 0.0
        %6581 = vmatprep.subr.mxu0 0.0
        %6582 = vmatpush1.xpose.msra.mxu0 0.0
        %6583 = vmatprep.subr.mxu0 0.0
        %6584 = vmatpush1.xpose.msra.mxu0 0.0
        %6585 = vmatprep.subr.mxu0 0.0
        %6586 = vmatpush1.xpose.msra.mxu0 0.0
        %6587 = vmatprep.subr.mxu0 0.0
        %6588 = vmatpush1.xpose.msra.mxu0 0.0
        %6589 = vmatprep.subr.mxu0 0.0
        %6590 = vmatpush1.xpose.msra.mxu0 0.0
        %6591 = vmatprep.subr.mxu0 0.0
        %6592 = vmatpush1.xpose.msra.mxu0 0.0
        %6593 = vmatprep.subr.mxu0 0.0
        %6594 = vmatpush1.xpose.msra.mxu0 0.0
        %6595 = vmatprep.subr.mxu0 0.0
        %6596 = vmatpush1.xpose.msra.mxu0 0.0
        %6597 = vmatprep.subr.mxu0 0.0
        %6598 = vmatpush1.xpose.msra.mxu0 0.0
        %6599 = vmatprep.subr.mxu0 0.0
        %6600 = vmatpush1.xpose.msra.mxu0 0.0
        %6601 = vmatprep.subr.mxu0 0.0
        %6602 = vmatpush1.xpose.msra.mxu0 0.0
        %6603 = vmatprep.subr.mxu0 0.0
        %6604 = vmatpush1.xpose.msra.mxu0 0.0
        %6605 = vmatprep.subr.mxu0 0.0
        %6606 = vmatpush1.xpose.msra.mxu0 0.0
        %6607 = vmatprep.subr.mxu0 0.0
        %6608 = vmatpush1.xpose.msra.mxu0 0.0
        %6609 = vmatprep.subr.mxu0 0.0
        %6610 = vmatpush1.xpose.msra.mxu0 0.0
        %6611 = vmatprep.subr.mxu0 0.0
        %6612 = vmatpush1.xpose.msra.mxu0 0.0
        %6613 = vmatprep.subr.mxu0 0.0
        %6614 = vmatpush1.xpose.msra.mxu0 0.0
        %6615 = vmatprep.subr.mxu0 0.0
        %6616 = vmatpush1.xpose.msra.mxu0 0.0
        %6617 = vmatprep.subr.mxu0 0.0
        %6618 = vmatpush1.xpose.msra.mxu0 0.0
        %6619 = vmatprep.subr.mxu0 0.0
        %6620 = vmatpush1.xpose.msra.mxu0 0.0
        %6621 = vmatprep.subr.mxu0 0.0
        %6622 = vmatpush1.xpose.msra.mxu0 0.0
        %6623 = vmatprep.subr.mxu0 0.0
        %6624 = vmatpush1.xpose.msra.mxu0 0.0
        %6625 = vmatprep.subr.mxu0 0.0
        %6626 = vmatpush1.xpose.msra.mxu0 0.0
        %6627 = vmatprep.subr.mxu0 0.0
        %6628 = vmatpush1.xpose.msra.mxu0 0.0
        %6629 = vmatprep.subr.mxu0 0.0
        %6630 = vmatpush1.xpose.msra.mxu0 0.0
        %6631 = vmatprep.subr.mxu0 0.0
        %6632 = vmatpush1.xpose.msra.mxu0 0.0
        %6633 = vmatprep.subr.mxu0 0.0
        %6634 = vmatpush1.xpose.msra.mxu0 0.0
        %6635 = vmatprep.subr.mxu0 0.0
        %6636 = vmatpush1.xpose.msra.mxu0 0.0
        %6637 = vmatprep.subr.mxu0 0.0
        %6638 = vmatpush1.xpose.msra.mxu0 0.0
        %6639 = vmatprep.subr.mxu0 0.0
        %6640 = vmatpush1.xpose.msra.mxu0 0.0
        %6641 = vmatprep.mubr.f32.mxu0 0.0
        %6642 = vmatmul.mubr.f32.gmra.mrb[0].mxu0 %v6573
        %v6643 = vpop.f32.mrb[0].mxu0
        %v6644 = vadd.f32 0.0, %v6643
        %v6645 = vpop.f32.mrb[0].mxu0
        %6646 = vdwg.mxu0
        %v6647 = vsel %vm465, %v6416, 0
        %v6649 = vsel %vm465, %v6494, 0
        %6651 = vmatprep.subr.mxu0 0.0
        %6652 = vmatpush1.xpose.msra.mxu0 %v6649
        %6653 = vmatprep.subr.mxu0 0.0
        %6654 = vmatpush1.xpose.msra.mxu0 0.0
        %6655 = vmatprep.subr.mxu0 0.0
        %6656 = vmatpush1.xpose.msra.mxu0 0.0
        %6657 = vmatprep.subr.mxu0 0.0
        %6658 = vmatpush1.xpose.msra.mxu0 0.0
        %6659 = vmatprep.subr.mxu0 0.0
        %6660 = vmatpush1.xpose.msra.mxu0 0.0
        %6661 = vmatprep.subr.mxu0 0.0
        %6662 = vmatpush1.xpose.msra.mxu0 0.0
        %6663 = vmatprep.subr.mxu0 0.0
        %6664 = vmatpush1.xpose.msra.mxu0 0.0
        %6665 = vmatprep.subr.mxu0 0.0
        %6666 = vmatpush1.xpose.msra.mxu0 0.0
        %6667 = vmatprep.subr.mxu0 0.0
        %6668 = vmatpush1.xpose.msra.mxu0 0.0
        %6669 = vmatprep.subr.mxu0 0.0
        %6670 = vmatpush1.xpose.msra.mxu0 0.0
        %6671 = vmatprep.subr.mxu0 0.0
        %6672 = vmatpush1.xpose.msra.mxu0 0.0
        %6673 = vmatprep.subr.mxu0 0.0
        %6674 = vmatpush1.xpose.msra.mxu0 0.0
        %6675 = vmatprep.subr.mxu0 0.0
        %6676 = vmatpush1.xpose.msra.mxu0 0.0
        %6677 = vmatprep.subr.mxu0 0.0
        %6678 = vmatpush1.xpose.msra.mxu0 0.0
        %6679 = vmatprep.subr.mxu0 0.0
        %6680 = vmatpush1.xpose.msra.mxu0 0.0
        %6681 = vmatprep.subr.mxu0 0.0
        %6682 = vmatpush1.xpose.msra.mxu0 0.0
        %6683 = vmatprep.subr.mxu0 0.0
        %6684 = vmatpush1.xpose.msra.mxu0 0.0
        %6685 = vmatprep.subr.mxu0 0.0
        %6686 = vmatpush1.xpose.msra.mxu0 0.0
        %6687 = vmatprep.subr.mxu0 0.0
        %6688 = vmatpush1.xpose.msra.mxu0 0.0
        %6689 = vmatprep.subr.mxu0 0.0
        %6690 = vmatpush1.xpose.msra.mxu0 0.0
        %6691 = vmatprep.subr.mxu0 0.0
        %6692 = vmatpush1.xpose.msra.mxu0 0.0
        %6693 = vmatprep.subr.mxu0 0.0
        %6694 = vmatpush1.xpose.msra.mxu0 0.0
        %6695 = vmatprep.subr.mxu0 0.0
        %6696 = vmatpush1.xpose.msra.mxu0 0.0
        %6697 = vmatprep.subr.mxu0 0.0
        %6698 = vmatpush1.xpose.msra.mxu0 0.0
        %6699 = vmatprep.subr.mxu0 0.0
        %6700 = vmatpush1.xpose.msra.mxu0 0.0
        %6701 = vmatprep.subr.mxu0 0.0
        %6702 = vmatpush1.xpose.msra.mxu0 0.0
        %6703 = vmatprep.subr.mxu0 0.0
        %6704 = vmatpush1.xpose.msra.mxu0 0.0
        %6705 = vmatprep.subr.mxu0 0.0
        %6706 = vmatpush1.xpose.msra.mxu0 0.0
        %6707 = vmatprep.subr.mxu0 0.0
        %6708 = vmatpush1.xpose.msra.mxu0 0.0
        %6709 = vmatprep.subr.mxu0 0.0
        %6710 = vmatpush1.xpose.msra.mxu0 0.0
        %6711 = vmatprep.subr.mxu0 0.0
        %6712 = vmatpush1.xpose.msra.mxu0 0.0
        %6713 = vmatprep.subr.mxu0 0.0
        %6714 = vmatpush1.xpose.msra.mxu0 0.0
        %6715 = vmatprep.mubr.f32.mxu0 0.0
        %6716 = vmatmul.mubr.f32.gmra.mrb[0].mxu0 %v6647
        %v6717 = vpop.f32.mrb[0].mxu0
        %v6718 = vadd.f32 0.0, %v6717
        %v6719 = vpop.f32.mrb[0].mxu0
        %6720 = vdwg.mxu0
        %v6721 = vsel %vm465, %v6418, 0
        %v6723 = vsel %vm465, %v6497, 0
        %6725 = vmatprep.subr.mxu0 0.0
        %6726 = vmatpush1.xpose.msra.mxu0 %v6723
        %6727 = vmatprep.subr.mxu0 0.0
        %6728 = vmatpush1.xpose.msra.mxu0 0.0
        %6729 = vmatprep.subr.mxu0 0.0
        %6730 = vmatpush1.xpose.msra.mxu0 0.0
        %6731 = vmatprep.subr.mxu0 0.0
        %6732 = vmatpush1.xpose.msra.mxu0 0.0
        %6733 = vmatprep.subr.mxu0 0.0
        %6734 = vmatpush1.xpose.msra.mxu0 0.0
        %6735 = vmatprep.subr.mxu0 0.0
        %6736 = vmatpush1.xpose.msra.mxu0 0.0
        %6737 = vmatprep.subr.mxu0 0.0
        %6738 = vmatpush1.xpose.msra.mxu0 0.0
        %6739 = vmatprep.subr.mxu0 0.0
        %6740 = vmatpush1.xpose.msra.mxu0 0.0
        %6741 = vmatprep.subr.mxu0 0.0
        %6742 = vmatpush1.xpose.msra.mxu0 0.0
        %6743 = vmatprep.subr.mxu0 0.0
        %6744 = vmatpush1.xpose.msra.mxu0 0.0
        %6745 = vmatprep.subr.mxu0 0.0
        %6746 = vmatpush1.xpose.msra.mxu0 0.0
        %6747 = vmatprep.subr.mxu0 0.0
        %6748 = vmatpush1.xpose.msra.mxu0 0.0
        %6749 = vmatprep.subr.mxu0 0.0
        %6750 = vmatpush1.xpose.msra.mxu0 0.0
        %6751 = vmatprep.subr.mxu0 0.0
        %6752 = vmatpush1.xpose.msra.mxu0 0.0
        %6753 = vmatprep.subr.mxu0 0.0
        %6754 = vmatpush1.xpose.msra.mxu0 0.0
        %6755 = vmatprep.subr.mxu0 0.0
        %6756 = vmatpush1.xpose.msra.mxu0 0.0
        %6757 = vmatprep.subr.mxu0 0.0
        %6758 = vmatpush1.xpose.msra.mxu0 0.0
        %6759 = vmatprep.subr.mxu0 0.0
        %6760 = vmatpush1.xpose.msra.mxu0 0.0
        %6761 = vmatprep.subr.mxu0 0.0
        %6762 = vmatpush1.xpose.msra.mxu0 0.0
        %6763 = vmatprep.subr.mxu0 0.0
        %6764 = vmatpush1.xpose.msra.mxu0 0.0
        %6765 = vmatprep.subr.mxu0 0.0
        %6766 = vmatpush1.xpose.msra.mxu0 0.0
        %6767 = vmatprep.subr.mxu0 0.0
        %6768 = vmatpush1.xpose.msra.mxu0 0.0
        %6769 = vmatprep.subr.mxu0 0.0
        %6770 = vmatpush1.xpose.msra.mxu0 0.0
        %6771 = vmatprep.subr.mxu0 0.0
        %6772 = vmatpush1.xpose.msra.mxu0 0.0
        %6773 = vmatprep.subr.mxu0 0.0
        %6774 = vmatpush1.xpose.msra.mxu0 0.0
        %6775 = vmatprep.subr.mxu0 0.0
        %6776 = vmatpush1.xpose.msra.mxu0 0.0
        %6777 = vmatprep.subr.mxu0 0.0
        %6778 = vmatpush1.xpose.msra.mxu0 0.0
        %6779 = vmatprep.subr.mxu0 0.0
        %6780 = vmatpush1.xpose.msra.mxu0 0.0
        %6781 = vmatprep.subr.mxu0 0.0
        %6782 = vmatpush1.xpose.msra.mxu0 0.0
        %6783 = vmatprep.subr.mxu0 0.0
        %6784 = vmatpush1.xpose.msra.mxu0 0.0
        %6785 = vmatprep.subr.mxu0 0.0
        %6786 = vmatpush1.xpose.msra.mxu0 0.0
        %6787 = vmatprep.subr.mxu0 0.0
        %6788 = vmatpush1.xpose.msra.mxu0 0.0
        %6789 = vmatprep.mubr.f32.mxu0 0.0
        %6790 = vmatmul.mubr.f32.gmra.mrb[0].mxu0 %v6721
        %v6791 = vpop.f32.mrb[0].mxu0
        %v6792 = vadd.f32 0.0, %v6791
        %v6793 = vpop.f32.mrb[0].mxu0
        %6794 = vdwg.mxu0
        %v6795 = vmul.f32 %v6570, 0.35355338
        %v6796 = vmul.f32 %v6644, 0.35355338
        %v6797 = vmul.f32 %v6718, 0.35355338
        %v6798 = vmul.f32 %v6792, 0.35355338
        %v6799 = vadd.f32 %v6795, %v762
        %v6800 = vadd.f32 %v6796, %v762
        %v6801 = vadd.f32 %v6797, %v762
        %v6802 = vadd.f32 %v6798, %v762
        %v6803 = vsel %vm465, %v6799, -inf
        %6804 = vmax.xlane.f32.xlu0 %v6803
        %v6805 = vpop.xlane.xlu0 %6804
        %v6806 = vsel %vm465, %v6800, -inf
        %6807 = vmax.xlane.f32.xlu0 %v6806
        %v6808 = vpop.xlane.xlu0 %6807
        %v6809 = vsel %vm465, %v6801, -inf
        %6810 = vmax.xlane.f32.xlu0 %v6809
        %v6811 = vpop.xlane.xlu0 %6810
        %v6812 = vsel %vm465, %v6802, -inf
        %6813 = vmax.xlane.f32.xlu0 %v6812
        %v6814 = vpop.xlane.xlu0 %6813
        %v6815 = vsub.f32 %v6799, %v6805
        %v6816 = vsub.f32 %v6800, %v6808
        %v6817 = vsub.f32 %v6801, %v6811
        %v6818 = vsub.f32 %v6802, %v6814
        %v6819 = vmul.f32 %v6815, 1.442695
        %v6820 = vpow.pop %v6819
        %v6821 = vmul.f32 %v6816, 1.442695
        %v6822 = vpow.pop %v6821
        %v6823 = vmul.f32 %v6817, 1.442695
        %v6824 = vpow.pop %v6823
        %v6825 = vmul.f32 %v6818, 1.442695
        %v6826 = vpow.pop %v6825
        %v6827 = vsel %vm465, %v6820, 0.0
        %6828 = vadd.xlane.f32.xlu0 %v6827
        %v6829 = vpop.xlane.xlu0 %6828
        %v6830 = vsel %vm465, %v6822, 0.0
        %6831 = vadd.xlane.f32.xlu0 %v6830
        %v6832 = vpop.xlane.xlu0 %6831
        %v6833 = vsel %vm465, %v6824, 0.0
        %6834 = vadd.xlane.f32.xlu0 %v6833
        %v6835 = vpop.xlane.xlu0 %6834
        %v6836 = vsel %vm465, %v6826, 0.0
        %6837 = vadd.xlane.f32.xlu0 %v6836
        %v6838 = vpop.xlane.xlu0 %6837
        %v6839 = vrcp.pop %v6829
        %v6840 = vrcp.pop %v6832
        %v6841 = vrcp.pop %v6835
        %v6842 = vrcp.pop %v6838
        %v6843 = vmul.f32 %v6820, %v6839
        %v6844 = vmul.f32 %v6822, %v6840
        %v6845 = vmul.f32 %v6824, %v6841
        %v6846 = vmul.f32 %v6826, %v6842
        %v6848 = vsel %vm465, %v6843, 0
        %6850 = vmatprep.subr.mxu0 0.0
        %6851 = vmatpush1.msra.mxu0 %v6486
        %6852 = vmatprep.subr.mxu0 0.0
        %6853 = vmatpush1.msra.mxu0 0.0
        %6854 = vmatprep.subr.mxu0 0.0
        %6855 = vmatpush1.msra.mxu0 0.0
        %6856 = vmatprep.subr.mxu0 0.0
        %6857 = vmatpush1.msra.mxu0 0.0
        %6858 = vmatprep.subr.mxu0 0.0
        %6859 = vmatpush1.msra.mxu0 0.0
        %6860 = vmatprep.subr.mxu0 0.0
        %6861 = vmatpush1.msra.mxu0 0.0
        %6862 = vmatprep.subr.mxu0 0.0
        %6863 = vmatpush1.msra.mxu0 0.0
        %6864 = vmatprep.subr.mxu0 0.0
        %6865 = vmatpush1.msra.mxu0 0.0
        %6866 = vmatprep.subr.mxu0 0.0
        %6867 = vmatpush1.msra.mxu0 0.0
        %6868 = vmatprep.subr.mxu0 0.0
        %6869 = vmatpush1.msra.mxu0 0.0
        %6870 = vmatprep.subr.mxu0 0.0
        %6871 = vmatpush1.msra.mxu0 0.0
        %6872 = vmatprep.subr.mxu0 0.0
        %6873 = vmatpush1.msra.mxu0 0.0
        %6874 = vmatprep.subr.mxu0 0.0
        %6875 = vmatpush1.msra.mxu0 0.0
        %6876 = vmatprep.subr.mxu0 0.0
        %6877 = vmatpush1.msra.mxu0 0.0
        %6878 = vmatprep.subr.mxu0 0.0
        %6879 = vmatpush1.msra.mxu0 0.0
        %6880 = vmatprep.subr.mxu0 0.0
        %6881 = vmatpush1.msra.mxu0 0.0
        %6882 = vmatprep.subr.mxu0 0.0
        %6883 = vmatpush1.msra.mxu0 0.0
        %6884 = vmatprep.subr.mxu0 0.0
        %6885 = vmatpush1.msra.mxu0 0.0
        %6886 = vmatprep.subr.mxu0 0.0
        %6887 = vmatpush1.msra.mxu0 0.0
        %6888 = vmatprep.subr.mxu0 0.0
        %6889 = vmatpush1.msra.mxu0 0.0
        %6890 = vmatprep.subr.mxu0 0.0
        %6891 = vmatpush1.msra.mxu0 0.0
        %6892 = vmatprep.subr.mxu0 0.0
        %6893 = vmatpush1.msra.mxu0 0.0
        %6894 = vmatprep.subr.mxu0 0.0
        %6895 = vmatpush1.msra.mxu0 0.0
        %6896 = vmatprep.subr.mxu0 0.0
        %6897 = vmatpush1.msra.mxu0 0.0
        %6898 = vmatprep.subr.mxu0 0.0
        %6899 = vmatpush1.msra.mxu0 0.0
        %6900 = vmatprep.subr.mxu0 0.0
        %6901 = vmatpush1.msra.mxu0 0.0
        %6902 = vmatprep.subr.mxu0 0.0
        %6903 = vmatpush1.msra.mxu0 0.0
        %6904 = vmatprep.subr.mxu0 0.0
        %6905 = vmatpush1.msra.mxu0 0.0
        %6906 = vmatprep.subr.mxu0 0.0
        %6907 = vmatpush1.msra.mxu0 0.0
        %6908 = vmatprep.subr.mxu0 0.0
        %6909 = vmatpush1.msra.mxu0 0.0
        %6910 = vmatprep.subr.mxu0 0.0
        %6911 = vmatpush1.msra.mxu0 0.0
        %6912 = vmatprep.subr.mxu0 0.0
        %6913 = vmatpush1.msra.mxu0 0.0
        %6914 = vmatprep.mubr.f32.mxu0 0.0
        %6915 = vmatmul.mubr.f32.gmra.mrb[0].mxu0 %v6848
        %v6916 = vpop.f32.mrb[0].mxu0
        %v6917 = vadd.f32 0.0, %v6916
        %v6918 = vpop.f32.mrb[0].mxu0
        %6919 = vdwg.mxu0
        %v6921 = vsel %vm465, %v6844, 0
        %6923 = vmatprep.subr.mxu0 0.0
        %6924 = vmatpush1.msra.mxu0 %v6491
        %6925 = vmatprep.subr.mxu0 0.0
        %6926 = vmatpush1.msra.mxu0 0.0
        %6927 = vmatprep.subr.mxu0 0.0
        %6928 = vmatpush1.msra.mxu0 0.0
        %6929 = vmatprep.subr.mxu0 0.0
        %6930 = vmatpush1.msra.mxu0 0.0
        %6931 = vmatprep.subr.mxu0 0.0
        %6932 = vmatpush1.msra.mxu0 0.0
        %6933 = vmatprep.subr.mxu0 0.0
        %6934 = vmatpush1.msra.mxu0 0.0
        %6935 = vmatprep.subr.mxu0 0.0
        %6936 = vmatpush1.msra.mxu0 0.0
        %6937 = vmatprep.subr.mxu0 0.0
        %6938 = vmatpush1.msra.mxu0 0.0
        %6939 = vmatprep.subr.mxu0 0.0
        %6940 = vmatpush1.msra.mxu0 0.0
        %6941 = vmatprep.subr.mxu0 0.0
        %6942 = vmatpush1.msra.mxu0 0.0
        %6943 = vmatprep.subr.mxu0 0.0
        %6944 = vmatpush1.msra.mxu0 0.0
        %6945 = vmatprep.subr.mxu0 0.0
        %6946 = vmatpush1.msra.mxu0 0.0
        %6947 = vmatprep.subr.mxu0 0.0
        %6948 = vmatpush1.msra.mxu0 0.0
        %6949 = vmatprep.subr.mxu0 0.0
        %6950 = vmatpush1.msra.mxu0 0.0
        %6951 = vmatprep.subr.mxu0 0.0
        %6952 = vmatpush1.msra.mxu0 0.0
        %6953 = vmatprep.subr.mxu0 0.0
        %6954 = vmatpush1.msra.mxu0 0.0
        %6955 = vmatprep.subr.mxu0 0.0
        %6956 = vmatpush1.msra.mxu0 0.0
        %6957 = vmatprep.subr.mxu0 0.0
        %6958 = vmatpush1.msra.mxu0 0.0
        %6959 = vmatprep.subr.mxu0 0.0
        %6960 = vmatpush1.msra.mxu0 0.0
        %6961 = vmatprep.subr.mxu0 0.0
        %6962 = vmatpush1.msra.mxu0 0.0
        %6963 = vmatprep.subr.mxu0 0.0
        %6964 = vmatpush1.msra.mxu0 0.0
        %6965 = vmatprep.subr.mxu0 0.0
        %6966 = vmatpush1.msra.mxu0 0.0
        %6967 = vmatprep.subr.mxu0 0.0
        %6968 = vmatpush1.msra.mxu0 0.0
        %6969 = vmatprep.subr.mxu0 0.0
        %6970 = vmatpush1.msra.mxu0 0.0
        %6971 = vmatprep.subr.mxu0 0.0
        %6972 = vmatpush1.msra.mxu0 0.0
        %6973 = vmatprep.subr.mxu0 0.0
        %6974 = vmatpush1.msra.mxu0 0.0
        %6975 = vmatprep.subr.mxu0 0.0
        %6976 = vmatpush1.msra.mxu0 0.0
        %6977 = vmatprep.subr.mxu0 0.0
        %6978 = vmatpush1.msra.mxu0 0.0
        %6979 = vmatprep.subr.mxu0 0.0
        %6980 = vmatpush1.msra.mxu0 0.0
        %6981 = vmatprep.subr.mxu0 0.0
        %6982 = vmatpush1.msra.mxu0 0.0
        %6983 = vmatprep.subr.mxu0 0.0
        %6984 = vmatpush1.msra.mxu0 0.0
        %6985 = vmatprep.subr.mxu0 0.0
        %6986 = vmatpush1.msra.mxu0 0.0
        %6987 = vmatprep.mubr.f32.mxu0 0.0
        %6988 = vmatmul.mubr.f32.gmra.mrb[0].mxu0 %v6921
        %v6989 = vpop.f32.mrb[0].mxu0
        %v6990 = vadd.f32 0.0, %v6989
        %v6991 = vpop.f32.mrb[0].mxu0
        %6992 = vdwg.mxu0
        %v6994 = vsel %vm465, %v6845, 0
        %6996 = vmatprep.subr.mxu0 0.0
        %6997 = vmatpush1.msra.mxu0 %v6494
        %6998 = vmatprep.subr.mxu0 0.0
        %6999 = vmatpush1.msra.mxu0 0.0
        %7000 = vmatprep.subr.mxu0 0.0
        %7001 = vmatpush1.msra.mxu0 0.0
        %7002 = vmatprep.subr.mxu0 0.0
        %7003 = vmatpush1.msra.mxu0 0.0
        %7004 = vmatprep.subr.mxu0 0.0
        %7005 = vmatpush1.msra.mxu0 0.0
        %7006 = vmatprep.subr.mxu0 0.0
        %7007 = vmatpush1.msra.mxu0 0.0
        %7008 = vmatprep.subr.mxu0 0.0
        %7009 = vmatpush1.msra.mxu0 0.0
        %7010 = vmatprep.subr.mxu0 0.0
        %7011 = vmatpush1.msra.mxu0 0.0
        %7012 = vmatprep.subr.mxu0 0.0
        %7013 = vmatpush1.msra.mxu0 0.0
        %7014 = vmatprep.subr.mxu0 0.0
        %7015 = vmatpush1.msra.mxu0 0.0
        %7016 = vmatprep.subr.mxu0 0.0
        %7017 = vmatpush1.msra.mxu0 0.0
        %7018 = vmatprep.subr.mxu0 0.0
        %7019 = vmatpush1.msra.mxu0 0.0
        %7020 = vmatprep.subr.mxu0 0.0
        %7021 = vmatpush1.msra.mxu0 0.0
        %7022 = vmatprep.subr.mxu0 0.0
        %7023 = vmatpush1.msra.mxu0 0.0
        %7024 = vmatprep.subr.mxu0 0.0
        %7025 = vmatpush1.msra.mxu0 0.0
        %7026 = vmatprep.subr.mxu0 0.0
        %7027 = vmatpush1.msra.mxu0 0.0
        %7028 = vmatprep.subr.mxu0 0.0
        %7029 = vmatpush1.msra.mxu0 0.0
        %7030 = vmatprep.subr.mxu0 0.0
        %7031 = vmatpush1.msra.mxu0 0.0
        %7032 = vmatprep.subr.mxu0 0.0
        %7033 = vmatpush1.msra.mxu0 0.0
        %7034 = vmatprep.subr.mxu0 0.0
        %7035 = vmatpush1.msra.mxu0 0.0
        %7036 = vmatprep.subr.mxu0 0.0
        %7037 = vmatpush1.msra.mxu0 0.0
        %7038 = vmatprep.subr.mxu0 0.0
        %7039 = vmatpush1.msra.mxu0 0.0
        %7040 = vmatprep.subr.mxu0 0.0
        %7041 = vmatpush1.msra.mxu0 0.0
        %7042 = vmatprep.subr.mxu0 0.0
        %7043 = vmatpush1.msra.mxu0 0.0
        %7044 = vmatprep.subr.mxu0 0.0
        %7045 = vmatpush1.msra.mxu0 0.0
        %7046 = vmatprep.subr.mxu0 0.0
        %7047 = vmatpush1.msra.mxu0 0.0
        %7048 = vmatprep.subr.mxu0 0.0
        %7049 = vmatpush1.msra.mxu0 0.0
        %7050 = vmatprep.subr.mxu0 0.0
        %7051 = vmatpush1.msra.mxu0 0.0
        %7052 = vmatprep.subr.mxu0 0.0
        %7053 = vmatpush1.msra.mxu0 0.0
        %7054 = vmatprep.subr.mxu0 0.0
        %7055 = vmatpush1.msra.mxu0 0.0
        %7056 = vmatprep.subr.mxu0 0.0
        %7057 = vmatpush1.msra.mxu0 0.0
        %7058 = vmatprep.subr.mxu0 0.0
        %7059 = vmatpush1.msra.mxu0 0.0
        %7060 = vmatprep.mubr.f32.mxu0 0.0
        %7061 = vmatmul.mubr.f32.gmra.mrb[0].mxu0 %v6994
        %v7062 = vpop.f32.mrb[0].mxu0
        %v7063 = vadd.f32 0.0, %v7062
        %v7064 = vpop.f32.mrb[0].mxu0
        %7065 = vdwg.mxu0
        %v7067 = vsel %vm465, %v6846, 0
        %7069 = vmatprep.subr.mxu0 0.0
        %7070 = vmatpush1.msra.mxu0 %v6497
        %7071 = vmatprep.subr.mxu0 0.0
        %7072 = vmatpush1.msra.mxu0 0.0
        %7073 = vmatprep.subr.mxu0 0.0
        %7074 = vmatpush1.msra.mxu0 0.0
        %7075 = vmatprep.subr.mxu0 0.0
        %7076 = vmatpush1.msra.mxu0 0.0
        %7077 = vmatprep.subr.mxu0 0.0
        %7078 = vmatpush1.msra.mxu0 0.0
        %7079 = vmatprep.subr.mxu0 0.0
        %7080 = vmatpush1.msra.mxu0 0.0
        %7081 = vmatprep.subr.mxu0 0.0
        %7082 = vmatpush1.msra.mxu0 0.0
        %7083 = vmatprep.subr.mxu0 0.0
        %7084 = vmatpush1.msra.mxu0 0.0
        %7085 = vmatprep.subr.mxu0 0.0
        %7086 = vmatpush1.msra.mxu0 0.0
        %7087 = vmatprep.subr.mxu0 0.0
        %7088 = vmatpush1.msra.mxu0 0.0
        %7089 = vmatprep.subr.mxu0 0.0
        %7090 = vmatpush1.msra.mxu0 0.0
        %7091 = vmatprep.subr.mxu0 0.0
        %7092 = vmatpush1.msra.mxu0 0.0
        %7093 = vmatprep.subr.mxu0 0.0
        %7094 = vmatpush1.msra.mxu0 0.0
        %7095 = vmatprep.subr.mxu0 0.0
        %7096 = vmatpush1.msra.mxu0 0.0
        %7097 = vmatprep.subr.mxu0 0.0
        %7098 = vmatpush1.msra.mxu0 0.0
        %7099 = vmatprep.subr.mxu0 0.0
        %7100 = vmatpush1.msra.mxu0 0.0
        %7101 = vmatprep.subr.mxu0 0.0
        %7102 = vmatpush1.msra.mxu0 0.0
        %7103 = vmatprep.subr.mxu0 0.0
        %7104 = vmatpush1.msra.mxu0 0.0
        %7105 = vmatprep.subr.mxu0 0.0
        %7106 = vmatpush1.msra.mxu0 0.0
        %7107 = vmatprep.subr.mxu0 0.0
        %7108 = vmatpush1.msra.mxu0 0.0
        %7109 = vmatprep.subr.mxu0 0.0
        %7110 = vmatpush1.msra.mxu0 0.0
        %7111 = vmatprep.subr.mxu0 0.0
        %7112 = vmatpush1.msra.mxu0 0.0
        %7113 = vmatprep.subr.mxu0 0.0
        %7114 = vmatpush1.msra.mxu0 0.0
        %7115 = vmatprep.subr.mxu0 0.0
        %7116 = vmatpush1.msra.mxu0 0.0
        %7117 = vmatprep.subr.mxu0 0.0
        %7118 = vmatpush1.msra.mxu0 0.0
        %7119 = vmatprep.subr.mxu0 0.0
        %7120 = vmatpush1.msra.mxu0 0.0
        %7121 = vmatprep.subr.mxu0 0.0
        %7122 = vmatpush1.msra.mxu0 0.0
        %7123 = vmatprep.subr.mxu0 0.0
        %7124 = vmatpush1.msra.mxu0 0.0
        %7125 = vmatprep.subr.mxu0 0.0
        %7126 = vmatpush1.msra.mxu0 0.0
        %7127 = vmatprep.subr.mxu0 0.0
        %7128 = vmatpush1.msra.mxu0 0.0
        %7129 = vmatprep.subr.mxu0 0.0
        %7130 = vmatpush1.msra.mxu0 0.0
        %7131 = vmatprep.subr.mxu0 0.0
        %7132 = vmatpush1.msra.mxu0 0.0
        %7133 = vmatprep.mubr.f32.mxu0 0.0
        %7134 = vmatmul.mubr.f32.gmra.mrb[0].mxu0 %v7067
        %v7135 = vpop.f32.mrb[0].mxu0
        %v7136 = vadd.f32 0.0, %v7135
        %v7137 = vpop.f32.mrb[0].mxu0
        %7138 = vdwg.mxu0
        %v7139 = vld [vmem:[#allocation7 + $0x2b0] sm:$0xff]
        %v7140 = vld [vmem:[#allocation7 + $0x2b8] sm:$0xff]
        %v7141 = vld [vmem:[#allocation7 + $0x2c0] sm:$0xff]
        %v7142 = vld [vmem:[#allocation7 + $0x2c8] sm:$0xff]
        %v7144 = vsel %vm465, %v6990, 0
        %7146 = vmatprep.subr.mxu0 0.0
        %7147 = vmatpush1.msra.mxu0 %v7140
        %7148 = vmatprep.subr.mxu0 0.0
        %7149 = vmatpush1.msra.mxu0 0.0
        %7150 = vmatprep.subr.mxu0 0.0
        %7151 = vmatpush1.msra.mxu0 0.0
        %7152 = vmatprep.subr.mxu0 0.0
        %7153 = vmatpush1.msra.mxu0 0.0
        %7154 = vmatprep.subr.mxu0 0.0
        %7155 = vmatpush1.msra.mxu0 0.0
        %7156 = vmatprep.subr.mxu0 0.0
        %7157 = vmatpush1.msra.mxu0 0.0
        %7158 = vmatprep.subr.mxu0 0.0
        %7159 = vmatpush1.msra.mxu0 0.0
        %7160 = vmatprep.subr.mxu0 0.0
        %7161 = vmatpush1.msra.mxu0 0.0
        %7162 = vmatprep.subr.mxu0 0.0
        %7163 = vmatpush1.msra.mxu0 0.0
        %7164 = vmatprep.subr.mxu0 0.0
        %7165 = vmatpush1.msra.mxu0 0.0
        %7166 = vmatprep.subr.mxu0 0.0
        %7167 = vmatpush1.msra.mxu0 0.0
        %7168 = vmatprep.subr.mxu0 0.0
        %7169 = vmatpush1.msra.mxu0 0.0
        %7170 = vmatprep.subr.mxu0 0.0
        %7171 = vmatpush1.msra.mxu0 0.0
        %7172 = vmatprep.subr.mxu0 0.0
        %7173 = vmatpush1.msra.mxu0 0.0
        %7174 = vmatprep.subr.mxu0 0.0
        %7175 = vmatpush1.msra.mxu0 0.0
        %7176 = vmatprep.subr.mxu0 0.0
        %7177 = vmatpush1.msra.mxu0 0.0
        %7178 = vmatprep.subr.mxu0 0.0
        %7179 = vmatpush1.msra.mxu0 0.0
        %7180 = vmatprep.subr.mxu0 0.0
        %7181 = vmatpush1.msra.mxu0 0.0
        %7182 = vmatprep.subr.mxu0 0.0
        %7183 = vmatpush1.msra.mxu0 0.0
        %7184 = vmatprep.subr.mxu0 0.0
        %7185 = vmatpush1.msra.mxu0 0.0
        %7186 = vmatprep.subr.mxu0 0.0
        %7187 = vmatpush1.msra.mxu0 0.0
        %7188 = vmatprep.subr.mxu0 0.0
        %7189 = vmatpush1.msra.mxu0 0.0
        %7190 = vmatprep.subr.mxu0 0.0
        %7191 = vmatpush1.msra.mxu0 0.0
        %7192 = vmatprep.subr.mxu0 0.0
        %7193 = vmatpush1.msra.mxu0 0.0
        %7194 = vmatprep.subr.mxu0 0.0
        %7195 = vmatpush1.msra.mxu0 0.0
        %7196 = vmatprep.subr.mxu0 0.0
        %7197 = vmatpush1.msra.mxu0 0.0
        %7198 = vmatprep.subr.mxu0 0.0
        %7199 = vmatpush1.msra.mxu0 0.0
        %7200 = vmatprep.subr.mxu0 0.0
        %7201 = vmatpush1.msra.mxu0 0.0
        %7202 = vmatprep.subr.mxu0 0.0
        %7203 = vmatpush1.msra.mxu0 0.0
        %7204 = vmatprep.subr.mxu0 0.0
        %7205 = vmatpush1.msra.mxu0 0.0
        %7206 = vmatprep.subr.mxu0 0.0
        %7207 = vmatpush1.msra.mxu0 0.0
        %7208 = vmatprep.subr.mxu0 0.0
        %7209 = vmatpush1.msra.mxu0 0.0
        %7210 = vmatprep.mubr.f32.mxu0 0.0
        %7211 = vmatmul.mubr.f32.gmra.mrb[0].mxu0 %v7144
        %v7212 = vpop.f32.mrb[0].mxu0
        %v7213 = vadd.f32 0.0, %v7212
        %v7214 = vpop.f32.mrb[0].mxu0
        %7215 = vdwg.mxu0
        %v7217 = vsel %vm465, %v6917, 0
        %7219 = vmatprep.subr.mxu0 0.0
        %7220 = vmatpush1.msra.mxu0 %v7139
        %7221 = vmatprep.subr.mxu0 0.0
        %7222 = vmatpush1.msra.mxu0 0.0
        %7223 = vmatprep.subr.mxu0 0.0
        %7224 = vmatpush1.msra.mxu0 0.0
        %7225 = vmatprep.subr.mxu0 0.0
        %7226 = vmatpush1.msra.mxu0 0.0
        %7227 = vmatprep.subr.mxu0 0.0
        %7228 = vmatpush1.msra.mxu0 0.0
        %7229 = vmatprep.subr.mxu0 0.0
        %7230 = vmatpush1.msra.mxu0 0.0
        %7231 = vmatprep.subr.mxu0 0.0
        %7232 = vmatpush1.msra.mxu0 0.0
        %7233 = vmatprep.subr.mxu0 0.0
        %7234 = vmatpush1.msra.mxu0 0.0
        %7235 = vmatprep.subr.mxu0 0.0
        %7236 = vmatpush1.msra.mxu0 0.0
        %7237 = vmatprep.subr.mxu0 0.0
        %7238 = vmatpush1.msra.mxu0 0.0
        %7239 = vmatprep.subr.mxu0 0.0
        %7240 = vmatpush1.msra.mxu0 0.0
        %7241 = vmatprep.subr.mxu0 0.0
        %7242 = vmatpush1.msra.mxu0 0.0
        %7243 = vmatprep.subr.mxu0 0.0
        %7244 = vmatpush1.msra.mxu0 0.0
        %7245 = vmatprep.subr.mxu0 0.0
        %7246 = vmatpush1.msra.mxu0 0.0
        %7247 = vmatprep.subr.mxu0 0.0
        %7248 = vmatpush1.msra.mxu0 0.0
        %7249 = vmatprep.subr.mxu0 0.0
        %7250 = vmatpush1.msra.mxu0 0.0
        %7251 = vmatprep.subr.mxu0 0.0
        %7252 = vmatpush1.msra.mxu0 0.0
        %7253 = vmatprep.subr.mxu0 0.0
        %7254 = vmatpush1.msra.mxu0 0.0
        %7255 = vmatprep.subr.mxu0 0.0
        %7256 = vmatpush1.msra.mxu0 0.0
        %7257 = vmatprep.subr.mxu0 0.0
        %7258 = vmatpush1.msra.mxu0 0.0
        %7259 = vmatprep.subr.mxu0 0.0
        %7260 = vmatpush1.msra.mxu0 0.0
        %7261 = vmatprep.subr.mxu0 0.0
        %7262 = vmatpush1.msra.mxu0 0.0
        %7263 = vmatprep.subr.mxu0 0.0
        %7264 = vmatpush1.msra.mxu0 0.0
        %7265 = vmatprep.subr.mxu0 0.0
        %7266 = vmatpush1.msra.mxu0 0.0
        %7267 = vmatprep.subr.mxu0 0.0
        %7268 = vmatpush1.msra.mxu0 0.0
        %7269 = vmatprep.subr.mxu0 0.0
        %7270 = vmatpush1.msra.mxu0 0.0
        %7271 = vmatprep.subr.mxu0 0.0
        %7272 = vmatpush1.msra.mxu0 0.0
        %7273 = vmatprep.subr.mxu0 0.0
        %7274 = vmatpush1.msra.mxu0 0.0
        %7275 = vmatprep.subr.mxu0 0.0
        %7276 = vmatpush1.msra.mxu0 0.0
        %7277 = vmatprep.subr.mxu0 0.0
        %7278 = vmatpush1.msra.mxu0 0.0
        %7279 = vmatprep.subr.mxu0 0.0
        %7280 = vmatpush1.msra.mxu0 0.0
        %7281 = vmatprep.subr.mxu0 0.0
        %7282 = vmatpush1.msra.mxu0 0.0
        %7283 = vmatprep.mubr.f32.mxu0 0.0
        %7284 = vmatmul.mubr.f32.gmra.mrb[0].mxu0 %v7217
        %v7285 = vpop.f32.mrb[0].mxu0
        %v7286 = vadd.f32 %v7213, %v7285
        %v7287 = vpop.f32.mrb[0].mxu0
        %7288 = vdwg.mxu0
        %v7290 = vsel %vm465, %v7063, 0
        %7292 = vmatprep.subr.mxu0 0.0
        %7293 = vmatpush1.msra.mxu0 %v7141
        %7294 = vmatprep.subr.mxu0 0.0
        %7295 = vmatpush1.msra.mxu0 0.0
        %7296 = vmatprep.subr.mxu0 0.0
        %7297 = vmatpush1.msra.mxu0 0.0
        %7298 = vmatprep.subr.mxu0 0.0
        %7299 = vmatpush1.msra.mxu0 0.0
        %7300 = vmatprep.subr.mxu0 0.0
        %7301 = vmatpush1.msra.mxu0 0.0
        %7302 = vmatprep.subr.mxu0 0.0
        %7303 = vmatpush1.msra.mxu0 0.0
        %7304 = vmatprep.subr.mxu0 0.0
        %7305 = vmatpush1.msra.mxu0 0.0
        %7306 = vmatprep.subr.mxu0 0.0
        %7307 = vmatpush1.msra.mxu0 0.0
        %7308 = vmatprep.subr.mxu0 0.0
        %7309 = vmatpush1.msra.mxu0 0.0
        %7310 = vmatprep.subr.mxu0 0.0
        %7311 = vmatpush1.msra.mxu0 0.0
        %7312 = vmatprep.subr.mxu0 0.0
        %7313 = vmatpush1.msra.mxu0 0.0
        %7314 = vmatprep.subr.mxu0 0.0
        %7315 = vmatpush1.msra.mxu0 0.0
        %7316 = vmatprep.subr.mxu0 0.0
        %7317 = vmatpush1.msra.mxu0 0.0
        %7318 = vmatprep.subr.mxu0 0.0
        %7319 = vmatpush1.msra.mxu0 0.0
        %7320 = vmatprep.subr.mxu0 0.0
        %7321 = vmatpush1.msra.mxu0 0.0
        %7322 = vmatprep.subr.mxu0 0.0
        %7323 = vmatpush1.msra.mxu0 0.0
        %7324 = vmatprep.subr.mxu0 0.0
        %7325 = vmatpush1.msra.mxu0 0.0
        %7326 = vmatprep.subr.mxu0 0.0
        %7327 = vmatpush1.msra.mxu0 0.0
        %7328 = vmatprep.subr.mxu0 0.0
        %7329 = vmatpush1.msra.mxu0 0.0
        %7330 = vmatprep.subr.mxu0 0.0
        %7331 = vmatpush1.msra.mxu0 0.0
        %7332 = vmatprep.subr.mxu0 0.0
        %7333 = vmatpush1.msra.mxu0 0.0
        %7334 = vmatprep.subr.mxu0 0.0
        %7335 = vmatpush1.msra.mxu0 0.0
        %7336 = vmatprep.subr.mxu0 0.0
        %7337 = vmatpush1.msra.mxu0 0.0
        %7338 = vmatprep.subr.mxu0 0.0
        %7339 = vmatpush1.msra.mxu0 0.0
        %7340 = vmatprep.subr.mxu0 0.0
        %7341 = vmatpush1.msra.mxu0 0.0
        %7342 = vmatprep.subr.mxu0 0.0
        %7343 = vmatpush1.msra.mxu0 0.0
        %7344 = vmatprep.subr.mxu0 0.0
        %7345 = vmatpush1.msra.mxu0 0.0
        %7346 = vmatprep.subr.mxu0 0.0
        %7347 = vmatpush1.msra.mxu0 0.0
        %7348 = vmatprep.subr.mxu0 0.0
        %7349 = vmatpush1.msra.mxu0 0.0
        %7350 = vmatprep.subr.mxu0 0.0
        %7351 = vmatpush1.msra.mxu0 0.0
        %7352 = vmatprep.subr.mxu0 0.0
        %7353 = vmatpush1.msra.mxu0 0.0
        %7354 = vmatprep.subr.mxu0 0.0
        %7355 = vmatpush1.msra.mxu0 0.0
        %7356 = vmatprep.mubr.f32.mxu0 0.0
        %7357 = vmatmul.mubr.f32.gmra.mrb[0].mxu0 %v7290
        %v7358 = vpop.f32.mrb[0].mxu0
        %v7359 = vadd.f32 0.0, %v7358
        %v7360 = vpop.f32.mrb[0].mxu0
        %7361 = vdwg.mxu0
        %v7362 = vadd.f32 %v7286, %v7359
        %v7364 = vsel %vm465, %v7136, 0
        %7366 = vmatprep.subr.mxu0 0.0
        %7367 = vmatpush1.msra.mxu0 %v7142
        %7368 = vmatprep.subr.mxu0 0.0
        %7369 = vmatpush1.msra.mxu0 0.0
        %7370 = vmatprep.subr.mxu0 0.0
        %7371 = vmatpush1.msra.mxu0 0.0
        %7372 = vmatprep.subr.mxu0 0.0
        %7373 = vmatpush1.msra.mxu0 0.0
        %7374 = vmatprep.subr.mxu0 0.0
        %7375 = vmatpush1.msra.mxu0 0.0
        %7376 = vmatprep.subr.mxu0 0.0
        %7377 = vmatpush1.msra.mxu0 0.0
        %7378 = vmatprep.subr.mxu0 0.0
        %7379 = vmatpush1.msra.mxu0 0.0
        %7380 = vmatprep.subr.mxu0 0.0
        %7381 = vmatpush1.msra.mxu0 0.0
        %7382 = vmatprep.subr.mxu0 0.0
        %7383 = vmatpush1.msra.mxu0 0.0
        %7384 = vmatprep.subr.mxu0 0.0
        %7385 = vmatpush1.msra.mxu0 0.0
        %7386 = vmatprep.subr.mxu0 0.0
        %7387 = vmatpush1.msra.mxu0 0.0
        %7388 = vmatprep.subr.mxu0 0.0
        %7389 = vmatpush1.msra.mxu0 0.0
        %7390 = vmatprep.subr.mxu0 0.0
        %7391 = vmatpush1.msra.mxu0 0.0
        %7392 = vmatprep.subr.mxu0 0.0
        %7393 = vmatpush1.msra.mxu0 0.0
        %7394 = vmatprep.subr.mxu0 0.0
        %7395 = vmatpush1.msra.mxu0 0.0
        %7396 = vmatprep.subr.mxu0 0.0
        %7397 = vmatpush1.msra.mxu0 0.0
        %7398 = vmatprep.subr.mxu0 0.0
        %7399 = vmatpush1.msra.mxu0 0.0
        %7400 = vmatprep.subr.mxu0 0.0
        %7401 = vmatpush1.msra.mxu0 0.0
        %7402 = vmatprep.subr.mxu0 0.0
        %7403 = vmatpush1.msra.mxu0 0.0
        %7404 = vmatprep.subr.mxu0 0.0
        %7405 = vmatpush1.msra.mxu0 0.0
        %7406 = vmatprep.subr.mxu0 0.0
        %7407 = vmatpush1.msra.mxu0 0.0
        %7408 = vmatprep.subr.mxu0 0.0
        %7409 = vmatpush1.msra.mxu0 0.0
        %7410 = vmatprep.subr.mxu0 0.0
        %7411 = vmatpush1.msra.mxu0 0.0
        %7412 = vmatprep.subr.mxu0 0.0
        %7413 = vmatpush1.msra.mxu0 0.0
        %7414 = vmatprep.subr.mxu0 0.0
        %7415 = vmatpush1.msra.mxu0 0.0
        %7416 = vmatprep.subr.mxu0 0.0
        %7417 = vmatpush1.msra.mxu0 0.0
        %7418 = vmatprep.subr.mxu0 0.0
        %7419 = vmatpush1.msra.mxu0 0.0
        %7420 = vmatprep.subr.mxu0 0.0
        %7421 = vmatpush1.msra.mxu0 0.0
        %7422 = vmatprep.subr.mxu0 0.0
        %7423 = vmatpush1.msra.mxu0 0.0
        %7424 = vmatprep.subr.mxu0 0.0
        %7425 = vmatpush1.msra.mxu0 0.0
        %7426 = vmatprep.subr.mxu0 0.0
        %7427 = vmatpush1.msra.mxu0 0.0
        %7428 = vmatprep.subr.mxu0 0.0
        %7429 = vmatpush1.msra.mxu0 0.0
        %7430 = vmatprep.mubr.f32.mxu0 0.0
        %7431 = vmatmul.mubr.f32.gmra.mrb[0].mxu0 %v7364
        %v7432 = vpop.f32.mrb[0].mxu0
        %v7433 = vadd.f32 0.0, %v7432
        %v7434 = vpop.f32.mrb[0].mxu0
        %7435 = vdwg.mxu0
        %v7436 = vadd.f32 %v7362, %v7433
        %v7437 = vld [vmem:[#allocation8 + $0x21] sm:$0x1]
        %v7438 = vlaneseq
        %v7439 = vshrl.u32 %v7438, 7
        %v7440 = vsub.s32 0, %v7439
        %v7441 = vrot.slane %v7437, %v7440
        %v7442 = vadd.f32 %v7436, %v7441
        %v7443 = vadd.f32 %v7442, %v6329
        %v7444 = vsel %vm381, %v7443, 0.0
        %7445 = vadd.xlane.f32.xlu0 %v7444
        %v7446 = vpop.xlane.xlu0 %7445
        %v7447 = vmul.f32 %v7446, %v1412
        %v7448 = vsub.f32 %v7443, %v7447
        %v7449 = vmul.f32 %v7448, %v7448
        %v7450 = vsel %vm381, %v7449, 0.0
        %7451 = vadd.xlane.f32.xlu0 %v7450
        %v7452 = vpop.xlane.xlu0 %7451
        %v7453 = vmul.f32 %v7452, %v1412
        %v7454 = vadd.f32 %v7453, 1e-05
        %v7455 = vrsqrt.pop %v7454
        %v7456 = vmul.f32 %v7448, %v7455
        %v7457 = vld [vmem:[#allocation8 + $0x26] sm:$0x1]
        %v7458 = vlaneseq
        %v7459 = vshrl.u32 %v7458, 7
        %v7460 = vsub.s32 0, %v7459
        %v7461 = vrot.slane %v7457, %v7460
        %v7462 = vmul.f32 %v7456, %v7461
        %v7463 = vld [vmem:[#allocation8 + $0x27] sm:$0x1]
        %v7464 = vlaneseq
        %v7465 = vshrl.u32 %v7464, 7
        %v7466 = vsub.s32 0, %v7465
        %v7467 = vrot.slane %v7463, %v7466
        %v7468 = vadd.f32 %v7462, %v7467
        %v7469 = vld [vmem:[#allocation7 + $0x2d0] sm:$0xff]
        %v7470 = vld [vmem:[#allocation7 + $0x2d8] sm:$0xff]
        %v7471 = vld [vmem:[#allocation7 + $0x2e0] sm:$0xff]
        %v7472 = vld [vmem:[#allocation7 + $0x2e8] sm:$0xff]
        %v7473 = vld [vmem:[#allocation8 + $0x22] sm:$0x1]
        %v7474 = vlaneseq
        %v7475 = vshrl.u32 %v7474, 7
        %v7476 = vsub.s32 0, %v7475
        %v7477 = vrot.slane %v7473, %v7476
        %v7479 = vsel %vm381, %v7468, 0
        %7481 = vmatprep.subr.mxu0 0.0
        %7482 = vmatpush1.msra.mxu0 %v7469
        %7483 = vmatprep.subr.mxu0 0.0
        %7484 = vmatpush1.msra.mxu0 %v7470
        %7485 = vmatprep.subr.mxu0 0.0
        %7486 = vmatpush1.msra.mxu0 %v7471
        %7487 = vmatprep.subr.mxu0 0.0
        %7488 = vmatpush1.msra.mxu0 %v7472
        %7489 = vmatprep.subr.mxu0 0.0
        %7490 = vmatpush1.msra.mxu0 0.0
        %7491 = vmatprep.subr.mxu0 0.0
        %7492 = vmatpush1.msra.mxu0 0.0
        %7493 = vmatprep.subr.mxu0 0.0
        %7494 = vmatpush1.msra.mxu0 0.0
        %7495 = vmatprep.subr.mxu0 0.0
        %7496 = vmatpush1.msra.mxu0 0.0
        %7497 = vmatprep.subr.mxu0 0.0
        %7498 = vmatpush1.msra.mxu0 0.0
        %7499 = vmatprep.subr.mxu0 0.0
        %7500 = vmatpush1.msra.mxu0 0.0
        %7501 = vmatprep.subr.mxu0 0.0
        %7502 = vmatpush1.msra.mxu0 0.0
        %7503 = vmatprep.subr.mxu0 0.0
        %7504 = vmatpush1.msra.mxu0 0.0
        %7505 = vmatprep.subr.mxu0 0.0
        %7506 = vmatpush1.msra.mxu0 0.0
        %7507 = vmatprep.subr.mxu0 0.0
        %7508 = vmatpush1.msra.mxu0 0.0
        %7509 = vmatprep.subr.mxu0 0.0
        %7510 = vmatpush1.msra.mxu0 0.0
        %7511 = vmatprep.subr.mxu0 0.0
        %7512 = vmatpush1.msra.mxu0 0.0
        %7513 = vmatprep.subr.mxu0 0.0
        %7514 = vmatpush1.msra.mxu0 0.0
        %7515 = vmatprep.subr.mxu0 0.0
        %7516 = vmatpush1.msra.mxu0 0.0
        %7517 = vmatprep.subr.mxu0 0.0
        %7518 = vmatpush1.msra.mxu0 0.0
        %7519 = vmatprep.subr.mxu0 0.0
        %7520 = vmatpush1.msra.mxu0 0.0
        %7521 = vmatprep.subr.mxu0 0.0
        %7522 = vmatpush1.msra.mxu0 0.0
        %7523 = vmatprep.subr.mxu0 0.0
        %7524 = vmatpush1.msra.mxu0 0.0
        %7525 = vmatprep.subr.mxu0 0.0
        %7526 = vmatpush1.msra.mxu0 0.0
        %7527 = vmatprep.subr.mxu0 0.0
        %7528 = vmatpush1.msra.mxu0 0.0
        %7529 = vmatprep.subr.mxu0 0.0
        %7530 = vmatpush1.msra.mxu0 0.0
        %7531 = vmatprep.subr.mxu0 0.0
        %7532 = vmatpush1.msra.mxu0 0.0
        %7533 = vmatprep.subr.mxu0 0.0
        %7534 = vmatpush1.msra.mxu0 0.0
        %7535 = vmatprep.subr.mxu0 0.0
        %7536 = vmatpush1.msra.mxu0 0.0
        %7537 = vmatprep.subr.mxu0 0.0
        %7538 = vmatpush1.msra.mxu0 0.0
        %7539 = vmatprep.subr.mxu0 0.0
        %7540 = vmatpush1.msra.mxu0 0.0
        %7541 = vmatprep.subr.mxu0 0.0
        %7542 = vmatpush1.msra.mxu0 0.0
        %7543 = vmatprep.subr.mxu0 0.0
        %7544 = vmatpush1.msra.mxu0 0.0
        %7545 = vmatprep.mubr.f32.mxu0 0.0
        %7546 = vmatmul.mubr.f32.gmra.mrb[0].mxu0 %v7479
        %v7547 = vpop.f32.mrb[0].mxu0
        %v7548 = vadd.f32 %v7477, %v7547
        %v7549 = vpop.f32.mrb[0].mxu0
        %7550 = vdwg.mxu0
        %v7551 = vmax.f32 %v7548, 0.0
        %v7552 = vld [vmem:[#allocation7 + $0x2f0] sm:$0xff]
        %v7553 = vld [vmem:[#allocation7 + $0x2f8] sm:$0xff]
        %v7554 = vld [vmem:[#allocation7 + $0x300] sm:$0xff]
        %v7555 = vld [vmem:[#allocation7 + $0x308] sm:$0xff]
        %v7556 = vld [vmem:[#allocation7 + $0x310] sm:$0xff]
        %v7557 = vld [vmem:[#allocation7 + $0x318] sm:$0xff]
        %v7558 = vld [vmem:[#allocation7 + $0x320] sm:$0xff]
        %v7559 = vld [vmem:[#allocation7 + $0x328] sm:$0xff]
        %v7560 = vld [vmem:[#allocation8 + $0x23] sm:$0x1]
        %v7561 = vlaneseq
        %v7562 = vshrl.u32 %v7561, 7
        %v7563 = vsub.s32 0, %v7562
        %v7564 = vrot.slane %v7560, %v7563
        %v7566 = vsel %vm1531, %v7551, 0
        %7568 = vmatprep.subr.mxu0 0.0
        %7569 = vmatpush1.msra.mxu0 %v7552
        %7570 = vmatprep.subr.mxu0 0.0
        %7571 = vmatpush1.msra.mxu0 %v7553
        %7572 = vmatprep.subr.mxu0 0.0
        %7573 = vmatpush1.msra.mxu0 %v7554
        %7574 = vmatprep.subr.mxu0 0.0
        %7575 = vmatpush1.msra.mxu0 %v7555
        %7576 = vmatprep.subr.mxu0 0.0
        %7577 = vmatpush1.msra.mxu0 %v7556
        %7578 = vmatprep.subr.mxu0 0.0
        %7579 = vmatpush1.msra.mxu0 %v7557
        %7580 = vmatprep.subr.mxu0 0.0
        %7581 = vmatpush1.msra.mxu0 %v7558
        %7582 = vmatprep.subr.mxu0 0.0
        %7583 = vmatpush1.msra.mxu0 %v7559
        %7584 = vmatprep.subr.mxu0 0.0
        %7585 = vmatpush1.msra.mxu0 0.0
        %7586 = vmatprep.subr.mxu0 0.0
        %7587 = vmatpush1.msra.mxu0 0.0
        %7588 = vmatprep.subr.mxu0 0.0
        %7589 = vmatpush1.msra.mxu0 0.0
        %7590 = vmatprep.subr.mxu0 0.0
        %7591 = vmatpush1.msra.mxu0 0.0
        %7592 = vmatprep.subr.mxu0 0.0
        %7593 = vmatpush1.msra.mxu0 0.0
        %7594 = vmatprep.subr.mxu0 0.0
        %7595 = vmatpush1.msra.mxu0 0.0
        %7596 = vmatprep.subr.mxu0 0.0
        %7597 = vmatpush1.msra.mxu0 0.0
        %7598 = vmatprep.subr.mxu0 0.0
        %7599 = vmatpush1.msra.mxu0 0.0
        %7600 = vmatprep.subr.mxu0 0.0
        %7601 = vmatpush1.msra.mxu0 0.0
        %7602 = vmatprep.subr.mxu0 0.0
        %7603 = vmatpush1.msra.mxu0 0.0
        %7604 = vmatprep.subr.mxu0 0.0
        %7605 = vmatpush1.msra.mxu0 0.0
        %7606 = vmatprep.subr.mxu0 0.0
        %7607 = vmatpush1.msra.mxu0 0.0
        %7608 = vmatprep.subr.mxu0 0.0
        %7609 = vmatpush1.msra.mxu0 0.0
        %7610 = vmatprep.subr.mxu0 0.0
        %7611 = vmatpush1.msra.mxu0 0.0
        %7612 = vmatprep.subr.mxu0 0.0
        %7613 = vmatpush1.msra.mxu0 0.0
        %7614 = vmatprep.subr.mxu0 0.0
        %7615 = vmatpush1.msra.mxu0 0.0
        %7616 = vmatprep.subr.mxu0 0.0
        %7617 = vmatpush1.msra.mxu0 0.0
        %7618 = vmatprep.subr.mxu0 0.0
        %7619 = vmatpush1.msra.mxu0 0.0
        %7620 = vmatprep.subr.mxu0 0.0
        %7621 = vmatpush1.msra.mxu0 0.0
        %7622 = vmatprep.subr.mxu0 0.0
        %7623 = vmatpush1.msra.mxu0 0.0
        %7624 = vmatprep.subr.mxu0 0.0
        %7625 = vmatpush1.msra.mxu0 0.0
        %7626 = vmatprep.subr.mxu0 0.0
        %7627 = vmatpush1.msra.mxu0 0.0
        %7628 = vmatprep.subr.mxu0 0.0
        %7629 = vmatpush1.msra.mxu0 0.0
        %7630 = vmatprep.subr.mxu0 0.0
        %7631 = vmatpush1.msra.mxu0 0.0
        %7632 = vmatprep.mubr.f32.mxu0 0.0
        %7633 = vmatmul.mubr.f32.gmra.mrb[0].mxu0 %v7566
        %v7634 = vpop.f32.mrb[0].mxu0
        %v7635 = vadd.f32 %v7564, %v7634
        %v7636 = vpop.f32.mrb[0].mxu0
        %7637 = vdwg.mxu0
        %v7638 = vadd.f32 %v7635, %v7468
        %v7639 = vsel %vm381, %v7638, 0.0
        %7640 = vadd.xlane.f32.xlu0 %v7639
        %v7641 = vpop.xlane.xlu0 %7640
        %v7642 = vmul.f32 %v7641, %v1412
        %v7643 = vsub.f32 %v7638, %v7642
        %v7644 = vmul.f32 %v7643, %v7643
        %v7645 = vsel %vm381, %v7644, 0.0
        %7646 = vadd.xlane.f32.xlu0 %v7645
        %v7647 = vpop.xlane.xlu0 %7646
        %v7648 = vmul.f32 %v7647, %v1412
        %v7649 = vadd.f32 %v7648, 1e-05
        %v7650 = vrsqrt.pop %v7649
        %v7651 = vmul.f32 %v7643, %v7650
        %v7652 = vld [vmem:[#allocation8 + $0x28] sm:$0x1]
        %v7653 = vlaneseq
        %v7654 = vshrl.u32 %v7653, 7
        %v7655 = vsub.s32 0, %v7654
        %v7656 = vrot.slane %v7652, %v7655
        %v7657 = vmul.f32 %v7651, %v7656
        %v7658 = vld [vmem:[#allocation8 + $0x29] sm:$0x1]
        %v7659 = vlaneseq
        %v7660 = vshrl.u32 %v7659, 7
        %v7661 = vsub.s32 0, %v7660
        %v7662 = vrot.slane %v7658, %v7661
        %v7663 = vadd.f32 %v7657, %v7662
        %v7664 = vld [vmem:[#allocation7 + $0x10] sm:$0xff]
        %v7665 = vld [vmem:[#allocation7 + $0x18] sm:$0xff]
        %v7666 = vld [vmem:[#allocation7 + $0x20] sm:$0xff]
        %v7667 = vld [vmem:[#allocation7 + $0x28] sm:$0xff]
        %v7668 = vld [vmem:[#allocation8 + $0x1] sm:$0x1]
        %v7669 = vlaneseq
        %v7670 = vshrl.u32 %v7669, 7
        %v7671 = vsub.s32 0, %v7670
        %v7672 = vrot.slane %v7668, %v7671
        %v7674 = vsel %vm381, %v7663, 0
        %7676 = vmatprep.subr.mxu0 0.0
        %7677 = vmatpush1.msra.mxu0 %v7664
        %7678 = vmatprep.subr.mxu0 0.0
        %7679 = vmatpush1.msra.mxu0 %v7665
        %7680 = vmatprep.subr.mxu0 0.0
        %7681 = vmatpush1.msra.mxu0 %v7666
        %7682 = vmatprep.subr.mxu0 0.0
        %7683 = vmatpush1.msra.mxu0 %v7667
        %7684 = vmatprep.subr.mxu0 0.0
        %7685 = vmatpush1.msra.mxu0 0.0
        %7686 = vmatprep.subr.mxu0 0.0
        %7687 = vmatpush1.msra.mxu0 0.0
        %7688 = vmatprep.subr.mxu0 0.0
        %7689 = vmatpush1.msra.mxu0 0.0
        %7690 = vmatprep.subr.mxu0 0.0
        %7691 = vmatpush1.msra.mxu0 0.0
        %7692 = vmatprep.subr.mxu0 0.0
        %7693 = vmatpush1.msra.mxu0 0.0
        %7694 = vmatprep.subr.mxu0 0.0
        %7695 = vmatpush1.msra.mxu0 0.0
        %7696 = vmatprep.subr.mxu0 0.0
        %7697 = vmatpush1.msra.mxu0 0.0
        %7698 = vmatprep.subr.mxu0 0.0
        %7699 = vmatpush1.msra.mxu0 0.0
        %7700 = vmatprep.subr.mxu0 0.0
        %7701 = vmatpush1.msra.mxu0 0.0
        %7702 = vmatprep.subr.mxu0 0.0
        %7703 = vmatpush1.msra.mxu0 0.0
        %7704 = vmatprep.subr.mxu0 0.0
        %7705 = vmatpush1.msra.mxu0 0.0
        %7706 = vmatprep.subr.mxu0 0.0
        %7707 = vmatpush1.msra.mxu0 0.0
        %7708 = vmatprep.subr.mxu0 0.0
        %7709 = vmatpush1.msra.mxu0 0.0
        %7710 = vmatprep.subr.mxu0 0.0
        %7711 = vmatpush1.msra.mxu0 0.0
        %7712 = vmatprep.subr.mxu0 0.0
        %7713 = vmatpush1.msra.mxu0 0.0
        %7714 = vmatprep.subr.mxu0 0.0
        %7715 = vmatpush1.msra.mxu0 0.0
        %7716 = vmatprep.subr.mxu0 0.0
        %7717 = vmatpush1.msra.mxu0 0.0
        %7718 = vmatprep.subr.mxu0 0.0
        %7719 = vmatpush1.msra.mxu0 0.0
        %7720 = vmatprep.subr.mxu0 0.0
        %7721 = vmatpush1.msra.mxu0 0.0
        %7722 = vmatprep.subr.mxu0 0.0
        %7723 = vmatpush1.msra.mxu0 0.0
        %7724 = vmatprep.subr.mxu0 0.0
        %7725 = vmatpush1.msra.mxu0 0.0
        %7726 = vmatprep.subr.mxu0 0.0
        %7727 = vmatpush1.msra.mxu0 0.0
        %7728 = vmatprep.subr.mxu0 0.0
        %7729 = vmatpush1.msra.mxu0 0.0
        %7730 = vmatprep.subr.mxu0 0.0
        %7731 = vmatpush1.msra.mxu0 0.0
        %7732 = vmatprep.subr.mxu0 0.0
        %7733 = vmatpush1.msra.mxu0 0.0
        %7734 = vmatprep.subr.mxu0 0.0
        %7735 = vmatpush1.msra.mxu0 0.0
        %7736 = vmatprep.subr.mxu0 0.0
        %7737 = vmatpush1.msra.mxu0 0.0
        %7738 = vmatprep.subr.mxu0 0.0
        %7739 = vmatpush1.msra.mxu0 0.0
        %7740 = vmatprep.mubr.f32.mxu0 0.0
        %7741 = vmatmul.mubr.f32.gmra.mrb[0].mxu0 %v7674
        %v7742 = vpop.f32.mrb[0].mxu0
        %v7743 = vadd.f32 %v7672, %v7742
        %v7744 = vpop.f32.mrb[0].mxu0
        %7745 = vdwg.mxu0
        %v7746 = vmax.f32 %v7743, 0.0
        %7747 = vst [vmem:[%s275] sm:$0xff] %v7746
        %s7748 = sand.u32 %s127, 1
        %s7749 = scalar_lea.sflag [#allocation4], %s7748
        %s7750 = sand.u32 %s127, 1
        %s7751 = smul.addr %s7750, 8
        %s7752 = scalar_lea.vmem [#allocation10], %s7751
        // Predicated region
        $region53: #{tpu_custom_call.1} parent=35 // pred_check
          %p7753 = pneg %p137
        $region54: #{tpu_custom_call.1} parent=35 // pred_check_branch
          %7755 = sbr.rel (%p7753) target = $region56
        $region55: #{tpu_custom_call.1} parent=35 // pred_region
          %s7757 = ssub.s32 128, 128
          %7758 = vsyncadd %s7749, %s7757
          %s7759 = smul.addr %s25, 128
          %s7760 = scalar_lea.hbm %s4, %s7759
          %s7762 = sshll.u32 %s7752, 4
          %s7763 = int_to_ptr.vmem [resolvable:$true] %s7762
          %7765 = dma.vmem_to_hbm [thread:$0]  %s7763, 128, %s7760, %s7749
        $region56: #{tpu_custom_call.1} parent=35 // pred_fallthru
          _
      $region36: #{tpu_custom_call.1} parent=5 // pred_fallthru
        _
      %p7766 = scmp.le.s32.totalorder 2, %s20
      // Predicated region
      $region57: #{tpu_custom_call.1} parent=5 // pred_check
        %p7767 = pneg %p7766
      $region58: #{tpu_custom_call.1} parent=5 // pred_check_branch
        %7769 = sbr.rel (%p7767) target = $region60
      $region59: #{tpu_custom_call.1} parent=5 // pred_region
        %s7770 = ssub.s32 %s20, 2
        // Predicated region
        $region61: #{tpu_custom_call.1} parent=59 // pred_check
          %p7771 = pneg %p143
        $region62: #{tpu_custom_call.1} parent=59 // pred_check_branch
          %7773 = sbr.rel (%p7771) target = $region64
        $region63: #{tpu_custom_call.1} parent=59 // pred_region
          %s7774 = sand.u32 %s128, 1
          %s7775 = scalar_lea.sflag [#allocation4], %s7774
          %s7776 = sand.u32 %s128, 1
          %s7777 = smul.addr %s7776, 8
          %s7778 = scalar_lea.vmem [#allocation10], %s7777
          %7779 = dma.done %s7775, 128
        $region64: #{tpu_custom_call.1} parent=59 // pred_fallthru
          _
      $region60: #{tpu_custom_call.1} parent=5 // pred_fallthru
        _
    $region6: #{tpu_custom_call.1} parent=1 // loop_footer
      %s24 = sadd.s32 1, %s20
    $region7: #{tpu_custom_call.1} parent=1 // loop_footer_branch
      %19 = sbr.rel target = $region3
    $region8: #{tpu_custom_call.1} parent=1 // loop_exit
      _
    %7780 = vsyncpa [#allocation3], 1
    %s7781 = scalar_lea.sflag [#allocation3], 1
    %7782 = vsyncpa %s7781, 1
    %7783 = vsyncpa [#allocation6], 1
    %s7784 = scalar_lea.sflag [#allocation6], 1
    %7785 = vsyncpa %s7784, 1
    %7786 = vsyncpa [#allocation9], 1
    %7787 = vsyncpa [#allocation4], 1
    %s7788 = scalar_lea.sflag [#allocation4], 1
    %7789 = vsyncpa %s7788, 1

</llo_original>
